<compile_context>
chip_gen: v5e
topology: v5e:2x2
jax: 0.10.0
libtpu: 0.0.40
codegen_flags: <defaults>
</compile_context>

<pallas_src>
import functools
import numpy as np
import jax
import jax.numpy as jnp
from jax import lax
from jax.experimental import pallas as pl
from jax.experimental.pallas import tpu as pltpu

# ---------------------------------------------------------------------------
# Geometry forced by the module: Conv(8->64,5) -> pool2 -> Conv(64->128,3) ->
# pool2 -> Conv(128->256,3) -> flatten(256) -> fc(256->1024) -> fc(1024->1).
# A 20x20 input is the unique spatial size that makes conv3's output 1x1 so
# that the flatten produces exactly the 256 features fc1 expects.
H1 = W1 = 20
C_IN = 8
K1, C1 = 5, 64
C1P = 128                       # conv1 cout zero-padded 64 -> 128 (lane density)
K2, C2 = 3, 128
K3, C3 = 3, 256
HC1 = WC1 = H1 - K1 + 1         # 16   conv1 output spatial
HP1 = WP1 = HC1 // 2            # 8    pool1 output spatial
HC2 = WC2 = HP1 - K2 + 1        # 6    conv2 output spatial
HP2 = WP2 = HC2 // 2            # 3    pool2 output spatial
F_HID = 1024

NB = 8                          # samples per grid step (batch block)
R1 = HC1 * WC1                  # 256  im2col / conv1 rows per sample
RP1 = HP1 * WP1                 # 64   pool1 rows per sample
LC2 = RP1 - (K2 - 1) * WP1 - (K2 - 1)   # 46 conv2 accumulator rows per sample
NP2 = HP2 * WP2                 # 9    pool2 positions per sample

# Static geometry assertions (review correctness concern: the "unused rows"
# scheme in conv2 must be checked, not assumed).
assert (HC1, HP1, HC2, HP2) == (16, 8, 6, 3)
assert K3 == HP2                                # conv3 output is exactly 1x1
# Deepest conv2-acc row touched by pool2 is 2*(HP2-1)*WP1 + WP1 + 1 + 2*(WP2-1)
assert 2 * (HP2 - 1) * WP1 + WP1 + 1 + 2 * (WP2 - 1) == 45 < LC2
assert R1 % 256 == 0 and RP1 == 64 and C1P == C2 == 128


# ------------------------------ fused kernel ------------------------------- #

def _fused_kernel(xp_ref, w1_ref, b1_ref, w2_ref, b2_ref, wt_ref, bt_ref,
                  o_ref, hbuf_ref, p1_ref, part_ref):
    """One batch block (NB samples); all intermediates live in VMEM/registers."""
    # Hoisted loop invariants (JAX does not CSE broadcast_in_dim, so build the
    # bias broadcasts exactly once).
    b1b = jnp.broadcast_to(b1_ref[...], (RP1 // 2, C1P))     # (32, 128)
    b2b = jnp.broadcast_to(b2_ref[...], (NP2, C2))           # (9, 128)
    wt = wt_ref[...]                                         # (9, 128) folded tail

    for s in range(NB):
        # ---- conv1: single im2col matmul per 128-row chunk, then
        #      bias + 2x2 max-pool + ReLU with the result register resident. --
        for half in range(2):
            rows = xp_ref[pl.ds(s * R1 + half * (R1 // 2), R1 // 2), :]  # (128,200)
            c1 = jnp.dot(rows, w1_ref[...],
                         preferred_element_type=jnp.float32)             # (128,128)
            # Rows are (h*16 + w); combine h-pairs (pure vreg regrouping).
            g = c1.reshape(4, 2, WC1, C1P)                               # (4,2,16,128)
            hmax = jnp.maximum(g[:, 0], g[:, 1]).reshape(R1 // 4, C1P)   # (64,128)
            # Single slab store + two stride-2 reads does the w-pair combine.
            hbuf_ref[...] = hmax
            even = hbuf_ref[pl.ds(0, R1 // 8, stride=2), :]              # (32,128)
            odd = hbuf_ref[pl.ds(1, R1 // 8, stride=2), :]               # (32,128)
            pooled = jnp.maximum(jnp.maximum(even, odd) + b1b, 0.0)
            p1_ref[pl.ds(half * (RP1 // 2), RP1 // 2), :] = pooled

        # ---- conv2: 3 tap-merged (K = 3*128 = 384) matmuls, register
        #      accumulation, one store of the 46 valid-ish rows. -------------
        acc2 = None
        for i in range(K2):
            op = jnp.concatenate(
                [p1_ref[pl.ds(i * WP1 + j, LC2), :] for j in range(K2)],
                axis=1)                                                  # (46,384)
            contrib = jnp.dot(op, w2_ref[i],
                              preferred_element_type=jnp.float32)        # (46,128)
            acc2 = contrib if acc2 is None else acc2 + contrib
        hbuf_ref[pl.ds(0, LC2), :] = acc2

        # ---- 2x2 max-pool + bias + ReLU on the 6x6 conv2 output ------------
        # (rows with ow in {6,7} in the 46-row acc are never read, see asserts)
        pieces = []
        for a in range(HP2):
            r0 = 2 * a * WP1
            q00 = hbuf_ref[pl.ds(r0, WP2, stride=2), :]
            q01 = hbuf_ref[pl.ds(r0 + 1, WP2, stride=2), :]
            q10 = hbuf_ref[pl.ds(r0 + WP1, WP2, stride=2), :]
            q11 = hbuf_ref[pl.ds(r0 + WP1 + 1, WP2, stride=2), :]
            pieces.append(jnp.maximum(jnp.maximum(q00, q01),
                                      jnp.maximum(q10, q11)))            # (3,128)
        p2 = jnp.maximum(jnp.concatenate(pieces, axis=0) + b2b, 0.0)     # (9,128)

        # ---- folded conv3 + fc1 + fc2 tail: per-sample partial (1,128) -----
        part_ref[pl.ds(s, 1), :] = jnp.sum(p2 * wt, axis=0, keepdims=True)

    # Lane-reduce the per-sample partials and add the folded bias.
    o_ref[...] = (jnp.sum(part_ref[...], axis=1, keepdims=True)
                  + bt_ref[...]).astype(o_ref.dtype)


# ------------------------------ host wrapper ------------------------------- #

def pack_params(p):
    """Repack into the kernel layout and fold the affine tail.

    conv3 -> flatten -> fc1 -> fc2 contains no activation in the module, so it
    is exactly an affine map and is pre-composed here (full f32 precision)
    into a (9, 128) weight + scalar bias consumed per sample in-kernel.
    """
    hp = jax.lax.Precision.HIGHEST

    w1 = p["w1"].reshape(K1 * K1 * C_IN, C1)                  # (200, 64), (kh,kw,cin)-major
    w1 = jnp.pad(w1, ((0, 0), (0, C1P - C1)))                 # cout 64 -> 128
    b1 = jnp.pad(p["b1"], (0, C1P - C1)).reshape(1, C1P)

    w2 = jnp.pad(p["w2"], ((0, 0), (0, 0), (0, C1P - C1), (0, 0)))  # cin 64 -> 128
    w2 = w2.reshape(K2, K2 * C1P, C2)                         # (3, 384, 128) kw-merged
    b2 = p["b2"].reshape(1, C2)

    w3_flat = p["w3"].reshape(K3 * K3 * C2, C3)               # (1152, 256)
    wt = jnp.dot(jnp.dot(w3_flat, p["wf1"], precision=hp), p["wf2"], precision=hp)
    wt = wt.reshape(NP2, C2)                                  # (9, 128)
    bt = (jnp.dot(jnp.dot(p["b3"], p["wf1"], precision=hp), p["wf2"], precision=hp)
          + jnp.dot(p["bf1"], p["wf2"], precision=hp) + p["bf2"]).reshape(1, 1)

    return {"w1": w1, "b1": b1, "w2": w2, "b2": b2, "wt": wt, "bt": bt}


def identicle_forward(x_nchw, pk):
    n = x_nchw.shape[0]
    assert x_nchw.shape[1:] == (C_IN, H1, W1), x_nchw.shape

    # Pad batch to a multiple of the block size.
    n_pad = ((n + NB - 1) // NB) * NB
    if n_pad != n:
        x_nchw = jnp.pad(x_nchw, ((0, n_pad - n), (0, 0), (0, 0), (0, 0)))

    # Host-side layout prep: NCHW -> NHWC, then im2col for conv1 with lane
    # order (kh, kw, cin) — matches w1's (kh*kw*cin, cout) packing.
    xt = jnp.transpose(x_nchw, (0, 2, 3, 1))                  # (n_pad, 20, 20, 8)
    patches = jnp.concatenate(
        [xt[:, i:i + HC1, j:j + WC1, :] for i in range(K1) for j in range(K1)],
        axis=-1)                                              # (n_pad, 16, 16, 200)
    xp = patches.reshape(n_pad * R1, K1 * K1 * C_IN)

    out = pl.pallas_call(
        _fused_kernel,
        out_shape=jax.ShapeDtypeStruct((n_pad, 1), jnp.float32),
        grid=(n_pad // NB,),
        in_specs=[
            pl.BlockSpec((NB * R1, K1 * K1 * C_IN), lambda b: (b, 0)),  # patches
            pl.BlockSpec((K1 * K1 * C_IN, C1P), lambda b: (0, 0)),      # w1
            pl.BlockSpec((1, C1P), lambda b: (0, 0)),                   # b1
            pl.BlockSpec((K2, K2 * C1P, C2), lambda b: (0, 0, 0)),      # w2 merged
            pl.BlockSpec((1, C2), lambda b: (0, 0)),                    # b2
            pl.BlockSpec((NP2, C2), lambda b: (0, 0)),                  # folded tail W
            pl.BlockSpec((1, 1), lambda b: (0, 0)),                     # folded tail b
        ],
        out_specs=pl.BlockSpec((NB, 1), lambda b: (b, 0)),
        scratch_shapes=[
            pltpu.VMEM((R1 // 4, C1P), jnp.float32),   # (64,128) pool1 / conv2 staging
            pltpu.VMEM((RP1, C1P), jnp.float32),       # (64,128) pool1 activations
            pltpu.VMEM((NB, C2), jnp.float32),         # (8,128)  per-sample tail partials
        ],
        compiler_params=pltpu.CompilerParams(
            dimension_semantics=("parallel",)),
    )(xp, pk["w1"], pk["b1"], pk["w2"], pk["b2"], pk["wt"], pk["bt"])

    return out[:n]


# ----------------------------- parameter init ------------------------------ #

def init_params(key):
    ks = jax.random.split(key, 10)

    def u(k, shape, fan_in):
        bound = 1.0 / float(np.sqrt(fan_in))
        return jax.random.uniform(k, shape, jnp.float32, -bound, bound)

    return {
        "w1": u(ks[0], (5, 5, 8, 64), 8 * 25),
        "b1": u(ks[1], (64,), 8 * 25),
        "w2": u(ks[2], (3, 3, 64, 128), 64 * 9),
        "b2": u(ks[3], (128,), 64 * 9),
        "w3": u(ks[4], (3, 3, 128, 256), 128 * 9),
        "b3": u(ks[5], (256,), 128 * 9),
        "wf1": u(ks[6], (256, 1024), 256),
        "bf1": u(ks[7], (1024,), 256),
        "wf2": u(ks[8], (1024, 1), 1024),
        "bf2": u(ks[9], (1,), 1024),
    }


# --------------------------- pure-JAX reference ----------------------------- #

def reference_forward(x_nchw, p):
    """Unfused reference mirroring the PyTorch module (validates the fold)."""
    hp = jax.lax.Precision.HIGHEST
    x = jnp.transpose(x_nchw, (0, 2, 3, 1))

    def conv(x, w, b):
        y = lax.conv_general_dilated(
            x, w, (1, 1), "VALID",
            dimension_numbers=("NHWC", "HWIO", "NHWC"), precision=hp)
        return y + b

    def pool_relu(x):
        y = lax.reduce_window(x, -jnp.inf, lax.max,
                              (1, 2, 2, 1), (1, 2, 2, 1), "VALID")
        return jnp.maximum(y, 0.0)

    x = pool_relu(conv(x, p["w1"], p["b1"]))
    x = pool_relu(conv(x, p["w2"], p["b2"]))
    x = conv(x, p["w3"], p["b3"])
    x = x.reshape(x.shape[0], -1)
    x = jnp.dot(x, p["wf1"], precision=hp) + p["bf1"]      # NOTE: no activation
    x = jnp.dot(x, p["wf2"], precision=hp) + p["bf2"]      # after fc1 in the module
    return x


if __name__ == "__main__":
    key = jax.random.PRNGKey(0)
    kx, kp = jax.random.split(key)
    # Batch 2; spatial 20x20 is forced by the module: 20-5+1=16 -> pool 8 ->
    # 3x3 conv 6 -> pool 3 -> 3x3 conv 1, so flatten yields exactly 256 feats.
    x = jax.random.normal(kx, (2, C_IN, H1, W1), jnp.float32)   # NCHW like PyTorch
    params = init_params(kp)
    packed = pack_params(params)

    fwd = jax.jit(identicle_forward)
    out = jax.block_until_ready(fwd(x, packed))
    assert out.shape == (2, 1)

    ref = reference_forward(x, params)
    np.testing.assert_allclose(np.asarray(out), np.asarray(ref),
                               rtol=2e-3, atol=2e-3)

    print("KERNEL_OK")
</pallas_src>

<mosaic_0001>
module attributes {stable_mosaic.version = 11 : i64} {
  func.func @_fused_kernel(%arg0: i32, %arg1: memref<2048x200xf32, #tpu.memory_space<vmem>>, %arg2: memref<200x128xf32, #tpu.memory_space<vmem>>, %arg3: memref<1x128xf32, #tpu.memory_space<vmem>>, %arg4: memref<3x384x128xf32, #tpu.memory_space<vmem>>, %arg5: memref<1x128xf32, #tpu.memory_space<vmem>>, %arg6: memref<9x128xf32, #tpu.memory_space<vmem>>, %arg7: memref<1x1xf32, #tpu.memory_space<vmem>>, %arg8: memref<8x1xf32, #tpu.memory_space<vmem>>, %arg9: memref<64x128xf32, #tpu.memory_space<vmem>>, %arg10: memref<64x128xf32, #tpu.memory_space<vmem>>, %arg11: memref<8x128xf32, #tpu.memory_space<vmem>>) attributes {dimension_semantics = [#tpu.dimension_semantics<parallel>], iteration_bounds = array<i64: 1>, scalar_prefetch = 0 : i64, scratch_operands = 3 : i64, tpu.core_type = #tpu.core_type<tc>, window_params = [{transform_indices = @transform_0, window_bounds = array<i64: 2048, 200>}, {pipeline_mode = #tpu.pipeline_mode<synchronous>, transform_indices = @transform_1, window_bounds = array<i64: 200, 128>}, {pipeline_mode = #tpu.pipeline_mode<synchronous>, transform_indices = @transform_2, window_bounds = array<i64: 1, 128>}, {pipeline_mode = #tpu.pipeline_mode<synchronous>, transform_indices = @transform_3, window_bounds = array<i64: 3, 384, 128>}, {pipeline_mode = #tpu.pipeline_mode<synchronous>, transform_indices = @transform_4, window_bounds = array<i64: 1, 128>}, {pipeline_mode = #tpu.pipeline_mode<synchronous>, transform_indices = @transform_5, window_bounds = array<i64: 9, 128>}, {pipeline_mode = #tpu.pipeline_mode<synchronous>, transform_indices = @transform_6, window_bounds = array<i64: 1, 1>}, {transform_indices = @transform_7, window_bounds = array<i64: 8, 1>}]} {
    %c0 = arith.constant 0 : index
    %c0_0 = arith.constant 0 : index
    %0 = vector.load %arg3[%c0, %c0_0] : memref<1x128xf32, #tpu.memory_space<vmem>>, vector<1x128xf32>
    %1 = vector.shape_cast %0 : vector<1x128xf32> to vector<1x128xf32>
    %2 = vector.broadcast %1 : vector<1x128xf32> to vector<32x128xf32>
    %c0_1 = arith.constant 0 : index
    %c0_2 = arith.constant 0 : index
    %3 = vector.load %arg5[%c0_1, %c0_2] : memref<1x128xf32, #tpu.memory_space<vmem>>, vector<1x128xf32>
    %4 = vector.shape_cast %3 : vector<1x128xf32> to vector<1x128xf32>
    %5 = vector.broadcast %4 : vector<1x128xf32> to vector<9x128xf32>
    %c0_3 = arith.constant 0 : index
    %c0_4 = arith.constant 0 : index
    %6 = vector.load %arg6[%c0_3, %c0_4] : memref<9x128xf32, #tpu.memory_space<vmem>>, vector<9x128xf32>
    %c0_5 = arith.constant 0 : index
    %c0_6 = arith.constant 0 : index
    %7 = vector.load %arg1[%c0_5, %c0_6] : memref<2048x200xf32, #tpu.memory_space<vmem>>, vector<128x200xf32>
    %c0_7 = arith.constant 0 : index
    %c0_8 = arith.constant 0 : index
    %8 = vector.load %arg2[%c0_7, %c0_8] : memref<200x128xf32, #tpu.memory_space<vmem>>, vector<200x128xf32>
    %cst = arith.constant dense<0.000000e+00> : vector<128x128xf32>
    %9 = tpu.matmul %7, %8, %cst {dimension_numbers = #tpu.dot_dimension_numbers<[1], [0], [0], [1], [0, 0, 1, 1], [], []>} : vector<128x200xf32>, vector<200x128xf32>, vector<128x128xf32> -> vector<128x128xf32>
    %10 = vector.shape_cast %9 : vector<128x128xf32> to vector<4x2x16x128xf32>
    %11 = vector.extract_strided_slice %10 {offsets = [0, 0, 0, 0], sizes = [4, 1, 16, 128], strides = [1, 1, 1, 1]} : vector<4x2x16x128xf32> to vector<4x1x16x128xf32>
    %12 = vector.shape_cast %11 : vector<4x1x16x128xf32> to vector<4x16x128xf32>
    %13 = vector.extract_strided_slice %10 {offsets = [0, 1, 0, 0], sizes = [4, 1, 16, 128], strides = [1, 1, 1, 1]} : vector<4x2x16x128xf32> to vector<4x1x16x128xf32>
    %14 = vector.shape_cast %13 : vector<4x1x16x128xf32> to vector<4x16x128xf32>
    %15 = arith.maximumf %12, %14 : vector<4x16x128xf32>
    %16 = vector.shape_cast %15 : vector<4x16x128xf32> to vector<64x128xf32>
    %c0_9 = arith.constant 0 : index
    %c0_10 = arith.constant 0 : index
    %17 = vector.load %arg9[%c0_9, %c0_10] : memref<64x128xf32, #tpu.memory_space<vmem>>, vector<64x128xf32>
    tpu.vector_store %arg9[%c0_9, %c0_10], %16 {strides = array<i32>} : memref<64x128xf32, #tpu.memory_space<vmem>>, vector<64x128xf32>,
    %c0_11 = arith.constant 0 : index
    %c0_12 = arith.constant 0 : index
    %18 = tpu.strided_load %arg9[%c0_11, %c0_12] {strides = array<i32: 2, 1>} : memref<64x128xf32, #tpu.memory_space<vmem>>, vector<32x128xf32>
    %c1 = arith.constant 1 : index
    %c0_13 = arith.constant 0 : index
    %19 = tpu.strided_load %arg9[%c1, %c0_13] {strides = array<i32: 2, 1>} : memref<64x128xf32, #tpu.memory_space<vmem>>, vector<32x128xf32>
    %20 = arith.maximumf %18, %19 : vector<32x128xf32>
    %21 = arith.addf %20, %2 : vector<32x128xf32>
    %cst_14 = arith.constant 0.000000e+00 : f32
    %22 = vector.broadcast %cst_14 : f32 to vector<32x128xf32>
    %23 = arith.maximumf %21, %22 : vector<32x128xf32>
    %c0_15 = arith.constant 0 : index
    %c0_16 = arith.constant 0 : index
    %24 = vector.load %arg10[%c0_15, %c0_16] : memref<64x128xf32, #tpu.memory_space<vmem>>, vector<32x128xf32>
    tpu.vector_store %arg10[%c0_15, %c0_16], %23 {strides = array<i32>} : memref<64x128xf32, #tpu.memory_space<vmem>>, vector<32x128xf32>,
    %c128 = arith.constant 128 : index
    %c0_17 = arith.constant 0 : index
    %25 = vector.load %arg1[%c128, %c0_17] : memref<2048x200xf32, #tpu.memory_space<vmem>>, vector<128x200xf32>
    %c0_18 = arith.constant 0 : index
    %c0_19 = arith.constant 0 : index
    %26 = vector.load %arg2[%c0_18, %c0_19] : memref<200x128xf32, #tpu.memory_space<vmem>>, vector<200x128xf32>
    %cst_20 = arith.constant dense<0.000000e+00> : vector<128x128xf32>
    %27 = tpu.matmul %25, %26, %cst_20 {dimension_numbers = #tpu.dot_dimension_numbers<[1], [0], [0], [1], [0, 0, 1, 1], [], []>} : vector<128x200xf32>, vector<200x128xf32>, vector<128x128xf32> -> vector<128x128xf32>
    %28 = vector.shape_cast %27 : vector<128x128xf32> to vector<4x2x16x128xf32>
    %29 = vector.extract_strided_slice %28 {offsets = [0, 0, 0, 0], sizes = [4, 1, 16, 128], strides = [1, 1, 1, 1]} : vector<4x2x16x128xf32> to vector<4x1x16x128xf32>
    %30 = vector.shape_cast %29 : vector<4x1x16x128xf32> to vector<4x16x128xf32>
    %31 = vector.extract_strided_slice %28 {offsets = [0, 1, 0, 0], sizes = [4, 1, 16, 128], strides = [1, 1, 1, 1]} : vector<4x2x16x128xf32> to vector<4x1x16x128xf32>
    %32 = vector.shape_cast %31 : vector<4x1x16x128xf32> to vector<4x16x128xf32>
    %33 = arith.maximumf %30, %32 : vector<4x16x128xf32>
    %34 = vector.shape_cast %33 : vector<4x16x128xf32> to vector<64x128xf32>
    %c0_21 = arith.constant 0 : index
    %c0_22 = arith.constant 0 : index
    %35 = vector.load %arg9[%c0_21, %c0_22] : memref<64x128xf32, #tpu.memory_space<vmem>>, vector<64x128xf32>
    tpu.vector_store %arg9[%c0_21, %c0_22], %34 {strides = array<i32>} : memref<64x128xf32, #tpu.memory_space<vmem>>, vector<64x128xf32>,
    %c0_23 = arith.constant 0 : index
    %c0_24 = arith.constant 0 : index
    %36 = tpu.strided_load %arg9[%c0_23, %c0_24] {strides = array<i32: 2, 1>} : memref<64x128xf32, #tpu.memory_space<vmem>>, vector<32x128xf32>
    %c1_25 = arith.constant 1 : index
    %c0_26 = arith.constant 0 : index
    %37 = tpu.strided_load %arg9[%c1_25, %c0_26] {strides = array<i32: 2, 1>} : memref<64x128xf32, #tpu.memory_space<vmem>>, vector<32x128xf32>
    %38 = arith.maximumf %36, %37 : vector<32x128xf32>
    %39 = arith.addf %38, %2 : vector<32x128xf32>
    %cst_27 = arith.constant 0.000000e+00 : f32
    %40 = vector.broadcast %cst_27 : f32 to vector<32x128xf32>
    %41 = arith.maximumf %39, %40 : vector<32x128xf32>
    %c32 = arith.constant 32 : index
    %c0_28 = arith.constant 0 : index
    %42 = vector.load %arg10[%c32, %c0_28] : memref<64x128xf32, #tpu.memory_space<vmem>>, vector<32x128xf32>
    tpu.vector_store %arg10[%c32, %c0_28], %41 {strides = array<i32>} : memref<64x128xf32, #tpu.memory_space<vmem>>, vector<32x128xf32>,
    %c0_29 = arith.constant 0 : index
    %c0_30 = arith.constant 0 : index
    %43 = vector.load %arg10[%c0_29, %c0_30] : memref<64x128xf32, #tpu.memory_space<vmem>>, vector<46x128xf32>
    %c1_31 = arith.constant 1 : index
    %c0_32 = arith.constant 0 : index
    %44 = vector.load %arg10[%c1_31, %c0_32] : memref<64x128xf32, #tpu.memory_space<vmem>>, vector<46x128xf32>
    %c2 = arith.constant 2 : index
    %c0_33 = arith.constant 0 : index
    %45 = vector.load %arg10[%c2, %c0_33] : memref<64x128xf32, #tpu.memory_space<vmem>>, vector<46x128xf32>
    %46 = tpu.concatenate %43, %44, %45 in 1 : vector<46x128xf32>, vector<46x128xf32>, vector<46x128xf32> -> vector<46x384xf32>
    %c0_34 = arith.constant 0 : index
    %c0_35 = arith.constant 0 : index
    %c0_36 = arith.constant 0 : index
    %47 = vector.load %arg4[%c0_34, %c0_35, %c0_36] : memref<3x384x128xf32, #tpu.memory_space<vmem>>, vector<1x384x128xf32>
    %48 = vector.shape_cast %47 : vector<1x384x128xf32> to vector<384x128xf32>
    %cst_37 = arith.constant dense<0.000000e+00> : vector<46x128xf32>
    %49 = tpu.matmul %46, %48, %cst_37 {dimension_numbers = #tpu.dot_dimension_numbers<[1], [0], [0], [1], [0, 0, 1, 1], [], []>} : vector<46x384xf32>, vector<384x128xf32>, vector<46x128xf32> -> vector<46x128xf32>
    %c8 = arith.constant 8 : index
    %c0_38 = arith.constant 0 : index
    %50 = vector.load %arg10[%c8, %c0_38] : memref<64x128xf32, #tpu.memory_space<vmem>>, vector<46x128xf32>
    %c9 = arith.constant 9 : index
    %c0_39 = arith.constant 0 : index
    %51 = vector.load %arg10[%c9, %c0_39] : memref<64x128xf32, #tpu.memory_space<vmem>>, vector<46x128xf32>
    %c10 = arith.constant 10 : index
    %c0_40 = arith.constant 0 : index
    %52 = vector.load %arg10[%c10, %c0_40] : memref<64x128xf32, #tpu.memory_space<vmem>>, vector<46x128xf32>
    %53 = tpu.concatenate %50, %51, %52 in 1 : vector<46x128xf32>, vector<46x128xf32>, vector<46x128xf32> -> vector<46x384xf32>
    %c1_41 = arith.constant 1 : index
    %c0_42 = arith.constant 0 : index
    %c0_43 = arith.constant 0 : index
    %54 = vector.load %arg4[%c1_41, %c0_42, %c0_43] : memref<3x384x128xf32, #tpu.memory_space<vmem>>, vector<1x384x128xf32>
    %55 = vector.shape_cast %54 : vector<1x384x128xf32> to vector<384x128xf32>
    %cst_44 = arith.constant dense<0.000000e+00> : vector<46x128xf32>
    %56 = tpu.matmul %53, %55, %cst_44 {dimension_numbers = #tpu.dot_dimension_numbers<[1], [0], [0], [1], [0, 0, 1, 1], [], []>} : vector<46x384xf32>, vector<384x128xf32>, vector<46x128xf32> -> vector<46x128xf32>
    %57 = arith.addf %49, %56 : vector<46x128xf32>
    %c16 = arith.constant 16 : index
    %c0_45 = arith.constant 0 : index
    %58 = vector.load %arg10[%c16, %c0_45] : memref<64x128xf32, #tpu.memory_space<vmem>>, vector<46x128xf32>
    %c17 = arith.constant 17 : index
    %c0_46 = arith.constant 0 : index
    %59 = vector.load %arg10[%c17, %c0_46] : memref<64x128xf32, #tpu.memory_space<vmem>>, vector<46x128xf32>
    %c18 = arith.constant 18 : index
    %c0_47 = arith.constant 0 : index
    %60 = vector.load %arg10[%c18, %c0_47] : memref<64x128xf32, #tpu.memory_space<vmem>>, vector<46x128xf32>
    %61 = tpu.concatenate %58, %59, %60 in 1 : vector<46x128xf32>, vector<46x128xf32>, vector<46x128xf32> -> vector<46x384xf32>
    %c2_48 = arith.constant 2 : index
    %c0_49 = arith.constant 0 : index
    %c0_50 = arith.constant 0 : index
    %62 = vector.load %arg4[%c2_48, %c0_49, %c0_50] : memref<3x384x128xf32, #tpu.memory_space<vmem>>, vector<1x384x128xf32>
    %63 = vector.shape_cast %62 : vector<1x384x128xf32> to vector<384x128xf32>
    %cst_51 = arith.constant dense<0.000000e+00> : vector<46x128xf32>
    %64 = tpu.matmul %61, %63, %cst_51 {dimension_numbers = #tpu.dot_dimension_numbers<[1], [0], [0], [1], [0, 0, 1, 1], [], []>} : vector<46x384xf32>, vector<384x128xf32>, vector<46x128xf32> -> vector<46x128xf32>
    %65 = arith.addf %57, %64 : vector<46x128xf32>
    %c0_52 = arith.constant 0 : index
    %c0_53 = arith.constant 0 : index
    %66 = vector.load %arg9[%c0_52, %c0_53] : memref<64x128xf32, #tpu.memory_space<vmem>>, vector<46x128xf32>
    tpu.vector_store %arg9[%c0_52, %c0_53], %65 {strides = array<i32>} : memref<64x128xf32, #tpu.memory_space<vmem>>, vector<46x128xf32>,
    %c0_54 = arith.constant 0 : index
    %c0_55 = arith.constant 0 : index
    %67 = tpu.strided_load %arg9[%c0_54, %c0_55] {strides = array<i32: 2, 1>} : memref<64x128xf32, #tpu.memory_space<vmem>>, vector<3x128xf32>
    %c1_56 = arith.constant 1 : index
    %c0_57 = arith.constant 0 : index
    %68 = tpu.strided_load %arg9[%c1_56, %c0_57] {strides = array<i32: 2, 1>} : memref<64x128xf32, #tpu.memory_space<vmem>>, vector<3x128xf32>
    %c8_58 = arith.constant 8 : index
    %c0_59 = arith.constant 0 : index
    %69 = tpu.strided_load %arg9[%c8_58, %c0_59] {strides = array<i32: 2, 1>} : memref<64x128xf32, #tpu.memory_space<vmem>>, vector<3x128xf32>
    %c9_60 = arith.constant 9 : index
    %c0_61 = arith.constant 0 : index
    %70 = tpu.strided_load %arg9[%c9_60, %c0_61] {strides = array<i32: 2, 1>} : memref<64x128xf32, #tpu.memory_space<vmem>>, vector<3x128xf32>
    %71 = arith.maximumf %67, %68 : vector<3x128xf32>
    %72 = arith.maximumf %69, %70 : vector<3x128xf32>
    %73 = arith.maximumf %71, %72 : vector<3x128xf32>
    %c16_62 = arith.constant 16 : index
    %c0_63 = arith.constant 0 : index
    %74 = tpu.strided_load %arg9[%c16_62, %c0_63] {strides = array<i32: 2, 1>} : memref<64x128xf32, #tpu.memory_space<vmem>>, vector<3x128xf32>
    %c17_64 = arith.constant 17 : index
    %c0_65 = arith.constant 0 : index
    %75 = tpu.strided_load %arg9[%c17_64, %c0_65] {strides = array<i32: 2, 1>} : memref<64x128xf32, #tpu.memory_space<vmem>>, vector<3x128xf32>
    %c24 = arith.constant 24 : index
    %c0_66 = arith.constant 0 : index
    %76 = tpu.strided_load %arg9[%c24, %c0_66] {strides = array<i32: 2, 1>} : memref<64x128xf32, #tpu.memory_space<vmem>>, vector<3x128xf32>
    %c25 = arith.constant 25 : index
    %c0_67 = arith.constant 0 : index
    %77 = tpu.strided_load %arg9[%c25, %c0_67] {strides = array<i32: 2, 1>} : memref<64x128xf32, #tpu.memory_space<vmem>>, vector<3x128xf32>
    %78 = arith.maximumf %74, %75 : vector<3x128xf32>
    %79 = arith.maximumf %76, %77 : vector<3x128xf32>
    %80 = arith.maximumf %78, %79 : vector<3x128xf32>
    %c32_68 = arith.constant 32 : index
    %c0_69 = arith.constant 0 : index
    %81 = tpu.strided_load %arg9[%c32_68, %c0_69] {strides = array<i32: 2, 1>} : memref<64x128xf32, #tpu.memory_space<vmem>>, vector<3x128xf32>
    %c33 = arith.constant 33 : index
    %c0_70 = arith.constant 0 : index
    %82 = tpu.strided_load %arg9[%c33, %c0_70] {strides = array<i32: 2, 1>} : memref<64x128xf32, #tpu.memory_space<vmem>>, vector<3x128xf32>
    %c40 = arith.constant 40 : index
    %c0_71 = arith.constant 0 : index
    %83 = tpu.strided_load %arg9[%c40, %c0_71] {strides = array<i32: 2, 1>} : memref<64x128xf32, #tpu.memory_space<vmem>>, vector<3x128xf32>
    %c41 = arith.constant 41 : index
    %c0_72 = arith.constant 0 : index
    %84 = tpu.strided_load %arg9[%c41, %c0_72] {strides = array<i32: 2, 1>} : memref<64x128xf32, #tpu.memory_space<vmem>>, vector<3x128xf32>
    %85 = arith.maximumf %81, %82 : vector<3x128xf32>
    %86 = arith.maximumf %83, %84 : vector<3x128xf32>
    %87 = arith.maximumf %85, %86 : vector<3x128xf32>
    %88 = tpu.concatenate %73, %80, %87 in 0 : vector<3x128xf32>, vector<3x128xf32>, vector<3x128xf32> -> vector<9x128xf32>
    %89 = arith.addf %88, %5 : vector<9x128xf32>
    %cst_73 = arith.constant 0.000000e+00 : f32
    %90 = vector.broadcast %cst_73 : f32 to vector<9x128xf32>
    %91 = arith.maximumf %89, %90 : vector<9x128xf32>
    %92 = arith.mulf %91, %6 : vector<9x128xf32>
    %cst_74 = arith.constant dense<0.000000e+00> : vector<128xf32>
    %93 = vector.multi_reduction <add>, %92, %cst_74 [0] : vector<9x128xf32> to vector<128xf32>
    %94 = vector.shape_cast %93 : vector<128xf32> to vector<1x128xf32>
    %c0_75 = arith.constant 0 : index
    %c0_76 = arith.constant 0 : index
    %95 = vector.load %arg11[%c0_75, %c0_76] : memref<8x128xf32, #tpu.memory_space<vmem>>, vector<1x128xf32>
    tpu.vector_store %arg11[%c0_75, %c0_76], %94 {strides = array<i32>} : memref<8x128xf32, #tpu.memory_space<vmem>>, vector<1x128xf32>,
    %c256 = arith.constant 256 : index
    %c0_77 = arith.constant 0 : index
    %96 = vector.load %arg1[%c256, %c0_77] : memref<2048x200xf32, #tpu.memory_space<vmem>>, vector<128x200xf32>
    %c0_78 = arith.constant 0 : index
    %c0_79 = arith.constant 0 : index
    %97 = vector.load %arg2[%c0_78, %c0_79] : memref<200x128xf32, #tpu.memory_space<vmem>>, vector<200x128xf32>
    %cst_80 = arith.constant dense<0.000000e+00> : vector<128x128xf32>
    %98 = tpu.matmul %96, %97, %cst_80 {dimension_numbers = #tpu.dot_dimension_numbers<[1], [0], [0], [1], [0, 0, 1, 1], [], []>} : vector<128x200xf32>, vector<200x128xf32>, vector<128x128xf32> -> vector<128x128xf32>
    %99 = vector.shape_cast %98 : vector<128x128xf32> to vector<4x2x16x128xf32>
    %100 = vector.extract_strided_slice %99 {offsets = [0, 0, 0, 0], sizes = [4, 1, 16, 128], strides = [1, 1, 1, 1]} : vector<4x2x16x128xf32> to vector<4x1x16x128xf32>
    %101 = vector.shape_cast %100 : vector<4x1x16x128xf32> to vector<4x16x128xf32>
    %102 = vector.extract_strided_slice %99 {offsets = [0, 1, 0, 0], sizes = [4, 1, 16, 128], strides = [1, 1, 1, 1]} : vector<4x2x16x128xf32> to vector<4x1x16x128xf32>
    %103 = vector.shape_cast %102 : vector<4x1x16x128xf32> to vector<4x16x128xf32>
    %104 = arith.maximumf %101, %103 : vector<4x16x128xf32>
    %105 = vector.shape_cast %104 : vector<4x16x128xf32> to vector<64x128xf32>
    %c0_81 = arith.constant 0 : index
    %c0_82 = arith.constant 0 : index
    %106 = vector.load %arg9[%c0_81, %c0_82] : memref<64x128xf32, #tpu.memory_space<vmem>>, vector<64x128xf32>
    tpu.vector_store %arg9[%c0_81, %c0_82], %105 {strides = array<i32>} : memref<64x128xf32, #tpu.memory_space<vmem>>, vector<64x128xf32>,
    %c0_83 = arith.constant 0 : index
    %c0_84 = arith.constant 0 : index
    %107 = tpu.strided_load %arg9[%c0_83, %c0_84] {strides = array<i32: 2, 1>} : memref<64x128xf32, #tpu.memory_space<vmem>>, vector<32x128xf32>
    %c1_85 = arith.constant 1 : index
    %c0_86 = arith.constant 0 : index
    %108 = tpu.strided_load %arg9[%c1_85, %c0_86] {strides = array<i32: 2, 1>} : memref<64x128xf32, #tpu.memory_space<vmem>>, vector<32x128xf32>
    %109 = arith.maximumf %107, %108 : vector<32x128xf32>
    %110 = arith.addf %109, %2 : vector<32x128xf32>
    %cst_87 = arith.constant 0.000000e+00 : f32
    %111 = vector.broadcast %cst_87 : f32 to vector<32x128xf32>
    %112 = arith.maximumf %110, %111 : vector<32x128xf32>
    %c0_88 = arith.constant 0 : index
    %c0_89 = arith.constant 0 : index
    %113 = vector.load %arg10[%c0_88, %c0_89] : memref<64x128xf32, #tpu.memory_space<vmem>>, vector<32x128xf32>
    tpu.vector_store %arg10[%c0_88, %c0_89], %112 {strides = array<i32>} : memref<64x128xf32, #tpu.memory_space<vmem>>, vector<32x128xf32>,
    %c384 = arith.constant 384 : index
    %c0_90 = arith.constant 0 : index
    %114 = vector.load %arg1[%c384, %c0_90] : memref<2048x200xf32, #tpu.memory_space<vmem>>, vector<128x200xf32>
    %c0_91 = arith.constant 0 : index
    %c0_92 = arith.constant 0 : index
    %115 = vector.load %arg2[%c0_91, %c0_92] : memref<200x128xf32, #tpu.memory_space<vmem>>, vector<200x128xf32>
    %cst_93 = arith.constant dense<0.000000e+00> : vector<128x128xf32>
    %116 = tpu.matmul %114, %115, %cst_93 {dimension_numbers = #tpu.dot_dimension_numbers<[1], [0], [0], [1], [0, 0, 1, 1], [], []>} : vector<128x200xf32>, vector<200x128xf32>, vector<128x128xf32> -> vector<128x128xf32>
    %117 = vector.shape_cast %116 : vector<128x128xf32> to vector<4x2x16x128xf32>
    %118 = vector.extract_strided_slice %117 {offsets = [0, 0, 0, 0], sizes = [4, 1, 16, 128], strides = [1, 1, 1, 1]} : vector<4x2x16x128xf32> to vector<4x1x16x128xf32>
    %119 = vector.shape_cast %118 : vector<4x1x16x128xf32> to vector<4x16x128xf32>
    %120 = vector.extract_strided_slice %117 {offsets = [0, 1, 0, 0], sizes = [4, 1, 16, 128], strides = [1, 1, 1, 1]} : vector<4x2x16x128xf32> to vector<4x1x16x128xf32>
    %121 = vector.shape_cast %120 : vector<4x1x16x128xf32> to vector<4x16x128xf32>
    %122 = arith.maximumf %119, %121 : vector<4x16x128xf32>
    %123 = vector.shape_cast %122 : vector<4x16x128xf32> to vector<64x128xf32>
    %c0_94 = arith.constant 0 : index
    %c0_95 = arith.constant 0 : index
    %124 = vector.load %arg9[%c0_94, %c0_95] : memref<64x128xf32, #tpu.memory_space<vmem>>, vector<64x128xf32>
    tpu.vector_store %arg9[%c0_94, %c0_95], %123 {strides = array<i32>} : memref<64x128xf32, #tpu.memory_space<vmem>>, vector<64x128xf32>,
    %c0_96 = arith.constant 0 : index
    %c0_97 = arith.constant 0 : index
    %125 = tpu.strided_load %arg9[%c0_96, %c0_97] {strides = array<i32: 2, 1>} : memref<64x128xf32, #tpu.memory_space<vmem>>, vector<32x128xf32>
    %c1_98 = arith.constant 1 : index
    %c0_99 = arith.constant 0 : index
    %126 = tpu.strided_load %arg9[%c1_98, %c0_99] {strides = array<i32: 2, 1>} : memref<64x128xf32, #tpu.memory_space<vmem>>, vector<32x128xf32>
    %127 = arith.maximumf %125, %126 : vector<32x128xf32>
    %128 = arith.addf %127, %2 : vector<32x128xf32>
    %cst_100 = arith.constant 0.000000e+00 : f32
    %129 = vector.broadcast %cst_100 : f32 to vector<32x128xf32>
    %130 = arith.maximumf %128, %129 : vector<32x128xf32>
    %c32_101 = arith.constant 32 : index
    %c0_102 = arith.constant 0 : index
    %131 = vector.load %arg10[%c32_101, %c0_102] : memref<64x128xf32, #tpu.memory_space<vmem>>, vector<32x128xf32>
    tpu.vector_store %arg10[%c32_101, %c0_102], %130 {strides = array<i32>} : memref<64x128xf32, #tpu.memory_space<vmem>>, vector<32x128xf32>,
    %c0_103 = arith.constant 0 : index
    %c0_104 = arith.constant 0 : index
    %132 = vector.load %arg10[%c0_103, %c0_104] : memref<64x128xf32, #tpu.memory_space<vmem>>, vector<46x128xf32>
    %c1_105 = arith.constant 1 : index
    %c0_106 = arith.constant 0 : index
    %133 = vector.load %arg10[%c1_105, %c0_106] : memref<64x128xf32, #tpu.memory_space<vmem>>, vector<46x128xf32>
    %c2_107 = arith.constant 2 : index
    %c0_108 = arith.constant 0 : index
    %134 = vector.load %arg10[%c2_107, %c0_108] : memref<64x128xf32, #tpu.memory_space<vmem>>, vector<46x128xf32>
    %135 = tpu.concatenate %132, %133, %134 in 1 : vector<46x128xf32>, vector<46x128xf32>, vector<46x128xf32> -> vector<46x384xf32>
    %c0_109 = arith.constant 0 : index
    %c0_110 = arith.constant 0 : index
    %c0_111 = arith.constant 0 : index
    %136 = vector.load %arg4[%c0_109, %c0_110, %c0_111] : memref<3x384x128xf32, #tpu.memory_space<vmem>>, vector<1x384x128xf32>
    %137 = vector.shape_cast %136 : vector<1x384x128xf32> to vector<384x128xf32>
    %cst_112 = arith.constant dense<0.000000e+00> : vector<46x128xf32>
    %138 = tpu.matmul %135, %137, %cst_112 {dimension_numbers = #tpu.dot_dimension_numbers<[1], [0], [0], [1], [0, 0, 1, 1], [], []>} : vector<46x384xf32>, vector<384x128xf32>, vector<46x128xf32> -> vector<46x128xf32>
    %c8_113 = arith.constant 8 : index
    %c0_114 = arith.constant 0 : index
    %139 = vector.load %arg10[%c8_113, %c0_114] : memref<64x128xf32, #tpu.memory_space<vmem>>, vector<46x128xf32>
    %c9_115 = arith.constant 9 : index
    %c0_116 = arith.constant 0 : index
    %140 = vector.load %arg10[%c9_115, %c0_116] : memref<64x128xf32, #tpu.memory_space<vmem>>, vector<46x128xf32>
    %c10_117 = arith.constant 10 : index
    %c0_118 = arith.constant 0 : index
    %141 = vector.load %arg10[%c10_117, %c0_118] : memref<64x128xf32, #tpu.memory_space<vmem>>, vector<46x128xf32>
    %142 = tpu.concatenate %139, %140, %141 in 1 : vector<46x128xf32>, vector<46x128xf32>, vector<46x128xf32> -> vector<46x384xf32>
    %c1_119 = arith.constant 1 : index
    %c0_120 = arith.constant 0 : index
    %c0_121 = arith.constant 0 : index
    %143 = vector.load %arg4[%c1_119, %c0_120, %c0_121] : memref<3x384x128xf32, #tpu.memory_space<vmem>>, vector<1x384x128xf32>
    %144 = vector.shape_cast %143 : vector<1x384x128xf32> to vector<384x128xf32>
    %cst_122 = arith.constant dense<0.000000e+00> : vector<46x128xf32>
    %145 = tpu.matmul %142, %144, %cst_122 {dimension_numbers = #tpu.dot_dimension_numbers<[1], [0], [0], [1], [0, 0, 1, 1], [], []>} : vector<46x384xf32>, vector<384x128xf32>, vector<46x128xf32> -> vector<46x128xf32>
    %146 = arith.addf %138, %145 : vector<46x128xf32>
    %c16_123 = arith.constant 16 : index
    %c0_124 = arith.constant 0 : index
    %147 = vector.load %arg10[%c16_123, %c0_124] : memref<64x128xf32, #tpu.memory_space<vmem>>, vector<46x128xf32>
    %c17_125 = arith.constant 17 : index
    %c0_126 = arith.constant 0 : index
    %148 = vector.load %arg10[%c17_125, %c0_126] : memref<64x128xf32, #tpu.memory_space<vmem>>, vector<46x128xf32>
    %c18_127 = arith.constant 18 : index
    %c0_128 = arith.constant 0 : index
    %149 = vector.load %arg10[%c18_127, %c0_128] : memref<64x128xf32, #tpu.memory_space<vmem>>, vector<46x128xf32>
    %150 = tpu.concatenate %147, %148, %149 in 1 : vector<46x128xf32>, vector<46x128xf32>, vector<46x128xf32> -> vector<46x384xf32>
    %c2_129 = arith.constant 2 : index
    %c0_130 = arith.constant 0 : index
    %c0_131 = arith.constant 0 : index
    %151 = vector.load %arg4[%c2_129, %c0_130, %c0_131] : memref<3x384x128xf32, #tpu.memory_space<vmem>>, vector<1x384x128xf32>
    %152 = vector.shape_cast %151 : vector<1x384x128xf32> to vector<384x128xf32>
    %cst_132 = arith.constant dense<0.000000e+00> : vector<46x128xf32>
    %153 = tpu.matmul %150, %152, %cst_132 {dimension_numbers = #tpu.dot_dimension_numbers<[1], [0], [0], [1], [0, 0, 1, 1], [], []>} : vector<46x384xf32>, vector<384x128xf32>, vector<46x128xf32> -> vector<46x128xf32>
    %154 = arith.addf %146, %153 : vector<46x128xf32>
    %c0_133 = arith.constant 0 : index
    %c0_134 = arith.constant 0 : index
    %155 = vector.load %arg9[%c0_133, %c0_134] : memref<64x128xf32, #tpu.memory_space<vmem>>, vector<46x128xf32>
    tpu.vector_store %arg9[%c0_133, %c0_134], %154 {strides = array<i32>} : memref<64x128xf32, #tpu.memory_space<vmem>>, vector<46x128xf32>,
    %c0_135 = arith.constant 0 : index
    %c0_136 = arith.constant 0 : index
    %156 = tpu.strided_load %arg9[%c0_135, %c0_136] {strides = array<i32: 2, 1>} : memref<64x128xf32, #tpu.memory_space<vmem>>, vector<3x128xf32>
    %c1_137 = arith.constant 1 : index
    %c0_138 = arith.constant 0 : index
    %157 = tpu.strided_load %arg9[%c1_137, %c0_138] {strides = array<i32: 2, 1>} : memref<64x128xf32, #tpu.memory_space<vmem>>, vector<3x128xf32>
    %c8_139 = arith.constant 8 : index
    %c0_140 = arith.constant 0 : index
    %158 = tpu.strided_load %arg9[%c8_139, %c0_140] {strides = array<i32: 2, 1>} : memref<64x128xf32, #tpu.memory_space<vmem>>, vector<3x128xf32>
    %c9_141 = arith.constant 9 : index
    %c0_142 = arith.constant 0 : index
    %159 = tpu.strided_load %arg9[%c9_141, %c0_142] {strides = array<i32: 2, 1>} : memref<64x128xf32, #tpu.memory_space<vmem>>, vector<3x128xf32>
    %160 = arith.maximumf %156, %157 : vector<3x128xf32>
    %161 = arith.maximumf %158, %159 : vector<3x128xf32>
    %162 = arith.maximumf %160, %161 : vector<3x128xf32>
    %c16_143 = arith.constant 16 : index
    %c0_144 = arith.constant 0 : index
    %163 = tpu.strided_load %arg9[%c16_143, %c0_144] {strides = array<i32: 2, 1>} : memref<64x128xf32, #tpu.memory_space<vmem>>, vector<3x128xf32>
    %c17_145 = arith.constant 17 : index
    %c0_146 = arith.constant 0 : index
    %164 = tpu.strided_load %arg9[%c17_145, %c0_146] {strides = array<i32: 2, 1>} : memref<64x128xf32, #tpu.memory_space<vmem>>, vector<3x128xf32>
    %c24_147 = arith.constant 24 : index
    %c0_148 = arith.constant 0 : index
    %165 = tpu.strided_load %arg9[%c24_147, %c0_148] {strides = array<i32: 2, 1>} : memref<64x128xf32, #tpu.memory_space<vmem>>, vector<3x128xf32>
    %c25_149 = arith.constant 25 : index
    %c0_150 = arith.constant 0 : index
    %166 = tpu.strided_load %arg9[%c25_149, %c0_150] {strides = array<i32: 2, 1>} : memref<64x128xf32, #tpu.memory_space<vmem>>, vector<3x128xf32>
    %167 = arith.maximumf %163, %164 : vector<3x128xf32>
    %168 = arith.maximumf %165, %166 : vector<3x128xf32>
    %169 = arith.maximumf %167, %168 : vector<3x128xf32>
    %c32_151 = arith.constant 32 : index
    %c0_152 = arith.constant 0 : index
    %170 = tpu.strided_load %arg9[%c32_151, %c0_152] {strides = array<i32: 2, 1>} : memref<64x128xf32, #tpu.memory_space<vmem>>, vector<3x128xf32>
    %c33_153 = arith.constant 33 : index
    %c0_154 = arith.constant 0 : index
    %171 = tpu.strided_load %arg9[%c33_153, %c0_154] {strides = array<i32: 2, 1>} : memref<64x128xf32, #tpu.memory_space<vmem>>, vector<3x128xf32>
    %c40_155 = arith.constant 40 : index
    %c0_156 = arith.constant 0 : index
    %172 = tpu.strided_load %arg9[%c40_155, %c0_156] {strides = array<i32: 2, 1>} : memref<64x128xf32, #tpu.memory_space<vmem>>, vector<3x128xf32>
    %c41_157 = arith.constant 41 : index
    %c0_158 = arith.constant 0 : index
    %173 = tpu.strided_load %arg9[%c41_157, %c0_158] {strides = array<i32: 2, 1>} : memref<64x128xf32, #tpu.memory_space<vmem>>, vector<3x128xf32>
    %174 = arith.maximumf %170, %171 : vector<3x128xf32>
    %175 = arith.maximumf %172, %173 : vector<3x128xf32>
    %176 = arith.maximumf %174, %175 : vector<3x128xf32>
    %177 = tpu.concatenate %162, %169, %176 in 0 : vector<3x128xf32>, vector<3x128xf32>, vector<3x128xf32> -> vector<9x128xf32>
    %178 = arith.addf %177, %5 : vector<9x128xf32>
    %cst_159 = arith.constant 0.000000e+00 : f32
    %179 = vector.broadcast %cst_159 : f32 to vector<9x128xf32>
    %180 = arith.maximumf %178, %179 : vector<9x128xf32>
    %181 = arith.mulf %180, %6 : vector<9x128xf32>
    %cst_160 = arith.constant dense<0.000000e+00> : vector<128xf32>
    %182 = vector.multi_reduction <add>, %181, %cst_160 [0] : vector<9x128xf32> to vector<128xf32>
    %183 = vector.shape_cast %182 : vector<128xf32> to vector<1x128xf32>
    %c1_161 = arith.constant 1 : index
    %c0_162 = arith.constant 0 : index
    %184 = vector.load %arg11[%c1_161, %c0_162] : memref<8x128xf32, #tpu.memory_space<vmem>>, vector<1x128xf32>
    tpu.vector_store %arg11[%c1_161, %c0_162], %183 {strides = array<i32>} : memref<8x128xf32, #tpu.memory_space<vmem>>, vector<1x128xf32>,
    %c512 = arith.constant 512 : index
    %c0_163 = arith.constant 0 : index
    %185 = vector.load %arg1[%c512, %c0_163] : memref<2048x200xf32, #tpu.memory_space<vmem>>, vector<128x200xf32>
    %c0_164 = arith.constant 0 : index
    %c0_165 = arith.constant 0 : index
    %186 = vector.load %arg2[%c0_164, %c0_165] : memref<200x128xf32, #tpu.memory_space<vmem>>, vector<200x128xf32>
    %cst_166 = arith.constant dense<0.000000e+00> : vector<128x128xf32>
    %187 = tpu.matmul %185, %186, %cst_166 {dimension_numbers = #tpu.dot_dimension_numbers<[1], [0], [0], [1], [0, 0, 1, 1], [], []>} : vector<128x200xf32>, vector<200x128xf32>, vector<128x128xf32> -> vector<128x128xf32>
    %188 = vector.shape_cast %187 : vector<128x128xf32> to vector<4x2x16x128xf32>
    %189 = vector.extract_strided_slice %188 {offsets = [0, 0, 0, 0], sizes = [4, 1, 16, 128], strides = [1, 1, 1, 1]} : vector<4x2x16x128xf32> to vector<4x1x16x128xf32>
    %190 = vector.shape_cast %189 : vector<4x1x16x128xf32> to vector<4x16x128xf32>
    %191 = vector.extract_strided_slice %188 {offsets = [0, 1, 0, 0], sizes = [4, 1, 16, 128], strides = [1, 1, 1, 1]} : vector<4x2x16x128xf32> to vector<4x1x16x128xf32>
    %192 = vector.shape_cast %191 : vector<4x1x16x128xf32> to vector<4x16x128xf32>
    %193 = arith.maximumf %190, %192 : vector<4x16x128xf32>
    %194 = vector.shape_cast %193 : vector<4x16x128xf32> to vector<64x128xf32>
    %c0_167 = arith.constant 0 : index
    %c0_168 = arith.constant 0 : index
    %195 = vector.load %arg9[%c0_167, %c0_168] : memref<64x128xf32, #tpu.memory_space<vmem>>, vector<64x128xf32>
    tpu.vector_store %arg9[%c0_167, %c0_168], %194 {strides = array<i32>} : memref<64x128xf32, #tpu.memory_space<vmem>>, vector<64x128xf32>,
    %c0_169 = arith.constant 0 : index
    %c0_170 = arith.constant 0 : index
    %196 = tpu.strided_load %arg9[%c0_169, %c0_170] {strides = array<i32: 2, 1>} : memref<64x128xf32, #tpu.memory_space<vmem>>, vector<32x128xf32>
    %c1_171 = arith.constant 1 : index
    %c0_172 = arith.constant 0 : index
    %197 = tpu.strided_load %arg9[%c1_171, %c0_172] {strides = array<i32: 2, 1>} : memref<64x128xf32, #tpu.memory_space<vmem>>, vector<32x128xf32>
    %198 = arith.maximumf %196, %197 : vector<32x128xf32>
    %199 = arith.addf %198, %2 : vector<32x128xf32>
    %cst_173 = arith.constant 0.000000e+00 : f32
    %200 = vector.broadcast %cst_173 : f32 to vector<32x128xf32>
    %201 = arith.maximumf %199, %200 : vector<32x128xf32>
    %c0_174 = arith.constant 0 : index
    %c0_175 = arith.constant 0 : index
    %202 = vector.load %arg10[%c0_174, %c0_175] : memref<64x128xf32, #tpu.memory_space<vmem>>, vector<32x128xf32>
    tpu.vector_store %arg10[%c0_174, %c0_175], %201 {strides = array<i32>} : memref<64x128xf32, #tpu.memory_space<vmem>>, vector<32x128xf32>,
    %c640 = arith.constant 640 : index
    %c0_176 = arith.constant 0 : index
    %203 = vector.load %arg1[%c640, %c0_176] : memref<2048x200xf32, #tpu.memory_space<vmem>>, vector<128x200xf32>
    %c0_177 = arith.constant 0 : index
    %c0_178 = arith.constant 0 : index
    %204 = vector.load %arg2[%c0_177, %c0_178] : memref<200x128xf32, #tpu.memory_space<vmem>>, vector<200x128xf32>
    %cst_179 = arith.constant dense<0.000000e+00> : vector<128x128xf32>
    %205 = tpu.matmul %203, %204, %cst_179 {dimension_numbers = #tpu.dot_dimension_numbers<[1], [0], [0], [1], [0, 0, 1, 1], [], []>} : vector<128x200xf32>, vector<200x128xf32>, vector<128x128xf32> -> vector<128x128xf32>
    %206 = vector.shape_cast %205 : vector<128x128xf32> to vector<4x2x16x128xf32>
    %207 = vector.extract_strided_slice %206 {offsets = [0, 0, 0, 0], sizes = [4, 1, 16, 128], strides = [1, 1, 1, 1]} : vector<4x2x16x128xf32> to vector<4x1x16x128xf32>
    %208 = vector.shape_cast %207 : vector<4x1x16x128xf32> to vector<4x16x128xf32>
    %209 = vector.extract_strided_slice %206 {offsets = [0, 1, 0, 0], sizes = [4, 1, 16, 128], strides = [1, 1, 1, 1]} : vector<4x2x16x128xf32> to vector<4x1x16x128xf32>
    %210 = vector.shape_cast %209 : vector<4x1x16x128xf32> to vector<4x16x128xf32>
    %211 = arith.maximumf %208, %210 : vector<4x16x128xf32>
    %212 = vector.shape_cast %211 : vector<4x16x128xf32> to vector<64x128xf32>
    %c0_180 = arith.constant 0 : index
    %c0_181 = arith.constant 0 : index
    %213 = vector.load %arg9[%c0_180, %c0_181] : memref<64x128xf32, #tpu.memory_space<vmem>>, vector<64x128xf32>
    tpu.vector_store %arg9[%c0_180, %c0_181], %212 {strides = array<i32>} : memref<64x128xf32, #tpu.memory_space<vmem>>, vector<64x128xf32>,
    %c0_182 = arith.constant 0 : index
    %c0_183 = arith.constant 0 : index
    %214 = tpu.strided_load %arg9[%c0_182, %c0_183] {strides = array<i32: 2, 1>} : memref<64x128xf32, #tpu.memory_space<vmem>>, vector<32x128xf32>
    %c1_184 = arith.constant 1 : index
    %c0_185 = arith.constant 0 : index
    %215 = tpu.strided_load %arg9[%c1_184, %c0_185] {strides = array<i32: 2, 1>} : memref<64x128xf32, #tpu.memory_space<vmem>>, vector<32x128xf32>
    %216 = arith.maximumf %214, %215 : vector<32x128xf32>
    %217 = arith.addf %216, %2 : vector<32x128xf32>
    %cst_186 = arith.constant 0.000000e+00 : f32
    %218 = vector.broadcast %cst_186 : f32 to vector<32x128xf32>
    %219 = arith.maximumf %217, %218 : vector<32x128xf32>
    %c32_187 = arith.constant 32 : index
    %c0_188 = arith.constant 0 : index
    %220 = vector.load %arg10[%c32_187, %c0_188] : memref<64x128xf32, #tpu.memory_space<vmem>>, vector<32x128xf32>
    tpu.vector_store %arg10[%c32_187, %c0_188], %219 {strides = array<i32>} : memref<64x128xf32, #tpu.memory_space<vmem>>, vector<32x128xf32>,
    %c0_189 = arith.constant 0 : index
    %c0_190 = arith.constant 0 : index
    %221 = vector.load %arg10[%c0_189, %c0_190] : memref<64x128xf32, #tpu.memory_space<vmem>>, vector<46x128xf32>
    %c1_191 = arith.constant 1 : index
    %c0_192 = arith.constant 0 : index
    %222 = vector.load %arg10[%c1_191, %c0_192] : memref<64x128xf32, #tpu.memory_space<vmem>>, vector<46x128xf32>
    %c2_193 = arith.constant 2 : index
    %c0_194 = arith.constant 0 : index
    %223 = vector.load %arg10[%c2_193, %c0_194] : memref<64x128xf32, #tpu.memory_space<vmem>>, vector<46x128xf32>
    %224 = tpu.concatenate %221, %222, %223 in 1 : vector<46x128xf32>, vector<46x128xf32>, vector<46x128xf32> -> vector<46x384xf32>
    %c0_195 = arith.constant 0 : index
    %c0_196 = arith.constant 0 : index
    %c0_197 = arith.constant 0 : index
    %225 = vector.load %arg4[%c0_195, %c0_196, %c0_197] : memref<3x384x128xf32, #tpu.memory_space<vmem>>, vector<1x384x128xf32>
    %226 = vector.shape_cast %225 : vector<1x384x128xf32> to vector<384x128xf32>
    %cst_198 = arith.constant dense<0.000000e+00> : vector<46x128xf32>
    %227 = tpu.matmul %224, %226, %cst_198 {dimension_numbers = #tpu.dot_dimension_numbers<[1], [0], [0], [1], [0, 0, 1, 1], [], []>} : vector<46x384xf32>, vector<384x128xf32>, vector<46x128xf32> -> vector<46x128xf32>
    %c8_199 = arith.constant 8 : index
    %c0_200 = arith.constant 0 : index
    %228 = vector.load %arg10[%c8_199, %c0_200] : memref<64x128xf32, #tpu.memory_space<vmem>>, vector<46x128xf32>
    %c9_201 = arith.constant 9 : index
    %c0_202 = arith.constant 0 : index
    %229 = vector.load %arg10[%c9_201, %c0_202] : memref<64x128xf32, #tpu.memory_space<vmem>>, vector<46x128xf32>
    %c10_203 = arith.constant 10 : index
    %c0_204 = arith.constant 0 : index
    %230 = vector.load %arg10[%c10_203, %c0_204] : memref<64x128xf32, #tpu.memory_space<vmem>>, vector<46x128xf32>
    %231 = tpu.concatenate %228, %229, %230 in 1 : vector<46x128xf32>, vector<46x128xf32>, vector<46x128xf32> -> vector<46x384xf32>
    %c1_205 = arith.constant 1 : index
    %c0_206 = arith.constant 0 : index
    %c0_207 = arith.constant 0 : index
    %232 = vector.load %arg4[%c1_205, %c0_206, %c0_207] : memref<3x384x128xf32, #tpu.memory_space<vmem>>, vector<1x384x128xf32>
    %233 = vector.shape_cast %232 : vector<1x384x128xf32> to vector<384x128xf32>
    %cst_208 = arith.constant dense<0.000000e+00> : vector<46x128xf32>
    %234 = tpu.matmul %231, %233, %cst_208 {dimension_numbers = #tpu.dot_dimension_numbers<[1], [0], [0], [1], [0, 0, 1, 1], [], []>} : vector<46x384xf32>, vector<384x128xf32>, vector<46x128xf32> -> vector<46x128xf32>
    %235 = arith.addf %227, %234 : vector<46x128xf32>
    %c16_209 = arith.constant 16 : index
    %c0_210 = arith.constant 0 : index
    %236 = vector.load %arg10[%c16_209, %c0_210] : memref<64x128xf32, #tpu.memory_space<vmem>>, vector<46x128xf32>
    %c17_211 = arith.constant 17 : index
    %c0_212 = arith.constant 0 : index
    %237 = vector.load %arg10[%c17_211, %c0_212] : memref<64x128xf32, #tpu.memory_space<vmem>>, vector<46x128xf32>
    %c18_213 = arith.constant 18 : index
    %c0_214 = arith.constant 0 : index
    %238 = vector.load %arg10[%c18_213, %c0_214] : memref<64x128xf32, #tpu.memory_space<vmem>>, vector<46x128xf32>
    %239 = tpu.concatenate %236, %237, %238 in 1 : vector<46x128xf32>, vector<46x128xf32>, vector<46x128xf32> -> vector<46x384xf32>
    %c2_215 = arith.constant 2 : index
    %c0_216 = arith.constant 0 : index
    %c0_217 = arith.constant 0 : index
    %240 = vector.load %arg4[%c2_215, %c0_216, %c0_217] : memref<3x384x128xf32, #tpu.memory_space<vmem>>, vector<1x384x128xf32>
    %241 = vector.shape_cast %240 : vector<1x384x128xf32> to vector<384x128xf32>
    %cst_218 = arith.constant dense<0.000000e+00> : vector<46x128xf32>
    %242 = tpu.matmul %239, %241, %cst_218 {dimension_numbers = #tpu.dot_dimension_numbers<[1], [0], [0], [1], [0, 0, 1, 1], [], []>} : vector<46x384xf32>, vector<384x128xf32>, vector<46x128xf32> -> vector<46x128xf32>
    %243 = arith.addf %235, %242 : vector<46x128xf32>
    %c0_219 = arith.constant 0 : index
    %c0_220 = arith.constant 0 : index
    %244 = vector.load %arg9[%c0_219, %c0_220] : memref<64x128xf32, #tpu.memory_space<vmem>>, vector<46x128xf32>
    tpu.vector_store %arg9[%c0_219, %c0_220], %243 {strides = array<i32>} : memref<64x128xf32, #tpu.memory_space<vmem>>, vector<46x128xf32>,
    %c0_221 = arith.constant 0 : index
    %c0_222 = arith.constant 0 : index
    %245 = tpu.strided_load %arg9[%c0_221, %c0_222] {strides = array<i32: 2, 1>} : memref<64x128xf32, #tpu.memory_space<vmem>>, vector<3x128xf32>
    %c1_223 = arith.constant 1 : index
    %c0_224 = arith.constant 0 : index
    %246 = tpu.strided_load %arg9[%c1_223, %c0_224] {strides = array<i32: 2, 1>} : memref<64x128xf32, #tpu.memory_space<vmem>>, vector<3x128xf32>
    %c8_225 = arith.constant 8 : index
    %c0_226 = arith.constant 0 : index
    %247 = tpu.strided_load %arg9[%c8_225, %c0_226] {strides = array<i32: 2, 1>} : memref<64x128xf32, #tpu.memory_space<vmem>>, vector<3x128xf32>
    %c9_227 = arith.constant 9 : index
    %c0_228 = arith.constant 0 : index
    %248 = tpu.strided_load %arg9[%c9_227, %c0_228] {strides = array<i32: 2, 1>} : memref<64x128xf32, #tpu.memory_space<vmem>>, vector<3x128xf32>
    %249 = arith.maximumf %245, %246 : vector<3x128xf32>
    %250 = arith.maximumf %247, %248 : vector<3x128xf32>
    %251 = arith.maximumf %249, %250 : vector<3x128xf32>
    %c16_229 = arith.constant 16 : index
    %c0_230 = arith.constant 0 : index
    %252 = tpu.strided_load %arg9[%c16_229, %c0_230] {strides = array<i32: 2, 1>} : memref<64x128xf32, #tpu.memory_space<vmem>>, vector<3x128xf32>
    %c17_231 = arith.constant 17 : index
    %c0_232 = arith.constant 0 : index
    %253 = tpu.strided_load %arg9[%c17_231, %c0_232] {strides = array<i32: 2, 1>} : memref<64x128xf32, #tpu.memory_space<vmem>>, vector<3x128xf32>
    %c24_233 = arith.constant 24 : index
    %c0_234 = arith.constant 0 : index
    %254 = tpu.strided_load %arg9[%c24_233, %c0_234] {strides = array<i32: 2, 1>} : memref<64x128xf32, #tpu.memory_space<vmem>>, vector<3x128xf32>
    %c25_235 = arith.constant 25 : index
    %c0_236 = arith.constant 0 : index
    %255 = tpu.strided_load %arg9[%c25_235, %c0_236] {strides = array<i32: 2, 1>} : memref<64x128xf32, #tpu.memory_space<vmem>>, vector<3x128xf32>
    %256 = arith.maximumf %252, %253 : vector<3x128xf32>
    %257 = arith.maximumf %254, %255 : vector<3x128xf32>
    %258 = arith.maximumf %256, %257 : vector<3x128xf32>
    %c32_237 = arith.constant 32 : index
    %c0_238 = arith.constant 0 : index
    %259 = tpu.strided_load %arg9[%c32_237, %c0_238] {strides = array<i32: 2, 1>} : memref<64x128xf32, #tpu.memory_space<vmem>>, vector<3x128xf32>
    %c33_239 = arith.constant 33 : index
    %c0_240 = arith.constant 0 : index
    %260 = tpu.strided_load %arg9[%c33_239, %c0_240] {strides = array<i32: 2, 1>} : memref<64x128xf32, #tpu.memory_space<vmem>>, vector<3x128xf32>
    %c40_241 = arith.constant 40 : index
    %c0_242 = arith.constant 0 : index
    %261 = tpu.strided_load %arg9[%c40_241, %c0_242] {strides = array<i32: 2, 1>} : memref<64x128xf32, #tpu.memory_space<vmem>>, vector<3x128xf32>
    %c41_243 = arith.constant 41 : index
    %c0_244 = arith.constant 0 : index
    %262 = tpu.strided_load %arg9[%c41_243, %c0_244] {strides = array<i32: 2, 1>} : memref<64x128xf32, #tpu.memory_space<vmem>>, vector<3x128xf32>
    %263 = arith.maximumf %259, %260 : vector<3x128xf32>
    %264 = arith.maximumf %261, %262 : vector<3x128xf32>
    %265 = arith.maximumf %263, %264 : vector<3x128xf32>
    %266 = tpu.concatenate %251, %258, %265 in 0 : vector<3x128xf32>, vector<3x128xf32>, vector<3x128xf32> -> vector<9x128xf32>
    %267 = arith.addf %266, %5 : vector<9x128xf32>
    %cst_245 = arith.constant 0.000000e+00 : f32
    %268 = vector.broadcast %cst_245 : f32 to vector<9x128xf32>
    %269 = arith.maximumf %267, %268 : vector<9x128xf32>
    %270 = arith.mulf %269, %6 : vector<9x128xf32>
    %cst_246 = arith.constant dense<0.000000e+00> : vector<128xf32>
    %271 = vector.multi_reduction <add>, %270, %cst_246 [0] : vector<9x128xf32> to vector<128xf32>
    %272 = vector.shape_cast %271 : vector<128xf32> to vector<1x128xf32>
    %c2_247 = arith.constant 2 : index
    %c0_248 = arith.constant 0 : index
    %273 = vector.load %arg11[%c2_247, %c0_248] : memref<8x128xf32, #tpu.memory_space<vmem>>, vector<1x128xf32>
    tpu.vector_store %arg11[%c2_247, %c0_248], %272 {strides = array<i32>} : memref<8x128xf32, #tpu.memory_space<vmem>>, vector<1x128xf32>,
    %c768 = arith.constant 768 : index
    %c0_249 = arith.constant 0 : index
    %274 = vector.load %arg1[%c768, %c0_249] : memref<2048x200xf32, #tpu.memory_space<vmem>>, vector<128x200xf32>
    %c0_250 = arith.constant 0 : index
    %c0_251 = arith.constant 0 : index
    %275 = vector.load %arg2[%c0_250, %c0_251] : memref<200x128xf32, #tpu.memory_space<vmem>>, vector<200x128xf32>
    %cst_252 = arith.constant dense<0.000000e+00> : vector<128x128xf32>
    %276 = tpu.matmul %274, %275, %cst_252 {dimension_numbers = #tpu.dot_dimension_numbers<[1], [0], [0], [1], [0, 0, 1, 1], [], []>} : vector<128x200xf32>, vector<200x128xf32>, vector<128x128xf32> -> vector<128x128xf32>
    %277 = vector.shape_cast %276 : vector<128x128xf32> to vector<4x2x16x128xf32>
    %278 = vector.extract_strided_slice %277 {offsets = [0, 0, 0, 0], sizes = [4, 1, 16, 128], strides = [1, 1, 1, 1]} : vector<4x2x16x128xf32> to vector<4x1x16x128xf32>
    %279 = vector.shape_cast %278 : vector<4x1x16x128xf32> to vector<4x16x128xf32>
    %280 = vector.extract_strided_slice %277 {offsets = [0, 1, 0, 0], sizes = [4, 1, 16, 128], strides = [1, 1, 1, 1]} : vector<4x2x16x128xf32> to vector<4x1x16x128xf32>
    %281 = vector.shape_cast %280 : vector<4x1x16x128xf32> to vector<4x16x128xf32>
    %282 = arith.maximumf %279, %281 : vector<4x16x128xf32>
    %283 = vector.shape_cast %282 : vector<4x16x128xf32> to vector<64x128xf32>
    %c0_253 = arith.constant 0 : index
    %c0_254 = arith.constant 0 : index
    %284 = vector.load %arg9[%c0_253, %c0_254] : memref<64x128xf32, #tpu.memory_space<vmem>>, vector<64x128xf32>
    tpu.vector_store %arg9[%c0_253, %c0_254], %283 {strides = array<i32>} : memref<64x128xf32, #tpu.memory_space<vmem>>, vector<64x128xf32>,
    %c0_255 = arith.constant 0 : index
    %c0_256 = arith.constant 0 : index
    %285 = tpu.strided_load %arg9[%c0_255, %c0_256] {strides = array<i32: 2, 1>} : memref<64x128xf32, #tpu.memory_space<vmem>>, vector<32x128xf32>
    %c1_257 = arith.constant 1 : index
    %c0_258 = arith.constant 0 : index
    %286 = tpu.strided_load %arg9[%c1_257, %c0_258] {strides = array<i32: 2, 1>} : memref<64x128xf32, #tpu.memory_space<vmem>>, vector<32x128xf32>
    %287 = arith.maximumf %285, %286 : vector<32x128xf32>
    %288 = arith.addf %287, %2 : vector<32x128xf32>
    %cst_259 = arith.constant 0.000000e+00 : f32
    %289 = vector.broadcast %cst_259 : f32 to vector<32x128xf32>
    %290 = arith.maximumf %288, %289 : vector<32x128xf32>
    %c0_260 = arith.constant 0 : index
    %c0_261 = arith.constant 0 : index
    %291 = vector.load %arg10[%c0_260, %c0_261] : memref<64x128xf32, #tpu.memory_space<vmem>>, vector<32x128xf32>
    tpu.vector_store %arg10[%c0_260, %c0_261], %290 {strides = array<i32>} : memref<64x128xf32, #tpu.memory_space<vmem>>, vector<32x128xf32>,
    %c896 = arith.constant 896 : index
    %c0_262 = arith.constant 0 : index
    %292 = vector.load %arg1[%c896, %c0_262] : memref<2048x200xf32, #tpu.memory_space<vmem>>, vector<128x200xf32>
    %c0_263 = arith.constant 0 : index
    %c0_264 = arith.constant 0 : index
    %293 = vector.load %arg2[%c0_263, %c0_264] : memref<200x128xf32, #tpu.memory_space<vmem>>, vector<200x128xf32>
    %cst_265 = arith.constant dense<0.000000e+00> : vector<128x128xf32>
    %294 = tpu.matmul %292, %293, %cst_265 {dimension_numbers = #tpu.dot_dimension_numbers<[1], [0], [0], [1], [0, 0, 1, 1], [], []>} : vector<128x200xf32>, vector<200x128xf32>, vector<128x128xf32> -> vector<128x128xf32>
    %295 = vector.shape_cast %294 : vector<128x128xf32> to vector<4x2x16x128xf32>
    %296 = vector.extract_strided_slice %295 {offsets = [0, 0, 0, 0], sizes = [4, 1, 16, 128], strides = [1, 1, 1, 1]} : vector<4x2x16x128xf32> to vector<4x1x16x128xf32>
    %297 = vector.shape_cast %296 : vector<4x1x16x128xf32> to vector<4x16x128xf32>
    %298 = vector.extract_strided_slice %295 {offsets = [0, 1, 0, 0], sizes = [4, 1, 16, 128], strides = [1, 1, 1, 1]} : vector<4x2x16x128xf32> to vector<4x1x16x128xf32>
    %299 = vector.shape_cast %298 : vector<4x1x16x128xf32> to vector<4x16x128xf32>
    %300 = arith.maximumf %297, %299 : vector<4x16x128xf32>
    %301 = vector.shape_cast %300 : vector<4x16x128xf32> to vector<64x128xf32>
    %c0_266 = arith.constant 0 : index
    %c0_267 = arith.constant 0 : index
    %302 = vector.load %arg9[%c0_266, %c0_267] : memref<64x128xf32, #tpu.memory_space<vmem>>, vector<64x128xf32>
    tpu.vector_store %arg9[%c0_266, %c0_267], %301 {strides = array<i32>} : memref<64x128xf32, #tpu.memory_space<vmem>>, vector<64x128xf32>,
    %c0_268 = arith.constant 0 : index
    %c0_269 = arith.constant 0 : index
    %303 = tpu.strided_load %arg9[%c0_268, %c0_269] {strides = array<i32: 2, 1>} : memref<64x128xf32, #tpu.memory_space<vmem>>, vector<32x128xf32>
    %c1_270 = arith.constant 1 : index
    %c0_271 = arith.constant 0 : index
    %304 = tpu.strided_load %arg9[%c1_270, %c0_271] {strides = array<i32: 2, 1>} : memref<64x128xf32, #tpu.memory_space<vmem>>, vector<32x128xf32>
    %305 = arith.maximumf %303, %304 : vector<32x128xf32>
    %306 = arith.addf %305, %2 : vector<32x128xf32>
    %cst_272 = arith.constant 0.000000e+00 : f32
    %307 = vector.broadcast %cst_272 : f32 to vector<32x128xf32>
    %308 = arith.maximumf %306, %307 : vector<32x128xf32>
    %c32_273 = arith.constant 32 : index
    %c0_274 = arith.constant 0 : index
    %309 = vector.load %arg10[%c32_273, %c0_274] : memref<64x128xf32, #tpu.memory_space<vmem>>, vector<32x128xf32>
    tpu.vector_store %arg10[%c32_273, %c0_274], %308 {strides = array<i32>} : memref<64x128xf32, #tpu.memory_space<vmem>>, vector<32x128xf32>,
    %c0_275 = arith.constant 0 : index
    %c0_276 = arith.constant 0 : index
    %310 = vector.load %arg10[%c0_275, %c0_276] : memref<64x128xf32, #tpu.memory_space<vmem>>, vector<46x128xf32>
    %c1_277 = arith.constant 1 : index
    %c0_278 = arith.constant 0 : index
    %311 = vector.load %arg10[%c1_277, %c0_278] : memref<64x128xf32, #tpu.memory_space<vmem>>, vector<46x128xf32>
    %c2_279 = arith.constant 2 : index
    %c0_280 = arith.constant 0 : index
    %312 = vector.load %arg10[%c2_279, %c0_280] : memref<64x128xf32, #tpu.memory_space<vmem>>, vector<46x128xf32>
    %313 = tpu.concatenate %310, %311, %312 in 1 : vector<46x128xf32>, vector<46x128xf32>, vector<46x128xf32> -> vector<46x384xf32>
    %c0_281 = arith.constant 0 : index
    %c0_282 = arith.constant 0 : index
    %c0_283 = arith.constant 0 : index
    %314 = vector.load %arg4[%c0_281, %c0_282, %c0_283] : memref<3x384x128xf32, #tpu.memory_space<vmem>>, vector<1x384x128xf32>
    %315 = vector.shape_cast %314 : vector<1x384x128xf32> to vector<384x128xf32>
    %cst_284 = arith.constant dense<0.000000e+00> : vector<46x128xf32>
    %316 = tpu.matmul %313, %315, %cst_284 {dimension_numbers = #tpu.dot_dimension_numbers<[1], [0], [0], [1], [0, 0, 1, 1], [], []>} : vector<46x384xf32>, vector<384x128xf32>, vector<46x128xf32> -> vector<46x128xf32>
    %c8_285 = arith.constant 8 : index
    %c0_286 = arith.constant 0 : index
    %317 = vector.load %arg10[%c8_285, %c0_286] : memref<64x128xf32, #tpu.memory_space<vmem>>, vector<46x128xf32>
    %c9_287 = arith.constant 9 : index
    %c0_288 = arith.constant 0 : index
    %318 = vector.load %arg10[%c9_287, %c0_288] : memref<64x128xf32, #tpu.memory_space<vmem>>, vector<46x128xf32>
    %c10_289 = arith.constant 10 : index
    %c0_290 = arith.constant 0 : index
    %319 = vector.load %arg10[%c10_289, %c0_290] : memref<64x128xf32, #tpu.memory_space<vmem>>, vector<46x128xf32>
    %320 = tpu.concatenate %317, %318, %319 in 1 : vector<46x128xf32>, vector<46x128xf32>, vector<46x128xf32> -> vector<46x384xf32>
    %c1_291 = arith.constant 1 : index
    %c0_292 = arith.constant 0 : index
    %c0_293 = arith.constant 0 : index
    %321 = vector.load %arg4[%c1_291, %c0_292, %c0_293] : memref<3x384x128xf32, #tpu.memory_space<vmem>>, vector<1x384x128xf32>
    %322 = vector.shape_cast %321 : vector<1x384x128xf32> to vector<384x128xf32>
    %cst_294 = arith.constant dense<0.000000e+00> : vector<46x128xf32>
    %323 = tpu.matmul %320, %322, %cst_294 {dimension_numbers = #tpu.dot_dimension_numbers<[1], [0], [0], [1], [0, 0, 1, 1], [], []>} : vector<46x384xf32>, vector<384x128xf32>, vector<46x128xf32> -> vector<46x128xf32>
    %324 = arith.addf %316, %323 : vector<46x128xf32>
    %c16_295 = arith.constant 16 : index
    %c0_296 = arith.constant 0 : index
    %325 = vector.load %arg10[%c16_295, %c0_296] : memref<64x128xf32, #tpu.memory_space<vmem>>, vector<46x128xf32>
    %c17_297 = arith.constant 17 : index
    %c0_298 = arith.constant 0 : index
    %326 = vector.load %arg10[%c17_297, %c0_298] : memref<64x128xf32, #tpu.memory_space<vmem>>, vector<46x128xf32>
    %c18_299 = arith.constant 18 : index
    %c0_300 = arith.constant 0 : index
    %327 = vector.load %arg10[%c18_299, %c0_300] : memref<64x128xf32, #tpu.memory_space<vmem>>, vector<46x128xf32>
    %328 = tpu.concatenate %325, %326, %327 in 1 : vector<46x128xf32>, vector<46x128xf32>, vector<46x128xf32> -> vector<46x384xf32>
    %c2_301 = arith.constant 2 : index
    %c0_302 = arith.constant 0 : index
    %c0_303 = arith.constant 0 : index
    %329 = vector.load %arg4[%c2_301, %c0_302, %c0_303] : memref<3x384x128xf32, #tpu.memory_space<vmem>>, vector<1x384x128xf32>
    %330 = vector.shape_cast %329 : vector<1x384x128xf32> to vector<384x128xf32>
    %cst_304 = arith.constant dense<0.000000e+00> : vector<46x128xf32>
    %331 = tpu.matmul %328, %330, %cst_304 {dimension_numbers = #tpu.dot_dimension_numbers<[1], [0], [0], [1], [0, 0, 1, 1], [], []>} : vector<46x384xf32>, vector<384x128xf32>, vector<46x128xf32> -> vector<46x128xf32>
    %332 = arith.addf %324, %331 : vector<46x128xf32>
    %c0_305 = arith.constant 0 : index
    %c0_306 = arith.constant 0 : index
    %333 = vector.load %arg9[%c0_305, %c0_306] : memref<64x128xf32, #tpu.memory_space<vmem>>, vector<46x128xf32>
    tpu.vector_store %arg9[%c0_305, %c0_306], %332 {strides = array<i32>} : memref<64x128xf32, #tpu.memory_space<vmem>>, vector<46x128xf32>,
    %c0_307 = arith.constant 0 : index
    %c0_308 = arith.constant 0 : index
    %334 = tpu.strided_load %arg9[%c0_307, %c0_308] {strides = array<i32: 2, 1>} : memref<64x128xf32, #tpu.memory_space<vmem>>, vector<3x128xf32>
    %c1_309 = arith.constant 1 : index
    %c0_310 = arith.constant 0 : index
    %335 = tpu.strided_load %arg9[%c1_309, %c0_310] {strides = array<i32: 2, 1>} : memref<64x128xf32, #tpu.memory_space<vmem>>, vector<3x128xf32>
    %c8_311 = arith.constant 8 : index
    %c0_312 = arith.constant 0 : index
    %336 = tpu.strided_load %arg9[%c8_311, %c0_312] {strides = array<i32: 2, 1>} : memref<64x128xf32, #tpu.memory_space<vmem>>, vector<3x128xf32>
    %c9_313 = arith.constant 9 : index
    %c0_314 = arith.constant 0 : index
    %337 = tpu.strided_load %arg9[%c9_313, %c0_314] {strides = array<i32: 2, 1>} : memref<64x128xf32, #tpu.memory_space<vmem>>, vector<3x128xf32>
    %338 = arith.maximumf %334, %335 : vector<3x128xf32>
    %339 = arith.maximumf %336, %337 : vector<3x128xf32>
    %340 = arith.maximumf %338, %339 : vector<3x128xf32>
    %c16_315 = arith.constant 16 : index
    %c0_316 = arith.constant 0 : index
    %341 = tpu.strided_load %arg9[%c16_315, %c0_316] {strides = array<i32: 2, 1>} : memref<64x128xf32, #tpu.memory_space<vmem>>, vector<3x128xf32>
    %c17_317 = arith.constant 17 : index
    %c0_318 = arith.constant 0 : index
    %342 = tpu.strided_load %arg9[%c17_317, %c0_318] {strides = array<i32: 2, 1>} : memref<64x128xf32, #tpu.memory_space<vmem>>, vector<3x128xf32>
    %c24_319 = arith.constant 24 : index
    %c0_320 = arith.constant 0 : index
    %343 = tpu.strided_load %arg9[%c24_319, %c0_320] {strides = array<i32: 2, 1>} : memref<64x128xf32, #tpu.memory_space<vmem>>, vector<3x128xf32>
    %c25_321 = arith.constant 25 : index
    %c0_322 = arith.constant 0 : index
    %344 = tpu.strided_load %arg9[%c25_321, %c0_322] {strides = array<i32: 2, 1>} : memref<64x128xf32, #tpu.memory_space<vmem>>, vector<3x128xf32>
    %345 = arith.maximumf %341, %342 : vector<3x128xf32>
    %346 = arith.maximumf %343, %344 : vector<3x128xf32>
    %347 = arith.maximumf %345, %346 : vector<3x128xf32>
    %c32_323 = arith.constant 32 : index
    %c0_324 = arith.constant 0 : index
    %348 = tpu.strided_load %arg9[%c32_323, %c0_324] {strides = array<i32: 2, 1>} : memref<64x128xf32, #tpu.memory_space<vmem>>, vector<3x128xf32>
    %c33_325 = arith.constant 33 : index
    %c0_326 = arith.constant 0 : index
    %349 = tpu.strided_load %arg9[%c33_325, %c0_326] {strides = array<i32: 2, 1>} : memref<64x128xf32, #tpu.memory_space<vmem>>, vector<3x128xf32>
    %c40_327 = arith.constant 40 : index
    %c0_328 = arith.constant 0 : index
    %350 = tpu.strided_load %arg9[%c40_327, %c0_328] {strides = array<i32: 2, 1>} : memref<64x128xf32, #tpu.memory_space<vmem>>, vector<3x128xf32>
    %c41_329 = arith.constant 41 : index
    %c0_330 = arith.constant 0 : index
    %351 = tpu.strided_load %arg9[%c41_329, %c0_330] {strides = array<i32: 2, 1>} : memref<64x128xf32, #tpu.memory_space<vmem>>, vector<3x128xf32>
    %352 = arith.maximumf %348, %349 : vector<3x128xf32>
    %353 = arith.maximumf %350, %351 : vector<3x128xf32>
    %354 = arith.maximumf %352, %353 : vector<3x128xf32>
    %355 = tpu.concatenate %340, %347, %354 in 0 : vector<3x128xf32>, vector<3x128xf32>, vector<3x128xf32> -> vector<9x128xf32>
    %356 = arith.addf %355, %5 : vector<9x128xf32>
    %cst_331 = arith.constant 0.000000e+00 : f32
    %357 = vector.broadcast %cst_331 : f32 to vector<9x128xf32>
    %358 = arith.maximumf %356, %357 : vector<9x128xf32>
    %359 = arith.mulf %358, %6 : vector<9x128xf32>
    %cst_332 = arith.constant dense<0.000000e+00> : vector<128xf32>
    %360 = vector.multi_reduction <add>, %359, %cst_332 [0] : vector<9x128xf32> to vector<128xf32>
    %361 = vector.shape_cast %360 : vector<128xf32> to vector<1x128xf32>
    %c3 = arith.constant 3 : index
    %c0_333 = arith.constant 0 : index
    %362 = vector.load %arg11[%c3, %c0_333] : memref<8x128xf32, #tpu.memory_space<vmem>>, vector<1x128xf32>
    tpu.vector_store %arg11[%c3, %c0_333], %361 {strides = array<i32>} : memref<8x128xf32, #tpu.memory_space<vmem>>, vector<1x128xf32>,
    %c1024 = arith.constant 1024 : index
    %c0_334 = arith.constant 0 : index
    %363 = vector.load %arg1[%c1024, %c0_334] : memref<2048x200xf32, #tpu.memory_space<vmem>>, vector<128x200xf32>
    %c0_335 = arith.constant 0 : index
    %c0_336 = arith.constant 0 : index
    %364 = vector.load %arg2[%c0_335, %c0_336] : memref<200x128xf32, #tpu.memory_space<vmem>>, vector<200x128xf32>
    %cst_337 = arith.constant dense<0.000000e+00> : vector<128x128xf32>
    %365 = tpu.matmul %363, %364, %cst_337 {dimension_numbers = #tpu.dot_dimension_numbers<[1], [0], [0], [1], [0, 0, 1, 1], [], []>} : vector<128x200xf32>, vector<200x128xf32>, vector<128x128xf32> -> vector<128x128xf32>
    %366 = vector.shape_cast %365 : vector<128x128xf32> to vector<4x2x16x128xf32>
    %367 = vector.extract_strided_slice %366 {offsets = [0, 0, 0, 0], sizes = [4, 1, 16, 128], strides = [1, 1, 1, 1]} : vector<4x2x16x128xf32> to vector<4x1x16x128xf32>
    %368 = vector.shape_cast %367 : vector<4x1x16x128xf32> to vector<4x16x128xf32>
    %369 = vector.extract_strided_slice %366 {offsets = [0, 1, 0, 0], sizes = [4, 1, 16, 128], strides = [1, 1, 1, 1]} : vector<4x2x16x128xf32> to vector<4x1x16x128xf32>
    %370 = vector.shape_cast %369 : vector<4x1x16x128xf32> to vector<4x16x128xf32>
    %371 = arith.maximumf %368, %370 : vector<4x16x128xf32>
    %372 = vector.shape_cast %371 : vector<4x16x128xf32> to vector<64x128xf32>
    %c0_338 = arith.constant 0 : index
    %c0_339 = arith.constant 0 : index
    %373 = vector.load %arg9[%c0_338, %c0_339] : memref<64x128xf32, #tpu.memory_space<vmem>>, vector<64x128xf32>
    tpu.vector_store %arg9[%c0_338, %c0_339], %372 {strides = array<i32>} : memref<64x128xf32, #tpu.memory_space<vmem>>, vector<64x128xf32>,
    %c0_340 = arith.constant 0 : index
    %c0_341 = arith.constant 0 : index
    %374 = tpu.strided_load %arg9[%c0_340, %c0_341] {strides = array<i32: 2, 1>} : memref<64x128xf32, #tpu.memory_space<vmem>>, vector<32x128xf32>
    %c1_342 = arith.constant 1 : index
    %c0_343 = arith.constant 0 : index
    %375 = tpu.strided_load %arg9[%c1_342, %c0_343] {strides = array<i32: 2, 1>} : memref<64x128xf32, #tpu.memory_space<vmem>>, vector<32x128xf32>
    %376 = arith.maximumf %374, %375 : vector<32x128xf32>
    %377 = arith.addf %376, %2 : vector<32x128xf32>
    %cst_344 = arith.constant 0.000000e+00 : f32
    %378 = vector.broadcast %cst_344 : f32 to vector<32x128xf32>
    %379 = arith.maximumf %377, %378 : vector<32x128xf32>
    %c0_345 = arith.constant 0 : index
    %c0_346 = arith.constant 0 : index
    %380 = vector.load %arg10[%c0_345, %c0_346] : memref<64x128xf32, #tpu.memory_space<vmem>>, vector<32x128xf32>
    tpu.vector_store %arg10[%c0_345, %c0_346], %379 {strides = array<i32>} : memref<64x128xf32, #tpu.memory_space<vmem>>, vector<32x128xf32>,
    %c1152 = arith.constant 1152 : index
    %c0_347 = arith.constant 0 : index
    %381 = vector.load %arg1[%c1152, %c0_347] : memref<2048x200xf32, #tpu.memory_space<vmem>>, vector<128x200xf32>
    %c0_348 = arith.constant 0 : index
    %c0_349 = arith.constant 0 : index
    %382 = vector.load %arg2[%c0_348, %c0_349] : memref<200x128xf32, #tpu.memory_space<vmem>>, vector<200x128xf32>
    %cst_350 = arith.constant dense<0.000000e+00> : vector<128x128xf32>
    %383 = tpu.matmul %381, %382, %cst_350 {dimension_numbers = #tpu.dot_dimension_numbers<[1], [0], [0], [1], [0, 0, 1, 1], [], []>} : vector<128x200xf32>, vector<200x128xf32>, vector<128x128xf32> -> vector<128x128xf32>
    %384 = vector.shape_cast %383 : vector<128x128xf32> to vector<4x2x16x128xf32>
    %385 = vector.extract_strided_slice %384 {offsets = [0, 0, 0, 0], sizes = [4, 1, 16, 128], strides = [1, 1, 1, 1]} : vector<4x2x16x128xf32> to vector<4x1x16x128xf32>
    %386 = vector.shape_cast %385 : vector<4x1x16x128xf32> to vector<4x16x128xf32>
    %387 = vector.extract_strided_slice %384 {offsets = [0, 1, 0, 0], sizes = [4, 1, 16, 128], strides = [1, 1, 1, 1]} : vector<4x2x16x128xf32> to vector<4x1x16x128xf32>
    %388 = vector.shape_cast %387 : vector<4x1x16x128xf32> to vector<4x16x128xf32>
    %389 = arith.maximumf %386, %388 : vector<4x16x128xf32>
    %390 = vector.shape_cast %389 : vector<4x16x128xf32> to vector<64x128xf32>
    %c0_351 = arith.constant 0 : index
    %c0_352 = arith.constant 0 : index
    %391 = vector.load %arg9[%c0_351, %c0_352] : memref<64x128xf32, #tpu.memory_space<vmem>>, vector<64x128xf32>
    tpu.vector_store %arg9[%c0_351, %c0_352], %390 {strides = array<i32>} : memref<64x128xf32, #tpu.memory_space<vmem>>, vector<64x128xf32>,
    %c0_353 = arith.constant 0 : index
    %c0_354 = arith.constant 0 : index
    %392 = tpu.strided_load %arg9[%c0_353, %c0_354] {strides = array<i32: 2, 1>} : memref<64x128xf32, #tpu.memory_space<vmem>>, vector<32x128xf32>
    %c1_355 = arith.constant 1 : index
    %c0_356 = arith.constant 0 : index
    %393 = tpu.strided_load %arg9[%c1_355, %c0_356] {strides = array<i32: 2, 1>} : memref<64x128xf32, #tpu.memory_space<vmem>>, vector<32x128xf32>
    %394 = arith.maximumf %392, %393 : vector<32x128xf32>
    %395 = arith.addf %394, %2 : vector<32x128xf32>
    %cst_357 = arith.constant 0.000000e+00 : f32
    %396 = vector.broadcast %cst_357 : f32 to vector<32x128xf32>
    %397 = arith.maximumf %395, %396 : vector<32x128xf32>
    %c32_358 = arith.constant 32 : index
    %c0_359 = arith.constant 0 : index
    %398 = vector.load %arg10[%c32_358, %c0_359] : memref<64x128xf32, #tpu.memory_space<vmem>>, vector<32x128xf32>
    tpu.vector_store %arg10[%c32_358, %c0_359], %397 {strides = array<i32>} : memref<64x128xf32, #tpu.memory_space<vmem>>, vector<32x128xf32>,
    %c0_360 = arith.constant 0 : index
    %c0_361 = arith.constant 0 : index
    %399 = vector.load %arg10[%c0_360, %c0_361] : memref<64x128xf32, #tpu.memory_space<vmem>>, vector<46x128xf32>
    %c1_362 = arith.constant 1 : index
    %c0_363 = arith.constant 0 : index
    %400 = vector.load %arg10[%c1_362, %c0_363] : memref<64x128xf32, #tpu.memory_space<vmem>>, vector<46x128xf32>
    %c2_364 = arith.constant 2 : index
    %c0_365 = arith.constant 0 : index
    %401 = vector.load %arg10[%c2_364, %c0_365] : memref<64x128xf32, #tpu.memory_space<vmem>>, vector<46x128xf32>
    %402 = tpu.concatenate %399, %400, %401 in 1 : vector<46x128xf32>, vector<46x128xf32>, vector<46x128xf32> -> vector<46x384xf32>
    %c0_366 = arith.constant 0 : index
    %c0_367 = arith.constant 0 : index
    %c0_368 = arith.constant 0 : index
    %403 = vector.load %arg4[%c0_366, %c0_367, %c0_368] : memref<3x384x128xf32, #tpu.memory_space<vmem>>, vector<1x384x128xf32>
    %404 = vector.shape_cast %403 : vector<1x384x128xf32> to vector<384x128xf32>
    %cst_369 = arith.constant dense<0.000000e+00> : vector<46x128xf32>
    %405 = tpu.matmul %402, %404, %cst_369 {dimension_numbers = #tpu.dot_dimension_numbers<[1], [0], [0], [1], [0, 0, 1, 1], [], []>} : vector<46x384xf32>, vector<384x128xf32>, vector<46x128xf32> -> vector<46x128xf32>
    %c8_370 = arith.constant 8 : index
    %c0_371 = arith.constant 0 : index
    %406 = vector.load %arg10[%c8_370, %c0_371] : memref<64x128xf32, #tpu.memory_space<vmem>>, vector<46x128xf32>
    %c9_372 = arith.constant 9 : index
    %c0_373 = arith.constant 0 : index
    %407 = vector.load %arg10[%c9_372, %c0_373] : memref<64x128xf32, #tpu.memory_space<vmem>>, vector<46x128xf32>
    %c10_374 = arith.constant 10 : index
    %c0_375 = arith.constant 0 : index
    %408 = vector.load %arg10[%c10_374, %c0_375] : memref<64x128xf32, #tpu.memory_space<vmem>>, vector<46x128xf32>
    %409 = tpu.concatenate %406, %407, %408 in 1 : vector<46x128xf32>, vector<46x128xf32>, vector<46x128xf32> -> vector<46x384xf32>
    %c1_376 = arith.constant 1 : index
    %c0_377 = arith.constant 0 : index
    %c0_378 = arith.constant 0 : index
    %410 = vector.load %arg4[%c1_376, %c0_377, %c0_378] : memref<3x384x128xf32, #tpu.memory_space<vmem>>, vector<1x384x128xf32>
    %411 = vector.shape_cast %410 : vector<1x384x128xf32> to vector<384x128xf32>
    %cst_379 = arith.constant dense<0.000000e+00> : vector<46x128xf32>
    %412 = tpu.matmul %409, %411, %cst_379 {dimension_numbers = #tpu.dot_dimension_numbers<[1], [0], [0], [1], [0, 0, 1, 1], [], []>} : vector<46x384xf32>, vector<384x128xf32>, vector<46x128xf32> -> vector<46x128xf32>
    %413 = arith.addf %405, %412 : vector<46x128xf32>
    %c16_380 = arith.constant 16 : index
    %c0_381 = arith.constant 0 : index
    %414 = vector.load %arg10[%c16_380, %c0_381] : memref<64x128xf32, #tpu.memory_space<vmem>>, vector<46x128xf32>
    %c17_382 = arith.constant 17 : index
    %c0_383 = arith.constant 0 : index
    %415 = vector.load %arg10[%c17_382, %c0_383] : memref<64x128xf32, #tpu.memory_space<vmem>>, vector<46x128xf32>
    %c18_384 = arith.constant 18 : index
    %c0_385 = arith.constant 0 : index
    %416 = vector.load %arg10[%c18_384, %c0_385] : memref<64x128xf32, #tpu.memory_space<vmem>>, vector<46x128xf32>
    %417 = tpu.concatenate %414, %415, %416 in 1 : vector<46x128xf32>, vector<46x128xf32>, vector<46x128xf32> -> vector<46x384xf32>
    %c2_386 = arith.constant 2 : index
    %c0_387 = arith.constant 0 : index
    %c0_388 = arith.constant 0 : index
    %418 = vector.load %arg4[%c2_386, %c0_387, %c0_388] : memref<3x384x128xf32, #tpu.memory_space<vmem>>, vector<1x384x128xf32>
    %419 = vector.shape_cast %418 : vector<1x384x128xf32> to vector<384x128xf32>
    %cst_389 = arith.constant dense<0.000000e+00> : vector<46x128xf32>
    %420 = tpu.matmul %417, %419, %cst_389 {dimension_numbers = #tpu.dot_dimension_numbers<[1], [0], [0], [1], [0, 0, 1, 1], [], []>} : vector<46x384xf32>, vector<384x128xf32>, vector<46x128xf32> -> vector<46x128xf32>
    %421 = arith.addf %413, %420 : vector<46x128xf32>
    %c0_390 = arith.constant 0 : index
    %c0_391 = arith.constant 0 : index
    %422 = vector.load %arg9[%c0_390, %c0_391] : memref<64x128xf32, #tpu.memory_space<vmem>>, vector<46x128xf32>
    tpu.vector_store %arg9[%c0_390, %c0_391], %421 {strides = array<i32>} : memref<64x128xf32, #tpu.memory_space<vmem>>, vector<46x128xf32>,
    %c0_392 = arith.constant 0 : index
    %c0_393 = arith.constant 0 : index
    %423 = tpu.strided_load %arg9[%c0_392, %c0_393] {strides = array<i32: 2, 1>} : memref<64x128xf32, #tpu.memory_space<vmem>>, vector<3x128xf32>
    %c1_394 = arith.constant 1 : index
    %c0_395 = arith.constant 0 : index
    %424 = tpu.strided_load %arg9[%c1_394, %c0_395] {strides = array<i32: 2, 1>} : memref<64x128xf32, #tpu.memory_space<vmem>>, vector<3x128xf32>
    %c8_396 = arith.constant 8 : index
    %c0_397 = arith.constant 0 : index
    %425 = tpu.strided_load %arg9[%c8_396, %c0_397] {strides = array<i32: 2, 1>} : memref<64x128xf32, #tpu.memory_space<vmem>>, vector<3x128xf32>
    %c9_398 = arith.constant 9 : index
    %c0_399 = arith.constant 0 : index
    %426 = tpu.strided_load %arg9[%c9_398, %c0_399] {strides = array<i32: 2, 1>} : memref<64x128xf32, #tpu.memory_space<vmem>>, vector<3x128xf32>
    %427 = arith.maximumf %423, %424 : vector<3x128xf32>
    %428 = arith.maximumf %425, %426 : vector<3x128xf32>
    %429 = arith.maximumf %427, %428 : vector<3x128xf32>
    %c16_400 = arith.constant 16 : index
    %c0_401 = arith.constant 0 : index
    %430 = tpu.strided_load %arg9[%c16_400, %c0_401] {strides = array<i32: 2, 1>} : memref<64x128xf32, #tpu.memory_space<vmem>>, vector<3x128xf32>
    %c17_402 = arith.constant 17 : index
    %c0_403 = arith.constant 0 : index
    %431 = tpu.strided_load %arg9[%c17_402, %c0_403] {strides = array<i32: 2, 1>} : memref<64x128xf32, #tpu.memory_space<vmem>>, vector<3x128xf32>
    %c24_404 = arith.constant 24 : index
    %c0_405 = arith.constant 0 : index
    %432 = tpu.strided_load %arg9[%c24_404, %c0_405] {strides = array<i32: 2, 1>} : memref<64x128xf32, #tpu.memory_space<vmem>>, vector<3x128xf32>
    %c25_406 = arith.constant 25 : index
    %c0_407 = arith.constant 0 : index
    %433 = tpu.strided_load %arg9[%c25_406, %c0_407] {strides = array<i32: 2, 1>} : memref<64x128xf32, #tpu.memory_space<vmem>>, vector<3x128xf32>
    %434 = arith.maximumf %430, %431 : vector<3x128xf32>
    %435 = arith.maximumf %432, %433 : vector<3x128xf32>
    %436 = arith.maximumf %434, %435 : vector<3x128xf32>
    %c32_408 = arith.constant 32 : index
    %c0_409 = arith.constant 0 : index
    %437 = tpu.strided_load %arg9[%c32_408, %c0_409] {strides = array<i32: 2, 1>} : memref<64x128xf32, #tpu.memory_space<vmem>>, vector<3x128xf32>
    %c33_410 = arith.constant 33 : index
    %c0_411 = arith.constant 0 : index
    %438 = tpu.strided_load %arg9[%c33_410, %c0_411] {strides = array<i32: 2, 1>} : memref<64x128xf32, #tpu.memory_space<vmem>>, vector<3x128xf32>
    %c40_412 = arith.constant 40 : index
    %c0_413 = arith.constant 0 : index
    %439 = tpu.strided_load %arg9[%c40_412, %c0_413] {strides = array<i32: 2, 1>} : memref<64x128xf32, #tpu.memory_space<vmem>>, vector<3x128xf32>
    %c41_414 = arith.constant 41 : index
    %c0_415 = arith.constant 0 : index
    %440 = tpu.strided_load %arg9[%c41_414, %c0_415] {strides = array<i32: 2, 1>} : memref<64x128xf32, #tpu.memory_space<vmem>>, vector<3x128xf32>
    %441 = arith.maximumf %437, %438 : vector<3x128xf32>
    %442 = arith.maximumf %439, %440 : vector<3x128xf32>
    %443 = arith.maximumf %441, %442 : vector<3x128xf32>
    %444 = tpu.concatenate %429, %436, %443 in 0 : vector<3x128xf32>, vector<3x128xf32>, vector<3x128xf32> -> vector<9x128xf32>
    %445 = arith.addf %444, %5 : vector<9x128xf32>
    %cst_416 = arith.constant 0.000000e+00 : f32
    %446 = vector.broadcast %cst_416 : f32 to vector<9x128xf32>
    %447 = arith.maximumf %445, %446 : vector<9x128xf32>
    %448 = arith.mulf %447, %6 : vector<9x128xf32>
    %cst_417 = arith.constant dense<0.000000e+00> : vector<128xf32>
    %449 = vector.multi_reduction <add>, %448, %cst_417 [0] : vector<9x128xf32> to vector<128xf32>
    %450 = vector.shape_cast %449 : vector<128xf32> to vector<1x128xf32>
    %c4 = arith.constant 4 : index
    %c0_418 = arith.constant 0 : index
    %451 = vector.load %arg11[%c4, %c0_418] : memref<8x128xf32, #tpu.memory_space<vmem>>, vector<1x128xf32>
    tpu.vector_store %arg11[%c4, %c0_418], %450 {strides = array<i32>} : memref<8x128xf32, #tpu.memory_space<vmem>>, vector<1x128xf32>,
    %c1280 = arith.constant 1280 : index
    %c0_419 = arith.constant 0 : index
    %452 = vector.load %arg1[%c1280, %c0_419] : memref<2048x200xf32, #tpu.memory_space<vmem>>, vector<128x200xf32>
    %c0_420 = arith.constant 0 : index
    %c0_421 = arith.constant 0 : index
    %453 = vector.load %arg2[%c0_420, %c0_421] : memref<200x128xf32, #tpu.memory_space<vmem>>, vector<200x128xf32>
    %cst_422 = arith.constant dense<0.000000e+00> : vector<128x128xf32>
    %454 = tpu.matmul %452, %453, %cst_422 {dimension_numbers = #tpu.dot_dimension_numbers<[1], [0], [0], [1], [0, 0, 1, 1], [], []>} : vector<128x200xf32>, vector<200x128xf32>, vector<128x128xf32> -> vector<128x128xf32>
    %455 = vector.shape_cast %454 : vector<128x128xf32> to vector<4x2x16x128xf32>
    %456 = vector.extract_strided_slice %455 {offsets = [0, 0, 0, 0], sizes = [4, 1, 16, 128], strides = [1, 1, 1, 1]} : vector<4x2x16x128xf32> to vector<4x1x16x128xf32>
    %457 = vector.shape_cast %456 : vector<4x1x16x128xf32> to vector<4x16x128xf32>
    %458 = vector.extract_strided_slice %455 {offsets = [0, 1, 0, 0], sizes = [4, 1, 16, 128], strides = [1, 1, 1, 1]} : vector<4x2x16x128xf32> to vector<4x1x16x128xf32>
    %459 = vector.shape_cast %458 : vector<4x1x16x128xf32> to vector<4x16x128xf32>
    %460 = arith.maximumf %457, %459 : vector<4x16x128xf32>
    %461 = vector.shape_cast %460 : vector<4x16x128xf32> to vector<64x128xf32>
    %c0_423 = arith.constant 0 : index
    %c0_424 = arith.constant 0 : index
    %462 = vector.load %arg9[%c0_423, %c0_424] : memref<64x128xf32, #tpu.memory_space<vmem>>, vector<64x128xf32>
    tpu.vector_store %arg9[%c0_423, %c0_424], %461 {strides = array<i32>} : memref<64x128xf32, #tpu.memory_space<vmem>>, vector<64x128xf32>,
    %c0_425 = arith.constant 0 : index
    %c0_426 = arith.constant 0 : index
    %463 = tpu.strided_load %arg9[%c0_425, %c0_426] {strides = array<i32: 2, 1>} : memref<64x128xf32, #tpu.memory_space<vmem>>, vector<32x128xf32>
    %c1_427 = arith.constant 1 : index
    %c0_428 = arith.constant 0 : index
    %464 = tpu.strided_load %arg9[%c1_427, %c0_428] {strides = array<i32: 2, 1>} : memref<64x128xf32, #tpu.memory_space<vmem>>, vector<32x128xf32>
    %465 = arith.maximumf %463, %464 : vector<32x128xf32>
    %466 = arith.addf %465, %2 : vector<32x128xf32>
    %cst_429 = arith.constant 0.000000e+00 : f32
    %467 = vector.broadcast %cst_429 : f32 to vector<32x128xf32>
    %468 = arith.maximumf %466, %467 : vector<32x128xf32>
    %c0_430 = arith.constant 0 : index
    %c0_431 = arith.constant 0 : index
    %469 = vector.load %arg10[%c0_430, %c0_431] : memref<64x128xf32, #tpu.memory_space<vmem>>, vector<32x128xf32>
    tpu.vector_store %arg10[%c0_430, %c0_431], %468 {strides = array<i32>} : memref<64x128xf32, #tpu.memory_space<vmem>>, vector<32x128xf32>,
    %c1408 = arith.constant 1408 : index
    %c0_432 = arith.constant 0 : index
    %470 = vector.load %arg1[%c1408, %c0_432] : memref<2048x200xf32, #tpu.memory_space<vmem>>, vector<128x200xf32>
    %c0_433 = arith.constant 0 : index
    %c0_434 = arith.constant 0 : index
    %471 = vector.load %arg2[%c0_433, %c0_434] : memref<200x128xf32, #tpu.memory_space<vmem>>, vector<200x128xf32>
    %cst_435 = arith.constant dense<0.000000e+00> : vector<128x128xf32>
    %472 = tpu.matmul %470, %471, %cst_435 {dimension_numbers = #tpu.dot_dimension_numbers<[1], [0], [0], [1], [0, 0, 1, 1], [], []>} : vector<128x200xf32>, vector<200x128xf32>, vector<128x128xf32> -> vector<128x128xf32>
    %473 = vector.shape_cast %472 : vector<128x128xf32> to vector<4x2x16x128xf32>
    %474 = vector.extract_strided_slice %473 {offsets = [0, 0, 0, 0], sizes = [4, 1, 16, 128], strides = [1, 1, 1, 1]} : vector<4x2x16x128xf32> to vector<4x1x16x128xf32>
    %475 = vector.shape_cast %474 : vector<4x1x16x128xf32> to vector<4x16x128xf32>
    %476 = vector.extract_strided_slice %473 {offsets = [0, 1, 0, 0], sizes = [4, 1, 16, 128], strides = [1, 1, 1, 1]} : vector<4x2x16x128xf32> to vector<4x1x16x128xf32>
    %477 = vector.shape_cast %476 : vector<4x1x16x128xf32> to vector<4x16x128xf32>
    %478 = arith.maximumf %475, %477 : vector<4x16x128xf32>
    %479 = vector.shape_cast %478 : vector<4x16x128xf32> to vector<64x128xf32>
    %c0_436 = arith.constant 0 : index
    %c0_437 = arith.constant 0 : index
    %480 = vector.load %arg9[%c0_436, %c0_437] : memref<64x128xf32, #tpu.memory_space<vmem>>, vector<64x128xf32>
    tpu.vector_store %arg9[%c0_436, %c0_437], %479 {strides = array<i32>} : memref<64x128xf32, #tpu.memory_space<vmem>>, vector<64x128xf32>,
    %c0_438 = arith.constant 0 : index
    %c0_439 = arith.constant 0 : index
    %481 = tpu.strided_load %arg9[%c0_438, %c0_439] {strides = array<i32: 2, 1>} : memref<64x128xf32, #tpu.memory_space<vmem>>, vector<32x128xf32>
    %c1_440 = arith.constant 1 : index
    %c0_441 = arith.constant 0 : index
    %482 = tpu.strided_load %arg9[%c1_440, %c0_441] {strides = array<i32: 2, 1>} : memref<64x128xf32, #tpu.memory_space<vmem>>, vector<32x128xf32>
    %483 = arith.maximumf %481, %482 : vector<32x128xf32>
    %484 = arith.addf %483, %2 : vector<32x128xf32>
    %cst_442 = arith.constant 0.000000e+00 : f32
    %485 = vector.broadcast %cst_442 : f32 to vector<32x128xf32>
    %486 = arith.maximumf %484, %485 : vector<32x128xf32>
    %c32_443 = arith.constant 32 : index
    %c0_444 = arith.constant 0 : index
    %487 = vector.load %arg10[%c32_443, %c0_444] : memref<64x128xf32, #tpu.memory_space<vmem>>, vector<32x128xf32>
    tpu.vector_store %arg10[%c32_443, %c0_444], %486 {strides = array<i32>} : memref<64x128xf32, #tpu.memory_space<vmem>>, vector<32x128xf32>,
    %c0_445 = arith.constant 0 : index
    %c0_446 = arith.constant 0 : index
    %488 = vector.load %arg10[%c0_445, %c0_446] : memref<64x128xf32, #tpu.memory_space<vmem>>, vector<46x128xf32>
    %c1_447 = arith.constant 1 : index
    %c0_448 = arith.constant 0 : index
    %489 = vector.load %arg10[%c1_447, %c0_448] : memref<64x128xf32, #tpu.memory_space<vmem>>, vector<46x128xf32>
    %c2_449 = arith.constant 2 : index
    %c0_450 = arith.constant 0 : index
    %490 = vector.load %arg10[%c2_449, %c0_450] : memref<64x128xf32, #tpu.memory_space<vmem>>, vector<46x128xf32>
    %491 = tpu.concatenate %488, %489, %490 in 1 : vector<46x128xf32>, vector<46x128xf32>, vector<46x128xf32> -> vector<46x384xf32>
    %c0_451 = arith.constant 0 : index
    %c0_452 = arith.constant 0 : index
    %c0_453 = arith.constant 0 : index
    %492 = vector.load %arg4[%c0_451, %c0_452, %c0_453] : memref<3x384x128xf32, #tpu.memory_space<vmem>>, vector<1x384x128xf32>
    %493 = vector.shape_cast %492 : vector<1x384x128xf32> to vector<384x128xf32>
    %cst_454 = arith.constant dense<0.000000e+00> : vector<46x128xf32>
    %494 = tpu.matmul %491, %493, %cst_454 {dimension_numbers = #tpu.dot_dimension_numbers<[1], [0], [0], [1], [0, 0, 1, 1], [], []>} : vector<46x384xf32>, vector<384x128xf32>, vector<46x128xf32> -> vector<46x128xf32>
    %c8_455 = arith.constant 8 : index
    %c0_456 = arith.constant 0 : index
    %495 = vector.load %arg10[%c8_455, %c0_456] : memref<64x128xf32, #tpu.memory_space<vmem>>, vector<46x128xf32>
    %c9_457 = arith.constant 9 : index
    %c0_458 = arith.constant 0 : index
    %496 = vector.load %arg10[%c9_457, %c0_458] : memref<64x128xf32, #tpu.memory_space<vmem>>, vector<46x128xf32>
    %c10_459 = arith.constant 10 : index
    %c0_460 = arith.constant 0 : index
    %497 = vector.load %arg10[%c10_459, %c0_460] : memref<64x128xf32, #tpu.memory_space<vmem>>, vector<46x128xf32>
    %498 = tpu.concatenate %495, %496, %497 in 1 : vector<46x128xf32>, vector<46x128xf32>, vector<46x128xf32> -> vector<46x384xf32>
    %c1_461 = arith.constant 1 : index
    %c0_462 = arith.constant 0 : index
    %c0_463 = arith.constant 0 : index
    %499 = vector.load %arg4[%c1_461, %c0_462, %c0_463] : memref<3x384x128xf32, #tpu.memory_space<vmem>>, vector<1x384x128xf32>
    %500 = vector.shape_cast %499 : vector<1x384x128xf32> to vector<384x128xf32>
    %cst_464 = arith.constant dense<0.000000e+00> : vector<46x128xf32>
    %501 = tpu.matmul %498, %500, %cst_464 {dimension_numbers = #tpu.dot_dimension_numbers<[1], [0], [0], [1], [0, 0, 1, 1], [], []>} : vector<46x384xf32>, vector<384x128xf32>, vector<46x128xf32> -> vector<46x128xf32>
    %502 = arith.addf %494, %501 : vector<46x128xf32>
    %c16_465 = arith.constant 16 : index
    %c0_466 = arith.constant 0 : index
    %503 = vector.load %arg10[%c16_465, %c0_466] : memref<64x128xf32, #tpu.memory_space<vmem>>, vector<46x128xf32>
    %c17_467 = arith.constant 17 : index
    %c0_468 = arith.constant 0 : index
    %504 = vector.load %arg10[%c17_467, %c0_468] : memref<64x128xf32, #tpu.memory_space<vmem>>, vector<46x128xf32>
    %c18_469 = arith.constant 18 : index
    %c0_470 = arith.constant 0 : index
    %505 = vector.load %arg10[%c18_469, %c0_470] : memref<64x128xf32, #tpu.memory_space<vmem>>, vector<46x128xf32>
    %506 = tpu.concatenate %503, %504, %505 in 1 : vector<46x128xf32>, vector<46x128xf32>, vector<46x128xf32> -> vector<46x384xf32>
    %c2_471 = arith.constant 2 : index
    %c0_472 = arith.constant 0 : index
    %c0_473 = arith.constant 0 : index
    %507 = vector.load %arg4[%c2_471, %c0_472, %c0_473] : memref<3x384x128xf32, #tpu.memory_space<vmem>>, vector<1x384x128xf32>
    %508 = vector.shape_cast %507 : vector<1x384x128xf32> to vector<384x128xf32>
    %cst_474 = arith.constant dense<0.000000e+00> : vector<46x128xf32>
    %509 = tpu.matmul %506, %508, %cst_474 {dimension_numbers = #tpu.dot_dimension_numbers<[1], [0], [0], [1], [0, 0, 1, 1], [], []>} : vector<46x384xf32>, vector<384x128xf32>, vector<46x128xf32> -> vector<46x128xf32>
    %510 = arith.addf %502, %509 : vector<46x128xf32>
    %c0_475 = arith.constant 0 : index
    %c0_476 = arith.constant 0 : index
    %511 = vector.load %arg9[%c0_475, %c0_476] : memref<64x128xf32, #tpu.memory_space<vmem>>, vector<46x128xf32>
    tpu.vector_store %arg9[%c0_475, %c0_476], %510 {strides = array<i32>} : memref<64x128xf32, #tpu.memory_space<vmem>>, vector<46x128xf32>,
    %c0_477 = arith.constant 0 : index
    %c0_478 = arith.constant 0 : index
    %512 = tpu.strided_load %arg9[%c0_477, %c0_478] {strides = array<i32: 2, 1>} : memref<64x128xf32, #tpu.memory_space<vmem>>, vector<3x128xf32>
    %c1_479 = arith.constant 1 : index
    %c0_480 = arith.constant 0 : index
    %513 = tpu.strided_load %arg9[%c1_479, %c0_480] {strides = array<i32: 2, 1>} : memref<64x128xf32, #tpu.memory_space<vmem>>, vector<3x128xf32>
    %c8_481 = arith.constant 8 : index
    %c0_482 = arith.constant 0 : index
    %514 = tpu.strided_load %arg9[%c8_481, %c0_482] {strides = array<i32: 2, 1>} : memref<64x128xf32, #tpu.memory_space<vmem>>, vector<3x128xf32>
    %c9_483 = arith.constant 9 : index
    %c0_484 = arith.constant 0 : index
    %515 = tpu.strided_load %arg9[%c9_483, %c0_484] {strides = array<i32: 2, 1>} : memref<64x128xf32, #tpu.memory_space<vmem>>, vector<3x128xf32>
    %516 = arith.maximumf %512, %513 : vector<3x128xf32>
    %517 = arith.maximumf %514, %515 : vector<3x128xf32>
    %518 = arith.maximumf %516, %517 : vector<3x128xf32>
    %c16_485 = arith.constant 16 : index
    %c0_486 = arith.constant 0 : index
    %519 = tpu.strided_load %arg9[%c16_485, %c0_486] {strides = array<i32: 2, 1>} : memref<64x128xf32, #tpu.memory_space<vmem>>, vector<3x128xf32>
    %c17_487 = arith.constant 17 : index
    %c0_488 = arith.constant 0 : index
    %520 = tpu.strided_load %arg9[%c17_487, %c0_488] {strides = array<i32: 2, 1>} : memref<64x128xf32, #tpu.memory_space<vmem>>, vector<3x128xf32>
    %c24_489 = arith.constant 24 : index
    %c0_490 = arith.constant 0 : index
    %521 = tpu.strided_load %arg9[%c24_489, %c0_490] {strides = array<i32: 2, 1>} : memref<64x128xf32, #tpu.memory_space<vmem>>, vector<3x128xf32>
    %c25_491 = arith.constant 25 : index
    %c0_492 = arith.constant 0 : index
    %522 = tpu.strided_load %arg9[%c25_491, %c0_492] {strides = array<i32: 2, 1>} : memref<64x128xf32, #tpu.memory_space<vmem>>, vector<3x128xf32>
    %523 = arith.maximumf %519, %520 : vector<3x128xf32>
    %524 = arith.maximumf %521, %522 : vector<3x128xf32>
    %525 = arith.maximumf %523, %524 : vector<3x128xf32>
    %c32_493 = arith.constant 32 : index
    %c0_494 = arith.constant 0 : index
    %526 = tpu.strided_load %arg9[%c32_493, %c0_494] {strides = array<i32: 2, 1>} : memref<64x128xf32, #tpu.memory_space<vmem>>, vector<3x128xf32>
    %c33_495 = arith.constant 33 : index
    %c0_496 = arith.constant 0 : index
    %527 = tpu.strided_load %arg9[%c33_495, %c0_496] {strides = array<i32: 2, 1>} : memref<64x128xf32, #tpu.memory_space<vmem>>, vector<3x128xf32>
    %c40_497 = arith.constant 40 : index
    %c0_498 = arith.constant 0 : index
    %528 = tpu.strided_load %arg9[%c40_497, %c0_498] {strides = array<i32: 2, 1>} : memref<64x128xf32, #tpu.memory_space<vmem>>, vector<3x128xf32>
    %c41_499 = arith.constant 41 : index
    %c0_500 = arith.constant 0 : index
    %529 = tpu.strided_load %arg9[%c41_499, %c0_500] {strides = array<i32: 2, 1>} : memref<64x128xf32, #tpu.memory_space<vmem>>, vector<3x128xf32>
    %530 = arith.maximumf %526, %527 : vector<3x128xf32>
    %531 = arith.maximumf %528, %529 : vector<3x128xf32>
    %532 = arith.maximumf %530, %531 : vector<3x128xf32>
    %533 = tpu.concatenate %518, %525, %532 in 0 : vector<3x128xf32>, vector<3x128xf32>, vector<3x128xf32> -> vector<9x128xf32>
    %534 = arith.addf %533, %5 : vector<9x128xf32>
    %cst_501 = arith.constant 0.000000e+00 : f32
    %535 = vector.broadcast %cst_501 : f32 to vector<9x128xf32>
    %536 = arith.maximumf %534, %535 : vector<9x128xf32>
    %537 = arith.mulf %536, %6 : vector<9x128xf32>
    %cst_502 = arith.constant dense<0.000000e+00> : vector<128xf32>
    %538 = vector.multi_reduction <add>, %537, %cst_502 [0] : vector<9x128xf32> to vector<128xf32>
    %539 = vector.shape_cast %538 : vector<128xf32> to vector<1x128xf32>
    %c5 = arith.constant 5 : index
    %c0_503 = arith.constant 0 : index
    %540 = vector.load %arg11[%c5, %c0_503] : memref<8x128xf32, #tpu.memory_space<vmem>>, vector<1x128xf32>
    tpu.vector_store %arg11[%c5, %c0_503], %539 {strides = array<i32>} : memref<8x128xf32, #tpu.memory_space<vmem>>, vector<1x128xf32>,
    %c1536 = arith.constant 1536 : index
    %c0_504 = arith.constant 0 : index
    %541 = vector.load %arg1[%c1536, %c0_504] : memref<2048x200xf32, #tpu.memory_space<vmem>>, vector<128x200xf32>
    %c0_505 = arith.constant 0 : index
    %c0_506 = arith.constant 0 : index
    %542 = vector.load %arg2[%c0_505, %c0_506] : memref<200x128xf32, #tpu.memory_space<vmem>>, vector<200x128xf32>
    %cst_507 = arith.constant dense<0.000000e+00> : vector<128x128xf32>
    %543 = tpu.matmul %541, %542, %cst_507 {dimension_numbers = #tpu.dot_dimension_numbers<[1], [0], [0], [1], [0, 0, 1, 1], [], []>} : vector<128x200xf32>, vector<200x128xf32>, vector<128x128xf32> -> vector<128x128xf32>
    %544 = vector.shape_cast %543 : vector<128x128xf32> to vector<4x2x16x128xf32>
    %545 = vector.extract_strided_slice %544 {offsets = [0, 0, 0, 0], sizes = [4, 1, 16, 128], strides = [1, 1, 1, 1]} : vector<4x2x16x128xf32> to vector<4x1x16x128xf32>
    %546 = vector.shape_cast %545 : vector<4x1x16x128xf32> to vector<4x16x128xf32>
    %547 = vector.extract_strided_slice %544 {offsets = [0, 1, 0, 0], sizes = [4, 1, 16, 128], strides = [1, 1, 1, 1]} : vector<4x2x16x128xf32> to vector<4x1x16x128xf32>
    %548 = vector.shape_cast %547 : vector<4x1x16x128xf32> to vector<4x16x128xf32>
    %549 = arith.maximumf %546, %548 : vector<4x16x128xf32>
    %550 = vector.shape_cast %549 : vector<4x16x128xf32> to vector<64x128xf32>
    %c0_508 = arith.constant 0 : index
    %c0_509 = arith.constant 0 : index
    %551 = vector.load %arg9[%c0_508, %c0_509] : memref<64x128xf32, #tpu.memory_space<vmem>>, vector<64x128xf32>
    tpu.vector_store %arg9[%c0_508, %c0_509], %550 {strides = array<i32>} : memref<64x128xf32, #tpu.memory_space<vmem>>, vector<64x128xf32>,
    %c0_510 = arith.constant 0 : index
    %c0_511 = arith.constant 0 : index
    %552 = tpu.strided_load %arg9[%c0_510, %c0_511] {strides = array<i32: 2, 1>} : memref<64x128xf32, #tpu.memory_space<vmem>>, vector<32x128xf32>
    %c1_512 = arith.constant 1 : index
    %c0_513 = arith.constant 0 : index
    %553 = tpu.strided_load %arg9[%c1_512, %c0_513] {strides = array<i32: 2, 1>} : memref<64x128xf32, #tpu.memory_space<vmem>>, vector<32x128xf32>
    %554 = arith.maximumf %552, %553 : vector<32x128xf32>
    %555 = arith.addf %554, %2 : vector<32x128xf32>
    %cst_514 = arith.constant 0.000000e+00 : f32
    %556 = vector.broadcast %cst_514 : f32 to vector<32x128xf32>
    %557 = arith.maximumf %555, %556 : vector<32x128xf32>
    %c0_515 = arith.constant 0 : index
    %c0_516 = arith.constant 0 : index
    %558 = vector.load %arg10[%c0_515, %c0_516] : memref<64x128xf32, #tpu.memory_space<vmem>>, vector<32x128xf32>
    tpu.vector_store %arg10[%c0_515, %c0_516], %557 {strides = array<i32>} : memref<64x128xf32, #tpu.memory_space<vmem>>, vector<32x128xf32>,
    %c1664 = arith.constant 1664 : index
    %c0_517 = arith.constant 0 : index
    %559 = vector.load %arg1[%c1664, %c0_517] : memref<2048x200xf32, #tpu.memory_space<vmem>>, vector<128x200xf32>
    %c0_518 = arith.constant 0 : index
    %c0_519 = arith.constant 0 : index
    %560 = vector.load %arg2[%c0_518, %c0_519] : memref<200x128xf32, #tpu.memory_space<vmem>>, vector<200x128xf32>
    %cst_520 = arith.constant dense<0.000000e+00> : vector<128x128xf32>
    %561 = tpu.matmul %559, %560, %cst_520 {dimension_numbers = #tpu.dot_dimension_numbers<[1], [0], [0], [1], [0, 0, 1, 1], [], []>} : vector<128x200xf32>, vector<200x128xf32>, vector<128x128xf32> -> vector<128x128xf32>
    %562 = vector.shape_cast %561 : vector<128x128xf32> to vector<4x2x16x128xf32>
    %563 = vector.extract_strided_slice %562 {offsets = [0, 0, 0, 0], sizes = [4, 1, 16, 128], strides = [1, 1, 1, 1]} : vector<4x2x16x128xf32> to vector<4x1x16x128xf32>
    %564 = vector.shape_cast %563 : vector<4x1x16x128xf32> to vector<4x16x128xf32>
    %565 = vector.extract_strided_slice %562 {offsets = [0, 1, 0, 0], sizes = [4, 1, 16, 128], strides = [1, 1, 1, 1]} : vector<4x2x16x128xf32> to vector<4x1x16x128xf32>
    %566 = vector.shape_cast %565 : vector<4x1x16x128xf32> to vector<4x16x128xf32>
    %567 = arith.maximumf %564, %566 : vector<4x16x128xf32>
    %568 = vector.shape_cast %567 : vector<4x16x128xf32> to vector<64x128xf32>
    %c0_521 = arith.constant 0 : index
    %c0_522 = arith.constant 0 : index
    %569 = vector.load %arg9[%c0_521, %c0_522] : memref<64x128xf32, #tpu.memory_space<vmem>>, vector<64x128xf32>
    tpu.vector_store %arg9[%c0_521, %c0_522], %568 {strides = array<i32>} : memref<64x128xf32, #tpu.memory_space<vmem>>, vector<64x128xf32>,
    %c0_523 = arith.constant 0 : index
    %c0_524 = arith.constant 0 : index
    %570 = tpu.strided_load %arg9[%c0_523, %c0_524] {strides = array<i32: 2, 1>} : memref<64x128xf32, #tpu.memory_space<vmem>>, vector<32x128xf32>
    %c1_525 = arith.constant 1 : index
    %c0_526 = arith.constant 0 : index
    %571 = tpu.strided_load %arg9[%c1_525, %c0_526] {strides = array<i32: 2, 1>} : memref<64x128xf32, #tpu.memory_space<vmem>>, vector<32x128xf32>
    %572 = arith.maximumf %570, %571 : vector<32x128xf32>
    %573 = arith.addf %572, %2 : vector<32x128xf32>
    %cst_527 = arith.constant 0.000000e+00 : f32
    %574 = vector.broadcast %cst_527 : f32 to vector<32x128xf32>
    %575 = arith.maximumf %573, %574 : vector<32x128xf32>
    %c32_528 = arith.constant 32 : index
    %c0_529 = arith.constant 0 : index
    %576 = vector.load %arg10[%c32_528, %c0_529] : memref<64x128xf32, #tpu.memory_space<vmem>>, vector<32x128xf32>
    tpu.vector_store %arg10[%c32_528, %c0_529], %575 {strides = array<i32>} : memref<64x128xf32, #tpu.memory_space<vmem>>, vector<32x128xf32>,
    %c0_530 = arith.constant 0 : index
    %c0_531 = arith.constant 0 : index
    %577 = vector.load %arg10[%c0_530, %c0_531] : memref<64x128xf32, #tpu.memory_space<vmem>>, vector<46x128xf32>
    %c1_532 = arith.constant 1 : index
    %c0_533 = arith.constant 0 : index
    %578 = vector.load %arg10[%c1_532, %c0_533] : memref<64x128xf32, #tpu.memory_space<vmem>>, vector<46x128xf32>
    %c2_534 = arith.constant 2 : index
    %c0_535 = arith.constant 0 : index
    %579 = vector.load %arg10[%c2_534, %c0_535] : memref<64x128xf32, #tpu.memory_space<vmem>>, vector<46x128xf32>
    %580 = tpu.concatenate %577, %578, %579 in 1 : vector<46x128xf32>, vector<46x128xf32>, vector<46x128xf32> -> vector<46x384xf32>
    %c0_536 = arith.constant 0 : index
    %c0_537 = arith.constant 0 : index
    %c0_538 = arith.constant 0 : index
    %581 = vector.load %arg4[%c0_536, %c0_537, %c0_538] : memref<3x384x128xf32, #tpu.memory_space<vmem>>, vector<1x384x128xf32>
    %582 = vector.shape_cast %581 : vector<1x384x128xf32> to vector<384x128xf32>
    %cst_539 = arith.constant dense<0.000000e+00> : vector<46x128xf32>
    %583 = tpu.matmul %580, %582, %cst_539 {dimension_numbers = #tpu.dot_dimension_numbers<[1], [0], [0], [1], [0, 0, 1, 1], [], []>} : vector<46x384xf32>, vector<384x128xf32>, vector<46x128xf32> -> vector<46x128xf32>
    %c8_540 = arith.constant 8 : index
    %c0_541 = arith.constant 0 : index
    %584 = vector.load %arg10[%c8_540, %c0_541] : memref<64x128xf32, #tpu.memory_space<vmem>>, vector<46x128xf32>
    %c9_542 = arith.constant 9 : index
    %c0_543 = arith.constant 0 : index
    %585 = vector.load %arg10[%c9_542, %c0_543] : memref<64x128xf32, #tpu.memory_space<vmem>>, vector<46x128xf32>
    %c10_544 = arith.constant 10 : index
    %c0_545 = arith.constant 0 : index
    %586 = vector.load %arg10[%c10_544, %c0_545] : memref<64x128xf32, #tpu.memory_space<vmem>>, vector<46x128xf32>
    %587 = tpu.concatenate %584, %585, %586 in 1 : vector<46x128xf32>, vector<46x128xf32>, vector<46x128xf32> -> vector<46x384xf32>
    %c1_546 = arith.constant 1 : index
    %c0_547 = arith.constant 0 : index
    %c0_548 = arith.constant 0 : index
    %588 = vector.load %arg4[%c1_546, %c0_547, %c0_548] : memref<3x384x128xf32, #tpu.memory_space<vmem>>, vector<1x384x128xf32>
    %589 = vector.shape_cast %588 : vector<1x384x128xf32> to vector<384x128xf32>
    %cst_549 = arith.constant dense<0.000000e+00> : vector<46x128xf32>
    %590 = tpu.matmul %587, %589, %cst_549 {dimension_numbers = #tpu.dot_dimension_numbers<[1], [0], [0], [1], [0, 0, 1, 1], [], []>} : vector<46x384xf32>, vector<384x128xf32>, vector<46x128xf32> -> vector<46x128xf32>
    %591 = arith.addf %583, %590 : vector<46x128xf32>
    %c16_550 = arith.constant 16 : index
    %c0_551 = arith.constant 0 : index
    %592 = vector.load %arg10[%c16_550, %c0_551] : memref<64x128xf32, #tpu.memory_space<vmem>>, vector<46x128xf32>
    %c17_552 = arith.constant 17 : index
    %c0_553 = arith.constant 0 : index
    %593 = vector.load %arg10[%c17_552, %c0_553] : memref<64x128xf32, #tpu.memory_space<vmem>>, vector<46x128xf32>
    %c18_554 = arith.constant 18 : index
    %c0_555 = arith.constant 0 : index
    %594 = vector.load %arg10[%c18_554, %c0_555] : memref<64x128xf32, #tpu.memory_space<vmem>>, vector<46x128xf32>
    %595 = tpu.concatenate %592, %593, %594 in 1 : vector<46x128xf32>, vector<46x128xf32>, vector<46x128xf32> -> vector<46x384xf32>
    %c2_556 = arith.constant 2 : index
    %c0_557 = arith.constant 0 : index
    %c0_558 = arith.constant 0 : index
    %596 = vector.load %arg4[%c2_556, %c0_557, %c0_558] : memref<3x384x128xf32, #tpu.memory_space<vmem>>, vector<1x384x128xf32>
    %597 = vector.shape_cast %596 : vector<1x384x128xf32> to vector<384x128xf32>
    %cst_559 = arith.constant dense<0.000000e+00> : vector<46x128xf32>
    %598 = tpu.matmul %595, %597, %cst_559 {dimension_numbers = #tpu.dot_dimension_numbers<[1], [0], [0], [1], [0, 0, 1, 1], [], []>} : vector<46x384xf32>, vector<384x128xf32>, vector<46x128xf32> -> vector<46x128xf32>
    %599 = arith.addf %591, %598 : vector<46x128xf32>
    %c0_560 = arith.constant 0 : index
    %c0_561 = arith.constant 0 : index
    %600 = vector.load %arg9[%c0_560, %c0_561] : memref<64x128xf32, #tpu.memory_space<vmem>>, vector<46x128xf32>
    tpu.vector_store %arg9[%c0_560, %c0_561], %599 {strides = array<i32>} : memref<64x128xf32, #tpu.memory_space<vmem>>, vector<46x128xf32>,
    %c0_562 = arith.constant 0 : index
    %c0_563 = arith.constant 0 : index
    %601 = tpu.strided_load %arg9[%c0_562, %c0_563] {strides = array<i32: 2, 1>} : memref<64x128xf32, #tpu.memory_space<vmem>>, vector<3x128xf32>
    %c1_564 = arith.constant 1 : index
    %c0_565 = arith.constant 0 : index
    %602 = tpu.strided_load %arg9[%c1_564, %c0_565] {strides = array<i32: 2, 1>} : memref<64x128xf32, #tpu.memory_space<vmem>>, vector<3x128xf32>
    %c8_566 = arith.constant 8 : index
    %c0_567 = arith.constant 0 : index
    %603 = tpu.strided_load %arg9[%c8_566, %c0_567] {strides = array<i32: 2, 1>} : memref<64x128xf32, #tpu.memory_space<vmem>>, vector<3x128xf32>
    %c9_568 = arith.constant 9 : index
    %c0_569 = arith.constant 0 : index
    %604 = tpu.strided_load %arg9[%c9_568, %c0_569] {strides = array<i32: 2, 1>} : memref<64x128xf32, #tpu.memory_space<vmem>>, vector<3x128xf32>
    %605 = arith.maximumf %601, %602 : vector<3x128xf32>
    %606 = arith.maximumf %603, %604 : vector<3x128xf32>
    %607 = arith.maximumf %605, %606 : vector<3x128xf32>
    %c16_570 = arith.constant 16 : index
    %c0_571 = arith.constant 0 : index
    %608 = tpu.strided_load %arg9[%c16_570, %c0_571] {strides = array<i32: 2, 1>} : memref<64x128xf32, #tpu.memory_space<vmem>>, vector<3x128xf32>
    %c17_572 = arith.constant 17 : index
    %c0_573 = arith.constant 0 : index
    %609 = tpu.strided_load %arg9[%c17_572, %c0_573] {strides = array<i32: 2, 1>} : memref<64x128xf32, #tpu.memory_space<vmem>>, vector<3x128xf32>
    %c24_574 = arith.constant 24 : index
    %c0_575 = arith.constant 0 : index
    %610 = tpu.strided_load %arg9[%c24_574, %c0_575] {strides = array<i32: 2, 1>} : memref<64x128xf32, #tpu.memory_space<vmem>>, vector<3x128xf32>
    %c25_576 = arith.constant 25 : index
    %c0_577 = arith.constant 0 : index
    %611 = tpu.strided_load %arg9[%c25_576, %c0_577] {strides = array<i32: 2, 1>} : memref<64x128xf32, #tpu.memory_space<vmem>>, vector<3x128xf32>
    %612 = arith.maximumf %608, %609 : vector<3x128xf32>
    %613 = arith.maximumf %610, %611 : vector<3x128xf32>
    %614 = arith.maximumf %612, %613 : vector<3x128xf32>
    %c32_578 = arith.constant 32 : index
    %c0_579 = arith.constant 0 : index
    %615 = tpu.strided_load %arg9[%c32_578, %c0_579] {strides = array<i32: 2, 1>} : memref<64x128xf32, #tpu.memory_space<vmem>>, vector<3x128xf32>
    %c33_580 = arith.constant 33 : index
    %c0_581 = arith.constant 0 : index
    %616 = tpu.strided_load %arg9[%c33_580, %c0_581] {strides = array<i32: 2, 1>} : memref<64x128xf32, #tpu.memory_space<vmem>>, vector<3x128xf32>
    %c40_582 = arith.constant 40 : index
    %c0_583 = arith.constant 0 : index
    %617 = tpu.strided_load %arg9[%c40_582, %c0_583] {strides = array<i32: 2, 1>} : memref<64x128xf32, #tpu.memory_space<vmem>>, vector<3x128xf32>
    %c41_584 = arith.constant 41 : index
    %c0_585 = arith.constant 0 : index
    %618 = tpu.strided_load %arg9[%c41_584, %c0_585] {strides = array<i32: 2, 1>} : memref<64x128xf32, #tpu.memory_space<vmem>>, vector<3x128xf32>
    %619 = arith.maximumf %615, %616 : vector<3x128xf32>
    %620 = arith.maximumf %617, %618 : vector<3x128xf32>
    %621 = arith.maximumf %619, %620 : vector<3x128xf32>
    %622 = tpu.concatenate %607, %614, %621 in 0 : vector<3x128xf32>, vector<3x128xf32>, vector<3x128xf32> -> vector<9x128xf32>
    %623 = arith.addf %622, %5 : vector<9x128xf32>
    %cst_586 = arith.constant 0.000000e+00 : f32
    %624 = vector.broadcast %cst_586 : f32 to vector<9x128xf32>
    %625 = arith.maximumf %623, %624 : vector<9x128xf32>
    %626 = arith.mulf %625, %6 : vector<9x128xf32>
    %cst_587 = arith.constant dense<0.000000e+00> : vector<128xf32>
    %627 = vector.multi_reduction <add>, %626, %cst_587 [0] : vector<9x128xf32> to vector<128xf32>
    %628 = vector.shape_cast %627 : vector<128xf32> to vector<1x128xf32>
    %c6 = arith.constant 6 : index
    %c0_588 = arith.constant 0 : index
    %629 = vector.load %arg11[%c6, %c0_588] : memref<8x128xf32, #tpu.memory_space<vmem>>, vector<1x128xf32>
    tpu.vector_store %arg11[%c6, %c0_588], %628 {strides = array<i32>} : memref<8x128xf32, #tpu.memory_space<vmem>>, vector<1x128xf32>,
    %c1792 = arith.constant 1792 : index
    %c0_589 = arith.constant 0 : index
    %630 = vector.load %arg1[%c1792, %c0_589] : memref<2048x200xf32, #tpu.memory_space<vmem>>, vector<128x200xf32>
    %c0_590 = arith.constant 0 : index
    %c0_591 = arith.constant 0 : index
    %631 = vector.load %arg2[%c0_590, %c0_591] : memref<200x128xf32, #tpu.memory_space<vmem>>, vector<200x128xf32>
    %cst_592 = arith.constant dense<0.000000e+00> : vector<128x128xf32>
    %632 = tpu.matmul %630, %631, %cst_592 {dimension_numbers = #tpu.dot_dimension_numbers<[1], [0], [0], [1], [0, 0, 1, 1], [], []>} : vector<128x200xf32>, vector<200x128xf32>, vector<128x128xf32> -> vector<128x128xf32>
    %633 = vector.shape_cast %632 : vector<128x128xf32> to vector<4x2x16x128xf32>
    %634 = vector.extract_strided_slice %633 {offsets = [0, 0, 0, 0], sizes = [4, 1, 16, 128], strides = [1, 1, 1, 1]} : vector<4x2x16x128xf32> to vector<4x1x16x128xf32>
    %635 = vector.shape_cast %634 : vector<4x1x16x128xf32> to vector<4x16x128xf32>
    %636 = vector.extract_strided_slice %633 {offsets = [0, 1, 0, 0], sizes = [4, 1, 16, 128], strides = [1, 1, 1, 1]} : vector<4x2x16x128xf32> to vector<4x1x16x128xf32>
    %637 = vector.shape_cast %636 : vector<4x1x16x128xf32> to vector<4x16x128xf32>
    %638 = arith.maximumf %635, %637 : vector<4x16x128xf32>
    %639 = vector.shape_cast %638 : vector<4x16x128xf32> to vector<64x128xf32>
    %c0_593 = arith.constant 0 : index
    %c0_594 = arith.constant 0 : index
    %640 = vector.load %arg9[%c0_593, %c0_594] : memref<64x128xf32, #tpu.memory_space<vmem>>, vector<64x128xf32>
    tpu.vector_store %arg9[%c0_593, %c0_594], %639 {strides = array<i32>} : memref<64x128xf32, #tpu.memory_space<vmem>>, vector<64x128xf32>,
    %c0_595 = arith.constant 0 : index
    %c0_596 = arith.constant 0 : index
    %641 = tpu.strided_load %arg9[%c0_595, %c0_596] {strides = array<i32: 2, 1>} : memref<64x128xf32, #tpu.memory_space<vmem>>, vector<32x128xf32>
    %c1_597 = arith.constant 1 : index
    %c0_598 = arith.constant 0 : index
    %642 = tpu.strided_load %arg9[%c1_597, %c0_598] {strides = array<i32: 2, 1>} : memref<64x128xf32, #tpu.memory_space<vmem>>, vector<32x128xf32>
    %643 = arith.maximumf %641, %642 : vector<32x128xf32>
    %644 = arith.addf %643, %2 : vector<32x128xf32>
    %cst_599 = arith.constant 0.000000e+00 : f32
    %645 = vector.broadcast %cst_599 : f32 to vector<32x128xf32>
    %646 = arith.maximumf %644, %645 : vector<32x128xf32>
    %c0_600 = arith.constant 0 : index
    %c0_601 = arith.constant 0 : index
    %647 = vector.load %arg10[%c0_600, %c0_601] : memref<64x128xf32, #tpu.memory_space<vmem>>, vector<32x128xf32>
    tpu.vector_store %arg10[%c0_600, %c0_601], %646 {strides = array<i32>} : memref<64x128xf32, #tpu.memory_space<vmem>>, vector<32x128xf32>,
    %c1920 = arith.constant 1920 : index
    %c0_602 = arith.constant 0 : index
    %648 = vector.load %arg1[%c1920, %c0_602] : memref<2048x200xf32, #tpu.memory_space<vmem>>, vector<128x200xf32>
    %c0_603 = arith.constant 0 : index
    %c0_604 = arith.constant 0 : index
    %649 = vector.load %arg2[%c0_603, %c0_604] : memref<200x128xf32, #tpu.memory_space<vmem>>, vector<200x128xf32>
    %cst_605 = arith.constant dense<0.000000e+00> : vector<128x128xf32>
    %650 = tpu.matmul %648, %649, %cst_605 {dimension_numbers = #tpu.dot_dimension_numbers<[1], [0], [0], [1], [0, 0, 1, 1], [], []>} : vector<128x200xf32>, vector<200x128xf32>, vector<128x128xf32> -> vector<128x128xf32>
    %651 = vector.shape_cast %650 : vector<128x128xf32> to vector<4x2x16x128xf32>
    %652 = vector.extract_strided_slice %651 {offsets = [0, 0, 0, 0], sizes = [4, 1, 16, 128], strides = [1, 1, 1, 1]} : vector<4x2x16x128xf32> to vector<4x1x16x128xf32>
    %653 = vector.shape_cast %652 : vector<4x1x16x128xf32> to vector<4x16x128xf32>
    %654 = vector.extract_strided_slice %651 {offsets = [0, 1, 0, 0], sizes = [4, 1, 16, 128], strides = [1, 1, 1, 1]} : vector<4x2x16x128xf32> to vector<4x1x16x128xf32>
    %655 = vector.shape_cast %654 : vector<4x1x16x128xf32> to vector<4x16x128xf32>
    %656 = arith.maximumf %653, %655 : vector<4x16x128xf32>
    %657 = vector.shape_cast %656 : vector<4x16x128xf32> to vector<64x128xf32>
    %c0_606 = arith.constant 0 : index
    %c0_607 = arith.constant 0 : index
    %658 = vector.load %arg9[%c0_606, %c0_607] : memref<64x128xf32, #tpu.memory_space<vmem>>, vector<64x128xf32>
    tpu.vector_store %arg9[%c0_606, %c0_607], %657 {strides = array<i32>} : memref<64x128xf32, #tpu.memory_space<vmem>>, vector<64x128xf32>,
    %c0_608 = arith.constant 0 : index
    %c0_609 = arith.constant 0 : index
    %659 = tpu.strided_load %arg9[%c0_608, %c0_609] {strides = array<i32: 2, 1>} : memref<64x128xf32, #tpu.memory_space<vmem>>, vector<32x128xf32>
    %c1_610 = arith.constant 1 : index
    %c0_611 = arith.constant 0 : index
    %660 = tpu.strided_load %arg9[%c1_610, %c0_611] {strides = array<i32: 2, 1>} : memref<64x128xf32, #tpu.memory_space<vmem>>, vector<32x128xf32>
    %661 = arith.maximumf %659, %660 : vector<32x128xf32>
    %662 = arith.addf %661, %2 : vector<32x128xf32>
    %cst_612 = arith.constant 0.000000e+00 : f32
    %663 = vector.broadcast %cst_612 : f32 to vector<32x128xf32>
    %664 = arith.maximumf %662, %663 : vector<32x128xf32>
    %c32_613 = arith.constant 32 : index
    %c0_614 = arith.constant 0 : index
    %665 = vector.load %arg10[%c32_613, %c0_614] : memref<64x128xf32, #tpu.memory_space<vmem>>, vector<32x128xf32>
    tpu.vector_store %arg10[%c32_613, %c0_614], %664 {strides = array<i32>} : memref<64x128xf32, #tpu.memory_space<vmem>>, vector<32x128xf32>,
    %c0_615 = arith.constant 0 : index
    %c0_616 = arith.constant 0 : index
    %666 = vector.load %arg10[%c0_615, %c0_616] : memref<64x128xf32, #tpu.memory_space<vmem>>, vector<46x128xf32>
    %c1_617 = arith.constant 1 : index
    %c0_618 = arith.constant 0 : index
    %667 = vector.load %arg10[%c1_617, %c0_618] : memref<64x128xf32, #tpu.memory_space<vmem>>, vector<46x128xf32>
    %c2_619 = arith.constant 2 : index
    %c0_620 = arith.constant 0 : index
    %668 = vector.load %arg10[%c2_619, %c0_620] : memref<64x128xf32, #tpu.memory_space<vmem>>, vector<46x128xf32>
    %669 = tpu.concatenate %666, %667, %668 in 1 : vector<46x128xf32>, vector<46x128xf32>, vector<46x128xf32> -> vector<46x384xf32>
    %c0_621 = arith.constant 0 : index
    %c0_622 = arith.constant 0 : index
    %c0_623 = arith.constant 0 : index
    %670 = vector.load %arg4[%c0_621, %c0_622, %c0_623] : memref<3x384x128xf32, #tpu.memory_space<vmem>>, vector<1x384x128xf32>
    %671 = vector.shape_cast %670 : vector<1x384x128xf32> to vector<384x128xf32>
    %cst_624 = arith.constant dense<0.000000e+00> : vector<46x128xf32>
    %672 = tpu.matmul %669, %671, %cst_624 {dimension_numbers = #tpu.dot_dimension_numbers<[1], [0], [0], [1], [0, 0, 1, 1], [], []>} : vector<46x384xf32>, vector<384x128xf32>, vector<46x128xf32> -> vector<46x128xf32>
    %c8_625 = arith.constant 8 : index
    %c0_626 = arith.constant 0 : index
    %673 = vector.load %arg10[%c8_625, %c0_626] : memref<64x128xf32, #tpu.memory_space<vmem>>, vector<46x128xf32>
    %c9_627 = arith.constant 9 : index
    %c0_628 = arith.constant 0 : index
    %674 = vector.load %arg10[%c9_627, %c0_628] : memref<64x128xf32, #tpu.memory_space<vmem>>, vector<46x128xf32>
    %c10_629 = arith.constant 10 : index
    %c0_630 = arith.constant 0 : index
    %675 = vector.load %arg10[%c10_629, %c0_630] : memref<64x128xf32, #tpu.memory_space<vmem>>, vector<46x128xf32>
    %676 = tpu.concatenate %673, %674, %675 in 1 : vector<46x128xf32>, vector<46x128xf32>, vector<46x128xf32> -> vector<46x384xf32>
    %c1_631 = arith.constant 1 : index
    %c0_632 = arith.constant 0 : index
    %c0_633 = arith.constant 0 : index
    %677 = vector.load %arg4[%c1_631, %c0_632, %c0_633] : memref<3x384x128xf32, #tpu.memory_space<vmem>>, vector<1x384x128xf32>
    %678 = vector.shape_cast %677 : vector<1x384x128xf32> to vector<384x128xf32>
    %cst_634 = arith.constant dense<0.000000e+00> : vector<46x128xf32>
    %679 = tpu.matmul %676, %678, %cst_634 {dimension_numbers = #tpu.dot_dimension_numbers<[1], [0], [0], [1], [0, 0, 1, 1], [], []>} : vector<46x384xf32>, vector<384x128xf32>, vector<46x128xf32> -> vector<46x128xf32>
    %680 = arith.addf %672, %679 : vector<46x128xf32>
    %c16_635 = arith.constant 16 : index
    %c0_636 = arith.constant 0 : index
    %681 = vector.load %arg10[%c16_635, %c0_636] : memref<64x128xf32, #tpu.memory_space<vmem>>, vector<46x128xf32>
    %c17_637 = arith.constant 17 : index
    %c0_638 = arith.constant 0 : index
    %682 = vector.load %arg10[%c17_637, %c0_638] : memref<64x128xf32, #tpu.memory_space<vmem>>, vector<46x128xf32>
    %c18_639 = arith.constant 18 : index
    %c0_640 = arith.constant 0 : index
    %683 = vector.load %arg10[%c18_639, %c0_640] : memref<64x128xf32, #tpu.memory_space<vmem>>, vector<46x128xf32>
    %684 = tpu.concatenate %681, %682, %683 in 1 : vector<46x128xf32>, vector<46x128xf32>, vector<46x128xf32> -> vector<46x384xf32>
    %c2_641 = arith.constant 2 : index
    %c0_642 = arith.constant 0 : index
    %c0_643 = arith.constant 0 : index
    %685 = vector.load %arg4[%c2_641, %c0_642, %c0_643] : memref<3x384x128xf32, #tpu.memory_space<vmem>>, vector<1x384x128xf32>
    %686 = vector.shape_cast %685 : vector<1x384x128xf32> to vector<384x128xf32>
    %cst_644 = arith.constant dense<0.000000e+00> : vector<46x128xf32>
    %687 = tpu.matmul %684, %686, %cst_644 {dimension_numbers = #tpu.dot_dimension_numbers<[1], [0], [0], [1], [0, 0, 1, 1], [], []>} : vector<46x384xf32>, vector<384x128xf32>, vector<46x128xf32> -> vector<46x128xf32>
    %688 = arith.addf %680, %687 : vector<46x128xf32>
    %c0_645 = arith.constant 0 : index
    %c0_646 = arith.constant 0 : index
    %689 = vector.load %arg9[%c0_645, %c0_646] : memref<64x128xf32, #tpu.memory_space<vmem>>, vector<46x128xf32>
    tpu.vector_store %arg9[%c0_645, %c0_646], %688 {strides = array<i32>} : memref<64x128xf32, #tpu.memory_space<vmem>>, vector<46x128xf32>,
    %c0_647 = arith.constant 0 : index
    %c0_648 = arith.constant 0 : index
    %690 = tpu.strided_load %arg9[%c0_647, %c0_648] {strides = array<i32: 2, 1>} : memref<64x128xf32, #tpu.memory_space<vmem>>, vector<3x128xf32>
    %c1_649 = arith.constant 1 : index
    %c0_650 = arith.constant 0 : index
    %691 = tpu.strided_load %arg9[%c1_649, %c0_650] {strides = array<i32: 2, 1>} : memref<64x128xf32, #tpu.memory_space<vmem>>, vector<3x128xf32>
    %c8_651 = arith.constant 8 : index
    %c0_652 = arith.constant 0 : index
    %692 = tpu.strided_load %arg9[%c8_651, %c0_652] {strides = array<i32: 2, 1>} : memref<64x128xf32, #tpu.memory_space<vmem>>, vector<3x128xf32>
    %c9_653 = arith.constant 9 : index
    %c0_654 = arith.constant 0 : index
    %693 = tpu.strided_load %arg9[%c9_653, %c0_654] {strides = array<i32: 2, 1>} : memref<64x128xf32, #tpu.memory_space<vmem>>, vector<3x128xf32>
    %694 = arith.maximumf %690, %691 : vector<3x128xf32>
    %695 = arith.maximumf %692, %693 : vector<3x128xf32>
    %696 = arith.maximumf %694, %695 : vector<3x128xf32>
    %c16_655 = arith.constant 16 : index
    %c0_656 = arith.constant 0 : index
    %697 = tpu.strided_load %arg9[%c16_655, %c0_656] {strides = array<i32: 2, 1>} : memref<64x128xf32, #tpu.memory_space<vmem>>, vector<3x128xf32>
    %c17_657 = arith.constant 17 : index
    %c0_658 = arith.constant 0 : index
    %698 = tpu.strided_load %arg9[%c17_657, %c0_658] {strides = array<i32: 2, 1>} : memref<64x128xf32, #tpu.memory_space<vmem>>, vector<3x128xf32>
    %c24_659 = arith.constant 24 : index
    %c0_660 = arith.constant 0 : index
    %699 = tpu.strided_load %arg9[%c24_659, %c0_660] {strides = array<i32: 2, 1>} : memref<64x128xf32, #tpu.memory_space<vmem>>, vector<3x128xf32>
    %c25_661 = arith.constant 25 : index
    %c0_662 = arith.constant 0 : index
    %700 = tpu.strided_load %arg9[%c25_661, %c0_662] {strides = array<i32: 2, 1>} : memref<64x128xf32, #tpu.memory_space<vmem>>, vector<3x128xf32>
    %701 = arith.maximumf %697, %698 : vector<3x128xf32>
    %702 = arith.maximumf %699, %700 : vector<3x128xf32>
    %703 = arith.maximumf %701, %702 : vector<3x128xf32>
    %c32_663 = arith.constant 32 : index
    %c0_664 = arith.constant 0 : index
    %704 = tpu.strided_load %arg9[%c32_663, %c0_664] {strides = array<i32: 2, 1>} : memref<64x128xf32, #tpu.memory_space<vmem>>, vector<3x128xf32>
    %c33_665 = arith.constant 33 : index
    %c0_666 = arith.constant 0 : index
    %705 = tpu.strided_load %arg9[%c33_665, %c0_666] {strides = array<i32: 2, 1>} : memref<64x128xf32, #tpu.memory_space<vmem>>, vector<3x128xf32>
    %c40_667 = arith.constant 40 : index
    %c0_668 = arith.constant 0 : index
    %706 = tpu.strided_load %arg9[%c40_667, %c0_668] {strides = array<i32: 2, 1>} : memref<64x128xf32, #tpu.memory_space<vmem>>, vector<3x128xf32>
    %c41_669 = arith.constant 41 : index
    %c0_670 = arith.constant 0 : index
    %707 = tpu.strided_load %arg9[%c41_669, %c0_670] {strides = array<i32: 2, 1>} : memref<64x128xf32, #tpu.memory_space<vmem>>, vector<3x128xf32>
    %708 = arith.maximumf %704, %705 : vector<3x128xf32>
    %709 = arith.maximumf %706, %707 : vector<3x128xf32>
    %710 = arith.maximumf %708, %709 : vector<3x128xf32>
    %711 = tpu.concatenate %696, %703, %710 in 0 : vector<3x128xf32>, vector<3x128xf32>, vector<3x128xf32> -> vector<9x128xf32>
    %712 = arith.addf %711, %5 : vector<9x128xf32>
    %cst_671 = arith.constant 0.000000e+00 : f32
    %713 = vector.broadcast %cst_671 : f32 to vector<9x128xf32>
    %714 = arith.maximumf %712, %713 : vector<9x128xf32>
    %715 = arith.mulf %714, %6 : vector<9x128xf32>
    %cst_672 = arith.constant dense<0.000000e+00> : vector<128xf32>
    %716 = vector.multi_reduction <add>, %715, %cst_672 [0] : vector<9x128xf32> to vector<128xf32>
    %717 = vector.shape_cast %716 : vector<128xf32> to vector<1x128xf32>
    %c7 = arith.constant 7 : index
    %c0_673 = arith.constant 0 : index
    %718 = vector.load %arg11[%c7, %c0_673] : memref<8x128xf32, #tpu.memory_space<vmem>>, vector<1x128xf32>
    tpu.vector_store %arg11[%c7, %c0_673], %717 {strides = array<i32>} : memref<8x128xf32, #tpu.memory_space<vmem>>, vector<1x128xf32>,
    %c0_674 = arith.constant 0 : index
    %c0_675 = arith.constant 0 : index
    %719 = vector.load %arg11[%c0_674, %c0_675] : memref<8x128xf32, #tpu.memory_space<vmem>>, vector<8x128xf32>
    %cst_676 = arith.constant dense<0.000000e+00> : vector<8xf32>
    %720 = vector.multi_reduction <add>, %719, %cst_676 [1] : vector<8x128xf32> to vector<8xf32>
    %721 = vector.shape_cast %720 : vector<8xf32> to vector<8x1xf32>
    %c0_677 = arith.constant 0 : index
    %c0_678 = arith.constant 0 : index
    %722 = vector.load %arg7[%c0_677, %c0_678] : memref<1x1xf32, #tpu.memory_space<vmem>>, vector<1x1xf32>
    %723 = vector.broadcast %722 : vector<1x1xf32> to vector<8x1xf32>
    %724 = arith.addf %721, %723 : vector<8x1xf32>
    %c0_679 = arith.constant 0 : index
    %c0_680 = arith.constant 0 : index
    %725 = vector.load %arg8[%c0_679, %c0_680] : memref<8x1xf32, #tpu.memory_space<vmem>>, vector<8x1xf32>
    tpu.vector_store %arg8[%c0_679, %c0_680], %724 {strides = array<i32>} : memref<8x1xf32, #tpu.memory_space<vmem>>, vector<8x1xf32>,
    return
  }
  func.func @transform_0(%arg0: i32) -> (i32, i32) {
    %c0_i32 = arith.constant 0 : i32
    %c0_i32_0 = arith.constant 0 : i32
    return %arg0, %c0_i32 : i32, i32
  }
  func.func @transform_1(%arg0: i32) -> (i32, i32) {
    %c0_i32 = arith.constant 0 : i32
    %c0_i32_0 = arith.constant 0 : i32
    %c0_i32_1 = arith.constant 0 : i32
    return %c0_i32, %c0_i32_0 : i32, i32
  }
  func.func @transform_2(%arg0: i32) -> (i32, i32) {
    %c0_i32 = arith.constant 0 : i32
    %c0_i32_0 = arith.constant 0 : i32
    %c0_i32_1 = arith.constant 0 : i32
    return %c0_i32, %c0_i32_0 : i32, i32
  }
  func.func @transform_3(%arg0: i32) -> (i32, i32, i32) {
    %c0_i32 = arith.constant 0 : i32
    %c0_i32_0 = arith.constant 0 : i32
    %c0_i32_1 = arith.constant 0 : i32
    %c0_i32_2 = arith.constant 0 : i32
    return %c0_i32, %c0_i32_0, %c0_i32_1 : i32, i32, i32
  }
  func.func @transform_4(%arg0: i32) -> (i32, i32) {
    %c0_i32 = arith.constant 0 : i32
    %c0_i32_0 = arith.constant 0 : i32
    %c0_i32_1 = arith.constant 0 : i32
    return %c0_i32, %c0_i32_0 : i32, i32
  }
  func.func @transform_5(%arg0: i32) -> (i32, i32) {
    %c0_i32 = arith.constant 0 : i32
    %c0_i32_0 = arith.constant 0 : i32
    %c0_i32_1 = arith.constant 0 : i32
    return %c0_i32, %c0_i32_0 : i32, i32
  }
  func.func @transform_6(%arg0: i32) -> (i32, i32) {
    %c0_i32 = arith.constant 0 : i32
    %c0_i32_0 = arith.constant 0 : i32
    %c0_i32_1 = arith.constant 0 : i32
    return %c0_i32, %c0_i32_0 : i32, i32
  }
  func.func @transform_7(%arg0: i32) -> (i32, i32) {
    %c0_i32 = arith.constant 0 : i32
    %c0_i32_0 = arith.constant 0 : i32
    return %arg0, %c0_i32 : i32, i32
  }
}

</mosaic_0001>

<llo_original>
// kernel: identicle_forward.1
$region0: #{identicle_forward.1}
  #allocation0 [shape = 'u32[]', space=smem, size = 0x4, offset = 0x4, fixed_abs, tag = 'smem constant byte address 0x4 - core index']
  #allocation1 [shape = 'u32[72,128]{1,0:T(1,128)}', space=vmem, size = 0x9000, scoped, tag = 'internal scratch']
  #allocation2 [shape = 'f32[64,128]{1,0:T(8,128)}', space=vmem, size = 0x8000, scoped, tag = 'scratch operand']
  #allocation3 [shape = 'f32[64,128]{1,0:T(8,128)}', space=vmem, size = 0x8000, scoped, tag = 'scratch operand']
  #allocation4 [shape = 'f32[8,128]{1,0:T(8,128)}', space=vmem, size = 0x1000, scoped, tag = 'scratch operand']
  #allocation5 [shape = 'f32[1,1]{1,0:T(1,128)S(1)}', space=vmem, size = 0x200, scoped, tag = 'scoped memory for identicle_forward.1']
  %s0 = inlined_call_operand.vmem [shape: f32[2048,200], index: 0, kind: input, shape index: {}]
  %s1 = inlined_call_operand.vmem [shape: f32[200,128], index: 1, kind: input, shape index: {}]
  %s2 = inlined_call_operand.vmem [shape: f32[1,128], index: 2, kind: input, shape index: {}]
  %s3 = inlined_call_operand.vmem [shape: f32[3,384,128], index: 3, kind: input, shape index: {}]
  %s4 = inlined_call_operand.vmem [shape: f32[1,128], index: 4, kind: input, shape index: {}]
  %s5 = inlined_call_operand.vmem [shape: f32[9,128], index: 5, kind: input, shape index: {}]
  %s6 = inlined_call_operand.<no memory space> [shape: f32[1,1], index: 6, kind: input, shape index: {}]
  %s7 = inlined_call_operand.vmem [shape: f32[8,1], index: 7, kind: output, shape index: {}]
  %s8 = sld [smem:[#allocation0]]
  $region38: #{identicle_forward.1} parent=0
    _
  %s10 = ssub.s32 1, %s8
  %s11 = scalar_select 0, %s10, %s8
  %v12 = vstv %s6
  %13 = vst [vmem:[#allocation5] sm:$0x1] %v12
  // Predicated region
  $region2: #{identicle_forward.1} parent=0 // pred_check
    _
  $region3: #{identicle_forward.1} parent=0 // pred_check_branch
    %15 = sbr.rel (0) target = $region5
  $region4: #{identicle_forward.1} parent=0 // pred_region
    _
  $region5: #{identicle_forward.1} parent=0 // pred_fallthru
    _
  // Predicated region
  $region6: #{identicle_forward.1} parent=0 // pred_check
    _
  $region7: #{identicle_forward.1} parent=0 // pred_check_branch
    %17 = sbr.rel (0) target = $region9
  $region8: #{identicle_forward.1} parent=0 // pred_region
    _
  $region9: #{identicle_forward.1} parent=0 // pred_fallthru
    _
  // Predicated region
  $region10: #{identicle_forward.1} parent=0 // pred_check
    _
  $region11: #{identicle_forward.1} parent=0 // pred_check_branch
    %19 = sbr.rel (0) target = $region13
  $region12: #{identicle_forward.1} parent=0 // pred_region
    _
  $region13: #{identicle_forward.1} parent=0 // pred_fallthru
    _
  // Predicated region
  $region14: #{identicle_forward.1} parent=0 // pred_check
    _
  $region15: #{identicle_forward.1} parent=0 // pred_check_branch
    %21 = sbr.rel (0) target = $region17
  $region16: #{identicle_forward.1} parent=0 // pred_region
    _
  $region17: #{identicle_forward.1} parent=0 // pred_fallthru
    _
  // Predicated region
  $region18: #{identicle_forward.1} parent=0 // pred_check
    _
  $region19: #{identicle_forward.1} parent=0 // pred_check_branch
    %23 = sbr.rel (0) target = $region21
  $region20: #{identicle_forward.1} parent=0 // pred_region
    _
  $region21: #{identicle_forward.1} parent=0 // pred_fallthru
    _
  // Predicated region
  $region22: #{identicle_forward.1} parent=0 // pred_check
    _
  $region23: #{identicle_forward.1} parent=0 // pred_check_branch
    %25 = sbr.rel (0) target = $region25
  $region24: #{identicle_forward.1} parent=0 // pred_region
    _
  $region25: #{identicle_forward.1} parent=0 // pred_fallthru
    _
  // Predicated region
  $region26: #{identicle_forward.1} parent=0 // pred_check
    _
  $region27: #{identicle_forward.1} parent=0 // pred_check_branch
    %27 = sbr.rel (0) target = $region29
  $region28: #{identicle_forward.1} parent=0 // pred_region
    _
  $region29: #{identicle_forward.1} parent=0 // pred_fallthru
    _
  %v28 = vld [vmem:[%s2] sm:$0x1]
  %v30 = vperm.slane %v28, 0
  %v32 = vld [vmem:[%s4] sm:$0x1]
  %v34 = vperm.slane %v32, 0
  %v36 = vld [vmem:[%s5] sm:$0xff]
  %v37 = vld [vmem:[%s5 + $0x8] sm:$0x1]
  %v38 = vld [vmem:[%s0] sm:$0xff]
  %v39 = vld [vmem:[%s0 + $0x8] sm:$0xff]
  %v40 = vld [vmem:[%s0 + $0x10] sm:$0xff]
  %v41 = vld [vmem:[%s0 + $0x18] sm:$0xff]
  %v42 = vld [vmem:[%s0 + $0x20] sm:$0xff]
  %v43 = vld [vmem:[%s0 + $0x28] sm:$0xff]
  %v44 = vld [vmem:[%s0 + $0x30] sm:$0xff]
  %v45 = vld [vmem:[%s0 + $0x38] sm:$0xff]
  %v46 = vld [vmem:[%s0 + $0x40] sm:$0xff]
  %v47 = vld [vmem:[%s0 + $0x48] sm:$0xff]
  %v48 = vld [vmem:[%s0 + $0x50] sm:$0xff]
  %v49 = vld [vmem:[%s0 + $0x58] sm:$0xff]
  %v50 = vld [vmem:[%s0 + $0x60] sm:$0xff]
  %v51 = vld [vmem:[%s0 + $0x68] sm:$0xff]
  %v52 = vld [vmem:[%s0 + $0x70] sm:$0xff]
  %v53 = vld [vmem:[%s0 + $0x78] sm:$0xff]
  %v54 = vld [vmem:[%s0 + $0x80] sm:$0xff]
  %v55 = vld [vmem:[%s0 + $0x88] sm:$0xff]
  %v56 = vld [vmem:[%s0 + $0x90] sm:$0xff]
  %v57 = vld [vmem:[%s0 + $0x98] sm:$0xff]
  %v58 = vld [vmem:[%s0 + $0xa0] sm:$0xff]
  %v59 = vld [vmem:[%s0 + $0xa8] sm:$0xff]
  %v60 = vld [vmem:[%s0 + $0xb0] sm:$0xff]
  %v61 = vld [vmem:[%s0 + $0xb8] sm:$0xff]
  %v62 = vld [vmem:[%s0 + $0xc0] sm:$0xff]
  %v63 = vld [vmem:[%s0 + $0xc8] sm:$0xff]
  %v64 = vld [vmem:[%s0 + $0xd0] sm:$0xff]
  %v65 = vld [vmem:[%s0 + $0xd8] sm:$0xff]
  %v66 = vld [vmem:[%s0 + $0xe0] sm:$0xff]
  %v67 = vld [vmem:[%s0 + $0xe8] sm:$0xff]
  %v68 = vld [vmem:[%s0 + $0xf0] sm:$0xff]
  %v69 = vld [vmem:[%s0 + $0xf8] sm:$0xff]
  %v70 = vld [vmem:[%s1] sm:$0xff]
  %v71 = vld [vmem:[%s1 + $0x8] sm:$0xff]
  %v72 = vld [vmem:[%s1 + $0x10] sm:$0xff]
  %v73 = vld [vmem:[%s1 + $0x18] sm:$0xff]
  %v74 = vld [vmem:[%s1 + $0x20] sm:$0xff]
  %v75 = vld [vmem:[%s1 + $0x28] sm:$0xff]
  %v76 = vld [vmem:[%s1 + $0x30] sm:$0xff]
  %v77 = vld [vmem:[%s1 + $0x38] sm:$0xff]
  %v78 = vld [vmem:[%s1 + $0x40] sm:$0xff]
  %v79 = vld [vmem:[%s1 + $0x48] sm:$0xff]
  %v80 = vld [vmem:[%s1 + $0x50] sm:$0xff]
  %v81 = vld [vmem:[%s1 + $0x58] sm:$0xff]
  %v82 = vld [vmem:[%s1 + $0x60] sm:$0xff]
  %v83 = vld [vmem:[%s1 + $0x68] sm:$0xff]
  %v84 = vld [vmem:[%s1 + $0x70] sm:$0xff]
  %v85 = vld [vmem:[%s1 + $0x78] sm:$0xff]
  %v86 = vld [vmem:[%s1 + $0x80] sm:$0xff]
  %v87 = vld [vmem:[%s1 + $0x88] sm:$0xff]
  %v88 = vld [vmem:[%s1 + $0x90] sm:$0xff]
  %v89 = vld [vmem:[%s1 + $0x98] sm:$0xff]
  %v90 = vld [vmem:[%s1 + $0xa0] sm:$0xff]
  %v91 = vld [vmem:[%s1 + $0xa8] sm:$0xff]
  %v92 = vld [vmem:[%s1 + $0xb0] sm:$0xff]
  %v93 = vld [vmem:[%s1 + $0xb8] sm:$0xff]
  %v94 = vld [vmem:[%s1 + $0xc0] sm:$0xff]
  %vm95 = vcmask 588800
  %v97 = vsel %vm95, %v39, 0
  %v100 = vsel %vm95, %v41, 0
  %v103 = vsel %vm95, %v43, 0
  %v106 = vsel %vm95, %v45, 0
  %v109 = vsel %vm95, %v47, 0
  %v112 = vsel %vm95, %v49, 0
  %v115 = vsel %vm95, %v51, 0
  %v118 = vsel %vm95, %v53, 0
  %v121 = vsel %vm95, %v55, 0
  %v124 = vsel %vm95, %v57, 0
  %v127 = vsel %vm95, %v59, 0
  %v130 = vsel %vm95, %v61, 0
  %v133 = vsel %vm95, %v63, 0
  %v136 = vsel %vm95, %v65, 0
  %v139 = vsel %vm95, %v67, 0
  %v142 = vsel %vm95, %v69, 0
  %144 = vmatpush.msra.mxu0 %v85
  %145 = vmatpush.msra.mxu0 %v84
  %146 = vmatpush.msra.mxu0 %v83
  %147 = vmatpush.msra.mxu0 %v82
  %148 = vmatpush.msra.mxu0 %v81
  %149 = vmatpush.msra.mxu0 %v80
  %150 = vmatpush.msra.mxu0 %v79
  %151 = vmatpush.msra.mxu0 %v78
  %152 = vmatpush.msra.mxu0 %v77
  %153 = vmatpush.msra.mxu0 %v76
  %154 = vmatpush.msra.mxu0 %v75
  %155 = vmatpush.msra.mxu0 %v74
  %156 = vmatpush.msra.mxu0 %v73
  %157 = vmatpush.msra.mxu0 %v72
  %158 = vmatpush.msra.mxu0 %v71
  %159 = vmatpush.msra.mxu0 %v70
  %160 = vmatmul.f32.gmra.mxu0 %v38
  %v161 = vpop.f32.mrf.mxu0
  %v162 = vadd.f32 0.0, %v161
  %163 = vmatmul.f32.gmra.mxu0 %v40
  %v164 = vpop.f32.mrf.mxu0
  %v165 = vadd.f32 0.0, %v164
  %166 = vmatmul.f32.gmra.mxu0 %v42
  %v167 = vpop.f32.mrf.mxu0
  %v168 = vadd.f32 0.0, %v167
  %169 = vmatmul.f32.gmra.mxu0 %v44
  %v170 = vpop.f32.mrf.mxu0
  %v171 = vadd.f32 0.0, %v170
  %172 = vmatmul.f32.gmra.mxu0 %v46
  %v173 = vpop.f32.mrf.mxu0
  %v174 = vadd.f32 0.0, %v173
  %175 = vmatmul.f32.gmra.mxu0 %v48
  %v176 = vpop.f32.mrf.mxu0
  %v177 = vadd.f32 0.0, %v176
  %178 = vmatmul.f32.gmra.mxu0 %v50
  %v179 = vpop.f32.mrf.mxu0
  %v180 = vadd.f32 0.0, %v179
  %181 = vmatmul.f32.gmra.mxu0 %v52
  %v182 = vpop.f32.mrf.mxu0
  %v183 = vadd.f32 0.0, %v182
  %184 = vmatmul.f32.gmra.mxu0 %v54
  %v185 = vpop.f32.mrf.mxu0
  %v186 = vadd.f32 0.0, %v185
  %187 = vmatmul.f32.gmra.mxu0 %v56
  %v188 = vpop.f32.mrf.mxu0
  %v189 = vadd.f32 0.0, %v188
  %190 = vmatmul.f32.gmra.mxu0 %v58
  %v191 = vpop.f32.mrf.mxu0
  %v192 = vadd.f32 0.0, %v191
  %193 = vmatmul.f32.gmra.mxu0 %v60
  %v194 = vpop.f32.mrf.mxu0
  %v195 = vadd.f32 0.0, %v194
  %196 = vmatmul.f32.gmra.mxu0 %v62
  %v197 = vpop.f32.mrf.mxu0
  %v198 = vadd.f32 0.0, %v197
  %199 = vmatmul.f32.gmra.mxu0 %v64
  %v200 = vpop.f32.mrf.mxu0
  %v201 = vadd.f32 0.0, %v200
  %202 = vmatmul.f32.gmra.mxu0 %v66
  %v203 = vpop.f32.mrf.mxu0
  %v204 = vadd.f32 0.0, %v203
  %205 = vmatmul.f32.gmra.mxu0 %v68
  %v206 = vpop.f32.mrf.mxu0
  %v207 = vadd.f32 0.0, %v206
  %208 = vdwg.mxu0
  %209 = vmatpush.msra.mxu0 0.0
  %210 = vmatpush.msra.mxu0 0.0
  %211 = vmatpush.msra.mxu0 0.0
  %212 = vmatpush.msra.mxu0 0.0
  %213 = vmatpush.msra.mxu0 0.0
  %214 = vmatpush.msra.mxu0 0.0
  %215 = vmatpush.msra.mxu0 0.0
  %216 = vmatpush.msra.mxu0 %v94
  %217 = vmatpush.msra.mxu0 %v93
  %218 = vmatpush.msra.mxu0 %v92
  %219 = vmatpush.msra.mxu0 %v91
  %220 = vmatpush.msra.mxu0 %v90
  %221 = vmatpush.msra.mxu0 %v89
  %222 = vmatpush.msra.mxu0 %v88
  %223 = vmatpush.msra.mxu0 %v87
  %224 = vmatpush.msra.mxu0 %v86
  %225 = vmatmul.f32.gmra.mxu0 %v97
  %v226 = vpop.f32.mrf.mxu0
  %v227 = vadd.f32 %v162, %v226
  %228 = vmatmul.f32.gmra.mxu0 %v100
  %v229 = vpop.f32.mrf.mxu0
  %v230 = vadd.f32 %v165, %v229
  %231 = vmatmul.f32.gmra.mxu0 %v103
  %v232 = vpop.f32.mrf.mxu0
  %v233 = vadd.f32 %v168, %v232
  %234 = vmatmul.f32.gmra.mxu0 %v106
  %v235 = vpop.f32.mrf.mxu0
  %v236 = vadd.f32 %v171, %v235
  %237 = vmatmul.f32.gmra.mxu0 %v109
  %v238 = vpop.f32.mrf.mxu0
  %v239 = vadd.f32 %v174, %v238
  %240 = vmatmul.f32.gmra.mxu0 %v112
  %v241 = vpop.f32.mrf.mxu0
  %v242 = vadd.f32 %v177, %v241
  %243 = vmatmul.f32.gmra.mxu0 %v115
  %v244 = vpop.f32.mrf.mxu0
  %v245 = vadd.f32 %v180, %v244
  %246 = vmatmul.f32.gmra.mxu0 %v118
  %v247 = vpop.f32.mrf.mxu0
  %v248 = vadd.f32 %v183, %v247
  %249 = vmatmul.f32.gmra.mxu0 %v121
  %v250 = vpop.f32.mrf.mxu0
  %v251 = vadd.f32 %v186, %v250
  %252 = vmatmul.f32.gmra.mxu0 %v124
  %v253 = vpop.f32.mrf.mxu0
  %v254 = vadd.f32 %v189, %v253
  %255 = vmatmul.f32.gmra.mxu0 %v127
  %v256 = vpop.f32.mrf.mxu0
  %v257 = vadd.f32 %v192, %v256
  %258 = vmatmul.f32.gmra.mxu0 %v130
  %v259 = vpop.f32.mrf.mxu0
  %v260 = vadd.f32 %v195, %v259
  %261 = vmatmul.f32.gmra.mxu0 %v133
  %v262 = vpop.f32.mrf.mxu0
  %v263 = vadd.f32 %v198, %v262
  %264 = vmatmul.f32.gmra.mxu0 %v136
  %v265 = vpop.f32.mrf.mxu0
  %v266 = vadd.f32 %v201, %v265
  %267 = vmatmul.f32.gmra.mxu0 %v139
  %v268 = vpop.f32.mrf.mxu0
  %v269 = vadd.f32 %v204, %v268
  %270 = vmatmul.f32.gmra.mxu0 %v142
  %v271 = vpop.f32.mrf.mxu0
  %v272 = vadd.f32 %v207, %v271
  %273 = vdwg.mxu0
  %v274 = vmax.f32 %v227, %v233
  %v275 = vmax.f32 %v230, %v236
  %v276 = vmax.f32 %v239, %v245
  %v277 = vmax.f32 %v242, %v248
  %v278 = vmax.f32 %v251, %v257
  %v279 = vmax.f32 %v254, %v260
  %v280 = vmax.f32 %v263, %v269
  %v281 = vmax.f32 %v266, %v272
  %282 = vst [vmem:[#allocation2] sm:$0xff] %v274
  %283 = vst [vmem:[#allocation2 + $0x8] sm:$0xff] %v275
  %284 = vst [vmem:[#allocation2 + $0x10] sm:$0xff] %v276
  %285 = vst [vmem:[#allocation2 + $0x18] sm:$0xff] %v277
  %286 = vst [vmem:[#allocation2 + $0x20] sm:$0xff] %v278
  %287 = vst [vmem:[#allocation2 + $0x28] sm:$0xff] %v279
  %288 = vst [vmem:[#allocation2 + $0x30] sm:$0xff] %v280
  %289 = vst [vmem:[#allocation2 + $0x38] sm:$0xff] %v281
  %v290 = vld [vmem:[#allocation2] ss:$2 sm:$0xff]
  %s291 = scalar_lea.vmem [#allocation2], 16
  %v292 = vld [vmem:[%s291] ss:$2 sm:$0xff]
  %s293 = scalar_lea.vmem [#allocation2], 32
  %v294 = vld [vmem:[%s293] ss:$2 sm:$0xff]
  %s295 = scalar_lea.vmem [#allocation2], 48
  %v296 = vld [vmem:[%s295] ss:$2 sm:$0xff]
  %s297 = scalar_lea.vmem [#allocation2], 1
  %v298 = vld [vmem:[%s297] ss:$2 sm:$0xff]
  %s299 = scalar_lea.vmem [#allocation2], 17
  %v300 = vld [vmem:[%s299] ss:$2 sm:$0xff]
  %s301 = scalar_lea.vmem [#allocation2], 33
  %v302 = vld [vmem:[%s301] ss:$2 sm:$0xff]
  %s303 = scalar_lea.vmem [#allocation2], 49
  %v304 = vld [vmem:[%s303] ss:$2 sm:$0xff]
  %v305 = vmax.f32 %v290, %v298
  %v306 = vmax.f32 %v292, %v300
  %v307 = vmax.f32 %v294, %v302
  %v308 = vmax.f32 %v296, %v304
  %v309 = vadd.f32 %v305, %v30
  %v310 = vadd.f32 %v306, %v30
  %v311 = vadd.f32 %v307, %v30
  %v312 = vadd.f32 %v308, %v30
  %v313 = vmax.f32 %v309, 0.0
  %v314 = vmax.f32 %v310, 0.0
  %v315 = vmax.f32 %v311, 0.0
  %v316 = vmax.f32 %v312, 0.0
  %317 = vst [vmem:[#allocation3] sm:$0xff] %v313
  %318 = vst [vmem:[#allocation3 + $0x8] sm:$0xff] %v314
  %319 = vst [vmem:[#allocation3 + $0x10] sm:$0xff] %v315
  %320 = vst [vmem:[#allocation3 + $0x18] sm:$0xff] %v316
  %v321 = vld [vmem:[%s0 + $0x100] sm:$0xff]
  %v322 = vld [vmem:[%s0 + $0x108] sm:$0xff]
  %v323 = vld [vmem:[%s0 + $0x110] sm:$0xff]
  %v324 = vld [vmem:[%s0 + $0x118] sm:$0xff]
  %v325 = vld [vmem:[%s0 + $0x120] sm:$0xff]
  %v326 = vld [vmem:[%s0 + $0x128] sm:$0xff]
  %v327 = vld [vmem:[%s0 + $0x130] sm:$0xff]
  %v328 = vld [vmem:[%s0 + $0x138] sm:$0xff]
  %v329 = vld [vmem:[%s0 + $0x140] sm:$0xff]
  %v330 = vld [vmem:[%s0 + $0x148] sm:$0xff]
  %v331 = vld [vmem:[%s0 + $0x150] sm:$0xff]
  %v332 = vld [vmem:[%s0 + $0x158] sm:$0xff]
  %v333 = vld [vmem:[%s0 + $0x160] sm:$0xff]
  %v334 = vld [vmem:[%s0 + $0x168] sm:$0xff]
  %v335 = vld [vmem:[%s0 + $0x170] sm:$0xff]
  %v336 = vld [vmem:[%s0 + $0x178] sm:$0xff]
  %v337 = vld [vmem:[%s0 + $0x180] sm:$0xff]
  %v338 = vld [vmem:[%s0 + $0x188] sm:$0xff]
  %v339 = vld [vmem:[%s0 + $0x190] sm:$0xff]
  %v340 = vld [vmem:[%s0 + $0x198] sm:$0xff]
  %v341 = vld [vmem:[%s0 + $0x1a0] sm:$0xff]
  %v342 = vld [vmem:[%s0 + $0x1a8] sm:$0xff]
  %v343 = vld [vmem:[%s0 + $0x1b0] sm:$0xff]
  %v344 = vld [vmem:[%s0 + $0x1b8] sm:$0xff]
  %v345 = vld [vmem:[%s0 + $0x1c0] sm:$0xff]
  %v346 = vld [vmem:[%s0 + $0x1c8] sm:$0xff]
  %v347 = vld [vmem:[%s0 + $0x1d0] sm:$0xff]
  %v348 = vld [vmem:[%s0 + $0x1d8] sm:$0xff]
  %v349 = vld [vmem:[%s0 + $0x1e0] sm:$0xff]
  %v350 = vld [vmem:[%s0 + $0x1e8] sm:$0xff]
  %v351 = vld [vmem:[%s0 + $0x1f0] sm:$0xff]
  %v352 = vld [vmem:[%s0 + $0x1f8] sm:$0xff]
  %v353 = vld [vmem:[%s1] sm:$0xff]
  %v354 = vld [vmem:[%s1 + $0x8] sm:$0xff]
  %v355 = vld [vmem:[%s1 + $0x10] sm:$0xff]
  %v356 = vld [vmem:[%s1 + $0x18] sm:$0xff]
  %v357 = vld [vmem:[%s1 + $0x20] sm:$0xff]
  %v358 = vld [vmem:[%s1 + $0x28] sm:$0xff]
  %v359 = vld [vmem:[%s1 + $0x30] sm:$0xff]
  %v360 = vld [vmem:[%s1 + $0x38] sm:$0xff]
  %v361 = vld [vmem:[%s1 + $0x40] sm:$0xff]
  %v362 = vld [vmem:[%s1 + $0x48] sm:$0xff]
  %v363 = vld [vmem:[%s1 + $0x50] sm:$0xff]
  %v364 = vld [vmem:[%s1 + $0x58] sm:$0xff]
  %v365 = vld [vmem:[%s1 + $0x60] sm:$0xff]
  %v366 = vld [vmem:[%s1 + $0x68] sm:$0xff]
  %v367 = vld [vmem:[%s1 + $0x70] sm:$0xff]
  %v368 = vld [vmem:[%s1 + $0x78] sm:$0xff]
  %v369 = vld [vmem:[%s1 + $0x80] sm:$0xff]
  %v370 = vld [vmem:[%s1 + $0x88] sm:$0xff]
  %v371 = vld [vmem:[%s1 + $0x90] sm:$0xff]
  %v372 = vld [vmem:[%s1 + $0x98] sm:$0xff]
  %v373 = vld [vmem:[%s1 + $0xa0] sm:$0xff]
  %v374 = vld [vmem:[%s1 + $0xa8] sm:$0xff]
  %v375 = vld [vmem:[%s1 + $0xb0] sm:$0xff]
  %v376 = vld [vmem:[%s1 + $0xb8] sm:$0xff]
  %v377 = vld [vmem:[%s1 + $0xc0] sm:$0xff]
  %v379 = vsel %vm95, %v322, 0
  %v382 = vsel %vm95, %v324, 0
  %v385 = vsel %vm95, %v326, 0
  %v388 = vsel %vm95, %v328, 0
  %v391 = vsel %vm95, %v330, 0
  %v394 = vsel %vm95, %v332, 0
  %v397 = vsel %vm95, %v334, 0
  %v400 = vsel %vm95, %v336, 0
  %v403 = vsel %vm95, %v338, 0
  %v406 = vsel %vm95, %v340, 0
  %v409 = vsel %vm95, %v342, 0
  %v412 = vsel %vm95, %v344, 0
  %v415 = vsel %vm95, %v346, 0
  %v418 = vsel %vm95, %v348, 0
  %v421 = vsel %vm95, %v350, 0
  %v424 = vsel %vm95, %v352, 0
  %426 = vmatpush.msra.mxu0 %v368
  %427 = vmatpush.msra.mxu0 %v367
  %428 = vmatpush.msra.mxu0 %v366
  %429 = vmatpush.msra.mxu0 %v365
  %430 = vmatpush.msra.mxu0 %v364
  %431 = vmatpush.msra.mxu0 %v363
  %432 = vmatpush.msra.mxu0 %v362
  %433 = vmatpush.msra.mxu0 %v361
  %434 = vmatpush.msra.mxu0 %v360
  %435 = vmatpush.msra.mxu0 %v359
  %436 = vmatpush.msra.mxu0 %v358
  %437 = vmatpush.msra.mxu0 %v357
  %438 = vmatpush.msra.mxu0 %v356
  %439 = vmatpush.msra.mxu0 %v355
  %440 = vmatpush.msra.mxu0 %v354
  %441 = vmatpush.msra.mxu0 %v353
  %442 = vmatmul.f32.gmra.mxu0 %v321
  %v443 = vpop.f32.mrf.mxu0
  %v444 = vadd.f32 0.0, %v443
  %445 = vmatmul.f32.gmra.mxu0 %v323
  %v446 = vpop.f32.mrf.mxu0
  %v447 = vadd.f32 0.0, %v446
  %448 = vmatmul.f32.gmra.mxu0 %v325
  %v449 = vpop.f32.mrf.mxu0
  %v450 = vadd.f32 0.0, %v449
  %451 = vmatmul.f32.gmra.mxu0 %v327
  %v452 = vpop.f32.mrf.mxu0
  %v453 = vadd.f32 0.0, %v452
  %454 = vmatmul.f32.gmra.mxu0 %v329
  %v455 = vpop.f32.mrf.mxu0
  %v456 = vadd.f32 0.0, %v455
  %457 = vmatmul.f32.gmra.mxu0 %v331
  %v458 = vpop.f32.mrf.mxu0
  %v459 = vadd.f32 0.0, %v458
  %460 = vmatmul.f32.gmra.mxu0 %v333
  %v461 = vpop.f32.mrf.mxu0
  %v462 = vadd.f32 0.0, %v461
  %463 = vmatmul.f32.gmra.mxu0 %v335
  %v464 = vpop.f32.mrf.mxu0
  %v465 = vadd.f32 0.0, %v464
  %466 = vmatmul.f32.gmra.mxu0 %v337
  %v467 = vpop.f32.mrf.mxu0
  %v468 = vadd.f32 0.0, %v467
  %469 = vmatmul.f32.gmra.mxu0 %v339
  %v470 = vpop.f32.mrf.mxu0
  %v471 = vadd.f32 0.0, %v470
  %472 = vmatmul.f32.gmra.mxu0 %v341
  %v473 = vpop.f32.mrf.mxu0
  %v474 = vadd.f32 0.0, %v473
  %475 = vmatmul.f32.gmra.mxu0 %v343
  %v476 = vpop.f32.mrf.mxu0
  %v477 = vadd.f32 0.0, %v476
  %478 = vmatmul.f32.gmra.mxu0 %v345
  %v479 = vpop.f32.mrf.mxu0
  %v480 = vadd.f32 0.0, %v479
  %481 = vmatmul.f32.gmra.mxu0 %v347
  %v482 = vpop.f32.mrf.mxu0
  %v483 = vadd.f32 0.0, %v482
  %484 = vmatmul.f32.gmra.mxu0 %v349
  %v485 = vpop.f32.mrf.mxu0
  %v486 = vadd.f32 0.0, %v485
  %487 = vmatmul.f32.gmra.mxu0 %v351
  %v488 = vpop.f32.mrf.mxu0
  %v489 = vadd.f32 0.0, %v488
  %490 = vdwg.mxu0
  %491 = vmatpush.msra.mxu0 0.0
  %492 = vmatpush.msra.mxu0 0.0
  %493 = vmatpush.msra.mxu0 0.0
  %494 = vmatpush.msra.mxu0 0.0
  %495 = vmatpush.msra.mxu0 0.0
  %496 = vmatpush.msra.mxu0 0.0
  %497 = vmatpush.msra.mxu0 0.0
  %498 = vmatpush.msra.mxu0 %v377
  %499 = vmatpush.msra.mxu0 %v376
  %500 = vmatpush.msra.mxu0 %v375
  %501 = vmatpush.msra.mxu0 %v374
  %502 = vmatpush.msra.mxu0 %v373
  %503 = vmatpush.msra.mxu0 %v372
  %504 = vmatpush.msra.mxu0 %v371
  %505 = vmatpush.msra.mxu0 %v370
  %506 = vmatpush.msra.mxu0 %v369
  %507 = vmatmul.f32.gmra.mxu0 %v379
  %v508 = vpop.f32.mrf.mxu0
  %v509 = vadd.f32 %v444, %v508
  %510 = vmatmul.f32.gmra.mxu0 %v382
  %v511 = vpop.f32.mrf.mxu0
  %v512 = vadd.f32 %v447, %v511
  %513 = vmatmul.f32.gmra.mxu0 %v385
  %v514 = vpop.f32.mrf.mxu0
  %v515 = vadd.f32 %v450, %v514
  %516 = vmatmul.f32.gmra.mxu0 %v388
  %v517 = vpop.f32.mrf.mxu0
  %v518 = vadd.f32 %v453, %v517
  %519 = vmatmul.f32.gmra.mxu0 %v391
  %v520 = vpop.f32.mrf.mxu0
  %v521 = vadd.f32 %v456, %v520
  %522 = vmatmul.f32.gmra.mxu0 %v394
  %v523 = vpop.f32.mrf.mxu0
  %v524 = vadd.f32 %v459, %v523
  %525 = vmatmul.f32.gmra.mxu0 %v397
  %v526 = vpop.f32.mrf.mxu0
  %v527 = vadd.f32 %v462, %v526
  %528 = vmatmul.f32.gmra.mxu0 %v400
  %v529 = vpop.f32.mrf.mxu0
  %v530 = vadd.f32 %v465, %v529
  %531 = vmatmul.f32.gmra.mxu0 %v403
  %v532 = vpop.f32.mrf.mxu0
  %v533 = vadd.f32 %v468, %v532
  %534 = vmatmul.f32.gmra.mxu0 %v406
  %v535 = vpop.f32.mrf.mxu0
  %v536 = vadd.f32 %v471, %v535
  %537 = vmatmul.f32.gmra.mxu0 %v409
  %v538 = vpop.f32.mrf.mxu0
  %v539 = vadd.f32 %v474, %v538
  %540 = vmatmul.f32.gmra.mxu0 %v412
  %v541 = vpop.f32.mrf.mxu0
  %v542 = vadd.f32 %v477, %v541
  %543 = vmatmul.f32.gmra.mxu0 %v415
  %v544 = vpop.f32.mrf.mxu0
  %v545 = vadd.f32 %v480, %v544
  %546 = vmatmul.f32.gmra.mxu0 %v418
  %v547 = vpop.f32.mrf.mxu0
  %v548 = vadd.f32 %v483, %v547
  %549 = vmatmul.f32.gmra.mxu0 %v421
  %v550 = vpop.f32.mrf.mxu0
  %v551 = vadd.f32 %v486, %v550
  %552 = vmatmul.f32.gmra.mxu0 %v424
  %v553 = vpop.f32.mrf.mxu0
  %v554 = vadd.f32 %v489, %v553
  %555 = vdwg.mxu0
  %v556 = vmax.f32 %v509, %v515
  %v557 = vmax.f32 %v512, %v518
  %v558 = vmax.f32 %v521, %v527
  %v559 = vmax.f32 %v524, %v530
  %v560 = vmax.f32 %v533, %v539
  %v561 = vmax.f32 %v536, %v542
  %v562 = vmax.f32 %v545, %v551
  %v563 = vmax.f32 %v548, %v554
  %564 = vst [vmem:[#allocation2] sm:$0xff] %v556
  %565 = vst [vmem:[#allocation2 + $0x8] sm:$0xff] %v557
  %566 = vst [vmem:[#allocation2 + $0x10] sm:$0xff] %v558
  %567 = vst [vmem:[#allocation2 + $0x18] sm:$0xff] %v559
  %568 = vst [vmem:[#allocation2 + $0x20] sm:$0xff] %v560
  %569 = vst [vmem:[#allocation2 + $0x28] sm:$0xff] %v561
  %570 = vst [vmem:[#allocation2 + $0x30] sm:$0xff] %v562
  %571 = vst [vmem:[#allocation2 + $0x38] sm:$0xff] %v563
  %v572 = vld [vmem:[#allocation2] ss:$2 sm:$0xff]
  %v573 = vld [vmem:[%s291] ss:$2 sm:$0xff]
  %v574 = vld [vmem:[%s293] ss:$2 sm:$0xff]
  %v575 = vld [vmem:[%s295] ss:$2 sm:$0xff]
  %v576 = vld [vmem:[%s297] ss:$2 sm:$0xff]
  %v577 = vld [vmem:[%s299] ss:$2 sm:$0xff]
  %v578 = vld [vmem:[%s301] ss:$2 sm:$0xff]
  %v579 = vld [vmem:[%s303] ss:$2 sm:$0xff]
  %v580 = vmax.f32 %v572, %v576
  %v581 = vmax.f32 %v573, %v577
  %v582 = vmax.f32 %v574, %v578
  %v583 = vmax.f32 %v575, %v579
  %v584 = vadd.f32 %v580, %v30
  %v585 = vadd.f32 %v581, %v30
  %v586 = vadd.f32 %v582, %v30
  %v587 = vadd.f32 %v583, %v30
  %v588 = vmax.f32 %v584, 0.0
  %v589 = vmax.f32 %v585, 0.0
  %v590 = vmax.f32 %v586, 0.0
  %v591 = vmax.f32 %v587, 0.0
  %592 = vst [vmem:[#allocation3 + $0x20] sm:$0xff] %v588
  %593 = vst [vmem:[#allocation3 + $0x28] sm:$0xff] %v589
  %594 = vst [vmem:[#allocation3 + $0x30] sm:$0xff] %v590
  %595 = vst [vmem:[#allocation3 + $0x38] sm:$0xff] %v591
  %v596 = vld [vmem:[#allocation3] sm:$0xff]
  %v597 = vld [vmem:[#allocation3 + $0x8] sm:$0xff]
  %v598 = vld [vmem:[#allocation3 + $0x10] sm:$0xff]
  %v599 = vld [vmem:[#allocation3 + $0x18] sm:$0xff]
  %v600 = vld [vmem:[#allocation3 + $0x20] sm:$0xff]
  %v601 = vld [vmem:[#allocation3 + $0x28] sm:$0x3f]
  %v602 = vld [vmem:[#allocation3 + $0x1] sm:$0xff]
  %v603 = vld [vmem:[#allocation3 + $0x9] sm:$0xff]
  %v604 = vld [vmem:[#allocation3 + $0x11] sm:$0xff]
  %v605 = vld [vmem:[#allocation3 + $0x19] sm:$0xff]
  %v606 = vld [vmem:[#allocation3 + $0x21] sm:$0xff]
  %v607 = vld [vmem:[#allocation3 + $0x29] sm:$0x3f]
  %v608 = vld [vmem:[#allocation3 + $0x2] sm:$0xff]
  %v609 = vld [vmem:[#allocation3 + $0xa] sm:$0xff]
  %v610 = vld [vmem:[#allocation3 + $0x12] sm:$0xff]
  %v611 = vld [vmem:[#allocation3 + $0x1a] sm:$0xff]
  %v612 = vld [vmem:[#allocation3 + $0x22] sm:$0xff]
  %v613 = vld [vmem:[#allocation3 + $0x2a] sm:$0x3f]
  %v614 = vld [vmem:[%s3] sm:$0xff]
  %v615 = vld [vmem:[%s3 + $0x8] sm:$0xff]
  %v616 = vld [vmem:[%s3 + $0x10] sm:$0xff]
  %v617 = vld [vmem:[%s3 + $0x18] sm:$0xff]
  %v618 = vld [vmem:[%s3 + $0x20] sm:$0xff]
  %v619 = vld [vmem:[%s3 + $0x28] sm:$0xff]
  %v620 = vld [vmem:[%s3 + $0x30] sm:$0xff]
  %v621 = vld [vmem:[%s3 + $0x38] sm:$0xff]
  %v622 = vld [vmem:[%s3 + $0x40] sm:$0xff]
  %v623 = vld [vmem:[%s3 + $0x48] sm:$0xff]
  %v624 = vld [vmem:[%s3 + $0x50] sm:$0xff]
  %v625 = vld [vmem:[%s3 + $0x58] sm:$0xff]
  %v626 = vld [vmem:[%s3 + $0x60] sm:$0xff]
  %v627 = vld [vmem:[%s3 + $0x68] sm:$0xff]
  %v628 = vld [vmem:[%s3 + $0x70] sm:$0xff]
  %v629 = vld [vmem:[%s3 + $0x78] sm:$0xff]
  %v630 = vld [vmem:[%s3 + $0x80] sm:$0xff]
  %v631 = vld [vmem:[%s3 + $0x88] sm:$0xff]
  %v632 = vld [vmem:[%s3 + $0x90] sm:$0xff]
  %v633 = vld [vmem:[%s3 + $0x98] sm:$0xff]
  %v634 = vld [vmem:[%s3 + $0xa0] sm:$0xff]
  %v635 = vld [vmem:[%s3 + $0xa8] sm:$0xff]
  %v636 = vld [vmem:[%s3 + $0xb0] sm:$0xff]
  %v637 = vld [vmem:[%s3 + $0xb8] sm:$0xff]
  %v638 = vld [vmem:[%s3 + $0xc0] sm:$0xff]
  %v639 = vld [vmem:[%s3 + $0xc8] sm:$0xff]
  %v640 = vld [vmem:[%s3 + $0xd0] sm:$0xff]
  %v641 = vld [vmem:[%s3 + $0xd8] sm:$0xff]
  %v642 = vld [vmem:[%s3 + $0xe0] sm:$0xff]
  %v643 = vld [vmem:[%s3 + $0xe8] sm:$0xff]
  %v644 = vld [vmem:[%s3 + $0xf0] sm:$0xff]
  %v645 = vld [vmem:[%s3 + $0xf8] sm:$0xff]
  %v646 = vld [vmem:[%s3 + $0x100] sm:$0xff]
  %v647 = vld [vmem:[%s3 + $0x108] sm:$0xff]
  %v648 = vld [vmem:[%s3 + $0x110] sm:$0xff]
  %v649 = vld [vmem:[%s3 + $0x118] sm:$0xff]
  %v650 = vld [vmem:[%s3 + $0x120] sm:$0xff]
  %v651 = vld [vmem:[%s3 + $0x128] sm:$0xff]
  %v652 = vld [vmem:[%s3 + $0x130] sm:$0xff]
  %v653 = vld [vmem:[%s3 + $0x138] sm:$0xff]
  %v654 = vld [vmem:[%s3 + $0x140] sm:$0xff]
  %v655 = vld [vmem:[%s3 + $0x148] sm:$0xff]
  %v656 = vld [vmem:[%s3 + $0x150] sm:$0xff]
  %v657 = vld [vmem:[%s3 + $0x158] sm:$0xff]
  %v658 = vld [vmem:[%s3 + $0x160] sm:$0xff]
  %v659 = vld [vmem:[%s3 + $0x168] sm:$0xff]
  %v660 = vld [vmem:[%s3 + $0x170] sm:$0xff]
  %v661 = vld [vmem:[%s3 + $0x178] sm:$0xff]
  %v662 = vld [vmem:[#allocation3 + $0x28] sm:$0xff]
  %v663 = vld [vmem:[#allocation3 + $0x30] sm:$0x3f]
  %v664 = vld [vmem:[#allocation3 + $0x29] sm:$0xff]
  %v665 = vld [vmem:[#allocation3 + $0x31] sm:$0x3f]
  %v666 = vld [vmem:[#allocation3 + $0x2a] sm:$0xff]
  %v667 = vld [vmem:[#allocation3 + $0x32] sm:$0x3f]
  %s668 = scalar_lea.vmem %s3, 384
  %v669 = vld [vmem:[%s668] sm:$0xff]
  %v670 = vld [vmem:[%s668 + $0x8] sm:$0xff]
  %v671 = vld [vmem:[%s668 + $0x10] sm:$0xff]
  %v672 = vld [vmem:[%s668 + $0x18] sm:$0xff]
  %v673 = vld [vmem:[%s668 + $0x20] sm:$0xff]
  %v674 = vld [vmem:[%s668 + $0x28] sm:$0xff]
  %v675 = vld [vmem:[%s668 + $0x30] sm:$0xff]
  %v676 = vld [vmem:[%s668 + $0x38] sm:$0xff]
  %v677 = vld [vmem:[%s668 + $0x40] sm:$0xff]
  %v678 = vld [vmem:[%s668 + $0x48] sm:$0xff]
  %v679 = vld [vmem:[%s668 + $0x50] sm:$0xff]
  %v680 = vld [vmem:[%s668 + $0x58] sm:$0xff]
  %v681 = vld [vmem:[%s668 + $0x60] sm:$0xff]
  %v682 = vld [vmem:[%s668 + $0x68] sm:$0xff]
  %v683 = vld [vmem:[%s668 + $0x70] sm:$0xff]
  %v684 = vld [vmem:[%s668 + $0x78] sm:$0xff]
  %v685 = vld [vmem:[%s668 + $0x80] sm:$0xff]
  %v686 = vld [vmem:[%s668 + $0x88] sm:$0xff]
  %v687 = vld [vmem:[%s668 + $0x90] sm:$0xff]
  %v688 = vld [vmem:[%s668 + $0x98] sm:$0xff]
  %v689 = vld [vmem:[%s668 + $0xa0] sm:$0xff]
  %v690 = vld [vmem:[%s668 + $0xa8] sm:$0xff]
  %v691 = vld [vmem:[%s668 + $0xb0] sm:$0xff]
  %v692 = vld [vmem:[%s668 + $0xb8] sm:$0xff]
  %v693 = vld [vmem:[%s668 + $0xc0] sm:$0xff]
  %v694 = vld [vmem:[%s668 + $0xc8] sm:$0xff]
  %v695 = vld [vmem:[%s668 + $0xd0] sm:$0xff]
  %v696 = vld [vmem:[%s668 + $0xd8] sm:$0xff]
  %v697 = vld [vmem:[%s668 + $0xe0] sm:$0xff]
  %v698 = vld [vmem:[%s668 + $0xe8] sm:$0xff]
  %v699 = vld [vmem:[%s668 + $0xf0] sm:$0xff]
  %v700 = vld [vmem:[%s668 + $0xf8] sm:$0xff]
  %v701 = vld [vmem:[%s668 + $0x100] sm:$0xff]
  %v702 = vld [vmem:[%s668 + $0x108] sm:$0xff]
  %v703 = vld [vmem:[%s668 + $0x110] sm:$0xff]
  %v704 = vld [vmem:[%s668 + $0x118] sm:$0xff]
  %v705 = vld [vmem:[%s668 + $0x120] sm:$0xff]
  %v706 = vld [vmem:[%s668 + $0x128] sm:$0xff]
  %v707 = vld [vmem:[%s668 + $0x130] sm:$0xff]
  %v708 = vld [vmem:[%s668 + $0x138] sm:$0xff]
  %v709 = vld [vmem:[%s668 + $0x140] sm:$0xff]
  %v710 = vld [vmem:[%s668 + $0x148] sm:$0xff]
  %v711 = vld [vmem:[%s668 + $0x150] sm:$0xff]
  %v712 = vld [vmem:[%s668 + $0x158] sm:$0xff]
  %v713 = vld [vmem:[%s668 + $0x160] sm:$0xff]
  %v714 = vld [vmem:[%s668 + $0x168] sm:$0xff]
  %v715 = vld [vmem:[%s668 + $0x170] sm:$0xff]
  %v716 = vld [vmem:[%s668 + $0x178] sm:$0xff]
  %717 = vmatpush.msra.mxu0 %v684
  %718 = vmatpush.msra.mxu0 %v683
  %719 = vmatpush.msra.mxu0 %v682
  %720 = vmatpush.msra.mxu0 %v681
  %721 = vmatpush.msra.mxu0 %v680
  %722 = vmatpush.msra.mxu0 %v679
  %723 = vmatpush.msra.mxu0 %v678
  %724 = vmatpush.msra.mxu0 %v677
  %725 = vmatpush.msra.mxu0 %v676
  %726 = vmatpush.msra.mxu0 %v675
  %727 = vmatpush.msra.mxu0 %v674
  %728 = vmatpush.msra.mxu0 %v673
  %729 = vmatpush.msra.mxu0 %v672
  %730 = vmatpush.msra.mxu0 %v671
  %731 = vmatpush.msra.mxu0 %v670
  %732 = vmatpush.msra.mxu0 %v669
  %733 = vmatmul.f32.gmra.mxu0 %v597
  %v734 = vpop.f32.mrf.mxu0
  %v735 = vadd.f32 0.0, %v734
  %736 = vmatmul.f32.gmra.mxu0 %v598
  %v737 = vpop.f32.mrf.mxu0
  %v738 = vadd.f32 0.0, %v737
  %739 = vmatmul.f32.gmra.mxu0 %v599
  %v740 = vpop.f32.mrf.mxu0
  %v741 = vadd.f32 0.0, %v740
  %742 = vmatmul.f32.gmra.mxu0 %v600
  %v743 = vpop.f32.mrf.mxu0
  %v744 = vadd.f32 0.0, %v743
  %745 = vmatmul.f32.gmra.mxu0 %v662
  %v746 = vpop.f32.mrf.mxu0
  %v747 = vadd.f32 0.0, %v746
  %748 = vmatmul.f32.gmra.mxu0 %v663
  %v749 = vpop.f32.mrf.mxu0
  %v750 = vadd.f32 0.0, %v749
  %751 = vdwg.mxu0
  %752 = vmatpush.msra.mxu0 %v700
  %753 = vmatpush.msra.mxu0 %v699
  %754 = vmatpush.msra.mxu0 %v698
  %755 = vmatpush.msra.mxu0 %v697
  %756 = vmatpush.msra.mxu0 %v696
  %757 = vmatpush.msra.mxu0 %v695
  %758 = vmatpush.msra.mxu0 %v694
  %759 = vmatpush.msra.mxu0 %v693
  %760 = vmatpush.msra.mxu0 %v692
  %761 = vmatpush.msra.mxu0 %v691
  %762 = vmatpush.msra.mxu0 %v690
  %763 = vmatpush.msra.mxu0 %v689
  %764 = vmatpush.msra.mxu0 %v688
  %765 = vmatpush.msra.mxu0 %v687
  %766 = vmatpush.msra.mxu0 %v686
  %767 = vmatpush.msra.mxu0 %v685
  %768 = vmatmul.f32.gmra.mxu0 %v603
  %v769 = vpop.f32.mrf.mxu0
  %v770 = vadd.f32 %v735, %v769
  %771 = vmatmul.f32.gmra.mxu0 %v604
  %v772 = vpop.f32.mrf.mxu0
  %v773 = vadd.f32 %v738, %v772
  %774 = vmatmul.f32.gmra.mxu0 %v605
  %v775 = vpop.f32.mrf.mxu0
  %v776 = vadd.f32 %v741, %v775
  %777 = vmatmul.f32.gmra.mxu0 %v606
  %v778 = vpop.f32.mrf.mxu0
  %v779 = vadd.f32 %v744, %v778
  %780 = vmatmul.f32.gmra.mxu0 %v664
  %v781 = vpop.f32.mrf.mxu0
  %v782 = vadd.f32 %v747, %v781
  %783 = vmatmul.f32.gmra.mxu0 %v665
  %v784 = vpop.f32.mrf.mxu0
  %v785 = vadd.f32 %v750, %v784
  %786 = vdwg.mxu0
  %787 = vmatpush.msra.mxu0 %v716
  %788 = vmatpush.msra.mxu0 %v715
  %789 = vmatpush.msra.mxu0 %v714
  %790 = vmatpush.msra.mxu0 %v713
  %791 = vmatpush.msra.mxu0 %v712
  %792 = vmatpush.msra.mxu0 %v711
  %793 = vmatpush.msra.mxu0 %v710
  %794 = vmatpush.msra.mxu0 %v709
  %795 = vmatpush.msra.mxu0 %v708
  %796 = vmatpush.msra.mxu0 %v707
  %797 = vmatpush.msra.mxu0 %v706
  %798 = vmatpush.msra.mxu0 %v705
  %799 = vmatpush.msra.mxu0 %v704
  %800 = vmatpush.msra.mxu0 %v703
  %801 = vmatpush.msra.mxu0 %v702
  %802 = vmatpush.msra.mxu0 %v701
  %803 = vmatmul.f32.gmra.mxu0 %v609
  %v804 = vpop.f32.mrf.mxu0
  %v805 = vadd.f32 %v770, %v804
  %806 = vmatmul.f32.gmra.mxu0 %v610
  %v807 = vpop.f32.mrf.mxu0
  %v808 = vadd.f32 %v773, %v807
  %809 = vmatmul.f32.gmra.mxu0 %v611
  %v810 = vpop.f32.mrf.mxu0
  %v811 = vadd.f32 %v776, %v810
  %812 = vmatmul.f32.gmra.mxu0 %v612
  %v813 = vpop.f32.mrf.mxu0
  %v814 = vadd.f32 %v779, %v813
  %815 = vmatmul.f32.gmra.mxu0 %v666
  %v816 = vpop.f32.mrf.mxu0
  %v817 = vadd.f32 %v782, %v816
  %818 = vmatmul.f32.gmra.mxu0 %v667
  %v819 = vpop.f32.mrf.mxu0
  %v820 = vadd.f32 %v785, %v819
  %821 = vdwg.mxu0
  %822 = vmatpush.msra.mxu0 %v629
  %823 = vmatpush.msra.mxu0 %v628
  %824 = vmatpush.msra.mxu0 %v627
  %825 = vmatpush.msra.mxu0 %v626
  %826 = vmatpush.msra.mxu0 %v625
  %827 = vmatpush.msra.mxu0 %v624
  %828 = vmatpush.msra.mxu0 %v623
  %829 = vmatpush.msra.mxu0 %v622
  %830 = vmatpush.msra.mxu0 %v621
  %831 = vmatpush.msra.mxu0 %v620
  %832 = vmatpush.msra.mxu0 %v619
  %833 = vmatpush.msra.mxu0 %v618
  %834 = vmatpush.msra.mxu0 %v617
  %835 = vmatpush.msra.mxu0 %v616
  %836 = vmatpush.msra.mxu0 %v615
  %837 = vmatpush.msra.mxu0 %v614
  %838 = vmatmul.f32.gmra.mxu0 %v596
  %v839 = vpop.f32.mrf.mxu0
  %v840 = vadd.f32 %v805, %v839
  %841 = vmatmul.f32.gmra.mxu0 %v597
  %v842 = vpop.f32.mrf.mxu0
  %v843 = vadd.f32 %v808, %v842
  %844 = vmatmul.f32.gmra.mxu0 %v598
  %v845 = vpop.f32.mrf.mxu0
  %v846 = vadd.f32 %v811, %v845
  %847 = vmatmul.f32.gmra.mxu0 %v599
  %v848 = vpop.f32.mrf.mxu0
  %v849 = vadd.f32 %v814, %v848
  %850 = vmatmul.f32.gmra.mxu0 %v600
  %v851 = vpop.f32.mrf.mxu0
  %v852 = vadd.f32 %v817, %v851
  %853 = vmatmul.f32.gmra.mxu0 %v601
  %v854 = vpop.f32.mrf.mxu0
  %v855 = vadd.f32 %v820, %v854
  %856 = vdwg.mxu0
  %857 = vmatpush.msra.mxu0 %v645
  %858 = vmatpush.msra.mxu0 %v644
  %859 = vmatpush.msra.mxu0 %v643
  %860 = vmatpush.msra.mxu0 %v642
  %861 = vmatpush.msra.mxu0 %v641
  %862 = vmatpush.msra.mxu0 %v640
  %863 = vmatpush.msra.mxu0 %v639
  %864 = vmatpush.msra.mxu0 %v638
  %865 = vmatpush.msra.mxu0 %v637
  %866 = vmatpush.msra.mxu0 %v636
  %867 = vmatpush.msra.mxu0 %v635
  %868 = vmatpush.msra.mxu0 %v634
  %869 = vmatpush.msra.mxu0 %v633
  %870 = vmatpush.msra.mxu0 %v632
  %871 = vmatpush.msra.mxu0 %v631
  %872 = vmatpush.msra.mxu0 %v630
  %873 = vmatmul.f32.gmra.mxu0 %v602
  %v874 = vpop.f32.mrf.mxu0
  %v875 = vadd.f32 %v840, %v874
  %876 = vmatmul.f32.gmra.mxu0 %v603
  %v877 = vpop.f32.mrf.mxu0
  %v878 = vadd.f32 %v843, %v877
  %879 = vmatmul.f32.gmra.mxu0 %v604
  %v880 = vpop.f32.mrf.mxu0
  %v881 = vadd.f32 %v846, %v880
  %882 = vmatmul.f32.gmra.mxu0 %v605
  %v883 = vpop.f32.mrf.mxu0
  %v884 = vadd.f32 %v849, %v883
  %885 = vmatmul.f32.gmra.mxu0 %v606
  %v886 = vpop.f32.mrf.mxu0
  %v887 = vadd.f32 %v852, %v886
  %888 = vmatmul.f32.gmra.mxu0 %v607
  %v889 = vpop.f32.mrf.mxu0
  %v890 = vadd.f32 %v855, %v889
  %891 = vdwg.mxu0
  %892 = vmatpush.msra.mxu0 %v661
  %893 = vmatpush.msra.mxu0 %v660
  %894 = vmatpush.msra.mxu0 %v659
  %895 = vmatpush.msra.mxu0 %v658
  %896 = vmatpush.msra.mxu0 %v657
  %897 = vmatpush.msra.mxu0 %v656
  %898 = vmatpush.msra.mxu0 %v655
  %899 = vmatpush.msra.mxu0 %v654
  %900 = vmatpush.msra.mxu0 %v653
  %901 = vmatpush.msra.mxu0 %v652
  %902 = vmatpush.msra.mxu0 %v651
  %903 = vmatpush.msra.mxu0 %v650
  %904 = vmatpush.msra.mxu0 %v649
  %905 = vmatpush.msra.mxu0 %v648
  %906 = vmatpush.msra.mxu0 %v647
  %907 = vmatpush.msra.mxu0 %v646
  %908 = vmatmul.f32.gmra.mxu0 %v608
  %v909 = vpop.f32.mrf.mxu0
  %v910 = vadd.f32 %v875, %v909
  %911 = vmatmul.f32.gmra.mxu0 %v609
  %v912 = vpop.f32.mrf.mxu0
  %v913 = vadd.f32 %v878, %v912
  %914 = vmatmul.f32.gmra.mxu0 %v610
  %v915 = vpop.f32.mrf.mxu0
  %v916 = vadd.f32 %v881, %v915
  %917 = vmatmul.f32.gmra.mxu0 %v611
  %v918 = vpop.f32.mrf.mxu0
  %v919 = vadd.f32 %v884, %v918
  %920 = vmatmul.f32.gmra.mxu0 %v612
  %v921 = vpop.f32.mrf.mxu0
  %v922 = vadd.f32 %v887, %v921
  %923 = vmatmul.f32.gmra.mxu0 %v613
  %v924 = vpop.f32.mrf.mxu0
  %v925 = vadd.f32 %v890, %v924
  %926 = vdwg.mxu0
  %v927 = vld [vmem:[#allocation3 + $0x10] sm:$0xff]
  %v928 = vld [vmem:[#allocation3 + $0x18] sm:$0xff]
  %v929 = vld [vmem:[#allocation3 + $0x20] sm:$0xff]
  %v930 = vld [vmem:[#allocation3 + $0x28] sm:$0xff]
  %v931 = vld [vmem:[#allocation3 + $0x30] sm:$0xff]
  %v932 = vld [vmem:[#allocation3 + $0x38] sm:$0x3f]
  %v933 = vld [vmem:[#allocation3 + $0x11] sm:$0xff]
  %v934 = vld [vmem:[#allocation3 + $0x19] sm:$0xff]
  %v935 = vld [vmem:[#allocation3 + $0x21] sm:$0xff]
  %v936 = vld [vmem:[#allocation3 + $0x29] sm:$0xff]
  %v937 = vld [vmem:[#allocation3 + $0x31] sm:$0xff]
  %v938 = vld [vmem:[#allocation3 + $0x39] sm:$0x3f]
  %v939 = vld [vmem:[#allocation3 + $0x12] sm:$0xff]
  %v940 = vld [vmem:[#allocation3 + $0x1a] sm:$0xff]
  %v941 = vld [vmem:[#allocation3 + $0x22] sm:$0xff]
  %v942 = vld [vmem:[#allocation3 + $0x2a] sm:$0xff]
  %v943 = vld [vmem:[#allocation3 + $0x32] sm:$0xff]
  %v944 = vld [vmem:[#allocation3 + $0x3a] sm:$0x3f]
  %s945 = scalar_lea.vmem %s3, 768
  %v946 = vld [vmem:[%s945] sm:$0xff]
  %v947 = vld [vmem:[%s945 + $0x8] sm:$0xff]
  %v948 = vld [vmem:[%s945 + $0x10] sm:$0xff]
  %v949 = vld [vmem:[%s945 + $0x18] sm:$0xff]
  %v950 = vld [vmem:[%s945 + $0x20] sm:$0xff]
  %v951 = vld [vmem:[%s945 + $0x28] sm:$0xff]
  %v952 = vld [vmem:[%s945 + $0x30] sm:$0xff]
  %v953 = vld [vmem:[%s945 + $0x38] sm:$0xff]
  %v954 = vld [vmem:[%s945 + $0x40] sm:$0xff]
  %v955 = vld [vmem:[%s945 + $0x48] sm:$0xff]
  %v956 = vld [vmem:[%s945 + $0x50] sm:$0xff]
  %v957 = vld [vmem:[%s945 + $0x58] sm:$0xff]
  %v958 = vld [vmem:[%s945 + $0x60] sm:$0xff]
  %v959 = vld [vmem:[%s945 + $0x68] sm:$0xff]
  %v960 = vld [vmem:[%s945 + $0x70] sm:$0xff]
  %v961 = vld [vmem:[%s945 + $0x78] sm:$0xff]
  %v962 = vld [vmem:[%s945 + $0x80] sm:$0xff]
  %v963 = vld [vmem:[%s945 + $0x88] sm:$0xff]
  %v964 = vld [vmem:[%s945 + $0x90] sm:$0xff]
  %v965 = vld [vmem:[%s945 + $0x98] sm:$0xff]
  %v966 = vld [vmem:[%s945 + $0xa0] sm:$0xff]
  %v967 = vld [vmem:[%s945 + $0xa8] sm:$0xff]
  %v968 = vld [vmem:[%s945 + $0xb0] sm:$0xff]
  %v969 = vld [vmem:[%s945 + $0xb8] sm:$0xff]
  %v970 = vld [vmem:[%s945 + $0xc0] sm:$0xff]
  %v971 = vld [vmem:[%s945 + $0xc8] sm:$0xff]
  %v972 = vld [vmem:[%s945 + $0xd0] sm:$0xff]
  %v973 = vld [vmem:[%s945 + $0xd8] sm:$0xff]
  %v974 = vld [vmem:[%s945 + $0xe0] sm:$0xff]
  %v975 = vld [vmem:[%s945 + $0xe8] sm:$0xff]
  %v976 = vld [vmem:[%s945 + $0xf0] sm:$0xff]
  %v977 = vld [vmem:[%s945 + $0xf8] sm:$0xff]
  %v978 = vld [vmem:[%s945 + $0x100] sm:$0xff]
  %v979 = vld [vmem:[%s945 + $0x108] sm:$0xff]
  %v980 = vld [vmem:[%s945 + $0x110] sm:$0xff]
  %v981 = vld [vmem:[%s945 + $0x118] sm:$0xff]
  %v982 = vld [vmem:[%s945 + $0x120] sm:$0xff]
  %v983 = vld [vmem:[%s945 + $0x128] sm:$0xff]
  %v984 = vld [vmem:[%s945 + $0x130] sm:$0xff]
  %v985 = vld [vmem:[%s945 + $0x138] sm:$0xff]
  %v986 = vld [vmem:[%s945 + $0x140] sm:$0xff]
  %v987 = vld [vmem:[%s945 + $0x148] sm:$0xff]
  %v988 = vld [vmem:[%s945 + $0x150] sm:$0xff]
  %v989 = vld [vmem:[%s945 + $0x158] sm:$0xff]
  %v990 = vld [vmem:[%s945 + $0x160] sm:$0xff]
  %v991 = vld [vmem:[%s945 + $0x168] sm:$0xff]
  %v992 = vld [vmem:[%s945 + $0x170] sm:$0xff]
  %v993 = vld [vmem:[%s945 + $0x178] sm:$0xff]
  %994 = vmatpush.msra.mxu0 %v961
  %995 = vmatpush.msra.mxu0 %v960
  %996 = vmatpush.msra.mxu0 %v959
  %997 = vmatpush.msra.mxu0 %v958
  %998 = vmatpush.msra.mxu0 %v957
  %999 = vmatpush.msra.mxu0 %v956
  %1000 = vmatpush.msra.mxu0 %v955
  %1001 = vmatpush.msra.mxu0 %v954
  %1002 = vmatpush.msra.mxu0 %v953
  %1003 = vmatpush.msra.mxu0 %v952
  %1004 = vmatpush.msra.mxu0 %v951
  %1005 = vmatpush.msra.mxu0 %v950
  %1006 = vmatpush.msra.mxu0 %v949
  %1007 = vmatpush.msra.mxu0 %v948
  %1008 = vmatpush.msra.mxu0 %v947
  %1009 = vmatpush.msra.mxu0 %v946
  %1010 = vmatmul.f32.gmra.mxu0 %v927
  %v1011 = vpop.f32.mrf.mxu0
  %v1012 = vadd.f32 0.0, %v1011
  %1013 = vmatmul.f32.gmra.mxu0 %v928
  %v1014 = vpop.f32.mrf.mxu0
  %v1015 = vadd.f32 0.0, %v1014
  %1016 = vmatmul.f32.gmra.mxu0 %v929
  %v1017 = vpop.f32.mrf.mxu0
  %v1018 = vadd.f32 0.0, %v1017
  %1019 = vmatmul.f32.gmra.mxu0 %v930
  %v1020 = vpop.f32.mrf.mxu0
  %v1021 = vadd.f32 0.0, %v1020
  %1022 = vmatmul.f32.gmra.mxu0 %v931
  %v1023 = vpop.f32.mrf.mxu0
  %v1024 = vadd.f32 0.0, %v1023
  %1025 = vmatmul.f32.gmra.mxu0 %v932
  %v1026 = vpop.f32.mrf.mxu0
  %v1027 = vadd.f32 0.0, %v1026
  %1028 = vdwg.mxu0
  %1029 = vmatpush.msra.mxu0 %v977
  %1030 = vmatpush.msra.mxu0 %v976
  %1031 = vmatpush.msra.mxu0 %v975
  %1032 = vmatpush.msra.mxu0 %v974
  %1033 = vmatpush.msra.mxu0 %v973
  %1034 = vmatpush.msra.mxu0 %v972
  %1035 = vmatpush.msra.mxu0 %v971
  %1036 = vmatpush.msra.mxu0 %v970
  %1037 = vmatpush.msra.mxu0 %v969
  %1038 = vmatpush.msra.mxu0 %v968
  %1039 = vmatpush.msra.mxu0 %v967
  %1040 = vmatpush.msra.mxu0 %v966
  %1041 = vmatpush.msra.mxu0 %v965
  %1042 = vmatpush.msra.mxu0 %v964
  %1043 = vmatpush.msra.mxu0 %v963
  %1044 = vmatpush.msra.mxu0 %v962
  %1045 = vmatmul.f32.gmra.mxu0 %v933
  %v1046 = vpop.f32.mrf.mxu0
  %v1047 = vadd.f32 %v1012, %v1046
  %1048 = vmatmul.f32.gmra.mxu0 %v934
  %v1049 = vpop.f32.mrf.mxu0
  %v1050 = vadd.f32 %v1015, %v1049
  %1051 = vmatmul.f32.gmra.mxu0 %v935
  %v1052 = vpop.f32.mrf.mxu0
  %v1053 = vadd.f32 %v1018, %v1052
  %1054 = vmatmul.f32.gmra.mxu0 %v936
  %v1055 = vpop.f32.mrf.mxu0
  %v1056 = vadd.f32 %v1021, %v1055
  %1057 = vmatmul.f32.gmra.mxu0 %v937
  %v1058 = vpop.f32.mrf.mxu0
  %v1059 = vadd.f32 %v1024, %v1058
  %1060 = vmatmul.f32.gmra.mxu0 %v938
  %v1061 = vpop.f32.mrf.mxu0
  %v1062 = vadd.f32 %v1027, %v1061
  %1063 = vdwg.mxu0
  %1064 = vmatpush.msra.mxu0 %v993
  %1065 = vmatpush.msra.mxu0 %v992
  %1066 = vmatpush.msra.mxu0 %v991
  %1067 = vmatpush.msra.mxu0 %v990
  %1068 = vmatpush.msra.mxu0 %v989
  %1069 = vmatpush.msra.mxu0 %v988
  %1070 = vmatpush.msra.mxu0 %v987
  %1071 = vmatpush.msra.mxu0 %v986
  %1072 = vmatpush.msra.mxu0 %v985
  %1073 = vmatpush.msra.mxu0 %v984
  %1074 = vmatpush.msra.mxu0 %v983
  %1075 = vmatpush.msra.mxu0 %v982
  %1076 = vmatpush.msra.mxu0 %v981
  %1077 = vmatpush.msra.mxu0 %v980
  %1078 = vmatpush.msra.mxu0 %v979
  %1079 = vmatpush.msra.mxu0 %v978
  %1080 = vmatmul.f32.gmra.mxu0 %v939
  %v1081 = vpop.f32.mrf.mxu0
  %v1082 = vadd.f32 %v1047, %v1081
  %1083 = vmatmul.f32.gmra.mxu0 %v940
  %v1084 = vpop.f32.mrf.mxu0
  %v1085 = vadd.f32 %v1050, %v1084
  %1086 = vmatmul.f32.gmra.mxu0 %v941
  %v1087 = vpop.f32.mrf.mxu0
  %v1088 = vadd.f32 %v1053, %v1087
  %1089 = vmatmul.f32.gmra.mxu0 %v942
  %v1090 = vpop.f32.mrf.mxu0
  %v1091 = vadd.f32 %v1056, %v1090
  %1092 = vmatmul.f32.gmra.mxu0 %v943
  %v1093 = vpop.f32.mrf.mxu0
  %v1094 = vadd.f32 %v1059, %v1093
  %1095 = vmatmul.f32.gmra.mxu0 %v944
  %v1096 = vpop.f32.mrf.mxu0
  %v1097 = vadd.f32 %v1062, %v1096
  %1098 = vdwg.mxu0
  %v1099 = vadd.f32 %v910, %v1082
  %v1100 = vadd.f32 %v913, %v1085
  %v1101 = vadd.f32 %v916, %v1088
  %v1102 = vadd.f32 %v919, %v1091
  %v1103 = vadd.f32 %v922, %v1094
  %v1104 = vadd.f32 %v925, %v1097
  %1105 = vst [vmem:[#allocation2] sm:$0xff] %v1099
  %1106 = vst [vmem:[#allocation2 + $0x8] sm:$0xff] %v1100
  %1107 = vst [vmem:[#allocation2 + $0x10] sm:$0xff] %v1101
  %1108 = vst [vmem:[#allocation2 + $0x18] sm:$0xff] %v1102
  %1109 = vst [vmem:[#allocation2 + $0x20] sm:$0xff] %v1103
  %1110 = vst [vmem:[#allocation2 + $0x28] sm:$0x3f] %v1104
  %v1111 = vld [vmem:[#allocation2] ss:$2 sm:$0x7]
  %v1112 = vld [vmem:[%s297] ss:$2 sm:$0x7]
  %s1113 = scalar_lea.vmem [#allocation2], 8
  %v1114 = vld [vmem:[%s1113] ss:$2 sm:$0x7]
  %s1115 = scalar_lea.vmem [#allocation2], 9
  %v1116 = vld [vmem:[%s1115] ss:$2 sm:$0x7]
  %v1117 = vmax.f32 %v1111, %v1112
  %v1118 = vmax.f32 %v1114, %v1116
  %v1119 = vmax.f32 %v1117, %v1118
  %s1120 = scalar_lea.vmem [#allocation2], 16
  %v1121 = vld [vmem:[%s1120] ss:$2 sm:$0x7]
  %v1122 = vld [vmem:[%s299] ss:$2 sm:$0x7]
  %s1123 = scalar_lea.vmem [#allocation2], 24
  %v1124 = vld [vmem:[%s1123] ss:$2 sm:$0x7]
  %s1125 = scalar_lea.vmem [#allocation2], 25
  %v1126 = vld [vmem:[%s1125] ss:$2 sm:$0x7]
  %v1127 = vmax.f32 %v1121, %v1122
  %v1128 = vmax.f32 %v1124, %v1126
  %v1129 = vmax.f32 %v1127, %v1128
  %s1130 = scalar_lea.vmem [#allocation2], 32
  %v1131 = vld [vmem:[%s1130] ss:$2 sm:$0x7]
  %v1132 = vld [vmem:[%s301] ss:$2 sm:$0x7]
  %s1133 = scalar_lea.vmem [#allocation2], 40
  %v1134 = vld [vmem:[%s1133] ss:$2 sm:$0x7]
  %s1135 = scalar_lea.vmem [#allocation2], 41
  %v1136 = vld [vmem:[%s1135] ss:$2 sm:$0x7]
  %v1137 = vmax.f32 %v1131, %v1132
  %v1138 = vmax.f32 %v1134, %v1136
  %v1139 = vmax.f32 %v1137, %v1138
  %v1141 = vrot.slane %v1129, 5
  %v1144 = vrot.slane %v1139, 2
  %vm1146 = vcmask 1042432
  %v1147 = vsel %vm1146, %v1119, %v1141
  %vm1148 = vcmask 1045504
  %v1149 = vsel %vm1148, %v1147, %v1144
  %v1150 = vadd.f32 %v1149, %v34
  %v1151 = vadd.f32 %v1144, %v34
  %v1152 = vmax.f32 %v1150, 0.0
  %v1153 = vmax.f32 %v1151, 0.0
  %v1154 = vmul.f32 %v1152, %v36
  %v1155 = vmul.f32 %v1153, %v37
  %vm1156 = vcmask 1040384
  %v1157 = vsel %vm1156, %v1155, 0.0
  %v1158 = vadd.f32 %v1154, %v1157
  %v1159 = vrot.slane %v1158, 4
  %v1160 = vadd.f32 %v1158, %v1159
  %v1161 = vrot.slane %v1160, 2
  %v1162 = vadd.f32 %v1160, %v1161
  %v1163 = vrot.slane %v1162, 1
  %v1164 = vadd.f32 %v1162, %v1163
  %1165 = vst [vmem:[#allocation4] sm:$0x1] %v1164
  %v1166 = vld [vmem:[%s0 + $0x200] sm:$0xff]
  %v1167 = vld [vmem:[%s0 + $0x208] sm:$0xff]
  %v1168 = vld [vmem:[%s0 + $0x210] sm:$0xff]
  %v1169 = vld [vmem:[%s0 + $0x218] sm:$0xff]
  %v1170 = vld [vmem:[%s0 + $0x220] sm:$0xff]
  %v1171 = vld [vmem:[%s0 + $0x228] sm:$0xff]
  %v1172 = vld [vmem:[%s0 + $0x230] sm:$0xff]
  %v1173 = vld [vmem:[%s0 + $0x238] sm:$0xff]
  %v1174 = vld [vmem:[%s0 + $0x240] sm:$0xff]
  %v1175 = vld [vmem:[%s0 + $0x248] sm:$0xff]
  %v1176 = vld [vmem:[%s0 + $0x250] sm:$0xff]
  %v1177 = vld [vmem:[%s0 + $0x258] sm:$0xff]
  %v1178 = vld [vmem:[%s0 + $0x260] sm:$0xff]
  %v1179 = vld [vmem:[%s0 + $0x268] sm:$0xff]
  %v1180 = vld [vmem:[%s0 + $0x270] sm:$0xff]
  %v1181 = vld [vmem:[%s0 + $0x278] sm:$0xff]
  %v1182 = vld [vmem:[%s0 + $0x280] sm:$0xff]
  %v1183 = vld [vmem:[%s0 + $0x288] sm:$0xff]
  %v1184 = vld [vmem:[%s0 + $0x290] sm:$0xff]
  %v1185 = vld [vmem:[%s0 + $0x298] sm:$0xff]
  %v1186 = vld [vmem:[%s0 + $0x2a0] sm:$0xff]
  %v1187 = vld [vmem:[%s0 + $0x2a8] sm:$0xff]
  %v1188 = vld [vmem:[%s0 + $0x2b0] sm:$0xff]
  %v1189 = vld [vmem:[%s0 + $0x2b8] sm:$0xff]
  %v1190 = vld [vmem:[%s0 + $0x2c0] sm:$0xff]
  %v1191 = vld [vmem:[%s0 + $0x2c8] sm:$0xff]
  %v1192 = vld [vmem:[%s0 + $0x2d0] sm:$0xff]
  %v1193 = vld [vmem:[%s0 + $0x2d8] sm:$0xff]
  %v1194 = vld [vmem:[%s0 + $0x2e0] sm:$0xff]
  %v1195 = vld [vmem:[%s0 + $0x2e8] sm:$0xff]
  %v1196 = vld [vmem:[%s0 + $0x2f0] sm:$0xff]
  %v1197 = vld [vmem:[%s0 + $0x2f8] sm:$0xff]
  %v1198 = vld [vmem:[%s1] sm:$0xff]
  %v1199 = vld [vmem:[%s1 + $0x8] sm:$0xff]
  %v1200 = vld [vmem:[%s1 + $0x10] sm:$0xff]
  %v1201 = vld [vmem:[%s1 + $0x18] sm:$0xff]
  %v1202 = vld [vmem:[%s1 + $0x20] sm:$0xff]
  %v1203 = vld [vmem:[%s1 + $0x28] sm:$0xff]
  %v1204 = vld [vmem:[%s1 + $0x30] sm:$0xff]
  %v1205 = vld [vmem:[%s1 + $0x38] sm:$0xff]
  %v1206 = vld [vmem:[%s1 + $0x40] sm:$0xff]
  %v1207 = vld [vmem:[%s1 + $0x48] sm:$0xff]
  %v1208 = vld [vmem:[%s1 + $0x50] sm:$0xff]
  %v1209 = vld [vmem:[%s1 + $0x58] sm:$0xff]
  %v1210 = vld [vmem:[%s1 + $0x60] sm:$0xff]
  %v1211 = vld [vmem:[%s1 + $0x68] sm:$0xff]
  %v1212 = vld [vmem:[%s1 + $0x70] sm:$0xff]
  %v1213 = vld [vmem:[%s1 + $0x78] sm:$0xff]
  %v1214 = vld [vmem:[%s1 + $0x80] sm:$0xff]
  %v1215 = vld [vmem:[%s1 + $0x88] sm:$0xff]
  %v1216 = vld [vmem:[%s1 + $0x90] sm:$0xff]
  %v1217 = vld [vmem:[%s1 + $0x98] sm:$0xff]
  %v1218 = vld [vmem:[%s1 + $0xa0] sm:$0xff]
  %v1219 = vld [vmem:[%s1 + $0xa8] sm:$0xff]
  %v1220 = vld [vmem:[%s1 + $0xb0] sm:$0xff]
  %v1221 = vld [vmem:[%s1 + $0xb8] sm:$0xff]
  %v1222 = vld [vmem:[%s1 + $0xc0] sm:$0xff]
  %v1224 = vsel %vm95, %v1167, 0
  %v1227 = vsel %vm95, %v1169, 0
  %v1230 = vsel %vm95, %v1171, 0
  %v1233 = vsel %vm95, %v1173, 0
  %v1236 = vsel %vm95, %v1175, 0
  %v1239 = vsel %vm95, %v1177, 0
  %v1242 = vsel %vm95, %v1179, 0
  %v1245 = vsel %vm95, %v1181, 0
  %v1248 = vsel %vm95, %v1183, 0
  %v1251 = vsel %vm95, %v1185, 0
  %v1254 = vsel %vm95, %v1187, 0
  %v1257 = vsel %vm95, %v1189, 0
  %v1260 = vsel %vm95, %v1191, 0
  %v1263 = vsel %vm95, %v1193, 0
  %v1266 = vsel %vm95, %v1195, 0
  %v1269 = vsel %vm95, %v1197, 0
  %1271 = vmatpush.msra.mxu0 %v1213
  %1272 = vmatpush.msra.mxu0 %v1212
  %1273 = vmatpush.msra.mxu0 %v1211
  %1274 = vmatpush.msra.mxu0 %v1210
  %1275 = vmatpush.msra.mxu0 %v1209
  %1276 = vmatpush.msra.mxu0 %v1208
  %1277 = vmatpush.msra.mxu0 %v1207
  %1278 = vmatpush.msra.mxu0 %v1206
  %1279 = vmatpush.msra.mxu0 %v1205
  %1280 = vmatpush.msra.mxu0 %v1204
  %1281 = vmatpush.msra.mxu0 %v1203
  %1282 = vmatpush.msra.mxu0 %v1202
  %1283 = vmatpush.msra.mxu0 %v1201
  %1284 = vmatpush.msra.mxu0 %v1200
  %1285 = vmatpush.msra.mxu0 %v1199
  %1286 = vmatpush.msra.mxu0 %v1198
  %1287 = vmatmul.f32.gmra.mxu0 %v1166
  %v1288 = vpop.f32.mrf.mxu0
  %v1289 = vadd.f32 0.0, %v1288
  %1290 = vmatmul.f32.gmra.mxu0 %v1168
  %v1291 = vpop.f32.mrf.mxu0
  %v1292 = vadd.f32 0.0, %v1291
  %1293 = vmatmul.f32.gmra.mxu0 %v1170
  %v1294 = vpop.f32.mrf.mxu0
  %v1295 = vadd.f32 0.0, %v1294
  %1296 = vmatmul.f32.gmra.mxu0 %v1172
  %v1297 = vpop.f32.mrf.mxu0
  %v1298 = vadd.f32 0.0, %v1297
  %1299 = vmatmul.f32.gmra.mxu0 %v1174
  %v1300 = vpop.f32.mrf.mxu0
  %v1301 = vadd.f32 0.0, %v1300
  %1302 = vmatmul.f32.gmra.mxu0 %v1176
  %v1303 = vpop.f32.mrf.mxu0
  %v1304 = vadd.f32 0.0, %v1303
  %1305 = vmatmul.f32.gmra.mxu0 %v1178
  %v1306 = vpop.f32.mrf.mxu0
  %v1307 = vadd.f32 0.0, %v1306
  %1308 = vmatmul.f32.gmra.mxu0 %v1180
  %v1309 = vpop.f32.mrf.mxu0
  %v1310 = vadd.f32 0.0, %v1309
  %1311 = vmatmul.f32.gmra.mxu0 %v1182
  %v1312 = vpop.f32.mrf.mxu0
  %v1313 = vadd.f32 0.0, %v1312
  %1314 = vmatmul.f32.gmra.mxu0 %v1184
  %v1315 = vpop.f32.mrf.mxu0
  %v1316 = vadd.f32 0.0, %v1315
  %1317 = vmatmul.f32.gmra.mxu0 %v1186
  %v1318 = vpop.f32.mrf.mxu0
  %v1319 = vadd.f32 0.0, %v1318
  %1320 = vmatmul.f32.gmra.mxu0 %v1188
  %v1321 = vpop.f32.mrf.mxu0
  %v1322 = vadd.f32 0.0, %v1321
  %1323 = vmatmul.f32.gmra.mxu0 %v1190
  %v1324 = vpop.f32.mrf.mxu0
  %v1325 = vadd.f32 0.0, %v1324
  %1326 = vmatmul.f32.gmra.mxu0 %v1192
  %v1327 = vpop.f32.mrf.mxu0
  %v1328 = vadd.f32 0.0, %v1327
  %1329 = vmatmul.f32.gmra.mxu0 %v1194
  %v1330 = vpop.f32.mrf.mxu0
  %v1331 = vadd.f32 0.0, %v1330
  %1332 = vmatmul.f32.gmra.mxu0 %v1196
  %v1333 = vpop.f32.mrf.mxu0
  %v1334 = vadd.f32 0.0, %v1333
  %1335 = vdwg.mxu0
  %1336 = vmatpush.msra.mxu0 0.0
  %1337 = vmatpush.msra.mxu0 0.0
  %1338 = vmatpush.msra.mxu0 0.0
  %1339 = vmatpush.msra.mxu0 0.0
  %1340 = vmatpush.msra.mxu0 0.0
  %1341 = vmatpush.msra.mxu0 0.0
  %1342 = vmatpush.msra.mxu0 0.0
  %1343 = vmatpush.msra.mxu0 %v1222
  %1344 = vmatpush.msra.mxu0 %v1221
  %1345 = vmatpush.msra.mxu0 %v1220
  %1346 = vmatpush.msra.mxu0 %v1219
  %1347 = vmatpush.msra.mxu0 %v1218
  %1348 = vmatpush.msra.mxu0 %v1217
  %1349 = vmatpush.msra.mxu0 %v1216
  %1350 = vmatpush.msra.mxu0 %v1215
  %1351 = vmatpush.msra.mxu0 %v1214
  %1352 = vmatmul.f32.gmra.mxu0 %v1224
  %v1353 = vpop.f32.mrf.mxu0
  %v1354 = vadd.f32 %v1289, %v1353
  %1355 = vmatmul.f32.gmra.mxu0 %v1227
  %v1356 = vpop.f32.mrf.mxu0
  %v1357 = vadd.f32 %v1292, %v1356
  %1358 = vmatmul.f32.gmra.mxu0 %v1230
  %v1359 = vpop.f32.mrf.mxu0
  %v1360 = vadd.f32 %v1295, %v1359
  %1361 = vmatmul.f32.gmra.mxu0 %v1233
  %v1362 = vpop.f32.mrf.mxu0
  %v1363 = vadd.f32 %v1298, %v1362
  %1364 = vmatmul.f32.gmra.mxu0 %v1236
  %v1365 = vpop.f32.mrf.mxu0
  %v1366 = vadd.f32 %v1301, %v1365
  %1367 = vmatmul.f32.gmra.mxu0 %v1239
  %v1368 = vpop.f32.mrf.mxu0
  %v1369 = vadd.f32 %v1304, %v1368
  %1370 = vmatmul.f32.gmra.mxu0 %v1242
  %v1371 = vpop.f32.mrf.mxu0
  %v1372 = vadd.f32 %v1307, %v1371
  %1373 = vmatmul.f32.gmra.mxu0 %v1245
  %v1374 = vpop.f32.mrf.mxu0
  %v1375 = vadd.f32 %v1310, %v1374
  %1376 = vmatmul.f32.gmra.mxu0 %v1248
  %v1377 = vpop.f32.mrf.mxu0
  %v1378 = vadd.f32 %v1313, %v1377
  %1379 = vmatmul.f32.gmra.mxu0 %v1251
  %v1380 = vpop.f32.mrf.mxu0
  %v1381 = vadd.f32 %v1316, %v1380
  %1382 = vmatmul.f32.gmra.mxu0 %v1254
  %v1383 = vpop.f32.mrf.mxu0
  %v1384 = vadd.f32 %v1319, %v1383
  %1385 = vmatmul.f32.gmra.mxu0 %v1257
  %v1386 = vpop.f32.mrf.mxu0
  %v1387 = vadd.f32 %v1322, %v1386
  %1388 = vmatmul.f32.gmra.mxu0 %v1260
  %v1389 = vpop.f32.mrf.mxu0
  %v1390 = vadd.f32 %v1325, %v1389
  %1391 = vmatmul.f32.gmra.mxu0 %v1263
  %v1392 = vpop.f32.mrf.mxu0
  %v1393 = vadd.f32 %v1328, %v1392
  %1394 = vmatmul.f32.gmra.mxu0 %v1266
  %v1395 = vpop.f32.mrf.mxu0
  %v1396 = vadd.f32 %v1331, %v1395
  %1397 = vmatmul.f32.gmra.mxu0 %v1269
  %v1398 = vpop.f32.mrf.mxu0
  %v1399 = vadd.f32 %v1334, %v1398
  %1400 = vdwg.mxu0
  %v1401 = vmax.f32 %v1354, %v1360
  %v1402 = vmax.f32 %v1357, %v1363
  %v1403 = vmax.f32 %v1366, %v1372
  %v1404 = vmax.f32 %v1369, %v1375
  %v1405 = vmax.f32 %v1378, %v1384
  %v1406 = vmax.f32 %v1381, %v1387
  %v1407 = vmax.f32 %v1390, %v1396
  %v1408 = vmax.f32 %v1393, %v1399
  %1409 = vst [vmem:[#allocation2] sm:$0xff] %v1401
  %1410 = vst [vmem:[#allocation2 + $0x8] sm:$0xff] %v1402
  %1411 = vst [vmem:[#allocation2 + $0x10] sm:$0xff] %v1403
  %1412 = vst [vmem:[#allocation2 + $0x18] sm:$0xff] %v1404
  %1413 = vst [vmem:[#allocation2 + $0x20] sm:$0xff] %v1405
  %1414 = vst [vmem:[#allocation2 + $0x28] sm:$0xff] %v1406
  %1415 = vst [vmem:[#allocation2 + $0x30] sm:$0xff] %v1407
  %1416 = vst [vmem:[#allocation2 + $0x38] sm:$0xff] %v1408
  %v1417 = vld [vmem:[#allocation2] ss:$2 sm:$0xff]
  %v1418 = vld [vmem:[%s291] ss:$2 sm:$0xff]
  %v1419 = vld [vmem:[%s293] ss:$2 sm:$0xff]
  %v1420 = vld [vmem:[%s295] ss:$2 sm:$0xff]
  %v1421 = vld [vmem:[%s297] ss:$2 sm:$0xff]
  %v1422 = vld [vmem:[%s299] ss:$2 sm:$0xff]
  %v1423 = vld [vmem:[%s301] ss:$2 sm:$0xff]
  %v1424 = vld [vmem:[%s303] ss:$2 sm:$0xff]
  %v1425 = vmax.f32 %v1417, %v1421
  %v1426 = vmax.f32 %v1418, %v1422
  %v1427 = vmax.f32 %v1419, %v1423
  %v1428 = vmax.f32 %v1420, %v1424
  %v1429 = vadd.f32 %v1425, %v30
  %v1430 = vadd.f32 %v1426, %v30
  %v1431 = vadd.f32 %v1427, %v30
  %v1432 = vadd.f32 %v1428, %v30
  %v1433 = vmax.f32 %v1429, 0.0
  %v1434 = vmax.f32 %v1430, 0.0
  %v1435 = vmax.f32 %v1431, 0.0
  %v1436 = vmax.f32 %v1432, 0.0
  %1437 = vst [vmem:[#allocation3] sm:$0xff] %v1433
  %1438 = vst [vmem:[#allocation3 + $0x8] sm:$0xff] %v1434
  %1439 = vst [vmem:[#allocation3 + $0x10] sm:$0xff] %v1435
  %1440 = vst [vmem:[#allocation3 + $0x18] sm:$0xff] %v1436
  %v1441 = vld [vmem:[%s0 + $0x300] sm:$0xff]
  %v1442 = vld [vmem:[%s0 + $0x308] sm:$0xff]
  %v1443 = vld [vmem:[%s0 + $0x310] sm:$0xff]
  %v1444 = vld [vmem:[%s0 + $0x318] sm:$0xff]
  %v1445 = vld [vmem:[%s0 + $0x320] sm:$0xff]
  %v1446 = vld [vmem:[%s0 + $0x328] sm:$0xff]
  %v1447 = vld [vmem:[%s0 + $0x330] sm:$0xff]
  %v1448 = vld [vmem:[%s0 + $0x338] sm:$0xff]
  %v1449 = vld [vmem:[%s0 + $0x340] sm:$0xff]
  %v1450 = vld [vmem:[%s0 + $0x348] sm:$0xff]
  %v1451 = vld [vmem:[%s0 + $0x350] sm:$0xff]
  %v1452 = vld [vmem:[%s0 + $0x358] sm:$0xff]
  %v1453 = vld [vmem:[%s0 + $0x360] sm:$0xff]
  %v1454 = vld [vmem:[%s0 + $0x368] sm:$0xff]
  %v1455 = vld [vmem:[%s0 + $0x370] sm:$0xff]
  %v1456 = vld [vmem:[%s0 + $0x378] sm:$0xff]
  %v1457 = vld [vmem:[%s0 + $0x380] sm:$0xff]
  %v1458 = vld [vmem:[%s0 + $0x388] sm:$0xff]
  %v1459 = vld [vmem:[%s0 + $0x390] sm:$0xff]
  %v1460 = vld [vmem:[%s0 + $0x398] sm:$0xff]
  %v1461 = vld [vmem:[%s0 + $0x3a0] sm:$0xff]
  %v1462 = vld [vmem:[%s0 + $0x3a8] sm:$0xff]
  %v1463 = vld [vmem:[%s0 + $0x3b0] sm:$0xff]
  %v1464 = vld [vmem:[%s0 + $0x3b8] sm:$0xff]
  %v1465 = vld [vmem:[%s0 + $0x3c0] sm:$0xff]
  %v1466 = vld [vmem:[%s0 + $0x3c8] sm:$0xff]
  %v1467 = vld [vmem:[%s0 + $0x3d0] sm:$0xff]
  %v1468 = vld [vmem:[%s0 + $0x3d8] sm:$0xff]
  %v1469 = vld [vmem:[%s0 + $0x3e0] sm:$0xff]
  %v1470 = vld [vmem:[%s0 + $0x3e8] sm:$0xff]
  %v1471 = vld [vmem:[%s0 + $0x3f0] sm:$0xff]
  %v1472 = vld [vmem:[%s0 + $0x3f8] sm:$0xff]
  %v1473 = vld [vmem:[%s1] sm:$0xff]
  %v1474 = vld [vmem:[%s1 + $0x8] sm:$0xff]
  %v1475 = vld [vmem:[%s1 + $0x10] sm:$0xff]
  %v1476 = vld [vmem:[%s1 + $0x18] sm:$0xff]
  %v1477 = vld [vmem:[%s1 + $0x20] sm:$0xff]
  %v1478 = vld [vmem:[%s1 + $0x28] sm:$0xff]
  %v1479 = vld [vmem:[%s1 + $0x30] sm:$0xff]
  %v1480 = vld [vmem:[%s1 + $0x38] sm:$0xff]
  %v1481 = vld [vmem:[%s1 + $0x40] sm:$0xff]
  %v1482 = vld [vmem:[%s1 + $0x48] sm:$0xff]
  %v1483 = vld [vmem:[%s1 + $0x50] sm:$0xff]
  %v1484 = vld [vmem:[%s1 + $0x58] sm:$0xff]
  %v1485 = vld [vmem:[%s1 + $0x60] sm:$0xff]
  %v1486 = vld [vmem:[%s1 + $0x68] sm:$0xff]
  %v1487 = vld [vmem:[%s1 + $0x70] sm:$0xff]
  %v1488 = vld [vmem:[%s1 + $0x78] sm:$0xff]
  %v1489 = vld [vmem:[%s1 + $0x80] sm:$0xff]
  %v1490 = vld [vmem:[%s1 + $0x88] sm:$0xff]
  %v1491 = vld [vmem:[%s1 + $0x90] sm:$0xff]
  %v1492 = vld [vmem:[%s1 + $0x98] sm:$0xff]
  %v1493 = vld [vmem:[%s1 + $0xa0] sm:$0xff]
  %v1494 = vld [vmem:[%s1 + $0xa8] sm:$0xff]
  %v1495 = vld [vmem:[%s1 + $0xb0] sm:$0xff]
  %v1496 = vld [vmem:[%s1 + $0xb8] sm:$0xff]
  %v1497 = vld [vmem:[%s1 + $0xc0] sm:$0xff]
  %v1499 = vsel %vm95, %v1442, 0
  %v1502 = vsel %vm95, %v1444, 0
  %v1505 = vsel %vm95, %v1446, 0
  %v1508 = vsel %vm95, %v1448, 0
  %v1511 = vsel %vm95, %v1450, 0
  %v1514 = vsel %vm95, %v1452, 0
  %v1517 = vsel %vm95, %v1454, 0
  %v1520 = vsel %vm95, %v1456, 0
  %v1523 = vsel %vm95, %v1458, 0
  %v1526 = vsel %vm95, %v1460, 0
  %v1529 = vsel %vm95, %v1462, 0
  %v1532 = vsel %vm95, %v1464, 0
  %v1535 = vsel %vm95, %v1466, 0
  %v1538 = vsel %vm95, %v1468, 0
  %v1541 = vsel %vm95, %v1470, 0
  %v1544 = vsel %vm95, %v1472, 0
  %1546 = vmatpush.msra.mxu0 %v1488
  %1547 = vmatpush.msra.mxu0 %v1487
  %1548 = vmatpush.msra.mxu0 %v1486
  %1549 = vmatpush.msra.mxu0 %v1485
  %1550 = vmatpush.msra.mxu0 %v1484
  %1551 = vmatpush.msra.mxu0 %v1483
  %1552 = vmatpush.msra.mxu0 %v1482
  %1553 = vmatpush.msra.mxu0 %v1481
  %1554 = vmatpush.msra.mxu0 %v1480
  %1555 = vmatpush.msra.mxu0 %v1479
  %1556 = vmatpush.msra.mxu0 %v1478
  %1557 = vmatpush.msra.mxu0 %v1477
  %1558 = vmatpush.msra.mxu0 %v1476
  %1559 = vmatpush.msra.mxu0 %v1475
  %1560 = vmatpush.msra.mxu0 %v1474
  %1561 = vmatpush.msra.mxu0 %v1473
  %1562 = vmatmul.f32.gmra.mxu0 %v1441
  %v1563 = vpop.f32.mrf.mxu0
  %v1564 = vadd.f32 0.0, %v1563
  %1565 = vmatmul.f32.gmra.mxu0 %v1443
  %v1566 = vpop.f32.mrf.mxu0
  %v1567 = vadd.f32 0.0, %v1566
  %1568 = vmatmul.f32.gmra.mxu0 %v1445
  %v1569 = vpop.f32.mrf.mxu0
  %v1570 = vadd.f32 0.0, %v1569
  %1571 = vmatmul.f32.gmra.mxu0 %v1447
  %v1572 = vpop.f32.mrf.mxu0
  %v1573 = vadd.f32 0.0, %v1572
  %1574 = vmatmul.f32.gmra.mxu0 %v1449
  %v1575 = vpop.f32.mrf.mxu0
  %v1576 = vadd.f32 0.0, %v1575
  %1577 = vmatmul.f32.gmra.mxu0 %v1451
  %v1578 = vpop.f32.mrf.mxu0
  %v1579 = vadd.f32 0.0, %v1578
  %1580 = vmatmul.f32.gmra.mxu0 %v1453
  %v1581 = vpop.f32.mrf.mxu0
  %v1582 = vadd.f32 0.0, %v1581
  %1583 = vmatmul.f32.gmra.mxu0 %v1455
  %v1584 = vpop.f32.mrf.mxu0
  %v1585 = vadd.f32 0.0, %v1584
  %1586 = vmatmul.f32.gmra.mxu0 %v1457
  %v1587 = vpop.f32.mrf.mxu0
  %v1588 = vadd.f32 0.0, %v1587
  %1589 = vmatmul.f32.gmra.mxu0 %v1459
  %v1590 = vpop.f32.mrf.mxu0
  %v1591 = vadd.f32 0.0, %v1590
  %1592 = vmatmul.f32.gmra.mxu0 %v1461
  %v1593 = vpop.f32.mrf.mxu0
  %v1594 = vadd.f32 0.0, %v1593
  %1595 = vmatmul.f32.gmra.mxu0 %v1463
  %v1596 = vpop.f32.mrf.mxu0
  %v1597 = vadd.f32 0.0, %v1596
  %1598 = vmatmul.f32.gmra.mxu0 %v1465
  %v1599 = vpop.f32.mrf.mxu0
  %v1600 = vadd.f32 0.0, %v1599
  %1601 = vmatmul.f32.gmra.mxu0 %v1467
  %v1602 = vpop.f32.mrf.mxu0
  %v1603 = vadd.f32 0.0, %v1602
  %1604 = vmatmul.f32.gmra.mxu0 %v1469
  %v1605 = vpop.f32.mrf.mxu0
  %v1606 = vadd.f32 0.0, %v1605
  %1607 = vmatmul.f32.gmra.mxu0 %v1471
  %v1608 = vpop.f32.mrf.mxu0
  %v1609 = vadd.f32 0.0, %v1608
  %1610 = vdwg.mxu0
  %1611 = vmatpush.msra.mxu0 0.0
  %1612 = vmatpush.msra.mxu0 0.0
  %1613 = vmatpush.msra.mxu0 0.0
  %1614 = vmatpush.msra.mxu0 0.0
  %1615 = vmatpush.msra.mxu0 0.0
  %1616 = vmatpush.msra.mxu0 0.0
  %1617 = vmatpush.msra.mxu0 0.0
  %1618 = vmatpush.msra.mxu0 %v1497
  %1619 = vmatpush.msra.mxu0 %v1496
  %1620 = vmatpush.msra.mxu0 %v1495
  %1621 = vmatpush.msra.mxu0 %v1494
  %1622 = vmatpush.msra.mxu0 %v1493
  %1623 = vmatpush.msra.mxu0 %v1492
  %1624 = vmatpush.msra.mxu0 %v1491
  %1625 = vmatpush.msra.mxu0 %v1490
  %1626 = vmatpush.msra.mxu0 %v1489
  %1627 = vmatmul.f32.gmra.mxu0 %v1499
  %v1628 = vpop.f32.mrf.mxu0
  %v1629 = vadd.f32 %v1564, %v1628
  %1630 = vmatmul.f32.gmra.mxu0 %v1502
  %v1631 = vpop.f32.mrf.mxu0
  %v1632 = vadd.f32 %v1567, %v1631
  %1633 = vmatmul.f32.gmra.mxu0 %v1505
  %v1634 = vpop.f32.mrf.mxu0
  %v1635 = vadd.f32 %v1570, %v1634
  %1636 = vmatmul.f32.gmra.mxu0 %v1508
  %v1637 = vpop.f32.mrf.mxu0
  %v1638 = vadd.f32 %v1573, %v1637
  %1639 = vmatmul.f32.gmra.mxu0 %v1511
  %v1640 = vpop.f32.mrf.mxu0
  %v1641 = vadd.f32 %v1576, %v1640
  %1642 = vmatmul.f32.gmra.mxu0 %v1514
  %v1643 = vpop.f32.mrf.mxu0
  %v1644 = vadd.f32 %v1579, %v1643
  %1645 = vmatmul.f32.gmra.mxu0 %v1517
  %v1646 = vpop.f32.mrf.mxu0
  %v1647 = vadd.f32 %v1582, %v1646
  %1648 = vmatmul.f32.gmra.mxu0 %v1520
  %v1649 = vpop.f32.mrf.mxu0
  %v1650 = vadd.f32 %v1585, %v1649
  %1651 = vmatmul.f32.gmra.mxu0 %v1523
  %v1652 = vpop.f32.mrf.mxu0
  %v1653 = vadd.f32 %v1588, %v1652
  %1654 = vmatmul.f32.gmra.mxu0 %v1526
  %v1655 = vpop.f32.mrf.mxu0
  %v1656 = vadd.f32 %v1591, %v1655
  %1657 = vmatmul.f32.gmra.mxu0 %v1529
  %v1658 = vpop.f32.mrf.mxu0
  %v1659 = vadd.f32 %v1594, %v1658
  %1660 = vmatmul.f32.gmra.mxu0 %v1532
  %v1661 = vpop.f32.mrf.mxu0
  %v1662 = vadd.f32 %v1597, %v1661
  %1663 = vmatmul.f32.gmra.mxu0 %v1535
  %v1664 = vpop.f32.mrf.mxu0
  %v1665 = vadd.f32 %v1600, %v1664
  %1666 = vmatmul.f32.gmra.mxu0 %v1538
  %v1667 = vpop.f32.mrf.mxu0
  %v1668 = vadd.f32 %v1603, %v1667
  %1669 = vmatmul.f32.gmra.mxu0 %v1541
  %v1670 = vpop.f32.mrf.mxu0
  %v1671 = vadd.f32 %v1606, %v1670
  %1672 = vmatmul.f32.gmra.mxu0 %v1544
  %v1673 = vpop.f32.mrf.mxu0
  %v1674 = vadd.f32 %v1609, %v1673
  %1675 = vdwg.mxu0
  %v1676 = vmax.f32 %v1629, %v1635
  %v1677 = vmax.f32 %v1632, %v1638
  %v1678 = vmax.f32 %v1641, %v1647
  %v1679 = vmax.f32 %v1644, %v1650
  %v1680 = vmax.f32 %v1653, %v1659
  %v1681 = vmax.f32 %v1656, %v1662
  %v1682 = vmax.f32 %v1665, %v1671
  %v1683 = vmax.f32 %v1668, %v1674
  %1684 = vst [vmem:[#allocation2] sm:$0xff] %v1676
  %1685 = vst [vmem:[#allocation2 + $0x8] sm:$0xff] %v1677
  %1686 = vst [vmem:[#allocation2 + $0x10] sm:$0xff] %v1678
  %1687 = vst [vmem:[#allocation2 + $0x18] sm:$0xff] %v1679
  %1688 = vst [vmem:[#allocation2 + $0x20] sm:$0xff] %v1680
  %1689 = vst [vmem:[#allocation2 + $0x28] sm:$0xff] %v1681
  %1690 = vst [vmem:[#allocation2 + $0x30] sm:$0xff] %v1682
  %1691 = vst [vmem:[#allocation2 + $0x38] sm:$0xff] %v1683
  %v1692 = vld [vmem:[#allocation2] ss:$2 sm:$0xff]
  %v1693 = vld [vmem:[%s291] ss:$2 sm:$0xff]
  %v1694 = vld [vmem:[%s293] ss:$2 sm:$0xff]
  %v1695 = vld [vmem:[%s295] ss:$2 sm:$0xff]
  %v1696 = vld [vmem:[%s297] ss:$2 sm:$0xff]
  %v1697 = vld [vmem:[%s299] ss:$2 sm:$0xff]
  %v1698 = vld [vmem:[%s301] ss:$2 sm:$0xff]
  %v1699 = vld [vmem:[%s303] ss:$2 sm:$0xff]
  %v1700 = vmax.f32 %v1692, %v1696
  %v1701 = vmax.f32 %v1693, %v1697
  %v1702 = vmax.f32 %v1694, %v1698
  %v1703 = vmax.f32 %v1695, %v1699
  %v1704 = vadd.f32 %v1700, %v30
  %v1705 = vadd.f32 %v1701, %v30
  %v1706 = vadd.f32 %v1702, %v30
  %v1707 = vadd.f32 %v1703, %v30
  %v1708 = vmax.f32 %v1704, 0.0
  %v1709 = vmax.f32 %v1705, 0.0
  %v1710 = vmax.f32 %v1706, 0.0
  %v1711 = vmax.f32 %v1707, 0.0
  %1712 = vst [vmem:[#allocation3 + $0x20] sm:$0xff] %v1708
  %1713 = vst [vmem:[#allocation3 + $0x28] sm:$0xff] %v1709
  %1714 = vst [vmem:[#allocation3 + $0x30] sm:$0xff] %v1710
  %1715 = vst [vmem:[#allocation3 + $0x38] sm:$0xff] %v1711
  %v1716 = vld [vmem:[#allocation3] sm:$0xff]
  %v1717 = vld [vmem:[#allocation3 + $0x8] sm:$0xff]
  %v1718 = vld [vmem:[#allocation3 + $0x10] sm:$0xff]
  %v1719 = vld [vmem:[#allocation3 + $0x18] sm:$0xff]
  %v1720 = vld [vmem:[#allocation3 + $0x20] sm:$0xff]
  %v1721 = vld [vmem:[#allocation3 + $0x28] sm:$0x3f]
  %v1722 = vld [vmem:[#allocation3 + $0x1] sm:$0xff]
  %v1723 = vld [vmem:[#allocation3 + $0x9] sm:$0xff]
  %v1724 = vld [vmem:[#allocation3 + $0x11] sm:$0xff]
  %v1725 = vld [vmem:[#allocation3 + $0x19] sm:$0xff]
  %v1726 = vld [vmem:[#allocation3 + $0x21] sm:$0xff]
  %v1727 = vld [vmem:[#allocation3 + $0x29] sm:$0x3f]
  %v1728 = vld [vmem:[#allocation3 + $0x2] sm:$0xff]
  %v1729 = vld [vmem:[#allocation3 + $0xa] sm:$0xff]
  %v1730 = vld [vmem:[#allocation3 + $0x12] sm:$0xff]
  %v1731 = vld [vmem:[#allocation3 + $0x1a] sm:$0xff]
  %v1732 = vld [vmem:[#allocation3 + $0x22] sm:$0xff]
  %v1733 = vld [vmem:[#allocation3 + $0x2a] sm:$0x3f]
  %v1734 = vld [vmem:[%s3] sm:$0xff]
  %v1735 = vld [vmem:[%s3 + $0x8] sm:$0xff]
  %v1736 = vld [vmem:[%s3 + $0x10] sm:$0xff]
  %v1737 = vld [vmem:[%s3 + $0x18] sm:$0xff]
  %v1738 = vld [vmem:[%s3 + $0x20] sm:$0xff]
  %v1739 = vld [vmem:[%s3 + $0x28] sm:$0xff]
  %v1740 = vld [vmem:[%s3 + $0x30] sm:$0xff]
  %v1741 = vld [vmem:[%s3 + $0x38] sm:$0xff]
  %v1742 = vld [vmem:[%s3 + $0x40] sm:$0xff]
  %v1743 = vld [vmem:[%s3 + $0x48] sm:$0xff]
  %v1744 = vld [vmem:[%s3 + $0x50] sm:$0xff]
  %v1745 = vld [vmem:[%s3 + $0x58] sm:$0xff]
  %v1746 = vld [vmem:[%s3 + $0x60] sm:$0xff]
  %v1747 = vld [vmem:[%s3 + $0x68] sm:$0xff]
  %v1748 = vld [vmem:[%s3 + $0x70] sm:$0xff]
  %v1749 = vld [vmem:[%s3 + $0x78] sm:$0xff]
  %v1750 = vld [vmem:[%s3 + $0x80] sm:$0xff]
  %v1751 = vld [vmem:[%s3 + $0x88] sm:$0xff]
  %v1752 = vld [vmem:[%s3 + $0x90] sm:$0xff]
  %v1753 = vld [vmem:[%s3 + $0x98] sm:$0xff]
  %v1754 = vld [vmem:[%s3 + $0xa0] sm:$0xff]
  %v1755 = vld [vmem:[%s3 + $0xa8] sm:$0xff]
  %v1756 = vld [vmem:[%s3 + $0xb0] sm:$0xff]
  %v1757 = vld [vmem:[%s3 + $0xb8] sm:$0xff]
  %v1758 = vld [vmem:[%s3 + $0xc0] sm:$0xff]
  %v1759 = vld [vmem:[%s3 + $0xc8] sm:$0xff]
  %v1760 = vld [vmem:[%s3 + $0xd0] sm:$0xff]
  %v1761 = vld [vmem:[%s3 + $0xd8] sm:$0xff]
  %v1762 = vld [vmem:[%s3 + $0xe0] sm:$0xff]
  %v1763 = vld [vmem:[%s3 + $0xe8] sm:$0xff]
  %v1764 = vld [vmem:[%s3 + $0xf0] sm:$0xff]
  %v1765 = vld [vmem:[%s3 + $0xf8] sm:$0xff]
  %v1766 = vld [vmem:[%s3 + $0x100] sm:$0xff]
  %v1767 = vld [vmem:[%s3 + $0x108] sm:$0xff]
  %v1768 = vld [vmem:[%s3 + $0x110] sm:$0xff]
  %v1769 = vld [vmem:[%s3 + $0x118] sm:$0xff]
  %v1770 = vld [vmem:[%s3 + $0x120] sm:$0xff]
  %v1771 = vld [vmem:[%s3 + $0x128] sm:$0xff]
  %v1772 = vld [vmem:[%s3 + $0x130] sm:$0xff]
  %v1773 = vld [vmem:[%s3 + $0x138] sm:$0xff]
  %v1774 = vld [vmem:[%s3 + $0x140] sm:$0xff]
  %v1775 = vld [vmem:[%s3 + $0x148] sm:$0xff]
  %v1776 = vld [vmem:[%s3 + $0x150] sm:$0xff]
  %v1777 = vld [vmem:[%s3 + $0x158] sm:$0xff]
  %v1778 = vld [vmem:[%s3 + $0x160] sm:$0xff]
  %v1779 = vld [vmem:[%s3 + $0x168] sm:$0xff]
  %v1780 = vld [vmem:[%s3 + $0x170] sm:$0xff]
  %v1781 = vld [vmem:[%s3 + $0x178] sm:$0xff]
  %v1782 = vld [vmem:[#allocation3 + $0x28] sm:$0xff]
  %v1783 = vld [vmem:[#allocation3 + $0x30] sm:$0x3f]
  %v1784 = vld [vmem:[#allocation3 + $0x29] sm:$0xff]
  %v1785 = vld [vmem:[#allocation3 + $0x31] sm:$0x3f]
  %v1786 = vld [vmem:[#allocation3 + $0x2a] sm:$0xff]
  %v1787 = vld [vmem:[#allocation3 + $0x32] sm:$0x3f]
  %v1788 = vld [vmem:[%s668] sm:$0xff]
  %v1789 = vld [vmem:[%s668 + $0x8] sm:$0xff]
  %v1790 = vld [vmem:[%s668 + $0x10] sm:$0xff]
  %v1791 = vld [vmem:[%s668 + $0x18] sm:$0xff]
  %v1792 = vld [vmem:[%s668 + $0x20] sm:$0xff]
  %v1793 = vld [vmem:[%s668 + $0x28] sm:$0xff]
  %v1794 = vld [vmem:[%s668 + $0x30] sm:$0xff]
  %v1795 = vld [vmem:[%s668 + $0x38] sm:$0xff]
  %v1796 = vld [vmem:[%s668 + $0x40] sm:$0xff]
  %v1797 = vld [vmem:[%s668 + $0x48] sm:$0xff]
  %v1798 = vld [vmem:[%s668 + $0x50] sm:$0xff]
  %v1799 = vld [vmem:[%s668 + $0x58] sm:$0xff]
  %v1800 = vld [vmem:[%s668 + $0x60] sm:$0xff]
  %v1801 = vld [vmem:[%s668 + $0x68] sm:$0xff]
  %v1802 = vld [vmem:[%s668 + $0x70] sm:$0xff]
  %v1803 = vld [vmem:[%s668 + $0x78] sm:$0xff]
  %v1804 = vld [vmem:[%s668 + $0x80] sm:$0xff]
  %v1805 = vld [vmem:[%s668 + $0x88] sm:$0xff]
  %v1806 = vld [vmem:[%s668 + $0x90] sm:$0xff]
  %v1807 = vld [vmem:[%s668 + $0x98] sm:$0xff]
  %v1808 = vld [vmem:[%s668 + $0xa0] sm:$0xff]
  %v1809 = vld [vmem:[%s668 + $0xa8] sm:$0xff]
  %v1810 = vld [vmem:[%s668 + $0xb0] sm:$0xff]
  %v1811 = vld [vmem:[%s668 + $0xb8] sm:$0xff]
  %v1812 = vld [vmem:[%s668 + $0xc0] sm:$0xff]
  %v1813 = vld [vmem:[%s668 + $0xc8] sm:$0xff]
  %v1814 = vld [vmem:[%s668 + $0xd0] sm:$0xff]
  %v1815 = vld [vmem:[%s668 + $0xd8] sm:$0xff]
  %v1816 = vld [vmem:[%s668 + $0xe0] sm:$0xff]
  %v1817 = vld [vmem:[%s668 + $0xe8] sm:$0xff]
  %v1818 = vld [vmem:[%s668 + $0xf0] sm:$0xff]
  %v1819 = vld [vmem:[%s668 + $0xf8] sm:$0xff]
  %v1820 = vld [vmem:[%s668 + $0x100] sm:$0xff]
  %v1821 = vld [vmem:[%s668 + $0x108] sm:$0xff]
  %v1822 = vld [vmem:[%s668 + $0x110] sm:$0xff]
  %v1823 = vld [vmem:[%s668 + $0x118] sm:$0xff]
  %v1824 = vld [vmem:[%s668 + $0x120] sm:$0xff]
  %v1825 = vld [vmem:[%s668 + $0x128] sm:$0xff]
  %v1826 = vld [vmem:[%s668 + $0x130] sm:$0xff]
  %v1827 = vld [vmem:[%s668 + $0x138] sm:$0xff]
  %v1828 = vld [vmem:[%s668 + $0x140] sm:$0xff]
  %v1829 = vld [vmem:[%s668 + $0x148] sm:$0xff]
  %v1830 = vld [vmem:[%s668 + $0x150] sm:$0xff]
  %v1831 = vld [vmem:[%s668 + $0x158] sm:$0xff]
  %v1832 = vld [vmem:[%s668 + $0x160] sm:$0xff]
  %v1833 = vld [vmem:[%s668 + $0x168] sm:$0xff]
  %v1834 = vld [vmem:[%s668 + $0x170] sm:$0xff]
  %v1835 = vld [vmem:[%s668 + $0x178] sm:$0xff]
  %1836 = vmatpush.msra.mxu0 %v1803
  %1837 = vmatpush.msra.mxu0 %v1802
  %1838 = vmatpush.msra.mxu0 %v1801
  %1839 = vmatpush.msra.mxu0 %v1800
  %1840 = vmatpush.msra.mxu0 %v1799
  %1841 = vmatpush.msra.mxu0 %v1798
  %1842 = vmatpush.msra.mxu0 %v1797
  %1843 = vmatpush.msra.mxu0 %v1796
  %1844 = vmatpush.msra.mxu0 %v1795
  %1845 = vmatpush.msra.mxu0 %v1794
  %1846 = vmatpush.msra.mxu0 %v1793
  %1847 = vmatpush.msra.mxu0 %v1792
  %1848 = vmatpush.msra.mxu0 %v1791
  %1849 = vmatpush.msra.mxu0 %v1790
  %1850 = vmatpush.msra.mxu0 %v1789
  %1851 = vmatpush.msra.mxu0 %v1788
  %1852 = vmatmul.f32.gmra.mxu0 %v1717
  %v1853 = vpop.f32.mrf.mxu0
  %v1854 = vadd.f32 0.0, %v1853
  %1855 = vmatmul.f32.gmra.mxu0 %v1718
  %v1856 = vpop.f32.mrf.mxu0
  %v1857 = vadd.f32 0.0, %v1856
  %1858 = vmatmul.f32.gmra.mxu0 %v1719
  %v1859 = vpop.f32.mrf.mxu0
  %v1860 = vadd.f32 0.0, %v1859
  %1861 = vmatmul.f32.gmra.mxu0 %v1720
  %v1862 = vpop.f32.mrf.mxu0
  %v1863 = vadd.f32 0.0, %v1862
  %1864 = vmatmul.f32.gmra.mxu0 %v1782
  %v1865 = vpop.f32.mrf.mxu0
  %v1866 = vadd.f32 0.0, %v1865
  %1867 = vmatmul.f32.gmra.mxu0 %v1783
  %v1868 = vpop.f32.mrf.mxu0
  %v1869 = vadd.f32 0.0, %v1868
  %1870 = vdwg.mxu0
  %1871 = vmatpush.msra.mxu0 %v1819
  %1872 = vmatpush.msra.mxu0 %v1818
  %1873 = vmatpush.msra.mxu0 %v1817
  %1874 = vmatpush.msra.mxu0 %v1816
  %1875 = vmatpush.msra.mxu0 %v1815
  %1876 = vmatpush.msra.mxu0 %v1814
  %1877 = vmatpush.msra.mxu0 %v1813
  %1878 = vmatpush.msra.mxu0 %v1812
  %1879 = vmatpush.msra.mxu0 %v1811
  %1880 = vmatpush.msra.mxu0 %v1810
  %1881 = vmatpush.msra.mxu0 %v1809
  %1882 = vmatpush.msra.mxu0 %v1808
  %1883 = vmatpush.msra.mxu0 %v1807
  %1884 = vmatpush.msra.mxu0 %v1806
  %1885 = vmatpush.msra.mxu0 %v1805
  %1886 = vmatpush.msra.mxu0 %v1804
  %1887 = vmatmul.f32.gmra.mxu0 %v1723
  %v1888 = vpop.f32.mrf.mxu0
  %v1889 = vadd.f32 %v1854, %v1888
  %1890 = vmatmul.f32.gmra.mxu0 %v1724
  %v1891 = vpop.f32.mrf.mxu0
  %v1892 = vadd.f32 %v1857, %v1891
  %1893 = vmatmul.f32.gmra.mxu0 %v1725
  %v1894 = vpop.f32.mrf.mxu0
  %v1895 = vadd.f32 %v1860, %v1894
  %1896 = vmatmul.f32.gmra.mxu0 %v1726
  %v1897 = vpop.f32.mrf.mxu0
  %v1898 = vadd.f32 %v1863, %v1897
  %1899 = vmatmul.f32.gmra.mxu0 %v1784
  %v1900 = vpop.f32.mrf.mxu0
  %v1901 = vadd.f32 %v1866, %v1900
  %1902 = vmatmul.f32.gmra.mxu0 %v1785
  %v1903 = vpop.f32.mrf.mxu0
  %v1904 = vadd.f32 %v1869, %v1903
  %1905 = vdwg.mxu0
  %1906 = vmatpush.msra.mxu0 %v1835
  %1907 = vmatpush.msra.mxu0 %v1834
  %1908 = vmatpush.msra.mxu0 %v1833
  %1909 = vmatpush.msra.mxu0 %v1832
  %1910 = vmatpush.msra.mxu0 %v1831
  %1911 = vmatpush.msra.mxu0 %v1830
  %1912 = vmatpush.msra.mxu0 %v1829
  %1913 = vmatpush.msra.mxu0 %v1828
  %1914 = vmatpush.msra.mxu0 %v1827
  %1915 = vmatpush.msra.mxu0 %v1826
  %1916 = vmatpush.msra.mxu0 %v1825
  %1917 = vmatpush.msra.mxu0 %v1824
  %1918 = vmatpush.msra.mxu0 %v1823
  %1919 = vmatpush.msra.mxu0 %v1822
  %1920 = vmatpush.msra.mxu0 %v1821
  %1921 = vmatpush.msra.mxu0 %v1820
  %1922 = vmatmul.f32.gmra.mxu0 %v1729
  %v1923 = vpop.f32.mrf.mxu0
  %v1924 = vadd.f32 %v1889, %v1923
  %1925 = vmatmul.f32.gmra.mxu0 %v1730
  %v1926 = vpop.f32.mrf.mxu0
  %v1927 = vadd.f32 %v1892, %v1926
  %1928 = vmatmul.f32.gmra.mxu0 %v1731
  %v1929 = vpop.f32.mrf.mxu0
  %v1930 = vadd.f32 %v1895, %v1929
  %1931 = vmatmul.f32.gmra.mxu0 %v1732
  %v1932 = vpop.f32.mrf.mxu0
  %v1933 = vadd.f32 %v1898, %v1932
  %1934 = vmatmul.f32.gmra.mxu0 %v1786
  %v1935 = vpop.f32.mrf.mxu0
  %v1936 = vadd.f32 %v1901, %v1935
  %1937 = vmatmul.f32.gmra.mxu0 %v1787
  %v1938 = vpop.f32.mrf.mxu0
  %v1939 = vadd.f32 %v1904, %v1938
  %1940 = vdwg.mxu0
  %1941 = vmatpush.msra.mxu0 %v1749
  %1942 = vmatpush.msra.mxu0 %v1748
  %1943 = vmatpush.msra.mxu0 %v1747
  %1944 = vmatpush.msra.mxu0 %v1746
  %1945 = vmatpush.msra.mxu0 %v1745
  %1946 = vmatpush.msra.mxu0 %v1744
  %1947 = vmatpush.msra.mxu0 %v1743
  %1948 = vmatpush.msra.mxu0 %v1742
  %1949 = vmatpush.msra.mxu0 %v1741
  %1950 = vmatpush.msra.mxu0 %v1740
  %1951 = vmatpush.msra.mxu0 %v1739
  %1952 = vmatpush.msra.mxu0 %v1738
  %1953 = vmatpush.msra.mxu0 %v1737
  %1954 = vmatpush.msra.mxu0 %v1736
  %1955 = vmatpush.msra.mxu0 %v1735
  %1956 = vmatpush.msra.mxu0 %v1734
  %1957 = vmatmul.f32.gmra.mxu0 %v1716
  %v1958 = vpop.f32.mrf.mxu0
  %v1959 = vadd.f32 %v1924, %v1958
  %1960 = vmatmul.f32.gmra.mxu0 %v1717
  %v1961 = vpop.f32.mrf.mxu0
  %v1962 = vadd.f32 %v1927, %v1961
  %1963 = vmatmul.f32.gmra.mxu0 %v1718
  %v1964 = vpop.f32.mrf.mxu0
  %v1965 = vadd.f32 %v1930, %v1964
  %1966 = vmatmul.f32.gmra.mxu0 %v1719
  %v1967 = vpop.f32.mrf.mxu0
  %v1968 = vadd.f32 %v1933, %v1967
  %1969 = vmatmul.f32.gmra.mxu0 %v1720
  %v1970 = vpop.f32.mrf.mxu0
  %v1971 = vadd.f32 %v1936, %v1970
  %1972 = vmatmul.f32.gmra.mxu0 %v1721
  %v1973 = vpop.f32.mrf.mxu0
  %v1974 = vadd.f32 %v1939, %v1973
  %1975 = vdwg.mxu0
  %1976 = vmatpush.msra.mxu0 %v1765
  %1977 = vmatpush.msra.mxu0 %v1764
  %1978 = vmatpush.msra.mxu0 %v1763
  %1979 = vmatpush.msra.mxu0 %v1762
  %1980 = vmatpush.msra.mxu0 %v1761
  %1981 = vmatpush.msra.mxu0 %v1760
  %1982 = vmatpush.msra.mxu0 %v1759
  %1983 = vmatpush.msra.mxu0 %v1758
  %1984 = vmatpush.msra.mxu0 %v1757
  %1985 = vmatpush.msra.mxu0 %v1756
  %1986 = vmatpush.msra.mxu0 %v1755
  %1987 = vmatpush.msra.mxu0 %v1754
  %1988 = vmatpush.msra.mxu0 %v1753
  %1989 = vmatpush.msra.mxu0 %v1752
  %1990 = vmatpush.msra.mxu0 %v1751
  %1991 = vmatpush.msra.mxu0 %v1750
  %1992 = vmatmul.f32.gmra.mxu0 %v1722
  %v1993 = vpop.f32.mrf.mxu0
  %v1994 = vadd.f32 %v1959, %v1993
  %1995 = vmatmul.f32.gmra.mxu0 %v1723
  %v1996 = vpop.f32.mrf.mxu0
  %v1997 = vadd.f32 %v1962, %v1996
  %1998 = vmatmul.f32.gmra.mxu0 %v1724
  %v1999 = vpop.f32.mrf.mxu0
  %v2000 = vadd.f32 %v1965, %v1999
  %2001 = vmatmul.f32.gmra.mxu0 %v1725
  %v2002 = vpop.f32.mrf.mxu0
  %v2003 = vadd.f32 %v1968, %v2002
  %2004 = vmatmul.f32.gmra.mxu0 %v1726
  %v2005 = vpop.f32.mrf.mxu0
  %v2006 = vadd.f32 %v1971, %v2005
  %2007 = vmatmul.f32.gmra.mxu0 %v1727
  %v2008 = vpop.f32.mrf.mxu0
  %v2009 = vadd.f32 %v1974, %v2008
  %2010 = vdwg.mxu0
  %2011 = vmatpush.msra.mxu0 %v1781
  %2012 = vmatpush.msra.mxu0 %v1780
  %2013 = vmatpush.msra.mxu0 %v1779
  %2014 = vmatpush.msra.mxu0 %v1778
  %2015 = vmatpush.msra.mxu0 %v1777
  %2016 = vmatpush.msra.mxu0 %v1776
  %2017 = vmatpush.msra.mxu0 %v1775
  %2018 = vmatpush.msra.mxu0 %v1774
  %2019 = vmatpush.msra.mxu0 %v1773
  %2020 = vmatpush.msra.mxu0 %v1772
  %2021 = vmatpush.msra.mxu0 %v1771
  %2022 = vmatpush.msra.mxu0 %v1770
  %2023 = vmatpush.msra.mxu0 %v1769
  %2024 = vmatpush.msra.mxu0 %v1768
  %2025 = vmatpush.msra.mxu0 %v1767
  %2026 = vmatpush.msra.mxu0 %v1766
  %2027 = vmatmul.f32.gmra.mxu0 %v1728
  %v2028 = vpop.f32.mrf.mxu0
  %v2029 = vadd.f32 %v1994, %v2028
  %2030 = vmatmul.f32.gmra.mxu0 %v1729
  %v2031 = vpop.f32.mrf.mxu0
  %v2032 = vadd.f32 %v1997, %v2031
  %2033 = vmatmul.f32.gmra.mxu0 %v1730
  %v2034 = vpop.f32.mrf.mxu0
  %v2035 = vadd.f32 %v2000, %v2034
  %2036 = vmatmul.f32.gmra.mxu0 %v1731
  %v2037 = vpop.f32.mrf.mxu0
  %v2038 = vadd.f32 %v2003, %v2037
  %2039 = vmatmul.f32.gmra.mxu0 %v1732
  %v2040 = vpop.f32.mrf.mxu0
  %v2041 = vadd.f32 %v2006, %v2040
  %2042 = vmatmul.f32.gmra.mxu0 %v1733
  %v2043 = vpop.f32.mrf.mxu0
  %v2044 = vadd.f32 %v2009, %v2043
  %2045 = vdwg.mxu0
  %v2046 = vld [vmem:[#allocation3 + $0x10] sm:$0xff]
  %v2047 = vld [vmem:[#allocation3 + $0x18] sm:$0xff]
  %v2048 = vld [vmem:[#allocation3 + $0x20] sm:$0xff]
  %v2049 = vld [vmem:[#allocation3 + $0x28] sm:$0xff]
  %v2050 = vld [vmem:[#allocation3 + $0x30] sm:$0xff]
  %v2051 = vld [vmem:[#allocation3 + $0x38] sm:$0x3f]
  %v2052 = vld [vmem:[#allocation3 + $0x11] sm:$0xff]
  %v2053 = vld [vmem:[#allocation3 + $0x19] sm:$0xff]
  %v2054 = vld [vmem:[#allocation3 + $0x21] sm:$0xff]
  %v2055 = vld [vmem:[#allocation3 + $0x29] sm:$0xff]
  %v2056 = vld [vmem:[#allocation3 + $0x31] sm:$0xff]
  %v2057 = vld [vmem:[#allocation3 + $0x39] sm:$0x3f]
  %v2058 = vld [vmem:[#allocation3 + $0x12] sm:$0xff]
  %v2059 = vld [vmem:[#allocation3 + $0x1a] sm:$0xff]
  %v2060 = vld [vmem:[#allocation3 + $0x22] sm:$0xff]
  %v2061 = vld [vmem:[#allocation3 + $0x2a] sm:$0xff]
  %v2062 = vld [vmem:[#allocation3 + $0x32] sm:$0xff]
  %v2063 = vld [vmem:[#allocation3 + $0x3a] sm:$0x3f]
  %v2064 = vld [vmem:[%s945] sm:$0xff]
  %v2065 = vld [vmem:[%s945 + $0x8] sm:$0xff]
  %v2066 = vld [vmem:[%s945 + $0x10] sm:$0xff]
  %v2067 = vld [vmem:[%s945 + $0x18] sm:$0xff]
  %v2068 = vld [vmem:[%s945 + $0x20] sm:$0xff]
  %v2069 = vld [vmem:[%s945 + $0x28] sm:$0xff]
  %v2070 = vld [vmem:[%s945 + $0x30] sm:$0xff]
  %v2071 = vld [vmem:[%s945 + $0x38] sm:$0xff]
  %v2072 = vld [vmem:[%s945 + $0x40] sm:$0xff]
  %v2073 = vld [vmem:[%s945 + $0x48] sm:$0xff]
  %v2074 = vld [vmem:[%s945 + $0x50] sm:$0xff]
  %v2075 = vld [vmem:[%s945 + $0x58] sm:$0xff]
  %v2076 = vld [vmem:[%s945 + $0x60] sm:$0xff]
  %v2077 = vld [vmem:[%s945 + $0x68] sm:$0xff]
  %v2078 = vld [vmem:[%s945 + $0x70] sm:$0xff]
  %v2079 = vld [vmem:[%s945 + $0x78] sm:$0xff]
  %v2080 = vld [vmem:[%s945 + $0x80] sm:$0xff]
  %v2081 = vld [vmem:[%s945 + $0x88] sm:$0xff]
  %v2082 = vld [vmem:[%s945 + $0x90] sm:$0xff]
  %v2083 = vld [vmem:[%s945 + $0x98] sm:$0xff]
  %v2084 = vld [vmem:[%s945 + $0xa0] sm:$0xff]
  %v2085 = vld [vmem:[%s945 + $0xa8] sm:$0xff]
  %v2086 = vld [vmem:[%s945 + $0xb0] sm:$0xff]
  %v2087 = vld [vmem:[%s945 + $0xb8] sm:$0xff]
  %v2088 = vld [vmem:[%s945 + $0xc0] sm:$0xff]
  %v2089 = vld [vmem:[%s945 + $0xc8] sm:$0xff]
  %v2090 = vld [vmem:[%s945 + $0xd0] sm:$0xff]
  %v2091 = vld [vmem:[%s945 + $0xd8] sm:$0xff]
  %v2092 = vld [vmem:[%s945 + $0xe0] sm:$0xff]
  %v2093 = vld [vmem:[%s945 + $0xe8] sm:$0xff]
  %v2094 = vld [vmem:[%s945 + $0xf0] sm:$0xff]
  %v2095 = vld [vmem:[%s945 + $0xf8] sm:$0xff]
  %v2096 = vld [vmem:[%s945 + $0x100] sm:$0xff]
  %v2097 = vld [vmem:[%s945 + $0x108] sm:$0xff]
  %v2098 = vld [vmem:[%s945 + $0x110] sm:$0xff]
  %v2099 = vld [vmem:[%s945 + $0x118] sm:$0xff]
  %v2100 = vld [vmem:[%s945 + $0x120] sm:$0xff]
  %v2101 = vld [vmem:[%s945 + $0x128] sm:$0xff]
  %v2102 = vld [vmem:[%s945 + $0x130] sm:$0xff]
  %v2103 = vld [vmem:[%s945 + $0x138] sm:$0xff]
  %v2104 = vld [vmem:[%s945 + $0x140] sm:$0xff]
  %v2105 = vld [vmem:[%s945 + $0x148] sm:$0xff]
  %v2106 = vld [vmem:[%s945 + $0x150] sm:$0xff]
  %v2107 = vld [vmem:[%s945 + $0x158] sm:$0xff]
  %v2108 = vld [vmem:[%s945 + $0x160] sm:$0xff]
  %v2109 = vld [vmem:[%s945 + $0x168] sm:$0xff]
  %v2110 = vld [vmem:[%s945 + $0x170] sm:$0xff]
  %v2111 = vld [vmem:[%s945 + $0x178] sm:$0xff]
  %2112 = vmatpush.msra.mxu0 %v2079
  %2113 = vmatpush.msra.mxu0 %v2078
  %2114 = vmatpush.msra.mxu0 %v2077
  %2115 = vmatpush.msra.mxu0 %v2076
  %2116 = vmatpush.msra.mxu0 %v2075
  %2117 = vmatpush.msra.mxu0 %v2074
  %2118 = vmatpush.msra.mxu0 %v2073
  %2119 = vmatpush.msra.mxu0 %v2072
  %2120 = vmatpush.msra.mxu0 %v2071
  %2121 = vmatpush.msra.mxu0 %v2070
  %2122 = vmatpush.msra.mxu0 %v2069
  %2123 = vmatpush.msra.mxu0 %v2068
  %2124 = vmatpush.msra.mxu0 %v2067
  %2125 = vmatpush.msra.mxu0 %v2066
  %2126 = vmatpush.msra.mxu0 %v2065
  %2127 = vmatpush.msra.mxu0 %v2064
  %2128 = vmatmul.f32.gmra.mxu0 %v2046
  %v2129 = vpop.f32.mrf.mxu0
  %v2130 = vadd.f32 0.0, %v2129
  %2131 = vmatmul.f32.gmra.mxu0 %v2047
  %v2132 = vpop.f32.mrf.mxu0
  %v2133 = vadd.f32 0.0, %v2132
  %2134 = vmatmul.f32.gmra.mxu0 %v2048
  %v2135 = vpop.f32.mrf.mxu0
  %v2136 = vadd.f32 0.0, %v2135
  %2137 = vmatmul.f32.gmra.mxu0 %v2049
  %v2138 = vpop.f32.mrf.mxu0
  %v2139 = vadd.f32 0.0, %v2138
  %2140 = vmatmul.f32.gmra.mxu0 %v2050
  %v2141 = vpop.f32.mrf.mxu0
  %v2142 = vadd.f32 0.0, %v2141
  %2143 = vmatmul.f32.gmra.mxu0 %v2051
  %v2144 = vpop.f32.mrf.mxu0
  %v2145 = vadd.f32 0.0, %v2144
  %2146 = vdwg.mxu0
  %2147 = vmatpush.msra.mxu0 %v2095
  %2148 = vmatpush.msra.mxu0 %v2094
  %2149 = vmatpush.msra.mxu0 %v2093
  %2150 = vmatpush.msra.mxu0 %v2092
  %2151 = vmatpush.msra.mxu0 %v2091
  %2152 = vmatpush.msra.mxu0 %v2090
  %2153 = vmatpush.msra.mxu0 %v2089
  %2154 = vmatpush.msra.mxu0 %v2088
  %2155 = vmatpush.msra.mxu0 %v2087
  %2156 = vmatpush.msra.mxu0 %v2086
  %2157 = vmatpush.msra.mxu0 %v2085
  %2158 = vmatpush.msra.mxu0 %v2084
  %2159 = vmatpush.msra.mxu0 %v2083
  %2160 = vmatpush.msra.mxu0 %v2082
  %2161 = vmatpush.msra.mxu0 %v2081
  %2162 = vmatpush.msra.mxu0 %v2080
  %2163 = vmatmul.f32.gmra.mxu0 %v2052
  %v2164 = vpop.f32.mrf.mxu0
  %v2165 = vadd.f32 %v2130, %v2164
  %2166 = vmatmul.f32.gmra.mxu0 %v2053
  %v2167 = vpop.f32.mrf.mxu0
  %v2168 = vadd.f32 %v2133, %v2167
  %2169 = vmatmul.f32.gmra.mxu0 %v2054
  %v2170 = vpop.f32.mrf.mxu0
  %v2171 = vadd.f32 %v2136, %v2170
  %2172 = vmatmul.f32.gmra.mxu0 %v2055
  %v2173 = vpop.f32.mrf.mxu0
  %v2174 = vadd.f32 %v2139, %v2173
  %2175 = vmatmul.f32.gmra.mxu0 %v2056
  %v2176 = vpop.f32.mrf.mxu0
  %v2177 = vadd.f32 %v2142, %v2176
  %2178 = vmatmul.f32.gmra.mxu0 %v2057
  %v2179 = vpop.f32.mrf.mxu0
  %v2180 = vadd.f32 %v2145, %v2179
  %2181 = vdwg.mxu0
  %2182 = vmatpush.msra.mxu0 %v2111
  %2183 = vmatpush.msra.mxu0 %v2110
  %2184 = vmatpush.msra.mxu0 %v2109
  %2185 = vmatpush.msra.mxu0 %v2108
  %2186 = vmatpush.msra.mxu0 %v2107
  %2187 = vmatpush.msra.mxu0 %v2106
  %2188 = vmatpush.msra.mxu0 %v2105
  %2189 = vmatpush.msra.mxu0 %v2104
  %2190 = vmatpush.msra.mxu0 %v2103
  %2191 = vmatpush.msra.mxu0 %v2102
  %2192 = vmatpush.msra.mxu0 %v2101
  %2193 = vmatpush.msra.mxu0 %v2100
  %2194 = vmatpush.msra.mxu0 %v2099
  %2195 = vmatpush.msra.mxu0 %v2098
  %2196 = vmatpush.msra.mxu0 %v2097
  %2197 = vmatpush.msra.mxu0 %v2096
  %2198 = vmatmul.f32.gmra.mxu0 %v2058
  %v2199 = vpop.f32.mrf.mxu0
  %v2200 = vadd.f32 %v2165, %v2199
  %2201 = vmatmul.f32.gmra.mxu0 %v2059
  %v2202 = vpop.f32.mrf.mxu0
  %v2203 = vadd.f32 %v2168, %v2202
  %2204 = vmatmul.f32.gmra.mxu0 %v2060
  %v2205 = vpop.f32.mrf.mxu0
  %v2206 = vadd.f32 %v2171, %v2205
  %2207 = vmatmul.f32.gmra.mxu0 %v2061
  %v2208 = vpop.f32.mrf.mxu0
  %v2209 = vadd.f32 %v2174, %v2208
  %2210 = vmatmul.f32.gmra.mxu0 %v2062
  %v2211 = vpop.f32.mrf.mxu0
  %v2212 = vadd.f32 %v2177, %v2211
  %2213 = vmatmul.f32.gmra.mxu0 %v2063
  %v2214 = vpop.f32.mrf.mxu0
  %v2215 = vadd.f32 %v2180, %v2214
  %2216 = vdwg.mxu0
  %v2217 = vadd.f32 %v2029, %v2200
  %v2218 = vadd.f32 %v2032, %v2203
  %v2219 = vadd.f32 %v2035, %v2206
  %v2220 = vadd.f32 %v2038, %v2209
  %v2221 = vadd.f32 %v2041, %v2212
  %v2222 = vadd.f32 %v2044, %v2215
  %2223 = vst [vmem:[#allocation2] sm:$0xff] %v2217
  %2224 = vst [vmem:[#allocation2 + $0x8] sm:$0xff] %v2218
  %2225 = vst [vmem:[#allocation2 + $0x10] sm:$0xff] %v2219
  %2226 = vst [vmem:[#allocation2 + $0x18] sm:$0xff] %v2220
  %2227 = vst [vmem:[#allocation2 + $0x20] sm:$0xff] %v2221
  %2228 = vst [vmem:[#allocation2 + $0x28] sm:$0x3f] %v2222
  %v2229 = vld [vmem:[#allocation2] ss:$2 sm:$0x7]
  %v2230 = vld [vmem:[%s297] ss:$2 sm:$0x7]
  %v2231 = vld [vmem:[%s1113] ss:$2 sm:$0x7]
  %v2232 = vld [vmem:[%s1115] ss:$2 sm:$0x7]
  %v2233 = vmax.f32 %v2229, %v2230
  %v2234 = vmax.f32 %v2231, %v2232
  %v2235 = vmax.f32 %v2233, %v2234
  %v2236 = vld [vmem:[%s1120] ss:$2 sm:$0x7]
  %v2237 = vld [vmem:[%s299] ss:$2 sm:$0x7]
  %v2238 = vld [vmem:[%s1123] ss:$2 sm:$0x7]
  %v2239 = vld [vmem:[%s1125] ss:$2 sm:$0x7]
  %v2240 = vmax.f32 %v2236, %v2237
  %v2241 = vmax.f32 %v2238, %v2239
  %v2242 = vmax.f32 %v2240, %v2241
  %v2243 = vld [vmem:[%s1130] ss:$2 sm:$0x7]
  %v2244 = vld [vmem:[%s301] ss:$2 sm:$0x7]
  %v2245 = vld [vmem:[%s1133] ss:$2 sm:$0x7]
  %v2246 = vld [vmem:[%s1135] ss:$2 sm:$0x7]
  %v2247 = vmax.f32 %v2243, %v2244
  %v2248 = vmax.f32 %v2245, %v2246
  %v2249 = vmax.f32 %v2247, %v2248
  %v2251 = vrot.slane %v2242, 5
  %v2254 = vrot.slane %v2249, 2
  %v2256 = vsel %vm1146, %v2235, %v2251
  %v2257 = vsel %vm1148, %v2256, %v2254
  %v2258 = vadd.f32 %v2257, %v34
  %v2259 = vadd.f32 %v2254, %v34
  %v2260 = vmax.f32 %v2258, 0.0
  %v2261 = vmax.f32 %v2259, 0.0
  %v2262 = vmul.f32 %v2260, %v36
  %v2263 = vmul.f32 %v2261, %v37
  %v2264 = vsel %vm1156, %v2263, 0.0
  %v2265 = vadd.f32 %v2262, %v2264
  %v2266 = vrot.slane %v2265, 4
  %v2267 = vadd.f32 %v2265, %v2266
  %v2268 = vrot.slane %v2267, 2
  %v2269 = vadd.f32 %v2267, %v2268
  %v2270 = vrot.slane %v2269, 1
  %v2271 = vadd.f32 %v2269, %v2270
  %2272 = vst [vmem:[#allocation4 + $0x1] sm:$0x1] %v2271
  %v2273 = vld [vmem:[%s0 + $0x400] sm:$0xff]
  %v2274 = vld [vmem:[%s0 + $0x408] sm:$0xff]
  %v2275 = vld [vmem:[%s0 + $0x410] sm:$0xff]
  %v2276 = vld [vmem:[%s0 + $0x418] sm:$0xff]
  %v2277 = vld [vmem:[%s0 + $0x420] sm:$0xff]
  %v2278 = vld [vmem:[%s0 + $0x428] sm:$0xff]
  %v2279 = vld [vmem:[%s0 + $0x430] sm:$0xff]
  %v2280 = vld [vmem:[%s0 + $0x438] sm:$0xff]
  %v2281 = vld [vmem:[%s0 + $0x440] sm:$0xff]
  %v2282 = vld [vmem:[%s0 + $0x448] sm:$0xff]
  %v2283 = vld [vmem:[%s0 + $0x450] sm:$0xff]
  %v2284 = vld [vmem:[%s0 + $0x458] sm:$0xff]
  %v2285 = vld [vmem:[%s0 + $0x460] sm:$0xff]
  %v2286 = vld [vmem:[%s0 + $0x468] sm:$0xff]
  %v2287 = vld [vmem:[%s0 + $0x470] sm:$0xff]
  %v2288 = vld [vmem:[%s0 + $0x478] sm:$0xff]
  %v2289 = vld [vmem:[%s0 + $0x480] sm:$0xff]
  %v2290 = vld [vmem:[%s0 + $0x488] sm:$0xff]
  %v2291 = vld [vmem:[%s0 + $0x490] sm:$0xff]
  %v2292 = vld [vmem:[%s0 + $0x498] sm:$0xff]
  %v2293 = vld [vmem:[%s0 + $0x4a0] sm:$0xff]
  %v2294 = vld [vmem:[%s0 + $0x4a8] sm:$0xff]
  %v2295 = vld [vmem:[%s0 + $0x4b0] sm:$0xff]
  %v2296 = vld [vmem:[%s0 + $0x4b8] sm:$0xff]
  %v2297 = vld [vmem:[%s0 + $0x4c0] sm:$0xff]
  %v2298 = vld [vmem:[%s0 + $0x4c8] sm:$0xff]
  %v2299 = vld [vmem:[%s0 + $0x4d0] sm:$0xff]
  %v2300 = vld [vmem:[%s0 + $0x4d8] sm:$0xff]
  %v2301 = vld [vmem:[%s0 + $0x4e0] sm:$0xff]
  %v2302 = vld [vmem:[%s0 + $0x4e8] sm:$0xff]
  %v2303 = vld [vmem:[%s0 + $0x4f0] sm:$0xff]
  %v2304 = vld [vmem:[%s0 + $0x4f8] sm:$0xff]
  %v2305 = vld [vmem:[%s1] sm:$0xff]
  %v2306 = vld [vmem:[%s1 + $0x8] sm:$0xff]
  %v2307 = vld [vmem:[%s1 + $0x10] sm:$0xff]
  %v2308 = vld [vmem:[%s1 + $0x18] sm:$0xff]
  %v2309 = vld [vmem:[%s1 + $0x20] sm:$0xff]
  %v2310 = vld [vmem:[%s1 + $0x28] sm:$0xff]
  %v2311 = vld [vmem:[%s1 + $0x30] sm:$0xff]
  %v2312 = vld [vmem:[%s1 + $0x38] sm:$0xff]
  %v2313 = vld [vmem:[%s1 + $0x40] sm:$0xff]
  %v2314 = vld [vmem:[%s1 + $0x48] sm:$0xff]
  %v2315 = vld [vmem:[%s1 + $0x50] sm:$0xff]
  %v2316 = vld [vmem:[%s1 + $0x58] sm:$0xff]
  %v2317 = vld [vmem:[%s1 + $0x60] sm:$0xff]
  %v2318 = vld [vmem:[%s1 + $0x68] sm:$0xff]
  %v2319 = vld [vmem:[%s1 + $0x70] sm:$0xff]
  %v2320 = vld [vmem:[%s1 + $0x78] sm:$0xff]
  %v2321 = vld [vmem:[%s1 + $0x80] sm:$0xff]
  %v2322 = vld [vmem:[%s1 + $0x88] sm:$0xff]
  %v2323 = vld [vmem:[%s1 + $0x90] sm:$0xff]
  %v2324 = vld [vmem:[%s1 + $0x98] sm:$0xff]
  %v2325 = vld [vmem:[%s1 + $0xa0] sm:$0xff]
  %v2326 = vld [vmem:[%s1 + $0xa8] sm:$0xff]
  %v2327 = vld [vmem:[%s1 + $0xb0] sm:$0xff]
  %v2328 = vld [vmem:[%s1 + $0xb8] sm:$0xff]
  %v2329 = vld [vmem:[%s1 + $0xc0] sm:$0xff]
  %v2331 = vsel %vm95, %v2274, 0
  %v2334 = vsel %vm95, %v2276, 0
  %v2337 = vsel %vm95, %v2278, 0
  %v2340 = vsel %vm95, %v2280, 0
  %v2343 = vsel %vm95, %v2282, 0
  %v2346 = vsel %vm95, %v2284, 0
  %v2349 = vsel %vm95, %v2286, 0
  %v2352 = vsel %vm95, %v2288, 0
  %v2355 = vsel %vm95, %v2290, 0
  %v2358 = vsel %vm95, %v2292, 0
  %v2361 = vsel %vm95, %v2294, 0
  %v2364 = vsel %vm95, %v2296, 0
  %v2367 = vsel %vm95, %v2298, 0
  %v2370 = vsel %vm95, %v2300, 0
  %v2373 = vsel %vm95, %v2302, 0
  %v2376 = vsel %vm95, %v2304, 0
  %2378 = vmatpush.msra.mxu0 %v2320
  %2379 = vmatpush.msra.mxu0 %v2319
  %2380 = vmatpush.msra.mxu0 %v2318
  %2381 = vmatpush.msra.mxu0 %v2317
  %2382 = vmatpush.msra.mxu0 %v2316
  %2383 = vmatpush.msra.mxu0 %v2315
  %2384 = vmatpush.msra.mxu0 %v2314
  %2385 = vmatpush.msra.mxu0 %v2313
  %2386 = vmatpush.msra.mxu0 %v2312
  %2387 = vmatpush.msra.mxu0 %v2311
  %2388 = vmatpush.msra.mxu0 %v2310
  %2389 = vmatpush.msra.mxu0 %v2309
  %2390 = vmatpush.msra.mxu0 %v2308
  %2391 = vmatpush.msra.mxu0 %v2307
  %2392 = vmatpush.msra.mxu0 %v2306
  %2393 = vmatpush.msra.mxu0 %v2305
  %2394 = vmatmul.f32.gmra.mxu0 %v2273
  %v2395 = vpop.f32.mrf.mxu0
  %v2396 = vadd.f32 0.0, %v2395
  %2397 = vmatmul.f32.gmra.mxu0 %v2275
  %v2398 = vpop.f32.mrf.mxu0
  %v2399 = vadd.f32 0.0, %v2398
  %2400 = vmatmul.f32.gmra.mxu0 %v2277
  %v2401 = vpop.f32.mrf.mxu0
  %v2402 = vadd.f32 0.0, %v2401
  %2403 = vmatmul.f32.gmra.mxu0 %v2279
  %v2404 = vpop.f32.mrf.mxu0
  %v2405 = vadd.f32 0.0, %v2404
  %2406 = vmatmul.f32.gmra.mxu0 %v2281
  %v2407 = vpop.f32.mrf.mxu0
  %v2408 = vadd.f32 0.0, %v2407
  %2409 = vmatmul.f32.gmra.mxu0 %v2283
  %v2410 = vpop.f32.mrf.mxu0
  %v2411 = vadd.f32 0.0, %v2410
  %2412 = vmatmul.f32.gmra.mxu0 %v2285
  %v2413 = vpop.f32.mrf.mxu0
  %v2414 = vadd.f32 0.0, %v2413
  %2415 = vmatmul.f32.gmra.mxu0 %v2287
  %v2416 = vpop.f32.mrf.mxu0
  %v2417 = vadd.f32 0.0, %v2416
  %2418 = vmatmul.f32.gmra.mxu0 %v2289
  %v2419 = vpop.f32.mrf.mxu0
  %v2420 = vadd.f32 0.0, %v2419
  %2421 = vmatmul.f32.gmra.mxu0 %v2291
  %v2422 = vpop.f32.mrf.mxu0
  %v2423 = vadd.f32 0.0, %v2422
  %2424 = vmatmul.f32.gmra.mxu0 %v2293
  %v2425 = vpop.f32.mrf.mxu0
  %v2426 = vadd.f32 0.0, %v2425
  %2427 = vmatmul.f32.gmra.mxu0 %v2295
  %v2428 = vpop.f32.mrf.mxu0
  %v2429 = vadd.f32 0.0, %v2428
  %2430 = vmatmul.f32.gmra.mxu0 %v2297
  %v2431 = vpop.f32.mrf.mxu0
  %v2432 = vadd.f32 0.0, %v2431
  %2433 = vmatmul.f32.gmra.mxu0 %v2299
  %v2434 = vpop.f32.mrf.mxu0
  %v2435 = vadd.f32 0.0, %v2434
  %2436 = vmatmul.f32.gmra.mxu0 %v2301
  %v2437 = vpop.f32.mrf.mxu0
  %v2438 = vadd.f32 0.0, %v2437
  %2439 = vmatmul.f32.gmra.mxu0 %v2303
  %v2440 = vpop.f32.mrf.mxu0
  %v2441 = vadd.f32 0.0, %v2440
  %2442 = vdwg.mxu0
  %2443 = vmatpush.msra.mxu0 0.0
  %2444 = vmatpush.msra.mxu0 0.0
  %2445 = vmatpush.msra.mxu0 0.0
  %2446 = vmatpush.msra.mxu0 0.0
  %2447 = vmatpush.msra.mxu0 0.0
  %2448 = vmatpush.msra.mxu0 0.0
  %2449 = vmatpush.msra.mxu0 0.0
  %2450 = vmatpush.msra.mxu0 %v2329
  %2451 = vmatpush.msra.mxu0 %v2328
  %2452 = vmatpush.msra.mxu0 %v2327
  %2453 = vmatpush.msra.mxu0 %v2326
  %2454 = vmatpush.msra.mxu0 %v2325
  %2455 = vmatpush.msra.mxu0 %v2324
  %2456 = vmatpush.msra.mxu0 %v2323
  %2457 = vmatpush.msra.mxu0 %v2322
  %2458 = vmatpush.msra.mxu0 %v2321
  %2459 = vmatmul.f32.gmra.mxu0 %v2331
  %v2460 = vpop.f32.mrf.mxu0
  %v2461 = vadd.f32 %v2396, %v2460
  %2462 = vmatmul.f32.gmra.mxu0 %v2334
  %v2463 = vpop.f32.mrf.mxu0
  %v2464 = vadd.f32 %v2399, %v2463
  %2465 = vmatmul.f32.gmra.mxu0 %v2337
  %v2466 = vpop.f32.mrf.mxu0
  %v2467 = vadd.f32 %v2402, %v2466
  %2468 = vmatmul.f32.gmra.mxu0 %v2340
  %v2469 = vpop.f32.mrf.mxu0
  %v2470 = vadd.f32 %v2405, %v2469
  %2471 = vmatmul.f32.gmra.mxu0 %v2343
  %v2472 = vpop.f32.mrf.mxu0
  %v2473 = vadd.f32 %v2408, %v2472
  %2474 = vmatmul.f32.gmra.mxu0 %v2346
  %v2475 = vpop.f32.mrf.mxu0
  %v2476 = vadd.f32 %v2411, %v2475
  %2477 = vmatmul.f32.gmra.mxu0 %v2349
  %v2478 = vpop.f32.mrf.mxu0
  %v2479 = vadd.f32 %v2414, %v2478
  %2480 = vmatmul.f32.gmra.mxu0 %v2352
  %v2481 = vpop.f32.mrf.mxu0
  %v2482 = vadd.f32 %v2417, %v2481
  %2483 = vmatmul.f32.gmra.mxu0 %v2355
  %v2484 = vpop.f32.mrf.mxu0
  %v2485 = vadd.f32 %v2420, %v2484
  %2486 = vmatmul.f32.gmra.mxu0 %v2358
  %v2487 = vpop.f32.mrf.mxu0
  %v2488 = vadd.f32 %v2423, %v2487
  %2489 = vmatmul.f32.gmra.mxu0 %v2361
  %v2490 = vpop.f32.mrf.mxu0
  %v2491 = vadd.f32 %v2426, %v2490
  %2492 = vmatmul.f32.gmra.mxu0 %v2364
  %v2493 = vpop.f32.mrf.mxu0
  %v2494 = vadd.f32 %v2429, %v2493
  %2495 = vmatmul.f32.gmra.mxu0 %v2367
  %v2496 = vpop.f32.mrf.mxu0
  %v2497 = vadd.f32 %v2432, %v2496
  %2498 = vmatmul.f32.gmra.mxu0 %v2370
  %v2499 = vpop.f32.mrf.mxu0
  %v2500 = vadd.f32 %v2435, %v2499
  %2501 = vmatmul.f32.gmra.mxu0 %v2373
  %v2502 = vpop.f32.mrf.mxu0
  %v2503 = vadd.f32 %v2438, %v2502
  %2504 = vmatmul.f32.gmra.mxu0 %v2376
  %v2505 = vpop.f32.mrf.mxu0
  %v2506 = vadd.f32 %v2441, %v2505
  %2507 = vdwg.mxu0
  %v2508 = vmax.f32 %v2461, %v2467
  %v2509 = vmax.f32 %v2464, %v2470
  %v2510 = vmax.f32 %v2473, %v2479
  %v2511 = vmax.f32 %v2476, %v2482
  %v2512 = vmax.f32 %v2485, %v2491
  %v2513 = vmax.f32 %v2488, %v2494
  %v2514 = vmax.f32 %v2497, %v2503
  %v2515 = vmax.f32 %v2500, %v2506
  %2516 = vst [vmem:[#allocation2] sm:$0xff] %v2508
  %2517 = vst [vmem:[#allocation2 + $0x8] sm:$0xff] %v2509
  %2518 = vst [vmem:[#allocation2 + $0x10] sm:$0xff] %v2510
  %2519 = vst [vmem:[#allocation2 + $0x18] sm:$0xff] %v2511
  %2520 = vst [vmem:[#allocation2 + $0x20] sm:$0xff] %v2512
  %2521 = vst [vmem:[#allocation2 + $0x28] sm:$0xff] %v2513
  %2522 = vst [vmem:[#allocation2 + $0x30] sm:$0xff] %v2514
  %2523 = vst [vmem:[#allocation2 + $0x38] sm:$0xff] %v2515
  %v2524 = vld [vmem:[#allocation2] ss:$2 sm:$0xff]
  %v2525 = vld [vmem:[%s291] ss:$2 sm:$0xff]
  %v2526 = vld [vmem:[%s293] ss:$2 sm:$0xff]
  %v2527 = vld [vmem:[%s295] ss:$2 sm:$0xff]
  %v2528 = vld [vmem:[%s297] ss:$2 sm:$0xff]
  %v2529 = vld [vmem:[%s299] ss:$2 sm:$0xff]
  %v2530 = vld [vmem:[%s301] ss:$2 sm:$0xff]
  %v2531 = vld [vmem:[%s303] ss:$2 sm:$0xff]
  %v2532 = vmax.f32 %v2524, %v2528
  %v2533 = vmax.f32 %v2525, %v2529
  %v2534 = vmax.f32 %v2526, %v2530
  %v2535 = vmax.f32 %v2527, %v2531
  %v2536 = vadd.f32 %v2532, %v30
  %v2537 = vadd.f32 %v2533, %v30
  %v2538 = vadd.f32 %v2534, %v30
  %v2539 = vadd.f32 %v2535, %v30
  %v2540 = vmax.f32 %v2536, 0.0
  %v2541 = vmax.f32 %v2537, 0.0
  %v2542 = vmax.f32 %v2538, 0.0
  %v2543 = vmax.f32 %v2539, 0.0
  %2544 = vst [vmem:[#allocation3] sm:$0xff] %v2540
  %2545 = vst [vmem:[#allocation3 + $0x8] sm:$0xff] %v2541
  %2546 = vst [vmem:[#allocation3 + $0x10] sm:$0xff] %v2542
  %2547 = vst [vmem:[#allocation3 + $0x18] sm:$0xff] %v2543
  %v2548 = vld [vmem:[%s0 + $0x500] sm:$0xff]
  %v2549 = vld [vmem:[%s0 + $0x508] sm:$0xff]
  %v2550 = vld [vmem:[%s0 + $0x510] sm:$0xff]
  %v2551 = vld [vmem:[%s0 + $0x518] sm:$0xff]
  %v2552 = vld [vmem:[%s0 + $0x520] sm:$0xff]
  %v2553 = vld [vmem:[%s0 + $0x528] sm:$0xff]
  %v2554 = vld [vmem:[%s0 + $0x530] sm:$0xff]
  %v2555 = vld [vmem:[%s0 + $0x538] sm:$0xff]
  %v2556 = vld [vmem:[%s0 + $0x540] sm:$0xff]
  %v2557 = vld [vmem:[%s0 + $0x548] sm:$0xff]
  %v2558 = vld [vmem:[%s0 + $0x550] sm:$0xff]
  %v2559 = vld [vmem:[%s0 + $0x558] sm:$0xff]
  %v2560 = vld [vmem:[%s0 + $0x560] sm:$0xff]
  %v2561 = vld [vmem:[%s0 + $0x568] sm:$0xff]
  %v2562 = vld [vmem:[%s0 + $0x570] sm:$0xff]
  %v2563 = vld [vmem:[%s0 + $0x578] sm:$0xff]
  %v2564 = vld [vmem:[%s0 + $0x580] sm:$0xff]
  %v2565 = vld [vmem:[%s0 + $0x588] sm:$0xff]
  %v2566 = vld [vmem:[%s0 + $0x590] sm:$0xff]
  %v2567 = vld [vmem:[%s0 + $0x598] sm:$0xff]
  %v2568 = vld [vmem:[%s0 + $0x5a0] sm:$0xff]
  %v2569 = vld [vmem:[%s0 + $0x5a8] sm:$0xff]
  %v2570 = vld [vmem:[%s0 + $0x5b0] sm:$0xff]
  %v2571 = vld [vmem:[%s0 + $0x5b8] sm:$0xff]
  %v2572 = vld [vmem:[%s0 + $0x5c0] sm:$0xff]
  %v2573 = vld [vmem:[%s0 + $0x5c8] sm:$0xff]
  %v2574 = vld [vmem:[%s0 + $0x5d0] sm:$0xff]
  %v2575 = vld [vmem:[%s0 + $0x5d8] sm:$0xff]
  %v2576 = vld [vmem:[%s0 + $0x5e0] sm:$0xff]
  %v2577 = vld [vmem:[%s0 + $0x5e8] sm:$0xff]
  %v2578 = vld [vmem:[%s0 + $0x5f0] sm:$0xff]
  %v2579 = vld [vmem:[%s0 + $0x5f8] sm:$0xff]
  %v2580 = vld [vmem:[%s1] sm:$0xff]
  %v2581 = vld [vmem:[%s1 + $0x8] sm:$0xff]
  %v2582 = vld [vmem:[%s1 + $0x10] sm:$0xff]
  %v2583 = vld [vmem:[%s1 + $0x18] sm:$0xff]
  %v2584 = vld [vmem:[%s1 + $0x20] sm:$0xff]
  %v2585 = vld [vmem:[%s1 + $0x28] sm:$0xff]
  %v2586 = vld [vmem:[%s1 + $0x30] sm:$0xff]
  %v2587 = vld [vmem:[%s1 + $0x38] sm:$0xff]
  %v2588 = vld [vmem:[%s1 + $0x40] sm:$0xff]
  %v2589 = vld [vmem:[%s1 + $0x48] sm:$0xff]
  %v2590 = vld [vmem:[%s1 + $0x50] sm:$0xff]
  %v2591 = vld [vmem:[%s1 + $0x58] sm:$0xff]
  %v2592 = vld [vmem:[%s1 + $0x60] sm:$0xff]
  %v2593 = vld [vmem:[%s1 + $0x68] sm:$0xff]
  %v2594 = vld [vmem:[%s1 + $0x70] sm:$0xff]
  %v2595 = vld [vmem:[%s1 + $0x78] sm:$0xff]
  %v2596 = vld [vmem:[%s1 + $0x80] sm:$0xff]
  %v2597 = vld [vmem:[%s1 + $0x88] sm:$0xff]
  %v2598 = vld [vmem:[%s1 + $0x90] sm:$0xff]
  %v2599 = vld [vmem:[%s1 + $0x98] sm:$0xff]
  %v2600 = vld [vmem:[%s1 + $0xa0] sm:$0xff]
  %v2601 = vld [vmem:[%s1 + $0xa8] sm:$0xff]
  %v2602 = vld [vmem:[%s1 + $0xb0] sm:$0xff]
  %v2603 = vld [vmem:[%s1 + $0xb8] sm:$0xff]
  %v2604 = vld [vmem:[%s1 + $0xc0] sm:$0xff]
  %v2606 = vsel %vm95, %v2549, 0
  %v2609 = vsel %vm95, %v2551, 0
  %v2612 = vsel %vm95, %v2553, 0
  %v2615 = vsel %vm95, %v2555, 0
  %v2618 = vsel %vm95, %v2557, 0
  %v2621 = vsel %vm95, %v2559, 0
  %v2624 = vsel %vm95, %v2561, 0
  %v2627 = vsel %vm95, %v2563, 0
  %v2630 = vsel %vm95, %v2565, 0
  %v2633 = vsel %vm95, %v2567, 0
  %v2636 = vsel %vm95, %v2569, 0
  %v2639 = vsel %vm95, %v2571, 0
  %v2642 = vsel %vm95, %v2573, 0
  %v2645 = vsel %vm95, %v2575, 0
  %v2648 = vsel %vm95, %v2577, 0
  %v2651 = vsel %vm95, %v2579, 0
  %2653 = vmatpush.msra.mxu0 %v2595
  %2654 = vmatpush.msra.mxu0 %v2594
  %2655 = vmatpush.msra.mxu0 %v2593
  %2656 = vmatpush.msra.mxu0 %v2592
  %2657 = vmatpush.msra.mxu0 %v2591
  %2658 = vmatpush.msra.mxu0 %v2590
  %2659 = vmatpush.msra.mxu0 %v2589
  %2660 = vmatpush.msra.mxu0 %v2588
  %2661 = vmatpush.msra.mxu0 %v2587
  %2662 = vmatpush.msra.mxu0 %v2586
  %2663 = vmatpush.msra.mxu0 %v2585
  %2664 = vmatpush.msra.mxu0 %v2584
  %2665 = vmatpush.msra.mxu0 %v2583
  %2666 = vmatpush.msra.mxu0 %v2582
  %2667 = vmatpush.msra.mxu0 %v2581
  %2668 = vmatpush.msra.mxu0 %v2580
  %2669 = vmatmul.f32.gmra.mxu0 %v2548
  %v2670 = vpop.f32.mrf.mxu0
  %v2671 = vadd.f32 0.0, %v2670
  %2672 = vmatmul.f32.gmra.mxu0 %v2550
  %v2673 = vpop.f32.mrf.mxu0
  %v2674 = vadd.f32 0.0, %v2673
  %2675 = vmatmul.f32.gmra.mxu0 %v2552
  %v2676 = vpop.f32.mrf.mxu0
  %v2677 = vadd.f32 0.0, %v2676
  %2678 = vmatmul.f32.gmra.mxu0 %v2554
  %v2679 = vpop.f32.mrf.mxu0
  %v2680 = vadd.f32 0.0, %v2679
  %2681 = vmatmul.f32.gmra.mxu0 %v2556
  %v2682 = vpop.f32.mrf.mxu0
  %v2683 = vadd.f32 0.0, %v2682
  %2684 = vmatmul.f32.gmra.mxu0 %v2558
  %v2685 = vpop.f32.mrf.mxu0
  %v2686 = vadd.f32 0.0, %v2685
  %2687 = vmatmul.f32.gmra.mxu0 %v2560
  %v2688 = vpop.f32.mrf.mxu0
  %v2689 = vadd.f32 0.0, %v2688
  %2690 = vmatmul.f32.gmra.mxu0 %v2562
  %v2691 = vpop.f32.mrf.mxu0
  %v2692 = vadd.f32 0.0, %v2691
  %2693 = vmatmul.f32.gmra.mxu0 %v2564
  %v2694 = vpop.f32.mrf.mxu0
  %v2695 = vadd.f32 0.0, %v2694
  %2696 = vmatmul.f32.gmra.mxu0 %v2566
  %v2697 = vpop.f32.mrf.mxu0
  %v2698 = vadd.f32 0.0, %v2697
  %2699 = vmatmul.f32.gmra.mxu0 %v2568
  %v2700 = vpop.f32.mrf.mxu0
  %v2701 = vadd.f32 0.0, %v2700
  %2702 = vmatmul.f32.gmra.mxu0 %v2570
  %v2703 = vpop.f32.mrf.mxu0
  %v2704 = vadd.f32 0.0, %v2703
  %2705 = vmatmul.f32.gmra.mxu0 %v2572
  %v2706 = vpop.f32.mrf.mxu0
  %v2707 = vadd.f32 0.0, %v2706
  %2708 = vmatmul.f32.gmra.mxu0 %v2574
  %v2709 = vpop.f32.mrf.mxu0
  %v2710 = vadd.f32 0.0, %v2709
  %2711 = vmatmul.f32.gmra.mxu0 %v2576
  %v2712 = vpop.f32.mrf.mxu0
  %v2713 = vadd.f32 0.0, %v2712
  %2714 = vmatmul.f32.gmra.mxu0 %v2578
  %v2715 = vpop.f32.mrf.mxu0
  %v2716 = vadd.f32 0.0, %v2715
  %2717 = vdwg.mxu0
  %2718 = vmatpush.msra.mxu0 0.0
  %2719 = vmatpush.msra.mxu0 0.0
  %2720 = vmatpush.msra.mxu0 0.0
  %2721 = vmatpush.msra.mxu0 0.0
  %2722 = vmatpush.msra.mxu0 0.0
  %2723 = vmatpush.msra.mxu0 0.0
  %2724 = vmatpush.msra.mxu0 0.0
  %2725 = vmatpush.msra.mxu0 %v2604
  %2726 = vmatpush.msra.mxu0 %v2603
  %2727 = vmatpush.msra.mxu0 %v2602
  %2728 = vmatpush.msra.mxu0 %v2601
  %2729 = vmatpush.msra.mxu0 %v2600
  %2730 = vmatpush.msra.mxu0 %v2599
  %2731 = vmatpush.msra.mxu0 %v2598
  %2732 = vmatpush.msra.mxu0 %v2597
  %2733 = vmatpush.msra.mxu0 %v2596
  %2734 = vmatmul.f32.gmra.mxu0 %v2606
  %v2735 = vpop.f32.mrf.mxu0
  %v2736 = vadd.f32 %v2671, %v2735
  %2737 = vmatmul.f32.gmra.mxu0 %v2609
  %v2738 = vpop.f32.mrf.mxu0
  %v2739 = vadd.f32 %v2674, %v2738
  %2740 = vmatmul.f32.gmra.mxu0 %v2612
  %v2741 = vpop.f32.mrf.mxu0
  %v2742 = vadd.f32 %v2677, %v2741
  %2743 = vmatmul.f32.gmra.mxu0 %v2615
  %v2744 = vpop.f32.mrf.mxu0
  %v2745 = vadd.f32 %v2680, %v2744
  %2746 = vmatmul.f32.gmra.mxu0 %v2618
  %v2747 = vpop.f32.mrf.mxu0
  %v2748 = vadd.f32 %v2683, %v2747
  %2749 = vmatmul.f32.gmra.mxu0 %v2621
  %v2750 = vpop.f32.mrf.mxu0
  %v2751 = vadd.f32 %v2686, %v2750
  %2752 = vmatmul.f32.gmra.mxu0 %v2624
  %v2753 = vpop.f32.mrf.mxu0
  %v2754 = vadd.f32 %v2689, %v2753
  %2755 = vmatmul.f32.gmra.mxu0 %v2627
  %v2756 = vpop.f32.mrf.mxu0
  %v2757 = vadd.f32 %v2692, %v2756
  %2758 = vmatmul.f32.gmra.mxu0 %v2630
  %v2759 = vpop.f32.mrf.mxu0
  %v2760 = vadd.f32 %v2695, %v2759
  %2761 = vmatmul.f32.gmra.mxu0 %v2633
  %v2762 = vpop.f32.mrf.mxu0
  %v2763 = vadd.f32 %v2698, %v2762
  %2764 = vmatmul.f32.gmra.mxu0 %v2636
  %v2765 = vpop.f32.mrf.mxu0
  %v2766 = vadd.f32 %v2701, %v2765
  %2767 = vmatmul.f32.gmra.mxu0 %v2639
  %v2768 = vpop.f32.mrf.mxu0
  %v2769 = vadd.f32 %v2704, %v2768
  %2770 = vmatmul.f32.gmra.mxu0 %v2642
  %v2771 = vpop.f32.mrf.mxu0
  %v2772 = vadd.f32 %v2707, %v2771
  %2773 = vmatmul.f32.gmra.mxu0 %v2645
  %v2774 = vpop.f32.mrf.mxu0
  %v2775 = vadd.f32 %v2710, %v2774
  %2776 = vmatmul.f32.gmra.mxu0 %v2648
  %v2777 = vpop.f32.mrf.mxu0
  %v2778 = vadd.f32 %v2713, %v2777
  %2779 = vmatmul.f32.gmra.mxu0 %v2651
  %v2780 = vpop.f32.mrf.mxu0
  %v2781 = vadd.f32 %v2716, %v2780
  %2782 = vdwg.mxu0
  %v2783 = vmax.f32 %v2736, %v2742
  %v2784 = vmax.f32 %v2739, %v2745
  %v2785 = vmax.f32 %v2748, %v2754
  %v2786 = vmax.f32 %v2751, %v2757
  %v2787 = vmax.f32 %v2760, %v2766
  %v2788 = vmax.f32 %v2763, %v2769
  %v2789 = vmax.f32 %v2772, %v2778
  %v2790 = vmax.f32 %v2775, %v2781
  %2791 = vst [vmem:[#allocation2] sm:$0xff] %v2783
  %2792 = vst [vmem:[#allocation2 + $0x8] sm:$0xff] %v2784
  %2793 = vst [vmem:[#allocation2 + $0x10] sm:$0xff] %v2785
  %2794 = vst [vmem:[#allocation2 + $0x18] sm:$0xff] %v2786
  %2795 = vst [vmem:[#allocation2 + $0x20] sm:$0xff] %v2787
  %2796 = vst [vmem:[#allocation2 + $0x28] sm:$0xff] %v2788
  %2797 = vst [vmem:[#allocation2 + $0x30] sm:$0xff] %v2789
  %2798 = vst [vmem:[#allocation2 + $0x38] sm:$0xff] %v2790
  %v2799 = vld [vmem:[#allocation2] ss:$2 sm:$0xff]
  %v2800 = vld [vmem:[%s291] ss:$2 sm:$0xff]
  %v2801 = vld [vmem:[%s293] ss:$2 sm:$0xff]
  %v2802 = vld [vmem:[%s295] ss:$2 sm:$0xff]
  %v2803 = vld [vmem:[%s297] ss:$2 sm:$0xff]
  %v2804 = vld [vmem:[%s299] ss:$2 sm:$0xff]
  %v2805 = vld [vmem:[%s301] ss:$2 sm:$0xff]
  %v2806 = vld [vmem:[%s303] ss:$2 sm:$0xff]
  %v2807 = vmax.f32 %v2799, %v2803
  %v2808 = vmax.f32 %v2800, %v2804
  %v2809 = vmax.f32 %v2801, %v2805
  %v2810 = vmax.f32 %v2802, %v2806
  %v2811 = vadd.f32 %v2807, %v30
  %v2812 = vadd.f32 %v2808, %v30
  %v2813 = vadd.f32 %v2809, %v30
  %v2814 = vadd.f32 %v2810, %v30
  %v2815 = vmax.f32 %v2811, 0.0
  %v2816 = vmax.f32 %v2812, 0.0
  %v2817 = vmax.f32 %v2813, 0.0
  %v2818 = vmax.f32 %v2814, 0.0
  %2819 = vst [vmem:[#allocation3 + $0x20] sm:$0xff] %v2815
  %2820 = vst [vmem:[#allocation3 + $0x28] sm:$0xff] %v2816
  %2821 = vst [vmem:[#allocation3 + $0x30] sm:$0xff] %v2817
  %2822 = vst [vmem:[#allocation3 + $0x38] sm:$0xff] %v2818
  %v2823 = vld [vmem:[#allocation3] sm:$0xff]
  %v2824 = vld [vmem:[#allocation3 + $0x8] sm:$0xff]
  %v2825 = vld [vmem:[#allocation3 + $0x10] sm:$0xff]
  %v2826 = vld [vmem:[#allocation3 + $0x18] sm:$0xff]
  %v2827 = vld [vmem:[#allocation3 + $0x20] sm:$0xff]
  %v2828 = vld [vmem:[#allocation3 + $0x28] sm:$0x3f]
  %v2829 = vld [vmem:[#allocation3 + $0x1] sm:$0xff]
  %v2830 = vld [vmem:[#allocation3 + $0x9] sm:$0xff]
  %v2831 = vld [vmem:[#allocation3 + $0x11] sm:$0xff]
  %v2832 = vld [vmem:[#allocation3 + $0x19] sm:$0xff]
  %v2833 = vld [vmem:[#allocation3 + $0x21] sm:$0xff]
  %v2834 = vld [vmem:[#allocation3 + $0x29] sm:$0x3f]
  %v2835 = vld [vmem:[#allocation3 + $0x2] sm:$0xff]
  %v2836 = vld [vmem:[#allocation3 + $0xa] sm:$0xff]
  %v2837 = vld [vmem:[#allocation3 + $0x12] sm:$0xff]
  %v2838 = vld [vmem:[#allocation3 + $0x1a] sm:$0xff]
  %v2839 = vld [vmem:[#allocation3 + $0x22] sm:$0xff]
  %v2840 = vld [vmem:[#allocation3 + $0x2a] sm:$0x3f]
  %v2841 = vld [vmem:[%s3] sm:$0xff]
  %v2842 = vld [vmem:[%s3 + $0x8] sm:$0xff]
  %v2843 = vld [vmem:[%s3 + $0x10] sm:$0xff]
  %v2844 = vld [vmem:[%s3 + $0x18] sm:$0xff]
  %v2845 = vld [vmem:[%s3 + $0x20] sm:$0xff]
  %v2846 = vld [vmem:[%s3 + $0x28] sm:$0xff]
  %v2847 = vld [vmem:[%s3 + $0x30] sm:$0xff]
  %v2848 = vld [vmem:[%s3 + $0x38] sm:$0xff]
  %v2849 = vld [vmem:[%s3 + $0x40] sm:$0xff]
  %v2850 = vld [vmem:[%s3 + $0x48] sm:$0xff]
  %v2851 = vld [vmem:[%s3 + $0x50] sm:$0xff]
  %v2852 = vld [vmem:[%s3 + $0x58] sm:$0xff]
  %v2853 = vld [vmem:[%s3 + $0x60] sm:$0xff]
  %v2854 = vld [vmem:[%s3 + $0x68] sm:$0xff]
  %v2855 = vld [vmem:[%s3 + $0x70] sm:$0xff]
  %v2856 = vld [vmem:[%s3 + $0x78] sm:$0xff]
  %v2857 = vld [vmem:[%s3 + $0x80] sm:$0xff]
  %v2858 = vld [vmem:[%s3 + $0x88] sm:$0xff]
  %v2859 = vld [vmem:[%s3 + $0x90] sm:$0xff]
  %v2860 = vld [vmem:[%s3 + $0x98] sm:$0xff]
  %v2861 = vld [vmem:[%s3 + $0xa0] sm:$0xff]
  %v2862 = vld [vmem:[%s3 + $0xa8] sm:$0xff]
  %v2863 = vld [vmem:[%s3 + $0xb0] sm:$0xff]
  %v2864 = vld [vmem:[%s3 + $0xb8] sm:$0xff]
  %v2865 = vld [vmem:[%s3 + $0xc0] sm:$0xff]
  %v2866 = vld [vmem:[%s3 + $0xc8] sm:$0xff]
  %v2867 = vld [vmem:[%s3 + $0xd0] sm:$0xff]
  %v2868 = vld [vmem:[%s3 + $0xd8] sm:$0xff]
  %v2869 = vld [vmem:[%s3 + $0xe0] sm:$0xff]
  %v2870 = vld [vmem:[%s3 + $0xe8] sm:$0xff]
  %v2871 = vld [vmem:[%s3 + $0xf0] sm:$0xff]
  %v2872 = vld [vmem:[%s3 + $0xf8] sm:$0xff]
  %v2873 = vld [vmem:[%s3 + $0x100] sm:$0xff]
  %v2874 = vld [vmem:[%s3 + $0x108] sm:$0xff]
  %v2875 = vld [vmem:[%s3 + $0x110] sm:$0xff]
  %v2876 = vld [vmem:[%s3 + $0x118] sm:$0xff]
  %v2877 = vld [vmem:[%s3 + $0x120] sm:$0xff]
  %v2878 = vld [vmem:[%s3 + $0x128] sm:$0xff]
  %v2879 = vld [vmem:[%s3 + $0x130] sm:$0xff]
  %v2880 = vld [vmem:[%s3 + $0x138] sm:$0xff]
  %v2881 = vld [vmem:[%s3 + $0x140] sm:$0xff]
  %v2882 = vld [vmem:[%s3 + $0x148] sm:$0xff]
  %v2883 = vld [vmem:[%s3 + $0x150] sm:$0xff]
  %v2884 = vld [vmem:[%s3 + $0x158] sm:$0xff]
  %v2885 = vld [vmem:[%s3 + $0x160] sm:$0xff]
  %v2886 = vld [vmem:[%s3 + $0x168] sm:$0xff]
  %v2887 = vld [vmem:[%s3 + $0x170] sm:$0xff]
  %v2888 = vld [vmem:[%s3 + $0x178] sm:$0xff]
  %v2889 = vld [vmem:[#allocation3 + $0x28] sm:$0xff]
  %v2890 = vld [vmem:[#allocation3 + $0x30] sm:$0x3f]
  %v2891 = vld [vmem:[#allocation3 + $0x29] sm:$0xff]
  %v2892 = vld [vmem:[#allocation3 + $0x31] sm:$0x3f]
  %v2893 = vld [vmem:[#allocation3 + $0x2a] sm:$0xff]
  %v2894 = vld [vmem:[#allocation3 + $0x32] sm:$0x3f]
  %v2895 = vld [vmem:[%s668] sm:$0xff]
  %v2896 = vld [vmem:[%s668 + $0x8] sm:$0xff]
  %v2897 = vld [vmem:[%s668 + $0x10] sm:$0xff]
  %v2898 = vld [vmem:[%s668 + $0x18] sm:$0xff]
  %v2899 = vld [vmem:[%s668 + $0x20] sm:$0xff]
  %v2900 = vld [vmem:[%s668 + $0x28] sm:$0xff]
  %v2901 = vld [vmem:[%s668 + $0x30] sm:$0xff]
  %v2902 = vld [vmem:[%s668 + $0x38] sm:$0xff]
  %v2903 = vld [vmem:[%s668 + $0x40] sm:$0xff]
  %v2904 = vld [vmem:[%s668 + $0x48] sm:$0xff]
  %v2905 = vld [vmem:[%s668 + $0x50] sm:$0xff]
  %v2906 = vld [vmem:[%s668 + $0x58] sm:$0xff]
  %v2907 = vld [vmem:[%s668 + $0x60] sm:$0xff]
  %v2908 = vld [vmem:[%s668 + $0x68] sm:$0xff]
  %v2909 = vld [vmem:[%s668 + $0x70] sm:$0xff]
  %v2910 = vld [vmem:[%s668 + $0x78] sm:$0xff]
  %v2911 = vld [vmem:[%s668 + $0x80] sm:$0xff]
  %v2912 = vld [vmem:[%s668 + $0x88] sm:$0xff]
  %v2913 = vld [vmem:[%s668 + $0x90] sm:$0xff]
  %v2914 = vld [vmem:[%s668 + $0x98] sm:$0xff]
  %v2915 = vld [vmem:[%s668 + $0xa0] sm:$0xff]
  %v2916 = vld [vmem:[%s668 + $0xa8] sm:$0xff]
  %v2917 = vld [vmem:[%s668 + $0xb0] sm:$0xff]
  %v2918 = vld [vmem:[%s668 + $0xb8] sm:$0xff]
  %v2919 = vld [vmem:[%s668 + $0xc0] sm:$0xff]
  %v2920 = vld [vmem:[%s668 + $0xc8] sm:$0xff]
  %v2921 = vld [vmem:[%s668 + $0xd0] sm:$0xff]
  %v2922 = vld [vmem:[%s668 + $0xd8] sm:$0xff]
  %v2923 = vld [vmem:[%s668 + $0xe0] sm:$0xff]
  %v2924 = vld [vmem:[%s668 + $0xe8] sm:$0xff]
  %v2925 = vld [vmem:[%s668 + $0xf0] sm:$0xff]
  %v2926 = vld [vmem:[%s668 + $0xf8] sm:$0xff]
  %v2927 = vld [vmem:[%s668 + $0x100] sm:$0xff]
  %v2928 = vld [vmem:[%s668 + $0x108] sm:$0xff]
  %v2929 = vld [vmem:[%s668 + $0x110] sm:$0xff]
  %v2930 = vld [vmem:[%s668 + $0x118] sm:$0xff]
  %v2931 = vld [vmem:[%s668 + $0x120] sm:$0xff]
  %v2932 = vld [vmem:[%s668 + $0x128] sm:$0xff]
  %v2933 = vld [vmem:[%s668 + $0x130] sm:$0xff]
  %v2934 = vld [vmem:[%s668 + $0x138] sm:$0xff]
  %v2935 = vld [vmem:[%s668 + $0x140] sm:$0xff]
  %v2936 = vld [vmem:[%s668 + $0x148] sm:$0xff]
  %v2937 = vld [vmem:[%s668 + $0x150] sm:$0xff]
  %v2938 = vld [vmem:[%s668 + $0x158] sm:$0xff]
  %v2939 = vld [vmem:[%s668 + $0x160] sm:$0xff]
  %v2940 = vld [vmem:[%s668 + $0x168] sm:$0xff]
  %v2941 = vld [vmem:[%s668 + $0x170] sm:$0xff]
  %v2942 = vld [vmem:[%s668 + $0x178] sm:$0xff]
  %2943 = vmatpush.msra.mxu0 %v2910
  %2944 = vmatpush.msra.mxu0 %v2909
  %2945 = vmatpush.msra.mxu0 %v2908
  %2946 = vmatpush.msra.mxu0 %v2907
  %2947 = vmatpush.msra.mxu0 %v2906
  %2948 = vmatpush.msra.mxu0 %v2905
  %2949 = vmatpush.msra.mxu0 %v2904
  %2950 = vmatpush.msra.mxu0 %v2903
  %2951 = vmatpush.msra.mxu0 %v2902
  %2952 = vmatpush.msra.mxu0 %v2901
  %2953 = vmatpush.msra.mxu0 %v2900
  %2954 = vmatpush.msra.mxu0 %v2899
  %2955 = vmatpush.msra.mxu0 %v2898
  %2956 = vmatpush.msra.mxu0 %v2897
  %2957 = vmatpush.msra.mxu0 %v2896
  %2958 = vmatpush.msra.mxu0 %v2895
  %2959 = vmatmul.f32.gmra.mxu0 %v2824
  %v2960 = vpop.f32.mrf.mxu0
  %v2961 = vadd.f32 0.0, %v2960
  %2962 = vmatmul.f32.gmra.mxu0 %v2825
  %v2963 = vpop.f32.mrf.mxu0
  %v2964 = vadd.f32 0.0, %v2963
  %2965 = vmatmul.f32.gmra.mxu0 %v2826
  %v2966 = vpop.f32.mrf.mxu0
  %v2967 = vadd.f32 0.0, %v2966
  %2968 = vmatmul.f32.gmra.mxu0 %v2827
  %v2969 = vpop.f32.mrf.mxu0
  %v2970 = vadd.f32 0.0, %v2969
  %2971 = vmatmul.f32.gmra.mxu0 %v2889
  %v2972 = vpop.f32.mrf.mxu0
  %v2973 = vadd.f32 0.0, %v2972
  %2974 = vmatmul.f32.gmra.mxu0 %v2890
  %v2975 = vpop.f32.mrf.mxu0
  %v2976 = vadd.f32 0.0, %v2975
  %2977 = vdwg.mxu0
  %2978 = vmatpush.msra.mxu0 %v2926
  %2979 = vmatpush.msra.mxu0 %v2925
  %2980 = vmatpush.msra.mxu0 %v2924
  %2981 = vmatpush.msra.mxu0 %v2923
  %2982 = vmatpush.msra.mxu0 %v2922
  %2983 = vmatpush.msra.mxu0 %v2921
  %2984 = vmatpush.msra.mxu0 %v2920
  %2985 = vmatpush.msra.mxu0 %v2919
  %2986 = vmatpush.msra.mxu0 %v2918
  %2987 = vmatpush.msra.mxu0 %v2917
  %2988 = vmatpush.msra.mxu0 %v2916
  %2989 = vmatpush.msra.mxu0 %v2915
  %2990 = vmatpush.msra.mxu0 %v2914
  %2991 = vmatpush.msra.mxu0 %v2913
  %2992 = vmatpush.msra.mxu0 %v2912
  %2993 = vmatpush.msra.mxu0 %v2911
  %2994 = vmatmul.f32.gmra.mxu0 %v2830
  %v2995 = vpop.f32.mrf.mxu0
  %v2996 = vadd.f32 %v2961, %v2995
  %2997 = vmatmul.f32.gmra.mxu0 %v2831
  %v2998 = vpop.f32.mrf.mxu0
  %v2999 = vadd.f32 %v2964, %v2998
  %3000 = vmatmul.f32.gmra.mxu0 %v2832
  %v3001 = vpop.f32.mrf.mxu0
  %v3002 = vadd.f32 %v2967, %v3001
  %3003 = vmatmul.f32.gmra.mxu0 %v2833
  %v3004 = vpop.f32.mrf.mxu0
  %v3005 = vadd.f32 %v2970, %v3004
  %3006 = vmatmul.f32.gmra.mxu0 %v2891
  %v3007 = vpop.f32.mrf.mxu0
  %v3008 = vadd.f32 %v2973, %v3007
  %3009 = vmatmul.f32.gmra.mxu0 %v2892
  %v3010 = vpop.f32.mrf.mxu0
  %v3011 = vadd.f32 %v2976, %v3010
  %3012 = vdwg.mxu0
  %3013 = vmatpush.msra.mxu0 %v2942
  %3014 = vmatpush.msra.mxu0 %v2941
  %3015 = vmatpush.msra.mxu0 %v2940
  %3016 = vmatpush.msra.mxu0 %v2939
  %3017 = vmatpush.msra.mxu0 %v2938
  %3018 = vmatpush.msra.mxu0 %v2937
  %3019 = vmatpush.msra.mxu0 %v2936
  %3020 = vmatpush.msra.mxu0 %v2935
  %3021 = vmatpush.msra.mxu0 %v2934
  %3022 = vmatpush.msra.mxu0 %v2933
  %3023 = vmatpush.msra.mxu0 %v2932
  %3024 = vmatpush.msra.mxu0 %v2931
  %3025 = vmatpush.msra.mxu0 %v2930
  %3026 = vmatpush.msra.mxu0 %v2929
  %3027 = vmatpush.msra.mxu0 %v2928
  %3028 = vmatpush.msra.mxu0 %v2927
  %3029 = vmatmul.f32.gmra.mxu0 %v2836
  %v3030 = vpop.f32.mrf.mxu0
  %v3031 = vadd.f32 %v2996, %v3030
  %3032 = vmatmul.f32.gmra.mxu0 %v2837
  %v3033 = vpop.f32.mrf.mxu0
  %v3034 = vadd.f32 %v2999, %v3033
  %3035 = vmatmul.f32.gmra.mxu0 %v2838
  %v3036 = vpop.f32.mrf.mxu0
  %v3037 = vadd.f32 %v3002, %v3036
  %3038 = vmatmul.f32.gmra.mxu0 %v2839
  %v3039 = vpop.f32.mrf.mxu0
  %v3040 = vadd.f32 %v3005, %v3039
  %3041 = vmatmul.f32.gmra.mxu0 %v2893
  %v3042 = vpop.f32.mrf.mxu0
  %v3043 = vadd.f32 %v3008, %v3042
  %3044 = vmatmul.f32.gmra.mxu0 %v2894
  %v3045 = vpop.f32.mrf.mxu0
  %v3046 = vadd.f32 %v3011, %v3045
  %3047 = vdwg.mxu0
  %3048 = vmatpush.msra.mxu0 %v2856
  %3049 = vmatpush.msra.mxu0 %v2855
  %3050 = vmatpush.msra.mxu0 %v2854
  %3051 = vmatpush.msra.mxu0 %v2853
  %3052 = vmatpush.msra.mxu0 %v2852
  %3053 = vmatpush.msra.mxu0 %v2851
  %3054 = vmatpush.msra.mxu0 %v2850
  %3055 = vmatpush.msra.mxu0 %v2849
  %3056 = vmatpush.msra.mxu0 %v2848
  %3057 = vmatpush.msra.mxu0 %v2847
  %3058 = vmatpush.msra.mxu0 %v2846
  %3059 = vmatpush.msra.mxu0 %v2845
  %3060 = vmatpush.msra.mxu0 %v2844
  %3061 = vmatpush.msra.mxu0 %v2843
  %3062 = vmatpush.msra.mxu0 %v2842
  %3063 = vmatpush.msra.mxu0 %v2841
  %3064 = vmatmul.f32.gmra.mxu0 %v2823
  %v3065 = vpop.f32.mrf.mxu0
  %v3066 = vadd.f32 %v3031, %v3065
  %3067 = vmatmul.f32.gmra.mxu0 %v2824
  %v3068 = vpop.f32.mrf.mxu0
  %v3069 = vadd.f32 %v3034, %v3068
  %3070 = vmatmul.f32.gmra.mxu0 %v2825
  %v3071 = vpop.f32.mrf.mxu0
  %v3072 = vadd.f32 %v3037, %v3071
  %3073 = vmatmul.f32.gmra.mxu0 %v2826
  %v3074 = vpop.f32.mrf.mxu0
  %v3075 = vadd.f32 %v3040, %v3074
  %3076 = vmatmul.f32.gmra.mxu0 %v2827
  %v3077 = vpop.f32.mrf.mxu0
  %v3078 = vadd.f32 %v3043, %v3077
  %3079 = vmatmul.f32.gmra.mxu0 %v2828
  %v3080 = vpop.f32.mrf.mxu0
  %v3081 = vadd.f32 %v3046, %v3080
  %3082 = vdwg.mxu0
  %3083 = vmatpush.msra.mxu0 %v2872
  %3084 = vmatpush.msra.mxu0 %v2871
  %3085 = vmatpush.msra.mxu0 %v2870
  %3086 = vmatpush.msra.mxu0 %v2869
  %3087 = vmatpush.msra.mxu0 %v2868
  %3088 = vmatpush.msra.mxu0 %v2867
  %3089 = vmatpush.msra.mxu0 %v2866
  %3090 = vmatpush.msra.mxu0 %v2865
  %3091 = vmatpush.msra.mxu0 %v2864
  %3092 = vmatpush.msra.mxu0 %v2863
  %3093 = vmatpush.msra.mxu0 %v2862
  %3094 = vmatpush.msra.mxu0 %v2861
  %3095 = vmatpush.msra.mxu0 %v2860
  %3096 = vmatpush.msra.mxu0 %v2859
  %3097 = vmatpush.msra.mxu0 %v2858
  %3098 = vmatpush.msra.mxu0 %v2857
  %3099 = vmatmul.f32.gmra.mxu0 %v2829
  %v3100 = vpop.f32.mrf.mxu0
  %v3101 = vadd.f32 %v3066, %v3100
  %3102 = vmatmul.f32.gmra.mxu0 %v2830
  %v3103 = vpop.f32.mrf.mxu0
  %v3104 = vadd.f32 %v3069, %v3103
  %3105 = vmatmul.f32.gmra.mxu0 %v2831
  %v3106 = vpop.f32.mrf.mxu0
  %v3107 = vadd.f32 %v3072, %v3106
  %3108 = vmatmul.f32.gmra.mxu0 %v2832
  %v3109 = vpop.f32.mrf.mxu0
  %v3110 = vadd.f32 %v3075, %v3109
  %3111 = vmatmul.f32.gmra.mxu0 %v2833
  %v3112 = vpop.f32.mrf.mxu0
  %v3113 = vadd.f32 %v3078, %v3112
  %3114 = vmatmul.f32.gmra.mxu0 %v2834
  %v3115 = vpop.f32.mrf.mxu0
  %v3116 = vadd.f32 %v3081, %v3115
  %3117 = vdwg.mxu0
  %3118 = vmatpush.msra.mxu0 %v2888
  %3119 = vmatpush.msra.mxu0 %v2887
  %3120 = vmatpush.msra.mxu0 %v2886
  %3121 = vmatpush.msra.mxu0 %v2885
  %3122 = vmatpush.msra.mxu0 %v2884
  %3123 = vmatpush.msra.mxu0 %v2883
  %3124 = vmatpush.msra.mxu0 %v2882
  %3125 = vmatpush.msra.mxu0 %v2881
  %3126 = vmatpush.msra.mxu0 %v2880
  %3127 = vmatpush.msra.mxu0 %v2879
  %3128 = vmatpush.msra.mxu0 %v2878
  %3129 = vmatpush.msra.mxu0 %v2877
  %3130 = vmatpush.msra.mxu0 %v2876
  %3131 = vmatpush.msra.mxu0 %v2875
  %3132 = vmatpush.msra.mxu0 %v2874
  %3133 = vmatpush.msra.mxu0 %v2873
  %3134 = vmatmul.f32.gmra.mxu0 %v2835
  %v3135 = vpop.f32.mrf.mxu0
  %v3136 = vadd.f32 %v3101, %v3135
  %3137 = vmatmul.f32.gmra.mxu0 %v2836
  %v3138 = vpop.f32.mrf.mxu0
  %v3139 = vadd.f32 %v3104, %v3138
  %3140 = vmatmul.f32.gmra.mxu0 %v2837
  %v3141 = vpop.f32.mrf.mxu0
  %v3142 = vadd.f32 %v3107, %v3141
  %3143 = vmatmul.f32.gmra.mxu0 %v2838
  %v3144 = vpop.f32.mrf.mxu0
  %v3145 = vadd.f32 %v3110, %v3144
  %3146 = vmatmul.f32.gmra.mxu0 %v2839
  %v3147 = vpop.f32.mrf.mxu0
  %v3148 = vadd.f32 %v3113, %v3147
  %3149 = vmatmul.f32.gmra.mxu0 %v2840
  %v3150 = vpop.f32.mrf.mxu0
  %v3151 = vadd.f32 %v3116, %v3150
  %3152 = vdwg.mxu0
  %v3153 = vld [vmem:[#allocation3 + $0x10] sm:$0xff]
  %v3154 = vld [vmem:[#allocation3 + $0x18] sm:$0xff]
  %v3155 = vld [vmem:[#allocation3 + $0x20] sm:$0xff]
  %v3156 = vld [vmem:[#allocation3 + $0x28] sm:$0xff]
  %v3157 = vld [vmem:[#allocation3 + $0x30] sm:$0xff]
  %v3158 = vld [vmem:[#allocation3 + $0x38] sm:$0x3f]
  %v3159 = vld [vmem:[#allocation3 + $0x11] sm:$0xff]
  %v3160 = vld [vmem:[#allocation3 + $0x19] sm:$0xff]
  %v3161 = vld [vmem:[#allocation3 + $0x21] sm:$0xff]
  %v3162 = vld [vmem:[#allocation3 + $0x29] sm:$0xff]
  %v3163 = vld [vmem:[#allocation3 + $0x31] sm:$0xff]
  %v3164 = vld [vmem:[#allocation3 + $0x39] sm:$0x3f]
  %v3165 = vld [vmem:[#allocation3 + $0x12] sm:$0xff]
  %v3166 = vld [vmem:[#allocation3 + $0x1a] sm:$0xff]
  %v3167 = vld [vmem:[#allocation3 + $0x22] sm:$0xff]
  %v3168 = vld [vmem:[#allocation3 + $0x2a] sm:$0xff]
  %v3169 = vld [vmem:[#allocation3 + $0x32] sm:$0xff]
  %v3170 = vld [vmem:[#allocation3 + $0x3a] sm:$0x3f]
  %v3171 = vld [vmem:[%s945] sm:$0xff]
  %v3172 = vld [vmem:[%s945 + $0x8] sm:$0xff]
  %v3173 = vld [vmem:[%s945 + $0x10] sm:$0xff]
  %v3174 = vld [vmem:[%s945 + $0x18] sm:$0xff]
  %v3175 = vld [vmem:[%s945 + $0x20] sm:$0xff]
  %v3176 = vld [vmem:[%s945 + $0x28] sm:$0xff]
  %v3177 = vld [vmem:[%s945 + $0x30] sm:$0xff]
  %v3178 = vld [vmem:[%s945 + $0x38] sm:$0xff]
  %v3179 = vld [vmem:[%s945 + $0x40] sm:$0xff]
  %v3180 = vld [vmem:[%s945 + $0x48] sm:$0xff]
  %v3181 = vld [vmem:[%s945 + $0x50] sm:$0xff]
  %v3182 = vld [vmem:[%s945 + $0x58] sm:$0xff]
  %v3183 = vld [vmem:[%s945 + $0x60] sm:$0xff]
  %v3184 = vld [vmem:[%s945 + $0x68] sm:$0xff]
  %v3185 = vld [vmem:[%s945 + $0x70] sm:$0xff]
  %v3186 = vld [vmem:[%s945 + $0x78] sm:$0xff]
  %v3187 = vld [vmem:[%s945 + $0x80] sm:$0xff]
  %v3188 = vld [vmem:[%s945 + $0x88] sm:$0xff]
  %v3189 = vld [vmem:[%s945 + $0x90] sm:$0xff]
  %v3190 = vld [vmem:[%s945 + $0x98] sm:$0xff]
  %v3191 = vld [vmem:[%s945 + $0xa0] sm:$0xff]
  %v3192 = vld [vmem:[%s945 + $0xa8] sm:$0xff]
  %v3193 = vld [vmem:[%s945 + $0xb0] sm:$0xff]
  %v3194 = vld [vmem:[%s945 + $0xb8] sm:$0xff]
  %v3195 = vld [vmem:[%s945 + $0xc0] sm:$0xff]
  %v3196 = vld [vmem:[%s945 + $0xc8] sm:$0xff]
  %v3197 = vld [vmem:[%s945 + $0xd0] sm:$0xff]
  %v3198 = vld [vmem:[%s945 + $0xd8] sm:$0xff]
  %v3199 = vld [vmem:[%s945 + $0xe0] sm:$0xff]
  %v3200 = vld [vmem:[%s945 + $0xe8] sm:$0xff]
  %v3201 = vld [vmem:[%s945 + $0xf0] sm:$0xff]
  %v3202 = vld [vmem:[%s945 + $0xf8] sm:$0xff]
  %v3203 = vld [vmem:[%s945 + $0x100] sm:$0xff]
  %v3204 = vld [vmem:[%s945 + $0x108] sm:$0xff]
  %v3205 = vld [vmem:[%s945 + $0x110] sm:$0xff]
  %v3206 = vld [vmem:[%s945 + $0x118] sm:$0xff]
  %v3207 = vld [vmem:[%s945 + $0x120] sm:$0xff]
  %v3208 = vld [vmem:[%s945 + $0x128] sm:$0xff]
  %v3209 = vld [vmem:[%s945 + $0x130] sm:$0xff]
  %v3210 = vld [vmem:[%s945 + $0x138] sm:$0xff]
  %v3211 = vld [vmem:[%s945 + $0x140] sm:$0xff]
  %v3212 = vld [vmem:[%s945 + $0x148] sm:$0xff]
  %v3213 = vld [vmem:[%s945 + $0x150] sm:$0xff]
  %v3214 = vld [vmem:[%s945 + $0x158] sm:$0xff]
  %v3215 = vld [vmem:[%s945 + $0x160] sm:$0xff]
  %v3216 = vld [vmem:[%s945 + $0x168] sm:$0xff]
  %v3217 = vld [vmem:[%s945 + $0x170] sm:$0xff]
  %v3218 = vld [vmem:[%s945 + $0x178] sm:$0xff]
  %3219 = vmatpush.msra.mxu0 %v3186
  %3220 = vmatpush.msra.mxu0 %v3185
  %3221 = vmatpush.msra.mxu0 %v3184
  %3222 = vmatpush.msra.mxu0 %v3183
  %3223 = vmatpush.msra.mxu0 %v3182
  %3224 = vmatpush.msra.mxu0 %v3181
  %3225 = vmatpush.msra.mxu0 %v3180
  %3226 = vmatpush.msra.mxu0 %v3179
  %3227 = vmatpush.msra.mxu0 %v3178
  %3228 = vmatpush.msra.mxu0 %v3177
  %3229 = vmatpush.msra.mxu0 %v3176
  %3230 = vmatpush.msra.mxu0 %v3175
  %3231 = vmatpush.msra.mxu0 %v3174
  %3232 = vmatpush.msra.mxu0 %v3173
  %3233 = vmatpush.msra.mxu0 %v3172
  %3234 = vmatpush.msra.mxu0 %v3171
  %3235 = vmatmul.f32.gmra.mxu0 %v3153
  %v3236 = vpop.f32.mrf.mxu0
  %v3237 = vadd.f32 0.0, %v3236
  %3238 = vmatmul.f32.gmra.mxu0 %v3154
  %v3239 = vpop.f32.mrf.mxu0
  %v3240 = vadd.f32 0.0, %v3239
  %3241 = vmatmul.f32.gmra.mxu0 %v3155
  %v3242 = vpop.f32.mrf.mxu0
  %v3243 = vadd.f32 0.0, %v3242
  %3244 = vmatmul.f32.gmra.mxu0 %v3156
  %v3245 = vpop.f32.mrf.mxu0
  %v3246 = vadd.f32 0.0, %v3245
  %3247 = vmatmul.f32.gmra.mxu0 %v3157
  %v3248 = vpop.f32.mrf.mxu0
  %v3249 = vadd.f32 0.0, %v3248
  %3250 = vmatmul.f32.gmra.mxu0 %v3158
  %v3251 = vpop.f32.mrf.mxu0
  %v3252 = vadd.f32 0.0, %v3251
  %3253 = vdwg.mxu0
  %3254 = vmatpush.msra.mxu0 %v3202
  %3255 = vmatpush.msra.mxu0 %v3201
  %3256 = vmatpush.msra.mxu0 %v3200
  %3257 = vmatpush.msra.mxu0 %v3199
  %3258 = vmatpush.msra.mxu0 %v3198
  %3259 = vmatpush.msra.mxu0 %v3197
  %3260 = vmatpush.msra.mxu0 %v3196
  %3261 = vmatpush.msra.mxu0 %v3195
  %3262 = vmatpush.msra.mxu0 %v3194
  %3263 = vmatpush.msra.mxu0 %v3193
  %3264 = vmatpush.msra.mxu0 %v3192
  %3265 = vmatpush.msra.mxu0 %v3191
  %3266 = vmatpush.msra.mxu0 %v3190
  %3267 = vmatpush.msra.mxu0 %v3189
  %3268 = vmatpush.msra.mxu0 %v3188
  %3269 = vmatpush.msra.mxu0 %v3187
  %3270 = vmatmul.f32.gmra.mxu0 %v3159
  %v3271 = vpop.f32.mrf.mxu0
  %v3272 = vadd.f32 %v3237, %v3271
  %3273 = vmatmul.f32.gmra.mxu0 %v3160
  %v3274 = vpop.f32.mrf.mxu0
  %v3275 = vadd.f32 %v3240, %v3274
  %3276 = vmatmul.f32.gmra.mxu0 %v3161
  %v3277 = vpop.f32.mrf.mxu0
  %v3278 = vadd.f32 %v3243, %v3277
  %3279 = vmatmul.f32.gmra.mxu0 %v3162
  %v3280 = vpop.f32.mrf.mxu0
  %v3281 = vadd.f32 %v3246, %v3280
  %3282 = vmatmul.f32.gmra.mxu0 %v3163
  %v3283 = vpop.f32.mrf.mxu0
  %v3284 = vadd.f32 %v3249, %v3283
  %3285 = vmatmul.f32.gmra.mxu0 %v3164
  %v3286 = vpop.f32.mrf.mxu0
  %v3287 = vadd.f32 %v3252, %v3286
  %3288 = vdwg.mxu0
  %3289 = vmatpush.msra.mxu0 %v3218
  %3290 = vmatpush.msra.mxu0 %v3217
  %3291 = vmatpush.msra.mxu0 %v3216
  %3292 = vmatpush.msra.mxu0 %v3215
  %3293 = vmatpush.msra.mxu0 %v3214
  %3294 = vmatpush.msra.mxu0 %v3213
  %3295 = vmatpush.msra.mxu0 %v3212
  %3296 = vmatpush.msra.mxu0 %v3211
  %3297 = vmatpush.msra.mxu0 %v3210
  %3298 = vmatpush.msra.mxu0 %v3209
  %3299 = vmatpush.msra.mxu0 %v3208
  %3300 = vmatpush.msra.mxu0 %v3207
  %3301 = vmatpush.msra.mxu0 %v3206
  %3302 = vmatpush.msra.mxu0 %v3205
  %3303 = vmatpush.msra.mxu0 %v3204
  %3304 = vmatpush.msra.mxu0 %v3203
  %3305 = vmatmul.f32.gmra.mxu0 %v3165
  %v3306 = vpop.f32.mrf.mxu0
  %v3307 = vadd.f32 %v3272, %v3306
  %3308 = vmatmul.f32.gmra.mxu0 %v3166
  %v3309 = vpop.f32.mrf.mxu0
  %v3310 = vadd.f32 %v3275, %v3309
  %3311 = vmatmul.f32.gmra.mxu0 %v3167
  %v3312 = vpop.f32.mrf.mxu0
  %v3313 = vadd.f32 %v3278, %v3312
  %3314 = vmatmul.f32.gmra.mxu0 %v3168
  %v3315 = vpop.f32.mrf.mxu0
  %v3316 = vadd.f32 %v3281, %v3315
  %3317 = vmatmul.f32.gmra.mxu0 %v3169
  %v3318 = vpop.f32.mrf.mxu0
  %v3319 = vadd.f32 %v3284, %v3318
  %3320 = vmatmul.f32.gmra.mxu0 %v3170
  %v3321 = vpop.f32.mrf.mxu0
  %v3322 = vadd.f32 %v3287, %v3321
  %3323 = vdwg.mxu0
  %v3324 = vadd.f32 %v3136, %v3307
  %v3325 = vadd.f32 %v3139, %v3310
  %v3326 = vadd.f32 %v3142, %v3313
  %v3327 = vadd.f32 %v3145, %v3316
  %v3328 = vadd.f32 %v3148, %v3319
  %v3329 = vadd.f32 %v3151, %v3322
  %3330 = vst [vmem:[#allocation2] sm:$0xff] %v3324
  %3331 = vst [vmem:[#allocation2 + $0x8] sm:$0xff] %v3325
  %3332 = vst [vmem:[#allocation2 + $0x10] sm:$0xff] %v3326
  %3333 = vst [vmem:[#allocation2 + $0x18] sm:$0xff] %v3327
  %3334 = vst [vmem:[#allocation2 + $0x20] sm:$0xff] %v3328
  %3335 = vst [vmem:[#allocation2 + $0x28] sm:$0x3f] %v3329
  %v3336 = vld [vmem:[#allocation2] ss:$2 sm:$0x7]
  %v3337 = vld [vmem:[%s297] ss:$2 sm:$0x7]
  %v3338 = vld [vmem:[%s1113] ss:$2 sm:$0x7]
  %v3339 = vld [vmem:[%s1115] ss:$2 sm:$0x7]
  %v3340 = vmax.f32 %v3336, %v3337
  %v3341 = vmax.f32 %v3338, %v3339
  %v3342 = vmax.f32 %v3340, %v3341
  %v3343 = vld [vmem:[%s1120] ss:$2 sm:$0x7]
  %v3344 = vld [vmem:[%s299] ss:$2 sm:$0x7]
  %v3345 = vld [vmem:[%s1123] ss:$2 sm:$0x7]
  %v3346 = vld [vmem:[%s1125] ss:$2 sm:$0x7]
  %v3347 = vmax.f32 %v3343, %v3344
  %v3348 = vmax.f32 %v3345, %v3346
  %v3349 = vmax.f32 %v3347, %v3348
  %v3350 = vld [vmem:[%s1130] ss:$2 sm:$0x7]
  %v3351 = vld [vmem:[%s301] ss:$2 sm:$0x7]
  %v3352 = vld [vmem:[%s1133] ss:$2 sm:$0x7]
  %v3353 = vld [vmem:[%s1135] ss:$2 sm:$0x7]
  %v3354 = vmax.f32 %v3350, %v3351
  %v3355 = vmax.f32 %v3352, %v3353
  %v3356 = vmax.f32 %v3354, %v3355
  %v3358 = vrot.slane %v3349, 5
  %v3361 = vrot.slane %v3356, 2
  %v3363 = vsel %vm1146, %v3342, %v3358
  %v3364 = vsel %vm1148, %v3363, %v3361
  %v3365 = vadd.f32 %v3364, %v34
  %v3366 = vadd.f32 %v3361, %v34
  %v3367 = vmax.f32 %v3365, 0.0
  %v3368 = vmax.f32 %v3366, 0.0
  %v3369 = vmul.f32 %v3367, %v36
  %v3370 = vmul.f32 %v3368, %v37
  %v3371 = vsel %vm1156, %v3370, 0.0
  %v3372 = vadd.f32 %v3369, %v3371
  %v3373 = vrot.slane %v3372, 4
  %v3374 = vadd.f32 %v3372, %v3373
  %v3375 = vrot.slane %v3374, 2
  %v3376 = vadd.f32 %v3374, %v3375
  %v3377 = vrot.slane %v3376, 1
  %v3378 = vadd.f32 %v3376, %v3377
  %3379 = vst [vmem:[#allocation4 + $0x2] sm:$0x1] %v3378
  %v3380 = vld [vmem:[%s0 + $0x600] sm:$0xff]
  %v3381 = vld [vmem:[%s0 + $0x608] sm:$0xff]
  %v3382 = vld [vmem:[%s0 + $0x610] sm:$0xff]
  %v3383 = vld [vmem:[%s0 + $0x618] sm:$0xff]
  %v3384 = vld [vmem:[%s0 + $0x620] sm:$0xff]
  %v3385 = vld [vmem:[%s0 + $0x628] sm:$0xff]
  %v3386 = vld [vmem:[%s0 + $0x630] sm:$0xff]
  %v3387 = vld [vmem:[%s0 + $0x638] sm:$0xff]
  %v3388 = vld [vmem:[%s0 + $0x640] sm:$0xff]
  %v3389 = vld [vmem:[%s0 + $0x648] sm:$0xff]
  %v3390 = vld [vmem:[%s0 + $0x650] sm:$0xff]
  %v3391 = vld [vmem:[%s0 + $0x658] sm:$0xff]
  %v3392 = vld [vmem:[%s0 + $0x660] sm:$0xff]
  %v3393 = vld [vmem:[%s0 + $0x668] sm:$0xff]
  %v3394 = vld [vmem:[%s0 + $0x670] sm:$0xff]
  %v3395 = vld [vmem:[%s0 + $0x678] sm:$0xff]
  %v3396 = vld [vmem:[%s0 + $0x680] sm:$0xff]
  %v3397 = vld [vmem:[%s0 + $0x688] sm:$0xff]
  %v3398 = vld [vmem:[%s0 + $0x690] sm:$0xff]
  %v3399 = vld [vmem:[%s0 + $0x698] sm:$0xff]
  %v3400 = vld [vmem:[%s0 + $0x6a0] sm:$0xff]
  %v3401 = vld [vmem:[%s0 + $0x6a8] sm:$0xff]
  %v3402 = vld [vmem:[%s0 + $0x6b0] sm:$0xff]
  %v3403 = vld [vmem:[%s0 + $0x6b8] sm:$0xff]
  %v3404 = vld [vmem:[%s0 + $0x6c0] sm:$0xff]
  %v3405 = vld [vmem:[%s0 + $0x6c8] sm:$0xff]
  %v3406 = vld [vmem:[%s0 + $0x6d0] sm:$0xff]
  %v3407 = vld [vmem:[%s0 + $0x6d8] sm:$0xff]
  %v3408 = vld [vmem:[%s0 + $0x6e0] sm:$0xff]
  %v3409 = vld [vmem:[%s0 + $0x6e8] sm:$0xff]
  %v3410 = vld [vmem:[%s0 + $0x6f0] sm:$0xff]
  %v3411 = vld [vmem:[%s0 + $0x6f8] sm:$0xff]
  %v3412 = vld [vmem:[%s1] sm:$0xff]
  %v3413 = vld [vmem:[%s1 + $0x8] sm:$0xff]
  %v3414 = vld [vmem:[%s1 + $0x10] sm:$0xff]
  %v3415 = vld [vmem:[%s1 + $0x18] sm:$0xff]
  %v3416 = vld [vmem:[%s1 + $0x20] sm:$0xff]
  %v3417 = vld [vmem:[%s1 + $0x28] sm:$0xff]
  %v3418 = vld [vmem:[%s1 + $0x30] sm:$0xff]
  %v3419 = vld [vmem:[%s1 + $0x38] sm:$0xff]
  %v3420 = vld [vmem:[%s1 + $0x40] sm:$0xff]
  %v3421 = vld [vmem:[%s1 + $0x48] sm:$0xff]
  %v3422 = vld [vmem:[%s1 + $0x50] sm:$0xff]
  %v3423 = vld [vmem:[%s1 + $0x58] sm:$0xff]
  %v3424 = vld [vmem:[%s1 + $0x60] sm:$0xff]
  %v3425 = vld [vmem:[%s1 + $0x68] sm:$0xff]
  %v3426 = vld [vmem:[%s1 + $0x70] sm:$0xff]
  %v3427 = vld [vmem:[%s1 + $0x78] sm:$0xff]
  %v3428 = vld [vmem:[%s1 + $0x80] sm:$0xff]
  %v3429 = vld [vmem:[%s1 + $0x88] sm:$0xff]
  %v3430 = vld [vmem:[%s1 + $0x90] sm:$0xff]
  %v3431 = vld [vmem:[%s1 + $0x98] sm:$0xff]
  %v3432 = vld [vmem:[%s1 + $0xa0] sm:$0xff]
  %v3433 = vld [vmem:[%s1 + $0xa8] sm:$0xff]
  %v3434 = vld [vmem:[%s1 + $0xb0] sm:$0xff]
  %v3435 = vld [vmem:[%s1 + $0xb8] sm:$0xff]
  %v3436 = vld [vmem:[%s1 + $0xc0] sm:$0xff]
  %v3438 = vsel %vm95, %v3381, 0
  %v3441 = vsel %vm95, %v3383, 0
  %v3444 = vsel %vm95, %v3385, 0
  %v3447 = vsel %vm95, %v3387, 0
  %v3450 = vsel %vm95, %v3389, 0
  %v3453 = vsel %vm95, %v3391, 0
  %v3456 = vsel %vm95, %v3393, 0
  %v3459 = vsel %vm95, %v3395, 0
  %v3462 = vsel %vm95, %v3397, 0
  %v3465 = vsel %vm95, %v3399, 0
  %v3468 = vsel %vm95, %v3401, 0
  %v3471 = vsel %vm95, %v3403, 0
  %v3474 = vsel %vm95, %v3405, 0
  %v3477 = vsel %vm95, %v3407, 0
  %v3480 = vsel %vm95, %v3409, 0
  %v3483 = vsel %vm95, %v3411, 0
  %3485 = vmatpush.msra.mxu0 %v3427
  %3486 = vmatpush.msra.mxu0 %v3426
  %3487 = vmatpush.msra.mxu0 %v3425
  %3488 = vmatpush.msra.mxu0 %v3424
  %3489 = vmatpush.msra.mxu0 %v3423
  %3490 = vmatpush.msra.mxu0 %v3422
  %3491 = vmatpush.msra.mxu0 %v3421
  %3492 = vmatpush.msra.mxu0 %v3420
  %3493 = vmatpush.msra.mxu0 %v3419
  %3494 = vmatpush.msra.mxu0 %v3418
  %3495 = vmatpush.msra.mxu0 %v3417
  %3496 = vmatpush.msra.mxu0 %v3416
  %3497 = vmatpush.msra.mxu0 %v3415
  %3498 = vmatpush.msra.mxu0 %v3414
  %3499 = vmatpush.msra.mxu0 %v3413
  %3500 = vmatpush.msra.mxu0 %v3412
  %3501 = vmatmul.f32.gmra.mxu0 %v3380
  %v3502 = vpop.f32.mrf.mxu0
  %v3503 = vadd.f32 0.0, %v3502
  %3504 = vmatmul.f32.gmra.mxu0 %v3382
  %v3505 = vpop.f32.mrf.mxu0
  %v3506 = vadd.f32 0.0, %v3505
  %3507 = vmatmul.f32.gmra.mxu0 %v3384
  %v3508 = vpop.f32.mrf.mxu0
  %v3509 = vadd.f32 0.0, %v3508
  %3510 = vmatmul.f32.gmra.mxu0 %v3386
  %v3511 = vpop.f32.mrf.mxu0
  %v3512 = vadd.f32 0.0, %v3511
  %3513 = vmatmul.f32.gmra.mxu0 %v3388
  %v3514 = vpop.f32.mrf.mxu0
  %v3515 = vadd.f32 0.0, %v3514
  %3516 = vmatmul.f32.gmra.mxu0 %v3390
  %v3517 = vpop.f32.mrf.mxu0
  %v3518 = vadd.f32 0.0, %v3517
  %3519 = vmatmul.f32.gmra.mxu0 %v3392
  %v3520 = vpop.f32.mrf.mxu0
  %v3521 = vadd.f32 0.0, %v3520
  %3522 = vmatmul.f32.gmra.mxu0 %v3394
  %v3523 = vpop.f32.mrf.mxu0
  %v3524 = vadd.f32 0.0, %v3523
  %3525 = vmatmul.f32.gmra.mxu0 %v3396
  %v3526 = vpop.f32.mrf.mxu0
  %v3527 = vadd.f32 0.0, %v3526
  %3528 = vmatmul.f32.gmra.mxu0 %v3398
  %v3529 = vpop.f32.mrf.mxu0
  %v3530 = vadd.f32 0.0, %v3529
  %3531 = vmatmul.f32.gmra.mxu0 %v3400
  %v3532 = vpop.f32.mrf.mxu0
  %v3533 = vadd.f32 0.0, %v3532
  %3534 = vmatmul.f32.gmra.mxu0 %v3402
  %v3535 = vpop.f32.mrf.mxu0
  %v3536 = vadd.f32 0.0, %v3535
  %3537 = vmatmul.f32.gmra.mxu0 %v3404
  %v3538 = vpop.f32.mrf.mxu0
  %v3539 = vadd.f32 0.0, %v3538
  %3540 = vmatmul.f32.gmra.mxu0 %v3406
  %v3541 = vpop.f32.mrf.mxu0
  %v3542 = vadd.f32 0.0, %v3541
  %3543 = vmatmul.f32.gmra.mxu0 %v3408
  %v3544 = vpop.f32.mrf.mxu0
  %v3545 = vadd.f32 0.0, %v3544
  %3546 = vmatmul.f32.gmra.mxu0 %v3410
  %v3547 = vpop.f32.mrf.mxu0
  %v3548 = vadd.f32 0.0, %v3547
  %3549 = vdwg.mxu0
  %3550 = vmatpush.msra.mxu0 0.0
  %3551 = vmatpush.msra.mxu0 0.0
  %3552 = vmatpush.msra.mxu0 0.0
  %3553 = vmatpush.msra.mxu0 0.0
  %3554 = vmatpush.msra.mxu0 0.0
  %3555 = vmatpush.msra.mxu0 0.0
  %3556 = vmatpush.msra.mxu0 0.0
  %3557 = vmatpush.msra.mxu0 %v3436
  %3558 = vmatpush.msra.mxu0 %v3435
  %3559 = vmatpush.msra.mxu0 %v3434
  %3560 = vmatpush.msra.mxu0 %v3433
  %3561 = vmatpush.msra.mxu0 %v3432
  %3562 = vmatpush.msra.mxu0 %v3431
  %3563 = vmatpush.msra.mxu0 %v3430
  %3564 = vmatpush.msra.mxu0 %v3429
  %3565 = vmatpush.msra.mxu0 %v3428
  %3566 = vmatmul.f32.gmra.mxu0 %v3438
  %v3567 = vpop.f32.mrf.mxu0
  %v3568 = vadd.f32 %v3503, %v3567
  %3569 = vmatmul.f32.gmra.mxu0 %v3441
  %v3570 = vpop.f32.mrf.mxu0
  %v3571 = vadd.f32 %v3506, %v3570
  %3572 = vmatmul.f32.gmra.mxu0 %v3444
  %v3573 = vpop.f32.mrf.mxu0
  %v3574 = vadd.f32 %v3509, %v3573
  %3575 = vmatmul.f32.gmra.mxu0 %v3447
  %v3576 = vpop.f32.mrf.mxu0
  %v3577 = vadd.f32 %v3512, %v3576
  %3578 = vmatmul.f32.gmra.mxu0 %v3450
  %v3579 = vpop.f32.mrf.mxu0
  %v3580 = vadd.f32 %v3515, %v3579
  %3581 = vmatmul.f32.gmra.mxu0 %v3453
  %v3582 = vpop.f32.mrf.mxu0
  %v3583 = vadd.f32 %v3518, %v3582
  %3584 = vmatmul.f32.gmra.mxu0 %v3456
  %v3585 = vpop.f32.mrf.mxu0
  %v3586 = vadd.f32 %v3521, %v3585
  %3587 = vmatmul.f32.gmra.mxu0 %v3459
  %v3588 = vpop.f32.mrf.mxu0
  %v3589 = vadd.f32 %v3524, %v3588
  %3590 = vmatmul.f32.gmra.mxu0 %v3462
  %v3591 = vpop.f32.mrf.mxu0
  %v3592 = vadd.f32 %v3527, %v3591
  %3593 = vmatmul.f32.gmra.mxu0 %v3465
  %v3594 = vpop.f32.mrf.mxu0
  %v3595 = vadd.f32 %v3530, %v3594
  %3596 = vmatmul.f32.gmra.mxu0 %v3468
  %v3597 = vpop.f32.mrf.mxu0
  %v3598 = vadd.f32 %v3533, %v3597
  %3599 = vmatmul.f32.gmra.mxu0 %v3471
  %v3600 = vpop.f32.mrf.mxu0
  %v3601 = vadd.f32 %v3536, %v3600
  %3602 = vmatmul.f32.gmra.mxu0 %v3474
  %v3603 = vpop.f32.mrf.mxu0
  %v3604 = vadd.f32 %v3539, %v3603
  %3605 = vmatmul.f32.gmra.mxu0 %v3477
  %v3606 = vpop.f32.mrf.mxu0
  %v3607 = vadd.f32 %v3542, %v3606
  %3608 = vmatmul.f32.gmra.mxu0 %v3480
  %v3609 = vpop.f32.mrf.mxu0
  %v3610 = vadd.f32 %v3545, %v3609
  %3611 = vmatmul.f32.gmra.mxu0 %v3483
  %v3612 = vpop.f32.mrf.mxu0
  %v3613 = vadd.f32 %v3548, %v3612
  %3614 = vdwg.mxu0
  %v3615 = vmax.f32 %v3568, %v3574
  %v3616 = vmax.f32 %v3571, %v3577
  %v3617 = vmax.f32 %v3580, %v3586
  %v3618 = vmax.f32 %v3583, %v3589
  %v3619 = vmax.f32 %v3592, %v3598
  %v3620 = vmax.f32 %v3595, %v3601
  %v3621 = vmax.f32 %v3604, %v3610
  %v3622 = vmax.f32 %v3607, %v3613
  %3623 = vst [vmem:[#allocation2] sm:$0xff] %v3615
  %3624 = vst [vmem:[#allocation2 + $0x8] sm:$0xff] %v3616
  %3625 = vst [vmem:[#allocation2 + $0x10] sm:$0xff] %v3617
  %3626 = vst [vmem:[#allocation2 + $0x18] sm:$0xff] %v3618
  %3627 = vst [vmem:[#allocation2 + $0x20] sm:$0xff] %v3619
  %3628 = vst [vmem:[#allocation2 + $0x28] sm:$0xff] %v3620
  %3629 = vst [vmem:[#allocation2 + $0x30] sm:$0xff] %v3621
  %3630 = vst [vmem:[#allocation2 + $0x38] sm:$0xff] %v3622
  %v3631 = vld [vmem:[#allocation2] ss:$2 sm:$0xff]
  %v3632 = vld [vmem:[%s291] ss:$2 sm:$0xff]
  %v3633 = vld [vmem:[%s293] ss:$2 sm:$0xff]
  %v3634 = vld [vmem:[%s295] ss:$2 sm:$0xff]
  %v3635 = vld [vmem:[%s297] ss:$2 sm:$0xff]
  %v3636 = vld [vmem:[%s299] ss:$2 sm:$0xff]
  %v3637 = vld [vmem:[%s301] ss:$2 sm:$0xff]
  %v3638 = vld [vmem:[%s303] ss:$2 sm:$0xff]
  %v3639 = vmax.f32 %v3631, %v3635
  %v3640 = vmax.f32 %v3632, %v3636
  %v3641 = vmax.f32 %v3633, %v3637
  %v3642 = vmax.f32 %v3634, %v3638
  %v3643 = vadd.f32 %v3639, %v30
  %v3644 = vadd.f32 %v3640, %v30
  %v3645 = vadd.f32 %v3641, %v30
  %v3646 = vadd.f32 %v3642, %v30
  %v3647 = vmax.f32 %v3643, 0.0
  %v3648 = vmax.f32 %v3644, 0.0
  %v3649 = vmax.f32 %v3645, 0.0
  %v3650 = vmax.f32 %v3646, 0.0
  %3651 = vst [vmem:[#allocation3] sm:$0xff] %v3647
  %3652 = vst [vmem:[#allocation3 + $0x8] sm:$0xff] %v3648
  %3653 = vst [vmem:[#allocation3 + $0x10] sm:$0xff] %v3649
  %3654 = vst [vmem:[#allocation3 + $0x18] sm:$0xff] %v3650
  %v3655 = vld [vmem:[%s0 + $0x700] sm:$0xff]
  %v3656 = vld [vmem:[%s0 + $0x708] sm:$0xff]
  %v3657 = vld [vmem:[%s0 + $0x710] sm:$0xff]
  %v3658 = vld [vmem:[%s0 + $0x718] sm:$0xff]
  %v3659 = vld [vmem:[%s0 + $0x720] sm:$0xff]
  %v3660 = vld [vmem:[%s0 + $0x728] sm:$0xff]
  %v3661 = vld [vmem:[%s0 + $0x730] sm:$0xff]
  %v3662 = vld [vmem:[%s0 + $0x738] sm:$0xff]
  %v3663 = vld [vmem:[%s0 + $0x740] sm:$0xff]
  %v3664 = vld [vmem:[%s0 + $0x748] sm:$0xff]
  %v3665 = vld [vmem:[%s0 + $0x750] sm:$0xff]
  %v3666 = vld [vmem:[%s0 + $0x758] sm:$0xff]
  %v3667 = vld [vmem:[%s0 + $0x760] sm:$0xff]
  %v3668 = vld [vmem:[%s0 + $0x768] sm:$0xff]
  %v3669 = vld [vmem:[%s0 + $0x770] sm:$0xff]
  %v3670 = vld [vmem:[%s0 + $0x778] sm:$0xff]
  %v3671 = vld [vmem:[%s0 + $0x780] sm:$0xff]
  %v3672 = vld [vmem:[%s0 + $0x788] sm:$0xff]
  %v3673 = vld [vmem:[%s0 + $0x790] sm:$0xff]
  %v3674 = vld [vmem:[%s0 + $0x798] sm:$0xff]
  %v3675 = vld [vmem:[%s0 + $0x7a0] sm:$0xff]
  %v3676 = vld [vmem:[%s0 + $0x7a8] sm:$0xff]
  %v3677 = vld [vmem:[%s0 + $0x7b0] sm:$0xff]
  %v3678 = vld [vmem:[%s0 + $0x7b8] sm:$0xff]
  %v3679 = vld [vmem:[%s0 + $0x7c0] sm:$0xff]
  %v3680 = vld [vmem:[%s0 + $0x7c8] sm:$0xff]
  %v3681 = vld [vmem:[%s0 + $0x7d0] sm:$0xff]
  %v3682 = vld [vmem:[%s0 + $0x7d8] sm:$0xff]
  %v3683 = vld [vmem:[%s0 + $0x7e0] sm:$0xff]
  %v3684 = vld [vmem:[%s0 + $0x7e8] sm:$0xff]
  %v3685 = vld [vmem:[%s0 + $0x7f0] sm:$0xff]
  %v3686 = vld [vmem:[%s0 + $0x7f8] sm:$0xff]
  %v3687 = vld [vmem:[%s1] sm:$0xff]
  %v3688 = vld [vmem:[%s1 + $0x8] sm:$0xff]
  %v3689 = vld [vmem:[%s1 + $0x10] sm:$0xff]
  %v3690 = vld [vmem:[%s1 + $0x18] sm:$0xff]
  %v3691 = vld [vmem:[%s1 + $0x20] sm:$0xff]
  %v3692 = vld [vmem:[%s1 + $0x28] sm:$0xff]
  %v3693 = vld [vmem:[%s1 + $0x30] sm:$0xff]
  %v3694 = vld [vmem:[%s1 + $0x38] sm:$0xff]
  %v3695 = vld [vmem:[%s1 + $0x40] sm:$0xff]
  %v3696 = vld [vmem:[%s1 + $0x48] sm:$0xff]
  %v3697 = vld [vmem:[%s1 + $0x50] sm:$0xff]
  %v3698 = vld [vmem:[%s1 + $0x58] sm:$0xff]
  %v3699 = vld [vmem:[%s1 + $0x60] sm:$0xff]
  %v3700 = vld [vmem:[%s1 + $0x68] sm:$0xff]
  %v3701 = vld [vmem:[%s1 + $0x70] sm:$0xff]
  %v3702 = vld [vmem:[%s1 + $0x78] sm:$0xff]
  %v3703 = vld [vmem:[%s1 + $0x80] sm:$0xff]
  %v3704 = vld [vmem:[%s1 + $0x88] sm:$0xff]
  %v3705 = vld [vmem:[%s1 + $0x90] sm:$0xff]
  %v3706 = vld [vmem:[%s1 + $0x98] sm:$0xff]
  %v3707 = vld [vmem:[%s1 + $0xa0] sm:$0xff]
  %v3708 = vld [vmem:[%s1 + $0xa8] sm:$0xff]
  %v3709 = vld [vmem:[%s1 + $0xb0] sm:$0xff]
  %v3710 = vld [vmem:[%s1 + $0xb8] sm:$0xff]
  %v3711 = vld [vmem:[%s1 + $0xc0] sm:$0xff]
  %v3713 = vsel %vm95, %v3656, 0
  %v3716 = vsel %vm95, %v3658, 0
  %v3719 = vsel %vm95, %v3660, 0
  %v3722 = vsel %vm95, %v3662, 0
  %v3725 = vsel %vm95, %v3664, 0
  %v3728 = vsel %vm95, %v3666, 0
  %v3731 = vsel %vm95, %v3668, 0
  %v3734 = vsel %vm95, %v3670, 0
  %v3737 = vsel %vm95, %v3672, 0
  %v3740 = vsel %vm95, %v3674, 0
  %v3743 = vsel %vm95, %v3676, 0
  %v3746 = vsel %vm95, %v3678, 0
  %v3749 = vsel %vm95, %v3680, 0
  %v3752 = vsel %vm95, %v3682, 0
  %v3755 = vsel %vm95, %v3684, 0
  %v3758 = vsel %vm95, %v3686, 0
  %3760 = vmatpush.msra.mxu0 %v3702
  %3761 = vmatpush.msra.mxu0 %v3701
  %3762 = vmatpush.msra.mxu0 %v3700
  %3763 = vmatpush.msra.mxu0 %v3699
  %3764 = vmatpush.msra.mxu0 %v3698
  %3765 = vmatpush.msra.mxu0 %v3697
  %3766 = vmatpush.msra.mxu0 %v3696
  %3767 = vmatpush.msra.mxu0 %v3695
  %3768 = vmatpush.msra.mxu0 %v3694
  %3769 = vmatpush.msra.mxu0 %v3693
  %3770 = vmatpush.msra.mxu0 %v3692
  %3771 = vmatpush.msra.mxu0 %v3691
  %3772 = vmatpush.msra.mxu0 %v3690
  %3773 = vmatpush.msra.mxu0 %v3689
  %3774 = vmatpush.msra.mxu0 %v3688
  %3775 = vmatpush.msra.mxu0 %v3687
  %3776 = vmatmul.f32.gmra.mxu0 %v3655
  %v3777 = vpop.f32.mrf.mxu0
  %v3778 = vadd.f32 0.0, %v3777
  %3779 = vmatmul.f32.gmra.mxu0 %v3657
  %v3780 = vpop.f32.mrf.mxu0
  %v3781 = vadd.f32 0.0, %v3780
  %3782 = vmatmul.f32.gmra.mxu0 %v3659
  %v3783 = vpop.f32.mrf.mxu0
  %v3784 = vadd.f32 0.0, %v3783
  %3785 = vmatmul.f32.gmra.mxu0 %v3661
  %v3786 = vpop.f32.mrf.mxu0
  %v3787 = vadd.f32 0.0, %v3786
  %3788 = vmatmul.f32.gmra.mxu0 %v3663
  %v3789 = vpop.f32.mrf.mxu0
  %v3790 = vadd.f32 0.0, %v3789
  %3791 = vmatmul.f32.gmra.mxu0 %v3665
  %v3792 = vpop.f32.mrf.mxu0
  %v3793 = vadd.f32 0.0, %v3792
  %3794 = vmatmul.f32.gmra.mxu0 %v3667
  %v3795 = vpop.f32.mrf.mxu0
  %v3796 = vadd.f32 0.0, %v3795
  %3797 = vmatmul.f32.gmra.mxu0 %v3669
  %v3798 = vpop.f32.mrf.mxu0
  %v3799 = vadd.f32 0.0, %v3798
  %3800 = vmatmul.f32.gmra.mxu0 %v3671
  %v3801 = vpop.f32.mrf.mxu0
  %v3802 = vadd.f32 0.0, %v3801
  %3803 = vmatmul.f32.gmra.mxu0 %v3673
  %v3804 = vpop.f32.mrf.mxu0
  %v3805 = vadd.f32 0.0, %v3804
  %3806 = vmatmul.f32.gmra.mxu0 %v3675
  %v3807 = vpop.f32.mrf.mxu0
  %v3808 = vadd.f32 0.0, %v3807
  %3809 = vmatmul.f32.gmra.mxu0 %v3677
  %v3810 = vpop.f32.mrf.mxu0
  %v3811 = vadd.f32 0.0, %v3810
  %3812 = vmatmul.f32.gmra.mxu0 %v3679
  %v3813 = vpop.f32.mrf.mxu0
  %v3814 = vadd.f32 0.0, %v3813
  %3815 = vmatmul.f32.gmra.mxu0 %v3681
  %v3816 = vpop.f32.mrf.mxu0
  %v3817 = vadd.f32 0.0, %v3816
  %3818 = vmatmul.f32.gmra.mxu0 %v3683
  %v3819 = vpop.f32.mrf.mxu0
  %v3820 = vadd.f32 0.0, %v3819
  %3821 = vmatmul.f32.gmra.mxu0 %v3685
  %v3822 = vpop.f32.mrf.mxu0
  %v3823 = vadd.f32 0.0, %v3822
  %3824 = vdwg.mxu0
  %3825 = vmatpush.msra.mxu0 0.0
  %3826 = vmatpush.msra.mxu0 0.0
  %3827 = vmatpush.msra.mxu0 0.0
  %3828 = vmatpush.msra.mxu0 0.0
  %3829 = vmatpush.msra.mxu0 0.0
  %3830 = vmatpush.msra.mxu0 0.0
  %3831 = vmatpush.msra.mxu0 0.0
  %3832 = vmatpush.msra.mxu0 %v3711
  %3833 = vmatpush.msra.mxu0 %v3710
  %3834 = vmatpush.msra.mxu0 %v3709
  %3835 = vmatpush.msra.mxu0 %v3708
  %3836 = vmatpush.msra.mxu0 %v3707
  %3837 = vmatpush.msra.mxu0 %v3706
  %3838 = vmatpush.msra.mxu0 %v3705
  %3839 = vmatpush.msra.mxu0 %v3704
  %3840 = vmatpush.msra.mxu0 %v3703
  %3841 = vmatmul.f32.gmra.mxu0 %v3713
  %v3842 = vpop.f32.mrf.mxu0
  %v3843 = vadd.f32 %v3778, %v3842
  %3844 = vmatmul.f32.gmra.mxu0 %v3716
  %v3845 = vpop.f32.mrf.mxu0
  %v3846 = vadd.f32 %v3781, %v3845
  %3847 = vmatmul.f32.gmra.mxu0 %v3719
  %v3848 = vpop.f32.mrf.mxu0
  %v3849 = vadd.f32 %v3784, %v3848
  %3850 = vmatmul.f32.gmra.mxu0 %v3722
  %v3851 = vpop.f32.mrf.mxu0
  %v3852 = vadd.f32 %v3787, %v3851
  %3853 = vmatmul.f32.gmra.mxu0 %v3725
  %v3854 = vpop.f32.mrf.mxu0
  %v3855 = vadd.f32 %v3790, %v3854
  %3856 = vmatmul.f32.gmra.mxu0 %v3728
  %v3857 = vpop.f32.mrf.mxu0
  %v3858 = vadd.f32 %v3793, %v3857
  %3859 = vmatmul.f32.gmra.mxu0 %v3731
  %v3860 = vpop.f32.mrf.mxu0
  %v3861 = vadd.f32 %v3796, %v3860
  %3862 = vmatmul.f32.gmra.mxu0 %v3734
  %v3863 = vpop.f32.mrf.mxu0
  %v3864 = vadd.f32 %v3799, %v3863
  %3865 = vmatmul.f32.gmra.mxu0 %v3737
  %v3866 = vpop.f32.mrf.mxu0
  %v3867 = vadd.f32 %v3802, %v3866
  %3868 = vmatmul.f32.gmra.mxu0 %v3740
  %v3869 = vpop.f32.mrf.mxu0
  %v3870 = vadd.f32 %v3805, %v3869
  %3871 = vmatmul.f32.gmra.mxu0 %v3743
  %v3872 = vpop.f32.mrf.mxu0
  %v3873 = vadd.f32 %v3808, %v3872
  %3874 = vmatmul.f32.gmra.mxu0 %v3746
  %v3875 = vpop.f32.mrf.mxu0
  %v3876 = vadd.f32 %v3811, %v3875
  %3877 = vmatmul.f32.gmra.mxu0 %v3749
  %v3878 = vpop.f32.mrf.mxu0
  %v3879 = vadd.f32 %v3814, %v3878
  %3880 = vmatmul.f32.gmra.mxu0 %v3752
  %v3881 = vpop.f32.mrf.mxu0
  %v3882 = vadd.f32 %v3817, %v3881
  %3883 = vmatmul.f32.gmra.mxu0 %v3755
  %v3884 = vpop.f32.mrf.mxu0
  %v3885 = vadd.f32 %v3820, %v3884
  %3886 = vmatmul.f32.gmra.mxu0 %v3758
  %v3887 = vpop.f32.mrf.mxu0
  %v3888 = vadd.f32 %v3823, %v3887
  %3889 = vdwg.mxu0
  %v3890 = vmax.f32 %v3843, %v3849
  %v3891 = vmax.f32 %v3846, %v3852
  %v3892 = vmax.f32 %v3855, %v3861
  %v3893 = vmax.f32 %v3858, %v3864
  %v3894 = vmax.f32 %v3867, %v3873
  %v3895 = vmax.f32 %v3870, %v3876
  %v3896 = vmax.f32 %v3879, %v3885
  %v3897 = vmax.f32 %v3882, %v3888
  %3898 = vst [vmem:[#allocation2] sm:$0xff] %v3890
  %3899 = vst [vmem:[#allocation2 + $0x8] sm:$0xff] %v3891
  %3900 = vst [vmem:[#allocation2 + $0x10] sm:$0xff] %v3892
  %3901 = vst [vmem:[#allocation2 + $0x18] sm:$0xff] %v3893
  %3902 = vst [vmem:[#allocation2 + $0x20] sm:$0xff] %v3894
  %3903 = vst [vmem:[#allocation2 + $0x28] sm:$0xff] %v3895
  %3904 = vst [vmem:[#allocation2 + $0x30] sm:$0xff] %v3896
  %3905 = vst [vmem:[#allocation2 + $0x38] sm:$0xff] %v3897
  %v3906 = vld [vmem:[#allocation2] ss:$2 sm:$0xff]
  %v3907 = vld [vmem:[%s291] ss:$2 sm:$0xff]
  %v3908 = vld [vmem:[%s293] ss:$2 sm:$0xff]
  %v3909 = vld [vmem:[%s295] ss:$2 sm:$0xff]
  %v3910 = vld [vmem:[%s297] ss:$2 sm:$0xff]
  %v3911 = vld [vmem:[%s299] ss:$2 sm:$0xff]
  %v3912 = vld [vmem:[%s301] ss:$2 sm:$0xff]
  %v3913 = vld [vmem:[%s303] ss:$2 sm:$0xff]
  %v3914 = vmax.f32 %v3906, %v3910
  %v3915 = vmax.f32 %v3907, %v3911
  %v3916 = vmax.f32 %v3908, %v3912
  %v3917 = vmax.f32 %v3909, %v3913
  %v3918 = vadd.f32 %v3914, %v30
  %v3919 = vadd.f32 %v3915, %v30
  %v3920 = vadd.f32 %v3916, %v30
  %v3921 = vadd.f32 %v3917, %v30
  %v3922 = vmax.f32 %v3918, 0.0
  %v3923 = vmax.f32 %v3919, 0.0
  %v3924 = vmax.f32 %v3920, 0.0
  %v3925 = vmax.f32 %v3921, 0.0
  %3926 = vst [vmem:[#allocation3 + $0x20] sm:$0xff] %v3922
  %3927 = vst [vmem:[#allocation3 + $0x28] sm:$0xff] %v3923
  %3928 = vst [vmem:[#allocation3 + $0x30] sm:$0xff] %v3924
  %3929 = vst [vmem:[#allocation3 + $0x38] sm:$0xff] %v3925
  %v3930 = vld [vmem:[#allocation3] sm:$0xff]
  %v3931 = vld [vmem:[#allocation3 + $0x8] sm:$0xff]
  %v3932 = vld [vmem:[#allocation3 + $0x10] sm:$0xff]
  %v3933 = vld [vmem:[#allocation3 + $0x18] sm:$0xff]
  %v3934 = vld [vmem:[#allocation3 + $0x20] sm:$0xff]
  %v3935 = vld [vmem:[#allocation3 + $0x28] sm:$0x3f]
  %v3936 = vld [vmem:[#allocation3 + $0x1] sm:$0xff]
  %v3937 = vld [vmem:[#allocation3 + $0x9] sm:$0xff]
  %v3938 = vld [vmem:[#allocation3 + $0x11] sm:$0xff]
  %v3939 = vld [vmem:[#allocation3 + $0x19] sm:$0xff]
  %v3940 = vld [vmem:[#allocation3 + $0x21] sm:$0xff]
  %v3941 = vld [vmem:[#allocation3 + $0x29] sm:$0x3f]
  %v3942 = vld [vmem:[#allocation3 + $0x2] sm:$0xff]
  %v3943 = vld [vmem:[#allocation3 + $0xa] sm:$0xff]
  %v3944 = vld [vmem:[#allocation3 + $0x12] sm:$0xff]
  %v3945 = vld [vmem:[#allocation3 + $0x1a] sm:$0xff]
  %v3946 = vld [vmem:[#allocation3 + $0x22] sm:$0xff]
  %v3947 = vld [vmem:[#allocation3 + $0x2a] sm:$0x3f]
  %v3948 = vld [vmem:[%s3] sm:$0xff]
  %v3949 = vld [vmem:[%s3 + $0x8] sm:$0xff]
  %v3950 = vld [vmem:[%s3 + $0x10] sm:$0xff]
  %v3951 = vld [vmem:[%s3 + $0x18] sm:$0xff]
  %v3952 = vld [vmem:[%s3 + $0x20] sm:$0xff]
  %v3953 = vld [vmem:[%s3 + $0x28] sm:$0xff]
  %v3954 = vld [vmem:[%s3 + $0x30] sm:$0xff]
  %v3955 = vld [vmem:[%s3 + $0x38] sm:$0xff]
  %v3956 = vld [vmem:[%s3 + $0x40] sm:$0xff]
  %v3957 = vld [vmem:[%s3 + $0x48] sm:$0xff]
  %v3958 = vld [vmem:[%s3 + $0x50] sm:$0xff]
  %v3959 = vld [vmem:[%s3 + $0x58] sm:$0xff]
  %v3960 = vld [vmem:[%s3 + $0x60] sm:$0xff]
  %v3961 = vld [vmem:[%s3 + $0x68] sm:$0xff]
  %v3962 = vld [vmem:[%s3 + $0x70] sm:$0xff]
  %v3963 = vld [vmem:[%s3 + $0x78] sm:$0xff]
  %v3964 = vld [vmem:[%s3 + $0x80] sm:$0xff]
  %v3965 = vld [vmem:[%s3 + $0x88] sm:$0xff]
  %v3966 = vld [vmem:[%s3 + $0x90] sm:$0xff]
  %v3967 = vld [vmem:[%s3 + $0x98] sm:$0xff]
  %v3968 = vld [vmem:[%s3 + $0xa0] sm:$0xff]
  %v3969 = vld [vmem:[%s3 + $0xa8] sm:$0xff]
  %v3970 = vld [vmem:[%s3 + $0xb0] sm:$0xff]
  %v3971 = vld [vmem:[%s3 + $0xb8] sm:$0xff]
  %v3972 = vld [vmem:[%s3 + $0xc0] sm:$0xff]
  %v3973 = vld [vmem:[%s3 + $0xc8] sm:$0xff]
  %v3974 = vld [vmem:[%s3 + $0xd0] sm:$0xff]
  %v3975 = vld [vmem:[%s3 + $0xd8] sm:$0xff]
  %v3976 = vld [vmem:[%s3 + $0xe0] sm:$0xff]
  %v3977 = vld [vmem:[%s3 + $0xe8] sm:$0xff]
  %v3978 = vld [vmem:[%s3 + $0xf0] sm:$0xff]
  %v3979 = vld [vmem:[%s3 + $0xf8] sm:$0xff]
  %v3980 = vld [vmem:[%s3 + $0x100] sm:$0xff]
  %v3981 = vld [vmem:[%s3 + $0x108] sm:$0xff]
  %v3982 = vld [vmem:[%s3 + $0x110] sm:$0xff]
  %v3983 = vld [vmem:[%s3 + $0x118] sm:$0xff]
  %v3984 = vld [vmem:[%s3 + $0x120] sm:$0xff]
  %v3985 = vld [vmem:[%s3 + $0x128] sm:$0xff]
  %v3986 = vld [vmem:[%s3 + $0x130] sm:$0xff]
  %v3987 = vld [vmem:[%s3 + $0x138] sm:$0xff]
  %v3988 = vld [vmem:[%s3 + $0x140] sm:$0xff]
  %v3989 = vld [vmem:[%s3 + $0x148] sm:$0xff]
  %v3990 = vld [vmem:[%s3 + $0x150] sm:$0xff]
  %v3991 = vld [vmem:[%s3 + $0x158] sm:$0xff]
  %v3992 = vld [vmem:[%s3 + $0x160] sm:$0xff]
  %v3993 = vld [vmem:[%s3 + $0x168] sm:$0xff]
  %v3994 = vld [vmem:[%s3 + $0x170] sm:$0xff]
  %v3995 = vld [vmem:[%s3 + $0x178] sm:$0xff]
  %v3996 = vld [vmem:[#allocation3 + $0x28] sm:$0xff]
  %v3997 = vld [vmem:[#allocation3 + $0x30] sm:$0x3f]
  %v3998 = vld [vmem:[#allocation3 + $0x29] sm:$0xff]
  %v3999 = vld [vmem:[#allocation3 + $0x31] sm:$0x3f]
  %v4000 = vld [vmem:[#allocation3 + $0x2a] sm:$0xff]
  %v4001 = vld [vmem:[#allocation3 + $0x32] sm:$0x3f]
  %v4002 = vld [vmem:[%s668] sm:$0xff]
  %v4003 = vld [vmem:[%s668 + $0x8] sm:$0xff]
  %v4004 = vld [vmem:[%s668 + $0x10] sm:$0xff]
  %v4005 = vld [vmem:[%s668 + $0x18] sm:$0xff]
  %v4006 = vld [vmem:[%s668 + $0x20] sm:$0xff]
  %v4007 = vld [vmem:[%s668 + $0x28] sm:$0xff]
  %v4008 = vld [vmem:[%s668 + $0x30] sm:$0xff]
  %v4009 = vld [vmem:[%s668 + $0x38] sm:$0xff]
  %v4010 = vld [vmem:[%s668 + $0x40] sm:$0xff]
  %v4011 = vld [vmem:[%s668 + $0x48] sm:$0xff]
  %v4012 = vld [vmem:[%s668 + $0x50] sm:$0xff]
  %v4013 = vld [vmem:[%s668 + $0x58] sm:$0xff]
  %v4014 = vld [vmem:[%s668 + $0x60] sm:$0xff]
  %v4015 = vld [vmem:[%s668 + $0x68] sm:$0xff]
  %v4016 = vld [vmem:[%s668 + $0x70] sm:$0xff]
  %v4017 = vld [vmem:[%s668 + $0x78] sm:$0xff]
  %v4018 = vld [vmem:[%s668 + $0x80] sm:$0xff]
  %v4019 = vld [vmem:[%s668 + $0x88] sm:$0xff]
  %v4020 = vld [vmem:[%s668 + $0x90] sm:$0xff]
  %v4021 = vld [vmem:[%s668 + $0x98] sm:$0xff]
  %v4022 = vld [vmem:[%s668 + $0xa0] sm:$0xff]
  %v4023 = vld [vmem:[%s668 + $0xa8] sm:$0xff]
  %v4024 = vld [vmem:[%s668 + $0xb0] sm:$0xff]
  %v4025 = vld [vmem:[%s668 + $0xb8] sm:$0xff]
  %v4026 = vld [vmem:[%s668 + $0xc0] sm:$0xff]
  %v4027 = vld [vmem:[%s668 + $0xc8] sm:$0xff]
  %v4028 = vld [vmem:[%s668 + $0xd0] sm:$0xff]
  %v4029 = vld [vmem:[%s668 + $0xd8] sm:$0xff]
  %v4030 = vld [vmem:[%s668 + $0xe0] sm:$0xff]
  %v4031 = vld [vmem:[%s668 + $0xe8] sm:$0xff]
  %v4032 = vld [vmem:[%s668 + $0xf0] sm:$0xff]
  %v4033 = vld [vmem:[%s668 + $0xf8] sm:$0xff]
  %v4034 = vld [vmem:[%s668 + $0x100] sm:$0xff]
  %v4035 = vld [vmem:[%s668 + $0x108] sm:$0xff]
  %v4036 = vld [vmem:[%s668 + $0x110] sm:$0xff]
  %v4037 = vld [vmem:[%s668 + $0x118] sm:$0xff]
  %v4038 = vld [vmem:[%s668 + $0x120] sm:$0xff]
  %v4039 = vld [vmem:[%s668 + $0x128] sm:$0xff]
  %v4040 = vld [vmem:[%s668 + $0x130] sm:$0xff]
  %v4041 = vld [vmem:[%s668 + $0x138] sm:$0xff]
  %v4042 = vld [vmem:[%s668 + $0x140] sm:$0xff]
  %v4043 = vld [vmem:[%s668 + $0x148] sm:$0xff]
  %v4044 = vld [vmem:[%s668 + $0x150] sm:$0xff]
  %v4045 = vld [vmem:[%s668 + $0x158] sm:$0xff]
  %v4046 = vld [vmem:[%s668 + $0x160] sm:$0xff]
  %v4047 = vld [vmem:[%s668 + $0x168] sm:$0xff]
  %v4048 = vld [vmem:[%s668 + $0x170] sm:$0xff]
  %v4049 = vld [vmem:[%s668 + $0x178] sm:$0xff]
  %4050 = vmatpush.msra.mxu0 %v4017
  %4051 = vmatpush.msra.mxu0 %v4016
  %4052 = vmatpush.msra.mxu0 %v4015
  %4053 = vmatpush.msra.mxu0 %v4014
  %4054 = vmatpush.msra.mxu0 %v4013
  %4055 = vmatpush.msra.mxu0 %v4012
  %4056 = vmatpush.msra.mxu0 %v4011
  %4057 = vmatpush.msra.mxu0 %v4010
  %4058 = vmatpush.msra.mxu0 %v4009
  %4059 = vmatpush.msra.mxu0 %v4008
  %4060 = vmatpush.msra.mxu0 %v4007
  %4061 = vmatpush.msra.mxu0 %v4006
  %4062 = vmatpush.msra.mxu0 %v4005
  %4063 = vmatpush.msra.mxu0 %v4004
  %4064 = vmatpush.msra.mxu0 %v4003
  %4065 = vmatpush.msra.mxu0 %v4002
  %4066 = vmatmul.f32.gmra.mxu0 %v3931
  %v4067 = vpop.f32.mrf.mxu0
  %v4068 = vadd.f32 0.0, %v4067
  %4069 = vmatmul.f32.gmra.mxu0 %v3932
  %v4070 = vpop.f32.mrf.mxu0
  %v4071 = vadd.f32 0.0, %v4070
  %4072 = vmatmul.f32.gmra.mxu0 %v3933
  %v4073 = vpop.f32.mrf.mxu0
  %v4074 = vadd.f32 0.0, %v4073
  %4075 = vmatmul.f32.gmra.mxu0 %v3934
  %v4076 = vpop.f32.mrf.mxu0
  %v4077 = vadd.f32 0.0, %v4076
  %4078 = vmatmul.f32.gmra.mxu0 %v3996
  %v4079 = vpop.f32.mrf.mxu0
  %v4080 = vadd.f32 0.0, %v4079
  %4081 = vmatmul.f32.gmra.mxu0 %v3997
  %v4082 = vpop.f32.mrf.mxu0
  %v4083 = vadd.f32 0.0, %v4082
  %4084 = vdwg.mxu0
  %4085 = vmatpush.msra.mxu0 %v4033
  %4086 = vmatpush.msra.mxu0 %v4032
  %4087 = vmatpush.msra.mxu0 %v4031
  %4088 = vmatpush.msra.mxu0 %v4030
  %4089 = vmatpush.msra.mxu0 %v4029
  %4090 = vmatpush.msra.mxu0 %v4028
  %4091 = vmatpush.msra.mxu0 %v4027
  %4092 = vmatpush.msra.mxu0 %v4026
  %4093 = vmatpush.msra.mxu0 %v4025
  %4094 = vmatpush.msra.mxu0 %v4024
  %4095 = vmatpush.msra.mxu0 %v4023
  %4096 = vmatpush.msra.mxu0 %v4022
  %4097 = vmatpush.msra.mxu0 %v4021
  %4098 = vmatpush.msra.mxu0 %v4020
  %4099 = vmatpush.msra.mxu0 %v4019
  %4100 = vmatpush.msra.mxu0 %v4018
  %4101 = vmatmul.f32.gmra.mxu0 %v3937
  %v4102 = vpop.f32.mrf.mxu0
  %v4103 = vadd.f32 %v4068, %v4102
  %4104 = vmatmul.f32.gmra.mxu0 %v3938
  %v4105 = vpop.f32.mrf.mxu0
  %v4106 = vadd.f32 %v4071, %v4105
  %4107 = vmatmul.f32.gmra.mxu0 %v3939
  %v4108 = vpop.f32.mrf.mxu0
  %v4109 = vadd.f32 %v4074, %v4108
  %4110 = vmatmul.f32.gmra.mxu0 %v3940
  %v4111 = vpop.f32.mrf.mxu0
  %v4112 = vadd.f32 %v4077, %v4111
  %4113 = vmatmul.f32.gmra.mxu0 %v3998
  %v4114 = vpop.f32.mrf.mxu0
  %v4115 = vadd.f32 %v4080, %v4114
  %4116 = vmatmul.f32.gmra.mxu0 %v3999
  %v4117 = vpop.f32.mrf.mxu0
  %v4118 = vadd.f32 %v4083, %v4117
  %4119 = vdwg.mxu0
  %4120 = vmatpush.msra.mxu0 %v4049
  %4121 = vmatpush.msra.mxu0 %v4048
  %4122 = vmatpush.msra.mxu0 %v4047
  %4123 = vmatpush.msra.mxu0 %v4046
  %4124 = vmatpush.msra.mxu0 %v4045
  %4125 = vmatpush.msra.mxu0 %v4044
  %4126 = vmatpush.msra.mxu0 %v4043
  %4127 = vmatpush.msra.mxu0 %v4042
  %4128 = vmatpush.msra.mxu0 %v4041
  %4129 = vmatpush.msra.mxu0 %v4040
  %4130 = vmatpush.msra.mxu0 %v4039
  %4131 = vmatpush.msra.mxu0 %v4038
  %4132 = vmatpush.msra.mxu0 %v4037
  %4133 = vmatpush.msra.mxu0 %v4036
  %4134 = vmatpush.msra.mxu0 %v4035
  %4135 = vmatpush.msra.mxu0 %v4034
  %4136 = vmatmul.f32.gmra.mxu0 %v3943
  %v4137 = vpop.f32.mrf.mxu0
  %v4138 = vadd.f32 %v4103, %v4137
  %4139 = vmatmul.f32.gmra.mxu0 %v3944
  %v4140 = vpop.f32.mrf.mxu0
  %v4141 = vadd.f32 %v4106, %v4140
  %4142 = vmatmul.f32.gmra.mxu0 %v3945
  %v4143 = vpop.f32.mrf.mxu0
  %v4144 = vadd.f32 %v4109, %v4143
  %4145 = vmatmul.f32.gmra.mxu0 %v3946
  %v4146 = vpop.f32.mrf.mxu0
  %v4147 = vadd.f32 %v4112, %v4146
  %4148 = vmatmul.f32.gmra.mxu0 %v4000
  %v4149 = vpop.f32.mrf.mxu0
  %v4150 = vadd.f32 %v4115, %v4149
  %4151 = vmatmul.f32.gmra.mxu0 %v4001
  %v4152 = vpop.f32.mrf.mxu0
  %v4153 = vadd.f32 %v4118, %v4152
  %4154 = vdwg.mxu0
  %4155 = vmatpush.msra.mxu0 %v3963
  %4156 = vmatpush.msra.mxu0 %v3962
  %4157 = vmatpush.msra.mxu0 %v3961
  %4158 = vmatpush.msra.mxu0 %v3960
  %4159 = vmatpush.msra.mxu0 %v3959
  %4160 = vmatpush.msra.mxu0 %v3958
  %4161 = vmatpush.msra.mxu0 %v3957
  %4162 = vmatpush.msra.mxu0 %v3956
  %4163 = vmatpush.msra.mxu0 %v3955
  %4164 = vmatpush.msra.mxu0 %v3954
  %4165 = vmatpush.msra.mxu0 %v3953
  %4166 = vmatpush.msra.mxu0 %v3952
  %4167 = vmatpush.msra.mxu0 %v3951
  %4168 = vmatpush.msra.mxu0 %v3950
  %4169 = vmatpush.msra.mxu0 %v3949
  %4170 = vmatpush.msra.mxu0 %v3948
  %4171 = vmatmul.f32.gmra.mxu0 %v3930
  %v4172 = vpop.f32.mrf.mxu0
  %v4173 = vadd.f32 %v4138, %v4172
  %4174 = vmatmul.f32.gmra.mxu0 %v3931
  %v4175 = vpop.f32.mrf.mxu0
  %v4176 = vadd.f32 %v4141, %v4175
  %4177 = vmatmul.f32.gmra.mxu0 %v3932
  %v4178 = vpop.f32.mrf.mxu0
  %v4179 = vadd.f32 %v4144, %v4178
  %4180 = vmatmul.f32.gmra.mxu0 %v3933
  %v4181 = vpop.f32.mrf.mxu0
  %v4182 = vadd.f32 %v4147, %v4181
  %4183 = vmatmul.f32.gmra.mxu0 %v3934
  %v4184 = vpop.f32.mrf.mxu0
  %v4185 = vadd.f32 %v4150, %v4184
  %4186 = vmatmul.f32.gmra.mxu0 %v3935
  %v4187 = vpop.f32.mrf.mxu0
  %v4188 = vadd.f32 %v4153, %v4187
  %4189 = vdwg.mxu0
  %4190 = vmatpush.msra.mxu0 %v3979
  %4191 = vmatpush.msra.mxu0 %v3978
  %4192 = vmatpush.msra.mxu0 %v3977
  %4193 = vmatpush.msra.mxu0 %v3976
  %4194 = vmatpush.msra.mxu0 %v3975
  %4195 = vmatpush.msra.mxu0 %v3974
  %4196 = vmatpush.msra.mxu0 %v3973
  %4197 = vmatpush.msra.mxu0 %v3972
  %4198 = vmatpush.msra.mxu0 %v3971
  %4199 = vmatpush.msra.mxu0 %v3970
  %4200 = vmatpush.msra.mxu0 %v3969
  %4201 = vmatpush.msra.mxu0 %v3968
  %4202 = vmatpush.msra.mxu0 %v3967
  %4203 = vmatpush.msra.mxu0 %v3966
  %4204 = vmatpush.msra.mxu0 %v3965
  %4205 = vmatpush.msra.mxu0 %v3964
  %4206 = vmatmul.f32.gmra.mxu0 %v3936
  %v4207 = vpop.f32.mrf.mxu0
  %v4208 = vadd.f32 %v4173, %v4207
  %4209 = vmatmul.f32.gmra.mxu0 %v3937
  %v4210 = vpop.f32.mrf.mxu0
  %v4211 = vadd.f32 %v4176, %v4210
  %4212 = vmatmul.f32.gmra.mxu0 %v3938
  %v4213 = vpop.f32.mrf.mxu0
  %v4214 = vadd.f32 %v4179, %v4213
  %4215 = vmatmul.f32.gmra.mxu0 %v3939
  %v4216 = vpop.f32.mrf.mxu0
  %v4217 = vadd.f32 %v4182, %v4216
  %4218 = vmatmul.f32.gmra.mxu0 %v3940
  %v4219 = vpop.f32.mrf.mxu0
  %v4220 = vadd.f32 %v4185, %v4219
  %4221 = vmatmul.f32.gmra.mxu0 %v3941
  %v4222 = vpop.f32.mrf.mxu0
  %v4223 = vadd.f32 %v4188, %v4222
  %4224 = vdwg.mxu0
  %4225 = vmatpush.msra.mxu0 %v3995
  %4226 = vmatpush.msra.mxu0 %v3994
  %4227 = vmatpush.msra.mxu0 %v3993
  %4228 = vmatpush.msra.mxu0 %v3992
  %4229 = vmatpush.msra.mxu0 %v3991
  %4230 = vmatpush.msra.mxu0 %v3990
  %4231 = vmatpush.msra.mxu0 %v3989
  %4232 = vmatpush.msra.mxu0 %v3988
  %4233 = vmatpush.msra.mxu0 %v3987
  %4234 = vmatpush.msra.mxu0 %v3986
  %4235 = vmatpush.msra.mxu0 %v3985
  %4236 = vmatpush.msra.mxu0 %v3984
  %4237 = vmatpush.msra.mxu0 %v3983
  %4238 = vmatpush.msra.mxu0 %v3982
  %4239 = vmatpush.msra.mxu0 %v3981
  %4240 = vmatpush.msra.mxu0 %v3980
  %4241 = vmatmul.f32.gmra.mxu0 %v3942
  %v4242 = vpop.f32.mrf.mxu0
  %v4243 = vadd.f32 %v4208, %v4242
  %4244 = vmatmul.f32.gmra.mxu0 %v3943
  %v4245 = vpop.f32.mrf.mxu0
  %v4246 = vadd.f32 %v4211, %v4245
  %4247 = vmatmul.f32.gmra.mxu0 %v3944
  %v4248 = vpop.f32.mrf.mxu0
  %v4249 = vadd.f32 %v4214, %v4248
  %4250 = vmatmul.f32.gmra.mxu0 %v3945
  %v4251 = vpop.f32.mrf.mxu0
  %v4252 = vadd.f32 %v4217, %v4251
  %4253 = vmatmul.f32.gmra.mxu0 %v3946
  %v4254 = vpop.f32.mrf.mxu0
  %v4255 = vadd.f32 %v4220, %v4254
  %4256 = vmatmul.f32.gmra.mxu0 %v3947
  %v4257 = vpop.f32.mrf.mxu0
  %v4258 = vadd.f32 %v4223, %v4257
  %4259 = vdwg.mxu0
  %v4260 = vld [vmem:[#allocation3 + $0x10] sm:$0xff]
  %v4261 = vld [vmem:[#allocation3 + $0x18] sm:$0xff]
  %v4262 = vld [vmem:[#allocation3 + $0x20] sm:$0xff]
  %v4263 = vld [vmem:[#allocation3 + $0x28] sm:$0xff]
  %v4264 = vld [vmem:[#allocation3 + $0x30] sm:$0xff]
  %v4265 = vld [vmem:[#allocation3 + $0x38] sm:$0x3f]
  %v4266 = vld [vmem:[#allocation3 + $0x11] sm:$0xff]
  %v4267 = vld [vmem:[#allocation3 + $0x19] sm:$0xff]
  %v4268 = vld [vmem:[#allocation3 + $0x21] sm:$0xff]
  %v4269 = vld [vmem:[#allocation3 + $0x29] sm:$0xff]
  %v4270 = vld [vmem:[#allocation3 + $0x31] sm:$0xff]
  %v4271 = vld [vmem:[#allocation3 + $0x39] sm:$0x3f]
  %v4272 = vld [vmem:[#allocation3 + $0x12] sm:$0xff]
  %v4273 = vld [vmem:[#allocation3 + $0x1a] sm:$0xff]
  %v4274 = vld [vmem:[#allocation3 + $0x22] sm:$0xff]
  %v4275 = vld [vmem:[#allocation3 + $0x2a] sm:$0xff]
  %v4276 = vld [vmem:[#allocation3 + $0x32] sm:$0xff]
  %v4277 = vld [vmem:[#allocation3 + $0x3a] sm:$0x3f]
  %v4278 = vld [vmem:[%s945] sm:$0xff]
  %v4279 = vld [vmem:[%s945 + $0x8] sm:$0xff]
  %v4280 = vld [vmem:[%s945 + $0x10] sm:$0xff]
  %v4281 = vld [vmem:[%s945 + $0x18] sm:$0xff]
  %v4282 = vld [vmem:[%s945 + $0x20] sm:$0xff]
  %v4283 = vld [vmem:[%s945 + $0x28] sm:$0xff]
  %v4284 = vld [vmem:[%s945 + $0x30] sm:$0xff]
  %v4285 = vld [vmem:[%s945 + $0x38] sm:$0xff]
  %v4286 = vld [vmem:[%s945 + $0x40] sm:$0xff]
  %v4287 = vld [vmem:[%s945 + $0x48] sm:$0xff]
  %v4288 = vld [vmem:[%s945 + $0x50] sm:$0xff]
  %v4289 = vld [vmem:[%s945 + $0x58] sm:$0xff]
  %v4290 = vld [vmem:[%s945 + $0x60] sm:$0xff]
  %v4291 = vld [vmem:[%s945 + $0x68] sm:$0xff]
  %v4292 = vld [vmem:[%s945 + $0x70] sm:$0xff]
  %v4293 = vld [vmem:[%s945 + $0x78] sm:$0xff]
  %v4294 = vld [vmem:[%s945 + $0x80] sm:$0xff]
  %v4295 = vld [vmem:[%s945 + $0x88] sm:$0xff]
  %v4296 = vld [vmem:[%s945 + $0x90] sm:$0xff]
  %v4297 = vld [vmem:[%s945 + $0x98] sm:$0xff]
  %v4298 = vld [vmem:[%s945 + $0xa0] sm:$0xff]
  %v4299 = vld [vmem:[%s945 + $0xa8] sm:$0xff]
  %v4300 = vld [vmem:[%s945 + $0xb0] sm:$0xff]
  %v4301 = vld [vmem:[%s945 + $0xb8] sm:$0xff]
  %v4302 = vld [vmem:[%s945 + $0xc0] sm:$0xff]
  %v4303 = vld [vmem:[%s945 + $0xc8] sm:$0xff]
  %v4304 = vld [vmem:[%s945 + $0xd0] sm:$0xff]
  %v4305 = vld [vmem:[%s945 + $0xd8] sm:$0xff]
  %v4306 = vld [vmem:[%s945 + $0xe0] sm:$0xff]
  %v4307 = vld [vmem:[%s945 + $0xe8] sm:$0xff]
  %v4308 = vld [vmem:[%s945 + $0xf0] sm:$0xff]
  %v4309 = vld [vmem:[%s945 + $0xf8] sm:$0xff]
  %v4310 = vld [vmem:[%s945 + $0x100] sm:$0xff]
  %v4311 = vld [vmem:[%s945 + $0x108] sm:$0xff]
  %v4312 = vld [vmem:[%s945 + $0x110] sm:$0xff]
  %v4313 = vld [vmem:[%s945 + $0x118] sm:$0xff]
  %v4314 = vld [vmem:[%s945 + $0x120] sm:$0xff]
  %v4315 = vld [vmem:[%s945 + $0x128] sm:$0xff]
  %v4316 = vld [vmem:[%s945 + $0x130] sm:$0xff]
  %v4317 = vld [vmem:[%s945 + $0x138] sm:$0xff]
  %v4318 = vld [vmem:[%s945 + $0x140] sm:$0xff]
  %v4319 = vld [vmem:[%s945 + $0x148] sm:$0xff]
  %v4320 = vld [vmem:[%s945 + $0x150] sm:$0xff]
  %v4321 = vld [vmem:[%s945 + $0x158] sm:$0xff]
  %v4322 = vld [vmem:[%s945 + $0x160] sm:$0xff]
  %v4323 = vld [vmem:[%s945 + $0x168] sm:$0xff]
  %v4324 = vld [vmem:[%s945 + $0x170] sm:$0xff]
  %v4325 = vld [vmem:[%s945 + $0x178] sm:$0xff]
  %4326 = vmatpush.msra.mxu0 %v4293
  %4327 = vmatpush.msra.mxu0 %v4292
  %4328 = vmatpush.msra.mxu0 %v4291
  %4329 = vmatpush.msra.mxu0 %v4290
  %4330 = vmatpush.msra.mxu0 %v4289
  %4331 = vmatpush.msra.mxu0 %v4288
  %4332 = vmatpush.msra.mxu0 %v4287
  %4333 = vmatpush.msra.mxu0 %v4286
  %4334 = vmatpush.msra.mxu0 %v4285
  %4335 = vmatpush.msra.mxu0 %v4284
  %4336 = vmatpush.msra.mxu0 %v4283
  %4337 = vmatpush.msra.mxu0 %v4282
  %4338 = vmatpush.msra.mxu0 %v4281
  %4339 = vmatpush.msra.mxu0 %v4280
  %4340 = vmatpush.msra.mxu0 %v4279
  %4341 = vmatpush.msra.mxu0 %v4278
  %4342 = vmatmul.f32.gmra.mxu0 %v4260
  %v4343 = vpop.f32.mrf.mxu0
  %v4344 = vadd.f32 0.0, %v4343
  %4345 = vmatmul.f32.gmra.mxu0 %v4261
  %v4346 = vpop.f32.mrf.mxu0
  %v4347 = vadd.f32 0.0, %v4346
  %4348 = vmatmul.f32.gmra.mxu0 %v4262
  %v4349 = vpop.f32.mrf.mxu0
  %v4350 = vadd.f32 0.0, %v4349
  %4351 = vmatmul.f32.gmra.mxu0 %v4263
  %v4352 = vpop.f32.mrf.mxu0
  %v4353 = vadd.f32 0.0, %v4352
  %4354 = vmatmul.f32.gmra.mxu0 %v4264
  %v4355 = vpop.f32.mrf.mxu0
  %v4356 = vadd.f32 0.0, %v4355
  %4357 = vmatmul.f32.gmra.mxu0 %v4265
  %v4358 = vpop.f32.mrf.mxu0
  %v4359 = vadd.f32 0.0, %v4358
  %4360 = vdwg.mxu0
  %4361 = vmatpush.msra.mxu0 %v4309
  %4362 = vmatpush.msra.mxu0 %v4308
  %4363 = vmatpush.msra.mxu0 %v4307
  %4364 = vmatpush.msra.mxu0 %v4306
  %4365 = vmatpush.msra.mxu0 %v4305
  %4366 = vmatpush.msra.mxu0 %v4304
  %4367 = vmatpush.msra.mxu0 %v4303
  %4368 = vmatpush.msra.mxu0 %v4302
  %4369 = vmatpush.msra.mxu0 %v4301
  %4370 = vmatpush.msra.mxu0 %v4300
  %4371 = vmatpush.msra.mxu0 %v4299
  %4372 = vmatpush.msra.mxu0 %v4298
  %4373 = vmatpush.msra.mxu0 %v4297
  %4374 = vmatpush.msra.mxu0 %v4296
  %4375 = vmatpush.msra.mxu0 %v4295
  %4376 = vmatpush.msra.mxu0 %v4294
  %4377 = vmatmul.f32.gmra.mxu0 %v4266
  %v4378 = vpop.f32.mrf.mxu0
  %v4379 = vadd.f32 %v4344, %v4378
  %4380 = vmatmul.f32.gmra.mxu0 %v4267
  %v4381 = vpop.f32.mrf.mxu0
  %v4382 = vadd.f32 %v4347, %v4381
  %4383 = vmatmul.f32.gmra.mxu0 %v4268
  %v4384 = vpop.f32.mrf.mxu0
  %v4385 = vadd.f32 %v4350, %v4384
  %4386 = vmatmul.f32.gmra.mxu0 %v4269
  %v4387 = vpop.f32.mrf.mxu0
  %v4388 = vadd.f32 %v4353, %v4387
  %4389 = vmatmul.f32.gmra.mxu0 %v4270
  %v4390 = vpop.f32.mrf.mxu0
  %v4391 = vadd.f32 %v4356, %v4390
  %4392 = vmatmul.f32.gmra.mxu0 %v4271
  %v4393 = vpop.f32.mrf.mxu0
  %v4394 = vadd.f32 %v4359, %v4393
  %4395 = vdwg.mxu0
  %4396 = vmatpush.msra.mxu0 %v4325
  %4397 = vmatpush.msra.mxu0 %v4324
  %4398 = vmatpush.msra.mxu0 %v4323
  %4399 = vmatpush.msra.mxu0 %v4322
  %4400 = vmatpush.msra.mxu0 %v4321
  %4401 = vmatpush.msra.mxu0 %v4320
  %4402 = vmatpush.msra.mxu0 %v4319
  %4403 = vmatpush.msra.mxu0 %v4318
  %4404 = vmatpush.msra.mxu0 %v4317
  %4405 = vmatpush.msra.mxu0 %v4316
  %4406 = vmatpush.msra.mxu0 %v4315
  %4407 = vmatpush.msra.mxu0 %v4314
  %4408 = vmatpush.msra.mxu0 %v4313
  %4409 = vmatpush.msra.mxu0 %v4312
  %4410 = vmatpush.msra.mxu0 %v4311
  %4411 = vmatpush.msra.mxu0 %v4310
  %4412 = vmatmul.f32.gmra.mxu0 %v4272
  %v4413 = vpop.f32.mrf.mxu0
  %v4414 = vadd.f32 %v4379, %v4413
  %4415 = vmatmul.f32.gmra.mxu0 %v4273
  %v4416 = vpop.f32.mrf.mxu0
  %v4417 = vadd.f32 %v4382, %v4416
  %4418 = vmatmul.f32.gmra.mxu0 %v4274
  %v4419 = vpop.f32.mrf.mxu0
  %v4420 = vadd.f32 %v4385, %v4419
  %4421 = vmatmul.f32.gmra.mxu0 %v4275
  %v4422 = vpop.f32.mrf.mxu0
  %v4423 = vadd.f32 %v4388, %v4422
  %4424 = vmatmul.f32.gmra.mxu0 %v4276
  %v4425 = vpop.f32.mrf.mxu0
  %v4426 = vadd.f32 %v4391, %v4425
  %4427 = vmatmul.f32.gmra.mxu0 %v4277
  %v4428 = vpop.f32.mrf.mxu0
  %v4429 = vadd.f32 %v4394, %v4428
  %4430 = vdwg.mxu0
  %v4431 = vadd.f32 %v4243, %v4414
  %v4432 = vadd.f32 %v4246, %v4417
  %v4433 = vadd.f32 %v4249, %v4420
  %v4434 = vadd.f32 %v4252, %v4423
  %v4435 = vadd.f32 %v4255, %v4426
  %v4436 = vadd.f32 %v4258, %v4429
  %4437 = vst [vmem:[#allocation2] sm:$0xff] %v4431
  %4438 = vst [vmem:[#allocation2 + $0x8] sm:$0xff] %v4432
  %4439 = vst [vmem:[#allocation2 + $0x10] sm:$0xff] %v4433
  %4440 = vst [vmem:[#allocation2 + $0x18] sm:$0xff] %v4434
  %4441 = vst [vmem:[#allocation2 + $0x20] sm:$0xff] %v4435
  %4442 = vst [vmem:[#allocation2 + $0x28] sm:$0x3f] %v4436
  %v4443 = vld [vmem:[#allocation2] ss:$2 sm:$0x7]
  %v4444 = vld [vmem:[%s297] ss:$2 sm:$0x7]
  %v4445 = vld [vmem:[%s1113] ss:$2 sm:$0x7]
  %v4446 = vld [vmem:[%s1115] ss:$2 sm:$0x7]
  %v4447 = vmax.f32 %v4443, %v4444
  %v4448 = vmax.f32 %v4445, %v4446
  %v4449 = vmax.f32 %v4447, %v4448
  %v4450 = vld [vmem:[%s1120] ss:$2 sm:$0x7]
  %v4451 = vld [vmem:[%s299] ss:$2 sm:$0x7]
  %v4452 = vld [vmem:[%s1123] ss:$2 sm:$0x7]
  %v4453 = vld [vmem:[%s1125] ss:$2 sm:$0x7]
  %v4454 = vmax.f32 %v4450, %v4451
  %v4455 = vmax.f32 %v4452, %v4453
  %v4456 = vmax.f32 %v4454, %v4455
  %v4457 = vld [vmem:[%s1130] ss:$2 sm:$0x7]
  %v4458 = vld [vmem:[%s301] ss:$2 sm:$0x7]
  %v4459 = vld [vmem:[%s1133] ss:$2 sm:$0x7]
  %v4460 = vld [vmem:[%s1135] ss:$2 sm:$0x7]
  %v4461 = vmax.f32 %v4457, %v4458
  %v4462 = vmax.f32 %v4459, %v4460
  %v4463 = vmax.f32 %v4461, %v4462
  %v4465 = vrot.slane %v4456, 5
  %v4468 = vrot.slane %v4463, 2
  %v4470 = vsel %vm1146, %v4449, %v4465
  %v4471 = vsel %vm1148, %v4470, %v4468
  %v4472 = vadd.f32 %v4471, %v34
  %v4473 = vadd.f32 %v4468, %v34
  %v4474 = vmax.f32 %v4472, 0.0
  %v4475 = vmax.f32 %v4473, 0.0
  %v4476 = vmul.f32 %v4474, %v36
  %v4477 = vmul.f32 %v4475, %v37
  %v4478 = vsel %vm1156, %v4477, 0.0
  %v4479 = vadd.f32 %v4476, %v4478
  %v4480 = vrot.slane %v4479, 4
  %v4481 = vadd.f32 %v4479, %v4480
  %v4482 = vrot.slane %v4481, 2
  %v4483 = vadd.f32 %v4481, %v4482
  %v4484 = vrot.slane %v4483, 1
  %v4485 = vadd.f32 %v4483, %v4484
  %4486 = vst [vmem:[#allocation4 + $0x3] sm:$0x1] %v4485
  %v4487 = vld [vmem:[%s0 + $0x800] sm:$0xff]
  %v4488 = vld [vmem:[%s0 + $0x808] sm:$0xff]
  %v4489 = vld [vmem:[%s0 + $0x810] sm:$0xff]
  %v4490 = vld [vmem:[%s0 + $0x818] sm:$0xff]
  %v4491 = vld [vmem:[%s0 + $0x820] sm:$0xff]
  %v4492 = vld [vmem:[%s0 + $0x828] sm:$0xff]
  %v4493 = vld [vmem:[%s0 + $0x830] sm:$0xff]
  %v4494 = vld [vmem:[%s0 + $0x838] sm:$0xff]
  %v4495 = vld [vmem:[%s0 + $0x840] sm:$0xff]
  %v4496 = vld [vmem:[%s0 + $0x848] sm:$0xff]
  %v4497 = vld [vmem:[%s0 + $0x850] sm:$0xff]
  %v4498 = vld [vmem:[%s0 + $0x858] sm:$0xff]
  %v4499 = vld [vmem:[%s0 + $0x860] sm:$0xff]
  %v4500 = vld [vmem:[%s0 + $0x868] sm:$0xff]
  %v4501 = vld [vmem:[%s0 + $0x870] sm:$0xff]
  %v4502 = vld [vmem:[%s0 + $0x878] sm:$0xff]
  %v4503 = vld [vmem:[%s0 + $0x880] sm:$0xff]
  %v4504 = vld [vmem:[%s0 + $0x888] sm:$0xff]
  %v4505 = vld [vmem:[%s0 + $0x890] sm:$0xff]
  %v4506 = vld [vmem:[%s0 + $0x898] sm:$0xff]
  %v4507 = vld [vmem:[%s0 + $0x8a0] sm:$0xff]
  %v4508 = vld [vmem:[%s0 + $0x8a8] sm:$0xff]
  %v4509 = vld [vmem:[%s0 + $0x8b0] sm:$0xff]
  %v4510 = vld [vmem:[%s0 + $0x8b8] sm:$0xff]
  %v4511 = vld [vmem:[%s0 + $0x8c0] sm:$0xff]
  %v4512 = vld [vmem:[%s0 + $0x8c8] sm:$0xff]
  %v4513 = vld [vmem:[%s0 + $0x8d0] sm:$0xff]
  %v4514 = vld [vmem:[%s0 + $0x8d8] sm:$0xff]
  %v4515 = vld [vmem:[%s0 + $0x8e0] sm:$0xff]
  %v4516 = vld [vmem:[%s0 + $0x8e8] sm:$0xff]
  %v4517 = vld [vmem:[%s0 + $0x8f0] sm:$0xff]
  %v4518 = vld [vmem:[%s0 + $0x8f8] sm:$0xff]
  %v4519 = vld [vmem:[%s1] sm:$0xff]
  %v4520 = vld [vmem:[%s1 + $0x8] sm:$0xff]
  %v4521 = vld [vmem:[%s1 + $0x10] sm:$0xff]
  %v4522 = vld [vmem:[%s1 + $0x18] sm:$0xff]
  %v4523 = vld [vmem:[%s1 + $0x20] sm:$0xff]
  %v4524 = vld [vmem:[%s1 + $0x28] sm:$0xff]
  %v4525 = vld [vmem:[%s1 + $0x30] sm:$0xff]
  %v4526 = vld [vmem:[%s1 + $0x38] sm:$0xff]
  %v4527 = vld [vmem:[%s1 + $0x40] sm:$0xff]
  %v4528 = vld [vmem:[%s1 + $0x48] sm:$0xff]
  %v4529 = vld [vmem:[%s1 + $0x50] sm:$0xff]
  %v4530 = vld [vmem:[%s1 + $0x58] sm:$0xff]
  %v4531 = vld [vmem:[%s1 + $0x60] sm:$0xff]
  %v4532 = vld [vmem:[%s1 + $0x68] sm:$0xff]
  %v4533 = vld [vmem:[%s1 + $0x70] sm:$0xff]
  %v4534 = vld [vmem:[%s1 + $0x78] sm:$0xff]
  %v4535 = vld [vmem:[%s1 + $0x80] sm:$0xff]
  %v4536 = vld [vmem:[%s1 + $0x88] sm:$0xff]
  %v4537 = vld [vmem:[%s1 + $0x90] sm:$0xff]
  %v4538 = vld [vmem:[%s1 + $0x98] sm:$0xff]
  %v4539 = vld [vmem:[%s1 + $0xa0] sm:$0xff]
  %v4540 = vld [vmem:[%s1 + $0xa8] sm:$0xff]
  %v4541 = vld [vmem:[%s1 + $0xb0] sm:$0xff]
  %v4542 = vld [vmem:[%s1 + $0xb8] sm:$0xff]
  %v4543 = vld [vmem:[%s1 + $0xc0] sm:$0xff]
  %v4545 = vsel %vm95, %v4488, 0
  %v4548 = vsel %vm95, %v4490, 0
  %v4551 = vsel %vm95, %v4492, 0
  %v4554 = vsel %vm95, %v4494, 0
  %v4557 = vsel %vm95, %v4496, 0
  %v4560 = vsel %vm95, %v4498, 0
  %v4563 = vsel %vm95, %v4500, 0
  %v4566 = vsel %vm95, %v4502, 0
  %v4569 = vsel %vm95, %v4504, 0
  %v4572 = vsel %vm95, %v4506, 0
  %v4575 = vsel %vm95, %v4508, 0
  %v4578 = vsel %vm95, %v4510, 0
  %v4581 = vsel %vm95, %v4512, 0
  %v4584 = vsel %vm95, %v4514, 0
  %v4587 = vsel %vm95, %v4516, 0
  %v4590 = vsel %vm95, %v4518, 0
  %4592 = vmatpush.msra.mxu0 %v4534
  %4593 = vmatpush.msra.mxu0 %v4533
  %4594 = vmatpush.msra.mxu0 %v4532
  %4595 = vmatpush.msra.mxu0 %v4531
  %4596 = vmatpush.msra.mxu0 %v4530
  %4597 = vmatpush.msra.mxu0 %v4529
  %4598 = vmatpush.msra.mxu0 %v4528
  %4599 = vmatpush.msra.mxu0 %v4527
  %4600 = vmatpush.msra.mxu0 %v4526
  %4601 = vmatpush.msra.mxu0 %v4525
  %4602 = vmatpush.msra.mxu0 %v4524
  %4603 = vmatpush.msra.mxu0 %v4523
  %4604 = vmatpush.msra.mxu0 %v4522
  %4605 = vmatpush.msra.mxu0 %v4521
  %4606 = vmatpush.msra.mxu0 %v4520
  %4607 = vmatpush.msra.mxu0 %v4519
  %4608 = vmatmul.f32.gmra.mxu0 %v4487
  %v4609 = vpop.f32.mrf.mxu0
  %v4610 = vadd.f32 0.0, %v4609
  %4611 = vmatmul.f32.gmra.mxu0 %v4489
  %v4612 = vpop.f32.mrf.mxu0
  %v4613 = vadd.f32 0.0, %v4612
  %4614 = vmatmul.f32.gmra.mxu0 %v4491
  %v4615 = vpop.f32.mrf.mxu0
  %v4616 = vadd.f32 0.0, %v4615
  %4617 = vmatmul.f32.gmra.mxu0 %v4493
  %v4618 = vpop.f32.mrf.mxu0
  %v4619 = vadd.f32 0.0, %v4618
  %4620 = vmatmul.f32.gmra.mxu0 %v4495
  %v4621 = vpop.f32.mrf.mxu0
  %v4622 = vadd.f32 0.0, %v4621
  %4623 = vmatmul.f32.gmra.mxu0 %v4497
  %v4624 = vpop.f32.mrf.mxu0
  %v4625 = vadd.f32 0.0, %v4624
  %4626 = vmatmul.f32.gmra.mxu0 %v4499
  %v4627 = vpop.f32.mrf.mxu0
  %v4628 = vadd.f32 0.0, %v4627
  %4629 = vmatmul.f32.gmra.mxu0 %v4501
  %v4630 = vpop.f32.mrf.mxu0
  %v4631 = vadd.f32 0.0, %v4630
  %4632 = vmatmul.f32.gmra.mxu0 %v4503
  %v4633 = vpop.f32.mrf.mxu0
  %v4634 = vadd.f32 0.0, %v4633
  %4635 = vmatmul.f32.gmra.mxu0 %v4505
  %v4636 = vpop.f32.mrf.mxu0
  %v4637 = vadd.f32 0.0, %v4636
  %4638 = vmatmul.f32.gmra.mxu0 %v4507
  %v4639 = vpop.f32.mrf.mxu0
  %v4640 = vadd.f32 0.0, %v4639
  %4641 = vmatmul.f32.gmra.mxu0 %v4509
  %v4642 = vpop.f32.mrf.mxu0
  %v4643 = vadd.f32 0.0, %v4642
  %4644 = vmatmul.f32.gmra.mxu0 %v4511
  %v4645 = vpop.f32.mrf.mxu0
  %v4646 = vadd.f32 0.0, %v4645
  %4647 = vmatmul.f32.gmra.mxu0 %v4513
  %v4648 = vpop.f32.mrf.mxu0
  %v4649 = vadd.f32 0.0, %v4648
  %4650 = vmatmul.f32.gmra.mxu0 %v4515
  %v4651 = vpop.f32.mrf.mxu0
  %v4652 = vadd.f32 0.0, %v4651
  %4653 = vmatmul.f32.gmra.mxu0 %v4517
  %v4654 = vpop.f32.mrf.mxu0
  %v4655 = vadd.f32 0.0, %v4654
  %4656 = vdwg.mxu0
  %4657 = vmatpush.msra.mxu0 0.0
  %4658 = vmatpush.msra.mxu0 0.0
  %4659 = vmatpush.msra.mxu0 0.0
  %4660 = vmatpush.msra.mxu0 0.0
  %4661 = vmatpush.msra.mxu0 0.0
  %4662 = vmatpush.msra.mxu0 0.0
  %4663 = vmatpush.msra.mxu0 0.0
  %4664 = vmatpush.msra.mxu0 %v4543
  %4665 = vmatpush.msra.mxu0 %v4542
  %4666 = vmatpush.msra.mxu0 %v4541
  %4667 = vmatpush.msra.mxu0 %v4540
  %4668 = vmatpush.msra.mxu0 %v4539
  %4669 = vmatpush.msra.mxu0 %v4538
  %4670 = vmatpush.msra.mxu0 %v4537
  %4671 = vmatpush.msra.mxu0 %v4536
  %4672 = vmatpush.msra.mxu0 %v4535
  %4673 = vmatmul.f32.gmra.mxu0 %v4545
  %v4674 = vpop.f32.mrf.mxu0
  %v4675 = vadd.f32 %v4610, %v4674
  %4676 = vmatmul.f32.gmra.mxu0 %v4548
  %v4677 = vpop.f32.mrf.mxu0
  %v4678 = vadd.f32 %v4613, %v4677
  %4679 = vmatmul.f32.gmra.mxu0 %v4551
  %v4680 = vpop.f32.mrf.mxu0
  %v4681 = vadd.f32 %v4616, %v4680
  %4682 = vmatmul.f32.gmra.mxu0 %v4554
  %v4683 = vpop.f32.mrf.mxu0
  %v4684 = vadd.f32 %v4619, %v4683
  %4685 = vmatmul.f32.gmra.mxu0 %v4557
  %v4686 = vpop.f32.mrf.mxu0
  %v4687 = vadd.f32 %v4622, %v4686
  %4688 = vmatmul.f32.gmra.mxu0 %v4560
  %v4689 = vpop.f32.mrf.mxu0
  %v4690 = vadd.f32 %v4625, %v4689
  %4691 = vmatmul.f32.gmra.mxu0 %v4563
  %v4692 = vpop.f32.mrf.mxu0
  %v4693 = vadd.f32 %v4628, %v4692
  %4694 = vmatmul.f32.gmra.mxu0 %v4566
  %v4695 = vpop.f32.mrf.mxu0
  %v4696 = vadd.f32 %v4631, %v4695
  %4697 = vmatmul.f32.gmra.mxu0 %v4569
  %v4698 = vpop.f32.mrf.mxu0
  %v4699 = vadd.f32 %v4634, %v4698
  %4700 = vmatmul.f32.gmra.mxu0 %v4572
  %v4701 = vpop.f32.mrf.mxu0
  %v4702 = vadd.f32 %v4637, %v4701
  %4703 = vmatmul.f32.gmra.mxu0 %v4575
  %v4704 = vpop.f32.mrf.mxu0
  %v4705 = vadd.f32 %v4640, %v4704
  %4706 = vmatmul.f32.gmra.mxu0 %v4578
  %v4707 = vpop.f32.mrf.mxu0
  %v4708 = vadd.f32 %v4643, %v4707
  %4709 = vmatmul.f32.gmra.mxu0 %v4581
  %v4710 = vpop.f32.mrf.mxu0
  %v4711 = vadd.f32 %v4646, %v4710
  %4712 = vmatmul.f32.gmra.mxu0 %v4584
  %v4713 = vpop.f32.mrf.mxu0
  %v4714 = vadd.f32 %v4649, %v4713
  %4715 = vmatmul.f32.gmra.mxu0 %v4587
  %v4716 = vpop.f32.mrf.mxu0
  %v4717 = vadd.f32 %v4652, %v4716
  %4718 = vmatmul.f32.gmra.mxu0 %v4590
  %v4719 = vpop.f32.mrf.mxu0
  %v4720 = vadd.f32 %v4655, %v4719
  %4721 = vdwg.mxu0
  %v4722 = vmax.f32 %v4675, %v4681
  %v4723 = vmax.f32 %v4678, %v4684
  %v4724 = vmax.f32 %v4687, %v4693
  %v4725 = vmax.f32 %v4690, %v4696
  %v4726 = vmax.f32 %v4699, %v4705
  %v4727 = vmax.f32 %v4702, %v4708
  %v4728 = vmax.f32 %v4711, %v4717
  %v4729 = vmax.f32 %v4714, %v4720
  %4730 = vst [vmem:[#allocation2] sm:$0xff] %v4722
  %4731 = vst [vmem:[#allocation2 + $0x8] sm:$0xff] %v4723
  %4732 = vst [vmem:[#allocation2 + $0x10] sm:$0xff] %v4724
  %4733 = vst [vmem:[#allocation2 + $0x18] sm:$0xff] %v4725
  %4734 = vst [vmem:[#allocation2 + $0x20] sm:$0xff] %v4726
  %4735 = vst [vmem:[#allocation2 + $0x28] sm:$0xff] %v4727
  %4736 = vst [vmem:[#allocation2 + $0x30] sm:$0xff] %v4728
  %4737 = vst [vmem:[#allocation2 + $0x38] sm:$0xff] %v4729
  %v4738 = vld [vmem:[#allocation2] ss:$2 sm:$0xff]
  %v4739 = vld [vmem:[%s291] ss:$2 sm:$0xff]
  %v4740 = vld [vmem:[%s293] ss:$2 sm:$0xff]
  %v4741 = vld [vmem:[%s295] ss:$2 sm:$0xff]
  %v4742 = vld [vmem:[%s297] ss:$2 sm:$0xff]
  %v4743 = vld [vmem:[%s299] ss:$2 sm:$0xff]
  %v4744 = vld [vmem:[%s301] ss:$2 sm:$0xff]
  %v4745 = vld [vmem:[%s303] ss:$2 sm:$0xff]
  %v4746 = vmax.f32 %v4738, %v4742
  %v4747 = vmax.f32 %v4739, %v4743
  %v4748 = vmax.f32 %v4740, %v4744
  %v4749 = vmax.f32 %v4741, %v4745
  %v4750 = vadd.f32 %v4746, %v30
  %v4751 = vadd.f32 %v4747, %v30
  %v4752 = vadd.f32 %v4748, %v30
  %v4753 = vadd.f32 %v4749, %v30
  %v4754 = vmax.f32 %v4750, 0.0
  %v4755 = vmax.f32 %v4751, 0.0
  %v4756 = vmax.f32 %v4752, 0.0
  %v4757 = vmax.f32 %v4753, 0.0
  %4758 = vst [vmem:[#allocation3] sm:$0xff] %v4754
  %4759 = vst [vmem:[#allocation3 + $0x8] sm:$0xff] %v4755
  %4760 = vst [vmem:[#allocation3 + $0x10] sm:$0xff] %v4756
  %4761 = vst [vmem:[#allocation3 + $0x18] sm:$0xff] %v4757
  %v4762 = vld [vmem:[%s0 + $0x900] sm:$0xff]
  %v4763 = vld [vmem:[%s0 + $0x908] sm:$0xff]
  %v4764 = vld [vmem:[%s0 + $0x910] sm:$0xff]
  %v4765 = vld [vmem:[%s0 + $0x918] sm:$0xff]
  %v4766 = vld [vmem:[%s0 + $0x920] sm:$0xff]
  %v4767 = vld [vmem:[%s0 + $0x928] sm:$0xff]
  %v4768 = vld [vmem:[%s0 + $0x930] sm:$0xff]
  %v4769 = vld [vmem:[%s0 + $0x938] sm:$0xff]
  %v4770 = vld [vmem:[%s0 + $0x940] sm:$0xff]
  %v4771 = vld [vmem:[%s0 + $0x948] sm:$0xff]
  %v4772 = vld [vmem:[%s0 + $0x950] sm:$0xff]
  %v4773 = vld [vmem:[%s0 + $0x958] sm:$0xff]
  %v4774 = vld [vmem:[%s0 + $0x960] sm:$0xff]
  %v4775 = vld [vmem:[%s0 + $0x968] sm:$0xff]
  %v4776 = vld [vmem:[%s0 + $0x970] sm:$0xff]
  %v4777 = vld [vmem:[%s0 + $0x978] sm:$0xff]
  %v4778 = vld [vmem:[%s0 + $0x980] sm:$0xff]
  %v4779 = vld [vmem:[%s0 + $0x988] sm:$0xff]
  %v4780 = vld [vmem:[%s0 + $0x990] sm:$0xff]
  %v4781 = vld [vmem:[%s0 + $0x998] sm:$0xff]
  %v4782 = vld [vmem:[%s0 + $0x9a0] sm:$0xff]
  %v4783 = vld [vmem:[%s0 + $0x9a8] sm:$0xff]
  %v4784 = vld [vmem:[%s0 + $0x9b0] sm:$0xff]
  %v4785 = vld [vmem:[%s0 + $0x9b8] sm:$0xff]
  %v4786 = vld [vmem:[%s0 + $0x9c0] sm:$0xff]
  %v4787 = vld [vmem:[%s0 + $0x9c8] sm:$0xff]
  %v4788 = vld [vmem:[%s0 + $0x9d0] sm:$0xff]
  %v4789 = vld [vmem:[%s0 + $0x9d8] sm:$0xff]
  %v4790 = vld [vmem:[%s0 + $0x9e0] sm:$0xff]
  %v4791 = vld [vmem:[%s0 + $0x9e8] sm:$0xff]
  %v4792 = vld [vmem:[%s0 + $0x9f0] sm:$0xff]
  %v4793 = vld [vmem:[%s0 + $0x9f8] sm:$0xff]
  %v4794 = vld [vmem:[%s1] sm:$0xff]
  %v4795 = vld [vmem:[%s1 + $0x8] sm:$0xff]
  %v4796 = vld [vmem:[%s1 + $0x10] sm:$0xff]
  %v4797 = vld [vmem:[%s1 + $0x18] sm:$0xff]
  %v4798 = vld [vmem:[%s1 + $0x20] sm:$0xff]
  %v4799 = vld [vmem:[%s1 + $0x28] sm:$0xff]
  %v4800 = vld [vmem:[%s1 + $0x30] sm:$0xff]
  %v4801 = vld [vmem:[%s1 + $0x38] sm:$0xff]
  %v4802 = vld [vmem:[%s1 + $0x40] sm:$0xff]
  %v4803 = vld [vmem:[%s1 + $0x48] sm:$0xff]
  %v4804 = vld [vmem:[%s1 + $0x50] sm:$0xff]
  %v4805 = vld [vmem:[%s1 + $0x58] sm:$0xff]
  %v4806 = vld [vmem:[%s1 + $0x60] sm:$0xff]
  %v4807 = vld [vmem:[%s1 + $0x68] sm:$0xff]
  %v4808 = vld [vmem:[%s1 + $0x70] sm:$0xff]
  %v4809 = vld [vmem:[%s1 + $0x78] sm:$0xff]
  %v4810 = vld [vmem:[%s1 + $0x80] sm:$0xff]
  %v4811 = vld [vmem:[%s1 + $0x88] sm:$0xff]
  %v4812 = vld [vmem:[%s1 + $0x90] sm:$0xff]
  %v4813 = vld [vmem:[%s1 + $0x98] sm:$0xff]
  %v4814 = vld [vmem:[%s1 + $0xa0] sm:$0xff]
  %v4815 = vld [vmem:[%s1 + $0xa8] sm:$0xff]
  %v4816 = vld [vmem:[%s1 + $0xb0] sm:$0xff]
  %v4817 = vld [vmem:[%s1 + $0xb8] sm:$0xff]
  %v4818 = vld [vmem:[%s1 + $0xc0] sm:$0xff]
  %v4820 = vsel %vm95, %v4763, 0
  %v4823 = vsel %vm95, %v4765, 0
  %v4826 = vsel %vm95, %v4767, 0
  %v4829 = vsel %vm95, %v4769, 0
  %v4832 = vsel %vm95, %v4771, 0
  %v4835 = vsel %vm95, %v4773, 0
  %v4838 = vsel %vm95, %v4775, 0
  %v4841 = vsel %vm95, %v4777, 0
  %v4844 = vsel %vm95, %v4779, 0
  %v4847 = vsel %vm95, %v4781, 0
  %v4850 = vsel %vm95, %v4783, 0
  %v4853 = vsel %vm95, %v4785, 0
  %v4856 = vsel %vm95, %v4787, 0
  %v4859 = vsel %vm95, %v4789, 0
  %v4862 = vsel %vm95, %v4791, 0
  %v4865 = vsel %vm95, %v4793, 0
  %4867 = vmatpush.msra.mxu0 %v4809
  %4868 = vmatpush.msra.mxu0 %v4808
  %4869 = vmatpush.msra.mxu0 %v4807
  %4870 = vmatpush.msra.mxu0 %v4806
  %4871 = vmatpush.msra.mxu0 %v4805
  %4872 = vmatpush.msra.mxu0 %v4804
  %4873 = vmatpush.msra.mxu0 %v4803
  %4874 = vmatpush.msra.mxu0 %v4802
  %4875 = vmatpush.msra.mxu0 %v4801
  %4876 = vmatpush.msra.mxu0 %v4800
  %4877 = vmatpush.msra.mxu0 %v4799
  %4878 = vmatpush.msra.mxu0 %v4798
  %4879 = vmatpush.msra.mxu0 %v4797
  %4880 = vmatpush.msra.mxu0 %v4796
  %4881 = vmatpush.msra.mxu0 %v4795
  %4882 = vmatpush.msra.mxu0 %v4794
  %4883 = vmatmul.f32.gmra.mxu0 %v4762
  %v4884 = vpop.f32.mrf.mxu0
  %v4885 = vadd.f32 0.0, %v4884
  %4886 = vmatmul.f32.gmra.mxu0 %v4764
  %v4887 = vpop.f32.mrf.mxu0
  %v4888 = vadd.f32 0.0, %v4887
  %4889 = vmatmul.f32.gmra.mxu0 %v4766
  %v4890 = vpop.f32.mrf.mxu0
  %v4891 = vadd.f32 0.0, %v4890
  %4892 = vmatmul.f32.gmra.mxu0 %v4768
  %v4893 = vpop.f32.mrf.mxu0
  %v4894 = vadd.f32 0.0, %v4893
  %4895 = vmatmul.f32.gmra.mxu0 %v4770
  %v4896 = vpop.f32.mrf.mxu0
  %v4897 = vadd.f32 0.0, %v4896
  %4898 = vmatmul.f32.gmra.mxu0 %v4772
  %v4899 = vpop.f32.mrf.mxu0
  %v4900 = vadd.f32 0.0, %v4899
  %4901 = vmatmul.f32.gmra.mxu0 %v4774
  %v4902 = vpop.f32.mrf.mxu0
  %v4903 = vadd.f32 0.0, %v4902
  %4904 = vmatmul.f32.gmra.mxu0 %v4776
  %v4905 = vpop.f32.mrf.mxu0
  %v4906 = vadd.f32 0.0, %v4905
  %4907 = vmatmul.f32.gmra.mxu0 %v4778
  %v4908 = vpop.f32.mrf.mxu0
  %v4909 = vadd.f32 0.0, %v4908
  %4910 = vmatmul.f32.gmra.mxu0 %v4780
  %v4911 = vpop.f32.mrf.mxu0
  %v4912 = vadd.f32 0.0, %v4911
  %4913 = vmatmul.f32.gmra.mxu0 %v4782
  %v4914 = vpop.f32.mrf.mxu0
  %v4915 = vadd.f32 0.0, %v4914
  %4916 = vmatmul.f32.gmra.mxu0 %v4784
  %v4917 = vpop.f32.mrf.mxu0
  %v4918 = vadd.f32 0.0, %v4917
  %4919 = vmatmul.f32.gmra.mxu0 %v4786
  %v4920 = vpop.f32.mrf.mxu0
  %v4921 = vadd.f32 0.0, %v4920
  %4922 = vmatmul.f32.gmra.mxu0 %v4788
  %v4923 = vpop.f32.mrf.mxu0
  %v4924 = vadd.f32 0.0, %v4923
  %4925 = vmatmul.f32.gmra.mxu0 %v4790
  %v4926 = vpop.f32.mrf.mxu0
  %v4927 = vadd.f32 0.0, %v4926
  %4928 = vmatmul.f32.gmra.mxu0 %v4792
  %v4929 = vpop.f32.mrf.mxu0
  %v4930 = vadd.f32 0.0, %v4929
  %4931 = vdwg.mxu0
  %4932 = vmatpush.msra.mxu0 0.0
  %4933 = vmatpush.msra.mxu0 0.0
  %4934 = vmatpush.msra.mxu0 0.0
  %4935 = vmatpush.msra.mxu0 0.0
  %4936 = vmatpush.msra.mxu0 0.0
  %4937 = vmatpush.msra.mxu0 0.0
  %4938 = vmatpush.msra.mxu0 0.0
  %4939 = vmatpush.msra.mxu0 %v4818
  %4940 = vmatpush.msra.mxu0 %v4817
  %4941 = vmatpush.msra.mxu0 %v4816
  %4942 = vmatpush.msra.mxu0 %v4815
  %4943 = vmatpush.msra.mxu0 %v4814
  %4944 = vmatpush.msra.mxu0 %v4813
  %4945 = vmatpush.msra.mxu0 %v4812
  %4946 = vmatpush.msra.mxu0 %v4811
  %4947 = vmatpush.msra.mxu0 %v4810
  %4948 = vmatmul.f32.gmra.mxu0 %v4820
  %v4949 = vpop.f32.mrf.mxu0
  %v4950 = vadd.f32 %v4885, %v4949
  %4951 = vmatmul.f32.gmra.mxu0 %v4823
  %v4952 = vpop.f32.mrf.mxu0
  %v4953 = vadd.f32 %v4888, %v4952
  %4954 = vmatmul.f32.gmra.mxu0 %v4826
  %v4955 = vpop.f32.mrf.mxu0
  %v4956 = vadd.f32 %v4891, %v4955
  %4957 = vmatmul.f32.gmra.mxu0 %v4829
  %v4958 = vpop.f32.mrf.mxu0
  %v4959 = vadd.f32 %v4894, %v4958
  %4960 = vmatmul.f32.gmra.mxu0 %v4832
  %v4961 = vpop.f32.mrf.mxu0
  %v4962 = vadd.f32 %v4897, %v4961
  %4963 = vmatmul.f32.gmra.mxu0 %v4835
  %v4964 = vpop.f32.mrf.mxu0
  %v4965 = vadd.f32 %v4900, %v4964
  %4966 = vmatmul.f32.gmra.mxu0 %v4838
  %v4967 = vpop.f32.mrf.mxu0
  %v4968 = vadd.f32 %v4903, %v4967
  %4969 = vmatmul.f32.gmra.mxu0 %v4841
  %v4970 = vpop.f32.mrf.mxu0
  %v4971 = vadd.f32 %v4906, %v4970
  %4972 = vmatmul.f32.gmra.mxu0 %v4844
  %v4973 = vpop.f32.mrf.mxu0
  %v4974 = vadd.f32 %v4909, %v4973
  %4975 = vmatmul.f32.gmra.mxu0 %v4847
  %v4976 = vpop.f32.mrf.mxu0
  %v4977 = vadd.f32 %v4912, %v4976
  %4978 = vmatmul.f32.gmra.mxu0 %v4850
  %v4979 = vpop.f32.mrf.mxu0
  %v4980 = vadd.f32 %v4915, %v4979
  %4981 = vmatmul.f32.gmra.mxu0 %v4853
  %v4982 = vpop.f32.mrf.mxu0
  %v4983 = vadd.f32 %v4918, %v4982
  %4984 = vmatmul.f32.gmra.mxu0 %v4856
  %v4985 = vpop.f32.mrf.mxu0
  %v4986 = vadd.f32 %v4921, %v4985
  %4987 = vmatmul.f32.gmra.mxu0 %v4859
  %v4988 = vpop.f32.mrf.mxu0
  %v4989 = vadd.f32 %v4924, %v4988
  %4990 = vmatmul.f32.gmra.mxu0 %v4862
  %v4991 = vpop.f32.mrf.mxu0
  %v4992 = vadd.f32 %v4927, %v4991
  %4993 = vmatmul.f32.gmra.mxu0 %v4865
  %v4994 = vpop.f32.mrf.mxu0
  %v4995 = vadd.f32 %v4930, %v4994
  %4996 = vdwg.mxu0
  %v4997 = vmax.f32 %v4950, %v4956
  %v4998 = vmax.f32 %v4953, %v4959
  %v4999 = vmax.f32 %v4962, %v4968
  %v5000 = vmax.f32 %v4965, %v4971
  %v5001 = vmax.f32 %v4974, %v4980
  %v5002 = vmax.f32 %v4977, %v4983
  %v5003 = vmax.f32 %v4986, %v4992
  %v5004 = vmax.f32 %v4989, %v4995
  %5005 = vst [vmem:[#allocation2] sm:$0xff] %v4997
  %5006 = vst [vmem:[#allocation2 + $0x8] sm:$0xff] %v4998
  %5007 = vst [vmem:[#allocation2 + $0x10] sm:$0xff] %v4999
  %5008 = vst [vmem:[#allocation2 + $0x18] sm:$0xff] %v5000
  %5009 = vst [vmem:[#allocation2 + $0x20] sm:$0xff] %v5001
  %5010 = vst [vmem:[#allocation2 + $0x28] sm:$0xff] %v5002
  %5011 = vst [vmem:[#allocation2 + $0x30] sm:$0xff] %v5003
  %5012 = vst [vmem:[#allocation2 + $0x38] sm:$0xff] %v5004
  %v5013 = vld [vmem:[#allocation2] ss:$2 sm:$0xff]
  %v5014 = vld [vmem:[%s291] ss:$2 sm:$0xff]
  %v5015 = vld [vmem:[%s293] ss:$2 sm:$0xff]
  %v5016 = vld [vmem:[%s295] ss:$2 sm:$0xff]
  %v5017 = vld [vmem:[%s297] ss:$2 sm:$0xff]
  %v5018 = vld [vmem:[%s299] ss:$2 sm:$0xff]
  %v5019 = vld [vmem:[%s301] ss:$2 sm:$0xff]
  %v5020 = vld [vmem:[%s303] ss:$2 sm:$0xff]
  %v5021 = vmax.f32 %v5013, %v5017
  %v5022 = vmax.f32 %v5014, %v5018
  %v5023 = vmax.f32 %v5015, %v5019
  %v5024 = vmax.f32 %v5016, %v5020
  %v5025 = vadd.f32 %v5021, %v30
  %v5026 = vadd.f32 %v5022, %v30
  %v5027 = vadd.f32 %v5023, %v30
  %v5028 = vadd.f32 %v5024, %v30
  %v5029 = vmax.f32 %v5025, 0.0
  %v5030 = vmax.f32 %v5026, 0.0
  %v5031 = vmax.f32 %v5027, 0.0
  %v5032 = vmax.f32 %v5028, 0.0
  %5033 = vst [vmem:[#allocation3 + $0x20] sm:$0xff] %v5029
  %5034 = vst [vmem:[#allocation3 + $0x28] sm:$0xff] %v5030
  %5035 = vst [vmem:[#allocation3 + $0x30] sm:$0xff] %v5031
  %5036 = vst [vmem:[#allocation3 + $0x38] sm:$0xff] %v5032
  %v5037 = vld [vmem:[#allocation3] sm:$0xff]
  %v5038 = vld [vmem:[#allocation3 + $0x8] sm:$0xff]
  %v5039 = vld [vmem:[#allocation3 + $0x10] sm:$0xff]
  %v5040 = vld [vmem:[#allocation3 + $0x18] sm:$0xff]
  %v5041 = vld [vmem:[#allocation3 + $0x20] sm:$0xff]
  %v5042 = vld [vmem:[#allocation3 + $0x28] sm:$0x3f]
  %v5043 = vld [vmem:[#allocation3 + $0x1] sm:$0xff]
  %v5044 = vld [vmem:[#allocation3 + $0x9] sm:$0xff]
  %v5045 = vld [vmem:[#allocation3 + $0x11] sm:$0xff]
  %v5046 = vld [vmem:[#allocation3 + $0x19] sm:$0xff]
  %v5047 = vld [vmem:[#allocation3 + $0x21] sm:$0xff]
  %v5048 = vld [vmem:[#allocation3 + $0x29] sm:$0x3f]
  %v5049 = vld [vmem:[#allocation3 + $0x2] sm:$0xff]
  %v5050 = vld [vmem:[#allocation3 + $0xa] sm:$0xff]
  %v5051 = vld [vmem:[#allocation3 + $0x12] sm:$0xff]
  %v5052 = vld [vmem:[#allocation3 + $0x1a] sm:$0xff]
  %v5053 = vld [vmem:[#allocation3 + $0x22] sm:$0xff]
  %v5054 = vld [vmem:[#allocation3 + $0x2a] sm:$0x3f]
  %v5055 = vld [vmem:[%s3] sm:$0xff]
  %v5056 = vld [vmem:[%s3 + $0x8] sm:$0xff]
  %v5057 = vld [vmem:[%s3 + $0x10] sm:$0xff]
  %v5058 = vld [vmem:[%s3 + $0x18] sm:$0xff]
  %v5059 = vld [vmem:[%s3 + $0x20] sm:$0xff]
  %v5060 = vld [vmem:[%s3 + $0x28] sm:$0xff]
  %v5061 = vld [vmem:[%s3 + $0x30] sm:$0xff]
  %v5062 = vld [vmem:[%s3 + $0x38] sm:$0xff]
  %v5063 = vld [vmem:[%s3 + $0x40] sm:$0xff]
  %v5064 = vld [vmem:[%s3 + $0x48] sm:$0xff]
  %v5065 = vld [vmem:[%s3 + $0x50] sm:$0xff]
  %v5066 = vld [vmem:[%s3 + $0x58] sm:$0xff]
  %v5067 = vld [vmem:[%s3 + $0x60] sm:$0xff]
  %v5068 = vld [vmem:[%s3 + $0x68] sm:$0xff]
  %v5069 = vld [vmem:[%s3 + $0x70] sm:$0xff]
  %v5070 = vld [vmem:[%s3 + $0x78] sm:$0xff]
  %v5071 = vld [vmem:[%s3 + $0x80] sm:$0xff]
  %v5072 = vld [vmem:[%s3 + $0x88] sm:$0xff]
  %v5073 = vld [vmem:[%s3 + $0x90] sm:$0xff]
  %v5074 = vld [vmem:[%s3 + $0x98] sm:$0xff]
  %v5075 = vld [vmem:[%s3 + $0xa0] sm:$0xff]
  %v5076 = vld [vmem:[%s3 + $0xa8] sm:$0xff]
  %v5077 = vld [vmem:[%s3 + $0xb0] sm:$0xff]
  %v5078 = vld [vmem:[%s3 + $0xb8] sm:$0xff]
  %v5079 = vld [vmem:[%s3 + $0xc0] sm:$0xff]
  %v5080 = vld [vmem:[%s3 + $0xc8] sm:$0xff]
  %v5081 = vld [vmem:[%s3 + $0xd0] sm:$0xff]
  %v5082 = vld [vmem:[%s3 + $0xd8] sm:$0xff]
  %v5083 = vld [vmem:[%s3 + $0xe0] sm:$0xff]
  %v5084 = vld [vmem:[%s3 + $0xe8] sm:$0xff]
  %v5085 = vld [vmem:[%s3 + $0xf0] sm:$0xff]
  %v5086 = vld [vmem:[%s3 + $0xf8] sm:$0xff]
  %v5087 = vld [vmem:[%s3 + $0x100] sm:$0xff]
  %v5088 = vld [vmem:[%s3 + $0x108] sm:$0xff]
  %v5089 = vld [vmem:[%s3 + $0x110] sm:$0xff]
  %v5090 = vld [vmem:[%s3 + $0x118] sm:$0xff]
  %v5091 = vld [vmem:[%s3 + $0x120] sm:$0xff]
  %v5092 = vld [vmem:[%s3 + $0x128] sm:$0xff]
  %v5093 = vld [vmem:[%s3 + $0x130] sm:$0xff]
  %v5094 = vld [vmem:[%s3 + $0x138] sm:$0xff]
  %v5095 = vld [vmem:[%s3 + $0x140] sm:$0xff]
  %v5096 = vld [vmem:[%s3 + $0x148] sm:$0xff]
  %v5097 = vld [vmem:[%s3 + $0x150] sm:$0xff]
  %v5098 = vld [vmem:[%s3 + $0x158] sm:$0xff]
  %v5099 = vld [vmem:[%s3 + $0x160] sm:$0xff]
  %v5100 = vld [vmem:[%s3 + $0x168] sm:$0xff]
  %v5101 = vld [vmem:[%s3 + $0x170] sm:$0xff]
  %v5102 = vld [vmem:[%s3 + $0x178] sm:$0xff]
  %v5103 = vld [vmem:[#allocation3 + $0x28] sm:$0xff]
  %v5104 = vld [vmem:[#allocation3 + $0x30] sm:$0x3f]
  %v5105 = vld [vmem:[#allocation3 + $0x29] sm:$0xff]
  %v5106 = vld [vmem:[#allocation3 + $0x31] sm:$0x3f]
  %v5107 = vld [vmem:[#allocation3 + $0x2a] sm:$0xff]
  %v5108 = vld [vmem:[#allocation3 + $0x32] sm:$0x3f]
  %v5109 = vld [vmem:[%s668] sm:$0xff]
  %v5110 = vld [vmem:[%s668 + $0x8] sm:$0xff]
  %v5111 = vld [vmem:[%s668 + $0x10] sm:$0xff]
  %v5112 = vld [vmem:[%s668 + $0x18] sm:$0xff]
  %v5113 = vld [vmem:[%s668 + $0x20] sm:$0xff]
  %v5114 = vld [vmem:[%s668 + $0x28] sm:$0xff]
  %v5115 = vld [vmem:[%s668 + $0x30] sm:$0xff]
  %v5116 = vld [vmem:[%s668 + $0x38] sm:$0xff]
  %v5117 = vld [vmem:[%s668 + $0x40] sm:$0xff]
  %v5118 = vld [vmem:[%s668 + $0x48] sm:$0xff]
  %v5119 = vld [vmem:[%s668 + $0x50] sm:$0xff]
  %v5120 = vld [vmem:[%s668 + $0x58] sm:$0xff]
  %v5121 = vld [vmem:[%s668 + $0x60] sm:$0xff]
  %v5122 = vld [vmem:[%s668 + $0x68] sm:$0xff]
  %v5123 = vld [vmem:[%s668 + $0x70] sm:$0xff]
  %v5124 = vld [vmem:[%s668 + $0x78] sm:$0xff]
  %v5125 = vld [vmem:[%s668 + $0x80] sm:$0xff]
  %v5126 = vld [vmem:[%s668 + $0x88] sm:$0xff]
  %v5127 = vld [vmem:[%s668 + $0x90] sm:$0xff]
  %v5128 = vld [vmem:[%s668 + $0x98] sm:$0xff]
  %v5129 = vld [vmem:[%s668 + $0xa0] sm:$0xff]
  %v5130 = vld [vmem:[%s668 + $0xa8] sm:$0xff]
  %v5131 = vld [vmem:[%s668 + $0xb0] sm:$0xff]
  %v5132 = vld [vmem:[%s668 + $0xb8] sm:$0xff]
  %v5133 = vld [vmem:[%s668 + $0xc0] sm:$0xff]
  %v5134 = vld [vmem:[%s668 + $0xc8] sm:$0xff]
  %v5135 = vld [vmem:[%s668 + $0xd0] sm:$0xff]
  %v5136 = vld [vmem:[%s668 + $0xd8] sm:$0xff]
  %v5137 = vld [vmem:[%s668 + $0xe0] sm:$0xff]
  %v5138 = vld [vmem:[%s668 + $0xe8] sm:$0xff]
  %v5139 = vld [vmem:[%s668 + $0xf0] sm:$0xff]
  %v5140 = vld [vmem:[%s668 + $0xf8] sm:$0xff]
  %v5141 = vld [vmem:[%s668 + $0x100] sm:$0xff]
  %v5142 = vld [vmem:[%s668 + $0x108] sm:$0xff]
  %v5143 = vld [vmem:[%s668 + $0x110] sm:$0xff]
  %v5144 = vld [vmem:[%s668 + $0x118] sm:$0xff]
  %v5145 = vld [vmem:[%s668 + $0x120] sm:$0xff]
  %v5146 = vld [vmem:[%s668 + $0x128] sm:$0xff]
  %v5147 = vld [vmem:[%s668 + $0x130] sm:$0xff]
  %v5148 = vld [vmem:[%s668 + $0x138] sm:$0xff]
  %v5149 = vld [vmem:[%s668 + $0x140] sm:$0xff]
  %v5150 = vld [vmem:[%s668 + $0x148] sm:$0xff]
  %v5151 = vld [vmem:[%s668 + $0x150] sm:$0xff]
  %v5152 = vld [vmem:[%s668 + $0x158] sm:$0xff]
  %v5153 = vld [vmem:[%s668 + $0x160] sm:$0xff]
  %v5154 = vld [vmem:[%s668 + $0x168] sm:$0xff]
  %v5155 = vld [vmem:[%s668 + $0x170] sm:$0xff]
  %v5156 = vld [vmem:[%s668 + $0x178] sm:$0xff]
  %5157 = vmatpush.msra.mxu0 %v5124
  %5158 = vmatpush.msra.mxu0 %v5123
  %5159 = vmatpush.msra.mxu0 %v5122
  %5160 = vmatpush.msra.mxu0 %v5121
  %5161 = vmatpush.msra.mxu0 %v5120
  %5162 = vmatpush.msra.mxu0 %v5119
  %5163 = vmatpush.msra.mxu0 %v5118
  %5164 = vmatpush.msra.mxu0 %v5117
  %5165 = vmatpush.msra.mxu0 %v5116
  %5166 = vmatpush.msra.mxu0 %v5115
  %5167 = vmatpush.msra.mxu0 %v5114
  %5168 = vmatpush.msra.mxu0 %v5113
  %5169 = vmatpush.msra.mxu0 %v5112
  %5170 = vmatpush.msra.mxu0 %v5111
  %5171 = vmatpush.msra.mxu0 %v5110
  %5172 = vmatpush.msra.mxu0 %v5109
  %5173 = vmatmul.f32.gmra.mxu0 %v5038
  %v5174 = vpop.f32.mrf.mxu0
  %v5175 = vadd.f32 0.0, %v5174
  %5176 = vmatmul.f32.gmra.mxu0 %v5039
  %v5177 = vpop.f32.mrf.mxu0
  %v5178 = vadd.f32 0.0, %v5177
  %5179 = vmatmul.f32.gmra.mxu0 %v5040
  %v5180 = vpop.f32.mrf.mxu0
  %v5181 = vadd.f32 0.0, %v5180
  %5182 = vmatmul.f32.gmra.mxu0 %v5041
  %v5183 = vpop.f32.mrf.mxu0
  %v5184 = vadd.f32 0.0, %v5183
  %5185 = vmatmul.f32.gmra.mxu0 %v5103
  %v5186 = vpop.f32.mrf.mxu0
  %v5187 = vadd.f32 0.0, %v5186
  %5188 = vmatmul.f32.gmra.mxu0 %v5104
  %v5189 = vpop.f32.mrf.mxu0
  %v5190 = vadd.f32 0.0, %v5189
  %5191 = vdwg.mxu0
  %5192 = vmatpush.msra.mxu0 %v5140
  %5193 = vmatpush.msra.mxu0 %v5139
  %5194 = vmatpush.msra.mxu0 %v5138
  %5195 = vmatpush.msra.mxu0 %v5137
  %5196 = vmatpush.msra.mxu0 %v5136
  %5197 = vmatpush.msra.mxu0 %v5135
  %5198 = vmatpush.msra.mxu0 %v5134
  %5199 = vmatpush.msra.mxu0 %v5133
  %5200 = vmatpush.msra.mxu0 %v5132
  %5201 = vmatpush.msra.mxu0 %v5131
  %5202 = vmatpush.msra.mxu0 %v5130
  %5203 = vmatpush.msra.mxu0 %v5129
  %5204 = vmatpush.msra.mxu0 %v5128
  %5205 = vmatpush.msra.mxu0 %v5127
  %5206 = vmatpush.msra.mxu0 %v5126
  %5207 = vmatpush.msra.mxu0 %v5125
  %5208 = vmatmul.f32.gmra.mxu0 %v5044
  %v5209 = vpop.f32.mrf.mxu0
  %v5210 = vadd.f32 %v5175, %v5209
  %5211 = vmatmul.f32.gmra.mxu0 %v5045
  %v5212 = vpop.f32.mrf.mxu0
  %v5213 = vadd.f32 %v5178, %v5212
  %5214 = vmatmul.f32.gmra.mxu0 %v5046
  %v5215 = vpop.f32.mrf.mxu0
  %v5216 = vadd.f32 %v5181, %v5215
  %5217 = vmatmul.f32.gmra.mxu0 %v5047
  %v5218 = vpop.f32.mrf.mxu0
  %v5219 = vadd.f32 %v5184, %v5218
  %5220 = vmatmul.f32.gmra.mxu0 %v5105
  %v5221 = vpop.f32.mrf.mxu0
  %v5222 = vadd.f32 %v5187, %v5221
  %5223 = vmatmul.f32.gmra.mxu0 %v5106
  %v5224 = vpop.f32.mrf.mxu0
  %v5225 = vadd.f32 %v5190, %v5224
  %5226 = vdwg.mxu0
  %5227 = vmatpush.msra.mxu0 %v5156
  %5228 = vmatpush.msra.mxu0 %v5155
  %5229 = vmatpush.msra.mxu0 %v5154
  %5230 = vmatpush.msra.mxu0 %v5153
  %5231 = vmatpush.msra.mxu0 %v5152
  %5232 = vmatpush.msra.mxu0 %v5151
  %5233 = vmatpush.msra.mxu0 %v5150
  %5234 = vmatpush.msra.mxu0 %v5149
  %5235 = vmatpush.msra.mxu0 %v5148
  %5236 = vmatpush.msra.mxu0 %v5147
  %5237 = vmatpush.msra.mxu0 %v5146
  %5238 = vmatpush.msra.mxu0 %v5145
  %5239 = vmatpush.msra.mxu0 %v5144
  %5240 = vmatpush.msra.mxu0 %v5143
  %5241 = vmatpush.msra.mxu0 %v5142
  %5242 = vmatpush.msra.mxu0 %v5141
  %5243 = vmatmul.f32.gmra.mxu0 %v5050
  %v5244 = vpop.f32.mrf.mxu0
  %v5245 = vadd.f32 %v5210, %v5244
  %5246 = vmatmul.f32.gmra.mxu0 %v5051
  %v5247 = vpop.f32.mrf.mxu0
  %v5248 = vadd.f32 %v5213, %v5247
  %5249 = vmatmul.f32.gmra.mxu0 %v5052
  %v5250 = vpop.f32.mrf.mxu0
  %v5251 = vadd.f32 %v5216, %v5250
  %5252 = vmatmul.f32.gmra.mxu0 %v5053
  %v5253 = vpop.f32.mrf.mxu0
  %v5254 = vadd.f32 %v5219, %v5253
  %5255 = vmatmul.f32.gmra.mxu0 %v5107
  %v5256 = vpop.f32.mrf.mxu0
  %v5257 = vadd.f32 %v5222, %v5256
  %5258 = vmatmul.f32.gmra.mxu0 %v5108
  %v5259 = vpop.f32.mrf.mxu0
  %v5260 = vadd.f32 %v5225, %v5259
  %5261 = vdwg.mxu0
  %5262 = vmatpush.msra.mxu0 %v5070
  %5263 = vmatpush.msra.mxu0 %v5069
  %5264 = vmatpush.msra.mxu0 %v5068
  %5265 = vmatpush.msra.mxu0 %v5067
  %5266 = vmatpush.msra.mxu0 %v5066
  %5267 = vmatpush.msra.mxu0 %v5065
  %5268 = vmatpush.msra.mxu0 %v5064
  %5269 = vmatpush.msra.mxu0 %v5063
  %5270 = vmatpush.msra.mxu0 %v5062
  %5271 = vmatpush.msra.mxu0 %v5061
  %5272 = vmatpush.msra.mxu0 %v5060
  %5273 = vmatpush.msra.mxu0 %v5059
  %5274 = vmatpush.msra.mxu0 %v5058
  %5275 = vmatpush.msra.mxu0 %v5057
  %5276 = vmatpush.msra.mxu0 %v5056
  %5277 = vmatpush.msra.mxu0 %v5055
  %5278 = vmatmul.f32.gmra.mxu0 %v5037
  %v5279 = vpop.f32.mrf.mxu0
  %v5280 = vadd.f32 %v5245, %v5279
  %5281 = vmatmul.f32.gmra.mxu0 %v5038
  %v5282 = vpop.f32.mrf.mxu0
  %v5283 = vadd.f32 %v5248, %v5282
  %5284 = vmatmul.f32.gmra.mxu0 %v5039
  %v5285 = vpop.f32.mrf.mxu0
  %v5286 = vadd.f32 %v5251, %v5285
  %5287 = vmatmul.f32.gmra.mxu0 %v5040
  %v5288 = vpop.f32.mrf.mxu0
  %v5289 = vadd.f32 %v5254, %v5288
  %5290 = vmatmul.f32.gmra.mxu0 %v5041
  %v5291 = vpop.f32.mrf.mxu0
  %v5292 = vadd.f32 %v5257, %v5291
  %5293 = vmatmul.f32.gmra.mxu0 %v5042
  %v5294 = vpop.f32.mrf.mxu0
  %v5295 = vadd.f32 %v5260, %v5294
  %5296 = vdwg.mxu0
  %5297 = vmatpush.msra.mxu0 %v5086
  %5298 = vmatpush.msra.mxu0 %v5085
  %5299 = vmatpush.msra.mxu0 %v5084
  %5300 = vmatpush.msra.mxu0 %v5083
  %5301 = vmatpush.msra.mxu0 %v5082
  %5302 = vmatpush.msra.mxu0 %v5081
  %5303 = vmatpush.msra.mxu0 %v5080
  %5304 = vmatpush.msra.mxu0 %v5079
  %5305 = vmatpush.msra.mxu0 %v5078
  %5306 = vmatpush.msra.mxu0 %v5077
  %5307 = vmatpush.msra.mxu0 %v5076
  %5308 = vmatpush.msra.mxu0 %v5075
  %5309 = vmatpush.msra.mxu0 %v5074
  %5310 = vmatpush.msra.mxu0 %v5073
  %5311 = vmatpush.msra.mxu0 %v5072
  %5312 = vmatpush.msra.mxu0 %v5071
  %5313 = vmatmul.f32.gmra.mxu0 %v5043
  %v5314 = vpop.f32.mrf.mxu0
  %v5315 = vadd.f32 %v5280, %v5314
  %5316 = vmatmul.f32.gmra.mxu0 %v5044
  %v5317 = vpop.f32.mrf.mxu0
  %v5318 = vadd.f32 %v5283, %v5317
  %5319 = vmatmul.f32.gmra.mxu0 %v5045
  %v5320 = vpop.f32.mrf.mxu0
  %v5321 = vadd.f32 %v5286, %v5320
  %5322 = vmatmul.f32.gmra.mxu0 %v5046
  %v5323 = vpop.f32.mrf.mxu0
  %v5324 = vadd.f32 %v5289, %v5323
  %5325 = vmatmul.f32.gmra.mxu0 %v5047
  %v5326 = vpop.f32.mrf.mxu0
  %v5327 = vadd.f32 %v5292, %v5326
  %5328 = vmatmul.f32.gmra.mxu0 %v5048
  %v5329 = vpop.f32.mrf.mxu0
  %v5330 = vadd.f32 %v5295, %v5329
  %5331 = vdwg.mxu0
  %5332 = vmatpush.msra.mxu0 %v5102
  %5333 = vmatpush.msra.mxu0 %v5101
  %5334 = vmatpush.msra.mxu0 %v5100
  %5335 = vmatpush.msra.mxu0 %v5099
  %5336 = vmatpush.msra.mxu0 %v5098
  %5337 = vmatpush.msra.mxu0 %v5097
  %5338 = vmatpush.msra.mxu0 %v5096
  %5339 = vmatpush.msra.mxu0 %v5095
  %5340 = vmatpush.msra.mxu0 %v5094
  %5341 = vmatpush.msra.mxu0 %v5093
  %5342 = vmatpush.msra.mxu0 %v5092
  %5343 = vmatpush.msra.mxu0 %v5091
  %5344 = vmatpush.msra.mxu0 %v5090
  %5345 = vmatpush.msra.mxu0 %v5089
  %5346 = vmatpush.msra.mxu0 %v5088
  %5347 = vmatpush.msra.mxu0 %v5087
  %5348 = vmatmul.f32.gmra.mxu0 %v5049
  %v5349 = vpop.f32.mrf.mxu0
  %v5350 = vadd.f32 %v5315, %v5349
  %5351 = vmatmul.f32.gmra.mxu0 %v5050
  %v5352 = vpop.f32.mrf.mxu0
  %v5353 = vadd.f32 %v5318, %v5352
  %5354 = vmatmul.f32.gmra.mxu0 %v5051
  %v5355 = vpop.f32.mrf.mxu0
  %v5356 = vadd.f32 %v5321, %v5355
  %5357 = vmatmul.f32.gmra.mxu0 %v5052
  %v5358 = vpop.f32.mrf.mxu0
  %v5359 = vadd.f32 %v5324, %v5358
  %5360 = vmatmul.f32.gmra.mxu0 %v5053
  %v5361 = vpop.f32.mrf.mxu0
  %v5362 = vadd.f32 %v5327, %v5361
  %5363 = vmatmul.f32.gmra.mxu0 %v5054
  %v5364 = vpop.f32.mrf.mxu0
  %v5365 = vadd.f32 %v5330, %v5364
  %5366 = vdwg.mxu0
  %v5367 = vld [vmem:[#allocation3 + $0x10] sm:$0xff]
  %v5368 = vld [vmem:[#allocation3 + $0x18] sm:$0xff]
  %v5369 = vld [vmem:[#allocation3 + $0x20] sm:$0xff]
  %v5370 = vld [vmem:[#allocation3 + $0x28] sm:$0xff]
  %v5371 = vld [vmem:[#allocation3 + $0x30] sm:$0xff]
  %v5372 = vld [vmem:[#allocation3 + $0x38] sm:$0x3f]
  %v5373 = vld [vmem:[#allocation3 + $0x11] sm:$0xff]
  %v5374 = vld [vmem:[#allocation3 + $0x19] sm:$0xff]
  %v5375 = vld [vmem:[#allocation3 + $0x21] sm:$0xff]
  %v5376 = vld [vmem:[#allocation3 + $0x29] sm:$0xff]
  %v5377 = vld [vmem:[#allocation3 + $0x31] sm:$0xff]
  %v5378 = vld [vmem:[#allocation3 + $0x39] sm:$0x3f]
  %v5379 = vld [vmem:[#allocation3 + $0x12] sm:$0xff]
  %v5380 = vld [vmem:[#allocation3 + $0x1a] sm:$0xff]
  %v5381 = vld [vmem:[#allocation3 + $0x22] sm:$0xff]
  %v5382 = vld [vmem:[#allocation3 + $0x2a] sm:$0xff]
  %v5383 = vld [vmem:[#allocation3 + $0x32] sm:$0xff]
  %v5384 = vld [vmem:[#allocation3 + $0x3a] sm:$0x3f]
  %v5385 = vld [vmem:[%s945] sm:$0xff]
  %v5386 = vld [vmem:[%s945 + $0x8] sm:$0xff]
  %v5387 = vld [vmem:[%s945 + $0x10] sm:$0xff]
  %v5388 = vld [vmem:[%s945 + $0x18] sm:$0xff]
  %v5389 = vld [vmem:[%s945 + $0x20] sm:$0xff]
  %v5390 = vld [vmem:[%s945 + $0x28] sm:$0xff]
  %v5391 = vld [vmem:[%s945 + $0x30] sm:$0xff]
  %v5392 = vld [vmem:[%s945 + $0x38] sm:$0xff]
  %v5393 = vld [vmem:[%s945 + $0x40] sm:$0xff]
  %v5394 = vld [vmem:[%s945 + $0x48] sm:$0xff]
  %v5395 = vld [vmem:[%s945 + $0x50] sm:$0xff]
  %v5396 = vld [vmem:[%s945 + $0x58] sm:$0xff]
  %v5397 = vld [vmem:[%s945 + $0x60] sm:$0xff]
  %v5398 = vld [vmem:[%s945 + $0x68] sm:$0xff]
  %v5399 = vld [vmem:[%s945 + $0x70] sm:$0xff]
  %v5400 = vld [vmem:[%s945 + $0x78] sm:$0xff]
  %v5401 = vld [vmem:[%s945 + $0x80] sm:$0xff]
  %v5402 = vld [vmem:[%s945 + $0x88] sm:$0xff]
  %v5403 = vld [vmem:[%s945 + $0x90] sm:$0xff]
  %v5404 = vld [vmem:[%s945 + $0x98] sm:$0xff]
  %v5405 = vld [vmem:[%s945 + $0xa0] sm:$0xff]
  %v5406 = vld [vmem:[%s945 + $0xa8] sm:$0xff]
  %v5407 = vld [vmem:[%s945 + $0xb0] sm:$0xff]
  %v5408 = vld [vmem:[%s945 + $0xb8] sm:$0xff]
  %v5409 = vld [vmem:[%s945 + $0xc0] sm:$0xff]
  %v5410 = vld [vmem:[%s945 + $0xc8] sm:$0xff]
  %v5411 = vld [vmem:[%s945 + $0xd0] sm:$0xff]
  %v5412 = vld [vmem:[%s945 + $0xd8] sm:$0xff]
  %v5413 = vld [vmem:[%s945 + $0xe0] sm:$0xff]
  %v5414 = vld [vmem:[%s945 + $0xe8] sm:$0xff]
  %v5415 = vld [vmem:[%s945 + $0xf0] sm:$0xff]
  %v5416 = vld [vmem:[%s945 + $0xf8] sm:$0xff]
  %v5417 = vld [vmem:[%s945 + $0x100] sm:$0xff]
  %v5418 = vld [vmem:[%s945 + $0x108] sm:$0xff]
  %v5419 = vld [vmem:[%s945 + $0x110] sm:$0xff]
  %v5420 = vld [vmem:[%s945 + $0x118] sm:$0xff]
  %v5421 = vld [vmem:[%s945 + $0x120] sm:$0xff]
  %v5422 = vld [vmem:[%s945 + $0x128] sm:$0xff]
  %v5423 = vld [vmem:[%s945 + $0x130] sm:$0xff]
  %v5424 = vld [vmem:[%s945 + $0x138] sm:$0xff]
  %v5425 = vld [vmem:[%s945 + $0x140] sm:$0xff]
  %v5426 = vld [vmem:[%s945 + $0x148] sm:$0xff]
  %v5427 = vld [vmem:[%s945 + $0x150] sm:$0xff]
  %v5428 = vld [vmem:[%s945 + $0x158] sm:$0xff]
  %v5429 = vld [vmem:[%s945 + $0x160] sm:$0xff]
  %v5430 = vld [vmem:[%s945 + $0x168] sm:$0xff]
  %v5431 = vld [vmem:[%s945 + $0x170] sm:$0xff]
  %v5432 = vld [vmem:[%s945 + $0x178] sm:$0xff]
  %5433 = vmatpush.msra.mxu0 %v5400
  %5434 = vmatpush.msra.mxu0 %v5399
  %5435 = vmatpush.msra.mxu0 %v5398
  %5436 = vmatpush.msra.mxu0 %v5397
  %5437 = vmatpush.msra.mxu0 %v5396
  %5438 = vmatpush.msra.mxu0 %v5395
  %5439 = vmatpush.msra.mxu0 %v5394
  %5440 = vmatpush.msra.mxu0 %v5393
  %5441 = vmatpush.msra.mxu0 %v5392
  %5442 = vmatpush.msra.mxu0 %v5391
  %5443 = vmatpush.msra.mxu0 %v5390
  %5444 = vmatpush.msra.mxu0 %v5389
  %5445 = vmatpush.msra.mxu0 %v5388
  %5446 = vmatpush.msra.mxu0 %v5387
  %5447 = vmatpush.msra.mxu0 %v5386
  %5448 = vmatpush.msra.mxu0 %v5385
  %5449 = vmatmul.f32.gmra.mxu0 %v5367
  %v5450 = vpop.f32.mrf.mxu0
  %v5451 = vadd.f32 0.0, %v5450
  %5452 = vmatmul.f32.gmra.mxu0 %v5368
  %v5453 = vpop.f32.mrf.mxu0
  %v5454 = vadd.f32 0.0, %v5453
  %5455 = vmatmul.f32.gmra.mxu0 %v5369
  %v5456 = vpop.f32.mrf.mxu0
  %v5457 = vadd.f32 0.0, %v5456
  %5458 = vmatmul.f32.gmra.mxu0 %v5370
  %v5459 = vpop.f32.mrf.mxu0
  %v5460 = vadd.f32 0.0, %v5459
  %5461 = vmatmul.f32.gmra.mxu0 %v5371
  %v5462 = vpop.f32.mrf.mxu0
  %v5463 = vadd.f32 0.0, %v5462
  %5464 = vmatmul.f32.gmra.mxu0 %v5372
  %v5465 = vpop.f32.mrf.mxu0
  %v5466 = vadd.f32 0.0, %v5465
  %5467 = vdwg.mxu0
  %5468 = vmatpush.msra.mxu0 %v5416
  %5469 = vmatpush.msra.mxu0 %v5415
  %5470 = vmatpush.msra.mxu0 %v5414
  %5471 = vmatpush.msra.mxu0 %v5413
  %5472 = vmatpush.msra.mxu0 %v5412
  %5473 = vmatpush.msra.mxu0 %v5411
  %5474 = vmatpush.msra.mxu0 %v5410
  %5475 = vmatpush.msra.mxu0 %v5409
  %5476 = vmatpush.msra.mxu0 %v5408
  %5477 = vmatpush.msra.mxu0 %v5407
  %5478 = vmatpush.msra.mxu0 %v5406
  %5479 = vmatpush.msra.mxu0 %v5405
  %5480 = vmatpush.msra.mxu0 %v5404
  %5481 = vmatpush.msra.mxu0 %v5403
  %5482 = vmatpush.msra.mxu0 %v5402
  %5483 = vmatpush.msra.mxu0 %v5401
  %5484 = vmatmul.f32.gmra.mxu0 %v5373
  %v5485 = vpop.f32.mrf.mxu0
  %v5486 = vadd.f32 %v5451, %v5485
  %5487 = vmatmul.f32.gmra.mxu0 %v5374
  %v5488 = vpop.f32.mrf.mxu0
  %v5489 = vadd.f32 %v5454, %v5488
  %5490 = vmatmul.f32.gmra.mxu0 %v5375
  %v5491 = vpop.f32.mrf.mxu0
  %v5492 = vadd.f32 %v5457, %v5491
  %5493 = vmatmul.f32.gmra.mxu0 %v5376
  %v5494 = vpop.f32.mrf.mxu0
  %v5495 = vadd.f32 %v5460, %v5494
  %5496 = vmatmul.f32.gmra.mxu0 %v5377
  %v5497 = vpop.f32.mrf.mxu0
  %v5498 = vadd.f32 %v5463, %v5497
  %5499 = vmatmul.f32.gmra.mxu0 %v5378
  %v5500 = vpop.f32.mrf.mxu0
  %v5501 = vadd.f32 %v5466, %v5500
  %5502 = vdwg.mxu0
  %5503 = vmatpush.msra.mxu0 %v5432
  %5504 = vmatpush.msra.mxu0 %v5431
  %5505 = vmatpush.msra.mxu0 %v5430
  %5506 = vmatpush.msra.mxu0 %v5429
  %5507 = vmatpush.msra.mxu0 %v5428
  %5508 = vmatpush.msra.mxu0 %v5427
  %5509 = vmatpush.msra.mxu0 %v5426
  %5510 = vmatpush.msra.mxu0 %v5425
  %5511 = vmatpush.msra.mxu0 %v5424
  %5512 = vmatpush.msra.mxu0 %v5423
  %5513 = vmatpush.msra.mxu0 %v5422
  %5514 = vmatpush.msra.mxu0 %v5421
  %5515 = vmatpush.msra.mxu0 %v5420
  %5516 = vmatpush.msra.mxu0 %v5419
  %5517 = vmatpush.msra.mxu0 %v5418
  %5518 = vmatpush.msra.mxu0 %v5417
  %5519 = vmatmul.f32.gmra.mxu0 %v5379
  %v5520 = vpop.f32.mrf.mxu0
  %v5521 = vadd.f32 %v5486, %v5520
  %5522 = vmatmul.f32.gmra.mxu0 %v5380
  %v5523 = vpop.f32.mrf.mxu0
  %v5524 = vadd.f32 %v5489, %v5523
  %5525 = vmatmul.f32.gmra.mxu0 %v5381
  %v5526 = vpop.f32.mrf.mxu0
  %v5527 = vadd.f32 %v5492, %v5526
  %5528 = vmatmul.f32.gmra.mxu0 %v5382
  %v5529 = vpop.f32.mrf.mxu0
  %v5530 = vadd.f32 %v5495, %v5529
  %5531 = vmatmul.f32.gmra.mxu0 %v5383
  %v5532 = vpop.f32.mrf.mxu0
  %v5533 = vadd.f32 %v5498, %v5532
  %5534 = vmatmul.f32.gmra.mxu0 %v5384
  %v5535 = vpop.f32.mrf.mxu0
  %v5536 = vadd.f32 %v5501, %v5535
  %5537 = vdwg.mxu0
  %v5538 = vadd.f32 %v5350, %v5521
  %v5539 = vadd.f32 %v5353, %v5524
  %v5540 = vadd.f32 %v5356, %v5527
  %v5541 = vadd.f32 %v5359, %v5530
  %v5542 = vadd.f32 %v5362, %v5533
  %v5543 = vadd.f32 %v5365, %v5536
  %5544 = vst [vmem:[#allocation2] sm:$0xff] %v5538
  %5545 = vst [vmem:[#allocation2 + $0x8] sm:$0xff] %v5539
  %5546 = vst [vmem:[#allocation2 + $0x10] sm:$0xff] %v5540
  %5547 = vst [vmem:[#allocation2 + $0x18] sm:$0xff] %v5541
  %5548 = vst [vmem:[#allocation2 + $0x20] sm:$0xff] %v5542
  %5549 = vst [vmem:[#allocation2 + $0x28] sm:$0x3f] %v5543
  %v5550 = vld [vmem:[#allocation2] ss:$2 sm:$0x7]
  %v5551 = vld [vmem:[%s297] ss:$2 sm:$0x7]
  %v5552 = vld [vmem:[%s1113] ss:$2 sm:$0x7]
  %v5553 = vld [vmem:[%s1115] ss:$2 sm:$0x7]
  %v5554 = vmax.f32 %v5550, %v5551
  %v5555 = vmax.f32 %v5552, %v5553
  %v5556 = vmax.f32 %v5554, %v5555
  %v5557 = vld [vmem:[%s1120] ss:$2 sm:$0x7]
  %v5558 = vld [vmem:[%s299] ss:$2 sm:$0x7]
  %v5559 = vld [vmem:[%s1123] ss:$2 sm:$0x7]
  %v5560 = vld [vmem:[%s1125] ss:$2 sm:$0x7]
  %v5561 = vmax.f32 %v5557, %v5558
  %v5562 = vmax.f32 %v5559, %v5560
  %v5563 = vmax.f32 %v5561, %v5562
  %v5564 = vld [vmem:[%s1130] ss:$2 sm:$0x7]
  %v5565 = vld [vmem:[%s301] ss:$2 sm:$0x7]
  %v5566 = vld [vmem:[%s1133] ss:$2 sm:$0x7]
  %v5567 = vld [vmem:[%s1135] ss:$2 sm:$0x7]
  %v5568 = vmax.f32 %v5564, %v5565
  %v5569 = vmax.f32 %v5566, %v5567
  %v5570 = vmax.f32 %v5568, %v5569
  %v5572 = vrot.slane %v5563, 5
  %v5575 = vrot.slane %v5570, 2
  %v5577 = vsel %vm1146, %v5556, %v5572
  %v5578 = vsel %vm1148, %v5577, %v5575
  %v5579 = vadd.f32 %v5578, %v34
  %v5580 = vadd.f32 %v5575, %v34
  %v5581 = vmax.f32 %v5579, 0.0
  %v5582 = vmax.f32 %v5580, 0.0
  %v5583 = vmul.f32 %v5581, %v36
  %v5584 = vmul.f32 %v5582, %v37
  %v5585 = vsel %vm1156, %v5584, 0.0
  %v5586 = vadd.f32 %v5583, %v5585
  %v5587 = vrot.slane %v5586, 4
  %v5588 = vadd.f32 %v5586, %v5587
  %v5589 = vrot.slane %v5588, 2
  %v5590 = vadd.f32 %v5588, %v5589
  %v5591 = vrot.slane %v5590, 1
  %v5592 = vadd.f32 %v5590, %v5591
  %5593 = vst [vmem:[#allocation4 + $0x4] sm:$0x1] %v5592
  %v5594 = vld [vmem:[%s0 + $0xa00] sm:$0xff]
  %v5595 = vld [vmem:[%s0 + $0xa08] sm:$0xff]
  %v5596 = vld [vmem:[%s0 + $0xa10] sm:$0xff]
  %v5597 = vld [vmem:[%s0 + $0xa18] sm:$0xff]
  %v5598 = vld [vmem:[%s0 + $0xa20] sm:$0xff]
  %v5599 = vld [vmem:[%s0 + $0xa28] sm:$0xff]
  %v5600 = vld [vmem:[%s0 + $0xa30] sm:$0xff]
  %v5601 = vld [vmem:[%s0 + $0xa38] sm:$0xff]
  %v5602 = vld [vmem:[%s0 + $0xa40] sm:$0xff]
  %v5603 = vld [vmem:[%s0 + $0xa48] sm:$0xff]
  %v5604 = vld [vmem:[%s0 + $0xa50] sm:$0xff]
  %v5605 = vld [vmem:[%s0 + $0xa58] sm:$0xff]
  %v5606 = vld [vmem:[%s0 + $0xa60] sm:$0xff]
  %v5607 = vld [vmem:[%s0 + $0xa68] sm:$0xff]
  %v5608 = vld [vmem:[%s0 + $0xa70] sm:$0xff]
  %v5609 = vld [vmem:[%s0 + $0xa78] sm:$0xff]
  %v5610 = vld [vmem:[%s0 + $0xa80] sm:$0xff]
  %v5611 = vld [vmem:[%s0 + $0xa88] sm:$0xff]
  %v5612 = vld [vmem:[%s0 + $0xa90] sm:$0xff]
  %v5613 = vld [vmem:[%s0 + $0xa98] sm:$0xff]
  %v5614 = vld [vmem:[%s0 + $0xaa0] sm:$0xff]
  %v5615 = vld [vmem:[%s0 + $0xaa8] sm:$0xff]
  %v5616 = vld [vmem:[%s0 + $0xab0] sm:$0xff]
  %v5617 = vld [vmem:[%s0 + $0xab8] sm:$0xff]
  %v5618 = vld [vmem:[%s0 + $0xac0] sm:$0xff]
  %v5619 = vld [vmem:[%s0 + $0xac8] sm:$0xff]
  %v5620 = vld [vmem:[%s0 + $0xad0] sm:$0xff]
  %v5621 = vld [vmem:[%s0 + $0xad8] sm:$0xff]
  %v5622 = vld [vmem:[%s0 + $0xae0] sm:$0xff]
  %v5623 = vld [vmem:[%s0 + $0xae8] sm:$0xff]
  %v5624 = vld [vmem:[%s0 + $0xaf0] sm:$0xff]
  %v5625 = vld [vmem:[%s0 + $0xaf8] sm:$0xff]
  %v5626 = vld [vmem:[%s1] sm:$0xff]
  %v5627 = vld [vmem:[%s1 + $0x8] sm:$0xff]
  %v5628 = vld [vmem:[%s1 + $0x10] sm:$0xff]
  %v5629 = vld [vmem:[%s1 + $0x18] sm:$0xff]
  %v5630 = vld [vmem:[%s1 + $0x20] sm:$0xff]
  %v5631 = vld [vmem:[%s1 + $0x28] sm:$0xff]
  %v5632 = vld [vmem:[%s1 + $0x30] sm:$0xff]
  %v5633 = vld [vmem:[%s1 + $0x38] sm:$0xff]
  %v5634 = vld [vmem:[%s1 + $0x40] sm:$0xff]
  %v5635 = vld [vmem:[%s1 + $0x48] sm:$0xff]
  %v5636 = vld [vmem:[%s1 + $0x50] sm:$0xff]
  %v5637 = vld [vmem:[%s1 + $0x58] sm:$0xff]
  %v5638 = vld [vmem:[%s1 + $0x60] sm:$0xff]
  %v5639 = vld [vmem:[%s1 + $0x68] sm:$0xff]
  %v5640 = vld [vmem:[%s1 + $0x70] sm:$0xff]
  %v5641 = vld [vmem:[%s1 + $0x78] sm:$0xff]
  %v5642 = vld [vmem:[%s1 + $0x80] sm:$0xff]
  %v5643 = vld [vmem:[%s1 + $0x88] sm:$0xff]
  %v5644 = vld [vmem:[%s1 + $0x90] sm:$0xff]
  %v5645 = vld [vmem:[%s1 + $0x98] sm:$0xff]
  %v5646 = vld [vmem:[%s1 + $0xa0] sm:$0xff]
  %v5647 = vld [vmem:[%s1 + $0xa8] sm:$0xff]
  %v5648 = vld [vmem:[%s1 + $0xb0] sm:$0xff]
  %v5649 = vld [vmem:[%s1 + $0xb8] sm:$0xff]
  %v5650 = vld [vmem:[%s1 + $0xc0] sm:$0xff]
  %v5652 = vsel %vm95, %v5595, 0
  %v5655 = vsel %vm95, %v5597, 0
  %v5658 = vsel %vm95, %v5599, 0
  %v5661 = vsel %vm95, %v5601, 0
  %v5664 = vsel %vm95, %v5603, 0
  %v5667 = vsel %vm95, %v5605, 0
  %v5670 = vsel %vm95, %v5607, 0
  %v5673 = vsel %vm95, %v5609, 0
  %v5676 = vsel %vm95, %v5611, 0
  %v5679 = vsel %vm95, %v5613, 0
  %v5682 = vsel %vm95, %v5615, 0
  %v5685 = vsel %vm95, %v5617, 0
  %v5688 = vsel %vm95, %v5619, 0
  %v5691 = vsel %vm95, %v5621, 0
  %v5694 = vsel %vm95, %v5623, 0
  %v5697 = vsel %vm95, %v5625, 0
  %5699 = vmatpush.msra.mxu0 %v5641
  %5700 = vmatpush.msra.mxu0 %v5640
  %5701 = vmatpush.msra.mxu0 %v5639
  %5702 = vmatpush.msra.mxu0 %v5638
  %5703 = vmatpush.msra.mxu0 %v5637
  %5704 = vmatpush.msra.mxu0 %v5636
  %5705 = vmatpush.msra.mxu0 %v5635
  %5706 = vmatpush.msra.mxu0 %v5634
  %5707 = vmatpush.msra.mxu0 %v5633
  %5708 = vmatpush.msra.mxu0 %v5632
  %5709 = vmatpush.msra.mxu0 %v5631
  %5710 = vmatpush.msra.mxu0 %v5630
  %5711 = vmatpush.msra.mxu0 %v5629
  %5712 = vmatpush.msra.mxu0 %v5628
  %5713 = vmatpush.msra.mxu0 %v5627
  %5714 = vmatpush.msra.mxu0 %v5626
  %5715 = vmatmul.f32.gmra.mxu0 %v5594
  %v5716 = vpop.f32.mrf.mxu0
  %v5717 = vadd.f32 0.0, %v5716
  %5718 = vmatmul.f32.gmra.mxu0 %v5596
  %v5719 = vpop.f32.mrf.mxu0
  %v5720 = vadd.f32 0.0, %v5719
  %5721 = vmatmul.f32.gmra.mxu0 %v5598
  %v5722 = vpop.f32.mrf.mxu0
  %v5723 = vadd.f32 0.0, %v5722
  %5724 = vmatmul.f32.gmra.mxu0 %v5600
  %v5725 = vpop.f32.mrf.mxu0
  %v5726 = vadd.f32 0.0, %v5725
  %5727 = vmatmul.f32.gmra.mxu0 %v5602
  %v5728 = vpop.f32.mrf.mxu0
  %v5729 = vadd.f32 0.0, %v5728
  %5730 = vmatmul.f32.gmra.mxu0 %v5604
  %v5731 = vpop.f32.mrf.mxu0
  %v5732 = vadd.f32 0.0, %v5731
  %5733 = vmatmul.f32.gmra.mxu0 %v5606
  %v5734 = vpop.f32.mrf.mxu0
  %v5735 = vadd.f32 0.0, %v5734
  %5736 = vmatmul.f32.gmra.mxu0 %v5608
  %v5737 = vpop.f32.mrf.mxu0
  %v5738 = vadd.f32 0.0, %v5737
  %5739 = vmatmul.f32.gmra.mxu0 %v5610
  %v5740 = vpop.f32.mrf.mxu0
  %v5741 = vadd.f32 0.0, %v5740
  %5742 = vmatmul.f32.gmra.mxu0 %v5612
  %v5743 = vpop.f32.mrf.mxu0
  %v5744 = vadd.f32 0.0, %v5743
  %5745 = vmatmul.f32.gmra.mxu0 %v5614
  %v5746 = vpop.f32.mrf.mxu0
  %v5747 = vadd.f32 0.0, %v5746
  %5748 = vmatmul.f32.gmra.mxu0 %v5616
  %v5749 = vpop.f32.mrf.mxu0
  %v5750 = vadd.f32 0.0, %v5749
  %5751 = vmatmul.f32.gmra.mxu0 %v5618
  %v5752 = vpop.f32.mrf.mxu0
  %v5753 = vadd.f32 0.0, %v5752
  %5754 = vmatmul.f32.gmra.mxu0 %v5620
  %v5755 = vpop.f32.mrf.mxu0
  %v5756 = vadd.f32 0.0, %v5755
  %5757 = vmatmul.f32.gmra.mxu0 %v5622
  %v5758 = vpop.f32.mrf.mxu0
  %v5759 = vadd.f32 0.0, %v5758
  %5760 = vmatmul.f32.gmra.mxu0 %v5624
  %v5761 = vpop.f32.mrf.mxu0
  %v5762 = vadd.f32 0.0, %v5761
  %5763 = vdwg.mxu0
  %5764 = vmatpush.msra.mxu0 0.0
  %5765 = vmatpush.msra.mxu0 0.0
  %5766 = vmatpush.msra.mxu0 0.0
  %5767 = vmatpush.msra.mxu0 0.0
  %5768 = vmatpush.msra.mxu0 0.0
  %5769 = vmatpush.msra.mxu0 0.0
  %5770 = vmatpush.msra.mxu0 0.0
  %5771 = vmatpush.msra.mxu0 %v5650
  %5772 = vmatpush.msra.mxu0 %v5649
  %5773 = vmatpush.msra.mxu0 %v5648
  %5774 = vmatpush.msra.mxu0 %v5647
  %5775 = vmatpush.msra.mxu0 %v5646
  %5776 = vmatpush.msra.mxu0 %v5645
  %5777 = vmatpush.msra.mxu0 %v5644
  %5778 = vmatpush.msra.mxu0 %v5643
  %5779 = vmatpush.msra.mxu0 %v5642
  %5780 = vmatmul.f32.gmra.mxu0 %v5652
  %v5781 = vpop.f32.mrf.mxu0
  %v5782 = vadd.f32 %v5717, %v5781
  %5783 = vmatmul.f32.gmra.mxu0 %v5655
  %v5784 = vpop.f32.mrf.mxu0
  %v5785 = vadd.f32 %v5720, %v5784
  %5786 = vmatmul.f32.gmra.mxu0 %v5658
  %v5787 = vpop.f32.mrf.mxu0
  %v5788 = vadd.f32 %v5723, %v5787
  %5789 = vmatmul.f32.gmra.mxu0 %v5661
  %v5790 = vpop.f32.mrf.mxu0
  %v5791 = vadd.f32 %v5726, %v5790
  %5792 = vmatmul.f32.gmra.mxu0 %v5664
  %v5793 = vpop.f32.mrf.mxu0
  %v5794 = vadd.f32 %v5729, %v5793
  %5795 = vmatmul.f32.gmra.mxu0 %v5667
  %v5796 = vpop.f32.mrf.mxu0
  %v5797 = vadd.f32 %v5732, %v5796
  %5798 = vmatmul.f32.gmra.mxu0 %v5670
  %v5799 = vpop.f32.mrf.mxu0
  %v5800 = vadd.f32 %v5735, %v5799
  %5801 = vmatmul.f32.gmra.mxu0 %v5673
  %v5802 = vpop.f32.mrf.mxu0
  %v5803 = vadd.f32 %v5738, %v5802
  %5804 = vmatmul.f32.gmra.mxu0 %v5676
  %v5805 = vpop.f32.mrf.mxu0
  %v5806 = vadd.f32 %v5741, %v5805
  %5807 = vmatmul.f32.gmra.mxu0 %v5679
  %v5808 = vpop.f32.mrf.mxu0
  %v5809 = vadd.f32 %v5744, %v5808
  %5810 = vmatmul.f32.gmra.mxu0 %v5682
  %v5811 = vpop.f32.mrf.mxu0
  %v5812 = vadd.f32 %v5747, %v5811
  %5813 = vmatmul.f32.gmra.mxu0 %v5685
  %v5814 = vpop.f32.mrf.mxu0
  %v5815 = vadd.f32 %v5750, %v5814
  %5816 = vmatmul.f32.gmra.mxu0 %v5688
  %v5817 = vpop.f32.mrf.mxu0
  %v5818 = vadd.f32 %v5753, %v5817
  %5819 = vmatmul.f32.gmra.mxu0 %v5691
  %v5820 = vpop.f32.mrf.mxu0
  %v5821 = vadd.f32 %v5756, %v5820
  %5822 = vmatmul.f32.gmra.mxu0 %v5694
  %v5823 = vpop.f32.mrf.mxu0
  %v5824 = vadd.f32 %v5759, %v5823
  %5825 = vmatmul.f32.gmra.mxu0 %v5697
  %v5826 = vpop.f32.mrf.mxu0
  %v5827 = vadd.f32 %v5762, %v5826
  %5828 = vdwg.mxu0
  %v5829 = vmax.f32 %v5782, %v5788
  %v5830 = vmax.f32 %v5785, %v5791
  %v5831 = vmax.f32 %v5794, %v5800
  %v5832 = vmax.f32 %v5797, %v5803
  %v5833 = vmax.f32 %v5806, %v5812
  %v5834 = vmax.f32 %v5809, %v5815
  %v5835 = vmax.f32 %v5818, %v5824
  %v5836 = vmax.f32 %v5821, %v5827
  %5837 = vst [vmem:[#allocation2] sm:$0xff] %v5829
  %5838 = vst [vmem:[#allocation2 + $0x8] sm:$0xff] %v5830
  %5839 = vst [vmem:[#allocation2 + $0x10] sm:$0xff] %v5831
  %5840 = vst [vmem:[#allocation2 + $0x18] sm:$0xff] %v5832
  %5841 = vst [vmem:[#allocation2 + $0x20] sm:$0xff] %v5833
  %5842 = vst [vmem:[#allocation2 + $0x28] sm:$0xff] %v5834
  %5843 = vst [vmem:[#allocation2 + $0x30] sm:$0xff] %v5835
  %5844 = vst [vmem:[#allocation2 + $0x38] sm:$0xff] %v5836
  %v5845 = vld [vmem:[#allocation2] ss:$2 sm:$0xff]
  %v5846 = vld [vmem:[%s291] ss:$2 sm:$0xff]
  %v5847 = vld [vmem:[%s293] ss:$2 sm:$0xff]
  %v5848 = vld [vmem:[%s295] ss:$2 sm:$0xff]
  %v5849 = vld [vmem:[%s297] ss:$2 sm:$0xff]
  %v5850 = vld [vmem:[%s299] ss:$2 sm:$0xff]
  %v5851 = vld [vmem:[%s301] ss:$2 sm:$0xff]
  %v5852 = vld [vmem:[%s303] ss:$2 sm:$0xff]
  %v5853 = vmax.f32 %v5845, %v5849
  %v5854 = vmax.f32 %v5846, %v5850
  %v5855 = vmax.f32 %v5847, %v5851
  %v5856 = vmax.f32 %v5848, %v5852
  %v5857 = vadd.f32 %v5853, %v30
  %v5858 = vadd.f32 %v5854, %v30
  %v5859 = vadd.f32 %v5855, %v30
  %v5860 = vadd.f32 %v5856, %v30
  %v5861 = vmax.f32 %v5857, 0.0
  %v5862 = vmax.f32 %v5858, 0.0
  %v5863 = vmax.f32 %v5859, 0.0
  %v5864 = vmax.f32 %v5860, 0.0
  %5865 = vst [vmem:[#allocation3] sm:$0xff] %v5861
  %5866 = vst [vmem:[#allocation3 + $0x8] sm:$0xff] %v5862
  %5867 = vst [vmem:[#allocation3 + $0x10] sm:$0xff] %v5863
  %5868 = vst [vmem:[#allocation3 + $0x18] sm:$0xff] %v5864
  %v5869 = vld [vmem:[%s0 + $0xb00] sm:$0xff]
  %v5870 = vld [vmem:[%s0 + $0xb08] sm:$0xff]
  %v5871 = vld [vmem:[%s0 + $0xb10] sm:$0xff]
  %v5872 = vld [vmem:[%s0 + $0xb18] sm:$0xff]
  %v5873 = vld [vmem:[%s0 + $0xb20] sm:$0xff]
  %v5874 = vld [vmem:[%s0 + $0xb28] sm:$0xff]
  %v5875 = vld [vmem:[%s0 + $0xb30] sm:$0xff]
  %v5876 = vld [vmem:[%s0 + $0xb38] sm:$0xff]
  %v5877 = vld [vmem:[%s0 + $0xb40] sm:$0xff]
  %v5878 = vld [vmem:[%s0 + $0xb48] sm:$0xff]
  %v5879 = vld [vmem:[%s0 + $0xb50] sm:$0xff]
  %v5880 = vld [vmem:[%s0 + $0xb58] sm:$0xff]
  %v5881 = vld [vmem:[%s0 + $0xb60] sm:$0xff]
  %v5882 = vld [vmem:[%s0 + $0xb68] sm:$0xff]
  %v5883 = vld [vmem:[%s0 + $0xb70] sm:$0xff]
  %v5884 = vld [vmem:[%s0 + $0xb78] sm:$0xff]
  %v5885 = vld [vmem:[%s0 + $0xb80] sm:$0xff]
  %v5886 = vld [vmem:[%s0 + $0xb88] sm:$0xff]
  %v5887 = vld [vmem:[%s0 + $0xb90] sm:$0xff]
  %v5888 = vld [vmem:[%s0 + $0xb98] sm:$0xff]
  %v5889 = vld [vmem:[%s0 + $0xba0] sm:$0xff]
  %v5890 = vld [vmem:[%s0 + $0xba8] sm:$0xff]
  %v5891 = vld [vmem:[%s0 + $0xbb0] sm:$0xff]
  %v5892 = vld [vmem:[%s0 + $0xbb8] sm:$0xff]
  %v5893 = vld [vmem:[%s0 + $0xbc0] sm:$0xff]
  %v5894 = vld [vmem:[%s0 + $0xbc8] sm:$0xff]
  %v5895 = vld [vmem:[%s0 + $0xbd0] sm:$0xff]
  %v5896 = vld [vmem:[%s0 + $0xbd8] sm:$0xff]
  %v5897 = vld [vmem:[%s0 + $0xbe0] sm:$0xff]
  %v5898 = vld [vmem:[%s0 + $0xbe8] sm:$0xff]
  %v5899 = vld [vmem:[%s0 + $0xbf0] sm:$0xff]
  %v5900 = vld [vmem:[%s0 + $0xbf8] sm:$0xff]
  %v5901 = vld [vmem:[%s1] sm:$0xff]
  %v5902 = vld [vmem:[%s1 + $0x8] sm:$0xff]
  %v5903 = vld [vmem:[%s1 + $0x10] sm:$0xff]
  %v5904 = vld [vmem:[%s1 + $0x18] sm:$0xff]
  %v5905 = vld [vmem:[%s1 + $0x20] sm:$0xff]
  %v5906 = vld [vmem:[%s1 + $0x28] sm:$0xff]
  %v5907 = vld [vmem:[%s1 + $0x30] sm:$0xff]
  %v5908 = vld [vmem:[%s1 + $0x38] sm:$0xff]
  %v5909 = vld [vmem:[%s1 + $0x40] sm:$0xff]
  %v5910 = vld [vmem:[%s1 + $0x48] sm:$0xff]
  %v5911 = vld [vmem:[%s1 + $0x50] sm:$0xff]
  %v5912 = vld [vmem:[%s1 + $0x58] sm:$0xff]
  %v5913 = vld [vmem:[%s1 + $0x60] sm:$0xff]
  %v5914 = vld [vmem:[%s1 + $0x68] sm:$0xff]
  %v5915 = vld [vmem:[%s1 + $0x70] sm:$0xff]
  %v5916 = vld [vmem:[%s1 + $0x78] sm:$0xff]
  %v5917 = vld [vmem:[%s1 + $0x80] sm:$0xff]
  %v5918 = vld [vmem:[%s1 + $0x88] sm:$0xff]
  %v5919 = vld [vmem:[%s1 + $0x90] sm:$0xff]
  %v5920 = vld [vmem:[%s1 + $0x98] sm:$0xff]
  %v5921 = vld [vmem:[%s1 + $0xa0] sm:$0xff]
  %v5922 = vld [vmem:[%s1 + $0xa8] sm:$0xff]
  %v5923 = vld [vmem:[%s1 + $0xb0] sm:$0xff]
  %v5924 = vld [vmem:[%s1 + $0xb8] sm:$0xff]
  %v5925 = vld [vmem:[%s1 + $0xc0] sm:$0xff]
  %v5927 = vsel %vm95, %v5870, 0
  %v5930 = vsel %vm95, %v5872, 0
  %v5933 = vsel %vm95, %v5874, 0
  %v5936 = vsel %vm95, %v5876, 0
  %v5939 = vsel %vm95, %v5878, 0
  %v5942 = vsel %vm95, %v5880, 0
  %v5945 = vsel %vm95, %v5882, 0
  %v5948 = vsel %vm95, %v5884, 0
  %v5951 = vsel %vm95, %v5886, 0
  %v5954 = vsel %vm95, %v5888, 0
  %v5957 = vsel %vm95, %v5890, 0
  %v5960 = vsel %vm95, %v5892, 0
  %v5963 = vsel %vm95, %v5894, 0
  %v5966 = vsel %vm95, %v5896, 0
  %v5969 = vsel %vm95, %v5898, 0
  %v5972 = vsel %vm95, %v5900, 0
  %5974 = vmatpush.msra.mxu0 %v5916
  %5975 = vmatpush.msra.mxu0 %v5915
  %5976 = vmatpush.msra.mxu0 %v5914
  %5977 = vmatpush.msra.mxu0 %v5913
  %5978 = vmatpush.msra.mxu0 %v5912
  %5979 = vmatpush.msra.mxu0 %v5911
  %5980 = vmatpush.msra.mxu0 %v5910
  %5981 = vmatpush.msra.mxu0 %v5909
  %5982 = vmatpush.msra.mxu0 %v5908
  %5983 = vmatpush.msra.mxu0 %v5907
  %5984 = vmatpush.msra.mxu0 %v5906
  %5985 = vmatpush.msra.mxu0 %v5905
  %5986 = vmatpush.msra.mxu0 %v5904
  %5987 = vmatpush.msra.mxu0 %v5903
  %5988 = vmatpush.msra.mxu0 %v5902
  %5989 = vmatpush.msra.mxu0 %v5901
  %5990 = vmatmul.f32.gmra.mxu0 %v5869
  %v5991 = vpop.f32.mrf.mxu0
  %v5992 = vadd.f32 0.0, %v5991
  %5993 = vmatmul.f32.gmra.mxu0 %v5871
  %v5994 = vpop.f32.mrf.mxu0
  %v5995 = vadd.f32 0.0, %v5994
  %5996 = vmatmul.f32.gmra.mxu0 %v5873
  %v5997 = vpop.f32.mrf.mxu0
  %v5998 = vadd.f32 0.0, %v5997
  %5999 = vmatmul.f32.gmra.mxu0 %v5875
  %v6000 = vpop.f32.mrf.mxu0
  %v6001 = vadd.f32 0.0, %v6000
  %6002 = vmatmul.f32.gmra.mxu0 %v5877
  %v6003 = vpop.f32.mrf.mxu0
  %v6004 = vadd.f32 0.0, %v6003
  %6005 = vmatmul.f32.gmra.mxu0 %v5879
  %v6006 = vpop.f32.mrf.mxu0
  %v6007 = vadd.f32 0.0, %v6006
  %6008 = vmatmul.f32.gmra.mxu0 %v5881
  %v6009 = vpop.f32.mrf.mxu0
  %v6010 = vadd.f32 0.0, %v6009
  %6011 = vmatmul.f32.gmra.mxu0 %v5883
  %v6012 = vpop.f32.mrf.mxu0
  %v6013 = vadd.f32 0.0, %v6012
  %6014 = vmatmul.f32.gmra.mxu0 %v5885
  %v6015 = vpop.f32.mrf.mxu0
  %v6016 = vadd.f32 0.0, %v6015
  %6017 = vmatmul.f32.gmra.mxu0 %v5887
  %v6018 = vpop.f32.mrf.mxu0
  %v6019 = vadd.f32 0.0, %v6018
  %6020 = vmatmul.f32.gmra.mxu0 %v5889
  %v6021 = vpop.f32.mrf.mxu0
  %v6022 = vadd.f32 0.0, %v6021
  %6023 = vmatmul.f32.gmra.mxu0 %v5891
  %v6024 = vpop.f32.mrf.mxu0
  %v6025 = vadd.f32 0.0, %v6024
  %6026 = vmatmul.f32.gmra.mxu0 %v5893
  %v6027 = vpop.f32.mrf.mxu0
  %v6028 = vadd.f32 0.0, %v6027
  %6029 = vmatmul.f32.gmra.mxu0 %v5895
  %v6030 = vpop.f32.mrf.mxu0
  %v6031 = vadd.f32 0.0, %v6030
  %6032 = vmatmul.f32.gmra.mxu0 %v5897
  %v6033 = vpop.f32.mrf.mxu0
  %v6034 = vadd.f32 0.0, %v6033
  %6035 = vmatmul.f32.gmra.mxu0 %v5899
  %v6036 = vpop.f32.mrf.mxu0
  %v6037 = vadd.f32 0.0, %v6036
  %6038 = vdwg.mxu0
  %6039 = vmatpush.msra.mxu0 0.0
  %6040 = vmatpush.msra.mxu0 0.0
  %6041 = vmatpush.msra.mxu0 0.0
  %6042 = vmatpush.msra.mxu0 0.0
  %6043 = vmatpush.msra.mxu0 0.0
  %6044 = vmatpush.msra.mxu0 0.0
  %6045 = vmatpush.msra.mxu0 0.0
  %6046 = vmatpush.msra.mxu0 %v5925
  %6047 = vmatpush.msra.mxu0 %v5924
  %6048 = vmatpush.msra.mxu0 %v5923
  %6049 = vmatpush.msra.mxu0 %v5922
  %6050 = vmatpush.msra.mxu0 %v5921
  %6051 = vmatpush.msra.mxu0 %v5920
  %6052 = vmatpush.msra.mxu0 %v5919
  %6053 = vmatpush.msra.mxu0 %v5918
  %6054 = vmatpush.msra.mxu0 %v5917
  %6055 = vmatmul.f32.gmra.mxu0 %v5927
  %v6056 = vpop.f32.mrf.mxu0
  %v6057 = vadd.f32 %v5992, %v6056
  %6058 = vmatmul.f32.gmra.mxu0 %v5930
  %v6059 = vpop.f32.mrf.mxu0
  %v6060 = vadd.f32 %v5995, %v6059
  %6061 = vmatmul.f32.gmra.mxu0 %v5933
  %v6062 = vpop.f32.mrf.mxu0
  %v6063 = vadd.f32 %v5998, %v6062
  %6064 = vmatmul.f32.gmra.mxu0 %v5936
  %v6065 = vpop.f32.mrf.mxu0
  %v6066 = vadd.f32 %v6001, %v6065
  %6067 = vmatmul.f32.gmra.mxu0 %v5939
  %v6068 = vpop.f32.mrf.mxu0
  %v6069 = vadd.f32 %v6004, %v6068
  %6070 = vmatmul.f32.gmra.mxu0 %v5942
  %v6071 = vpop.f32.mrf.mxu0
  %v6072 = vadd.f32 %v6007, %v6071
  %6073 = vmatmul.f32.gmra.mxu0 %v5945
  %v6074 = vpop.f32.mrf.mxu0
  %v6075 = vadd.f32 %v6010, %v6074
  %6076 = vmatmul.f32.gmra.mxu0 %v5948
  %v6077 = vpop.f32.mrf.mxu0
  %v6078 = vadd.f32 %v6013, %v6077
  %6079 = vmatmul.f32.gmra.mxu0 %v5951
  %v6080 = vpop.f32.mrf.mxu0
  %v6081 = vadd.f32 %v6016, %v6080
  %6082 = vmatmul.f32.gmra.mxu0 %v5954
  %v6083 = vpop.f32.mrf.mxu0
  %v6084 = vadd.f32 %v6019, %v6083
  %6085 = vmatmul.f32.gmra.mxu0 %v5957
  %v6086 = vpop.f32.mrf.mxu0
  %v6087 = vadd.f32 %v6022, %v6086
  %6088 = vmatmul.f32.gmra.mxu0 %v5960
  %v6089 = vpop.f32.mrf.mxu0
  %v6090 = vadd.f32 %v6025, %v6089
  %6091 = vmatmul.f32.gmra.mxu0 %v5963
  %v6092 = vpop.f32.mrf.mxu0
  %v6093 = vadd.f32 %v6028, %v6092
  %6094 = vmatmul.f32.gmra.mxu0 %v5966
  %v6095 = vpop.f32.mrf.mxu0
  %v6096 = vadd.f32 %v6031, %v6095
  %6097 = vmatmul.f32.gmra.mxu0 %v5969
  %v6098 = vpop.f32.mrf.mxu0
  %v6099 = vadd.f32 %v6034, %v6098
  %6100 = vmatmul.f32.gmra.mxu0 %v5972
  %v6101 = vpop.f32.mrf.mxu0
  %v6102 = vadd.f32 %v6037, %v6101
  %6103 = vdwg.mxu0
  %v6104 = vmax.f32 %v6057, %v6063
  %v6105 = vmax.f32 %v6060, %v6066
  %v6106 = vmax.f32 %v6069, %v6075
  %v6107 = vmax.f32 %v6072, %v6078
  %v6108 = vmax.f32 %v6081, %v6087
  %v6109 = vmax.f32 %v6084, %v6090
  %v6110 = vmax.f32 %v6093, %v6099
  %v6111 = vmax.f32 %v6096, %v6102
  %6112 = vst [vmem:[#allocation2] sm:$0xff] %v6104
  %6113 = vst [vmem:[#allocation2 + $0x8] sm:$0xff] %v6105
  %6114 = vst [vmem:[#allocation2 + $0x10] sm:$0xff] %v6106
  %6115 = vst [vmem:[#allocation2 + $0x18] sm:$0xff] %v6107
  %6116 = vst [vmem:[#allocation2 + $0x20] sm:$0xff] %v6108
  %6117 = vst [vmem:[#allocation2 + $0x28] sm:$0xff] %v6109
  %6118 = vst [vmem:[#allocation2 + $0x30] sm:$0xff] %v6110
  %6119 = vst [vmem:[#allocation2 + $0x38] sm:$0xff] %v6111
  %v6120 = vld [vmem:[#allocation2] ss:$2 sm:$0xff]
  %v6121 = vld [vmem:[%s291] ss:$2 sm:$0xff]
  %v6122 = vld [vmem:[%s293] ss:$2 sm:$0xff]
  %v6123 = vld [vmem:[%s295] ss:$2 sm:$0xff]
  %v6124 = vld [vmem:[%s297] ss:$2 sm:$0xff]
  %v6125 = vld [vmem:[%s299] ss:$2 sm:$0xff]
  %v6126 = vld [vmem:[%s301] ss:$2 sm:$0xff]
  %v6127 = vld [vmem:[%s303] ss:$2 sm:$0xff]
  %v6128 = vmax.f32 %v6120, %v6124
  %v6129 = vmax.f32 %v6121, %v6125
  %v6130 = vmax.f32 %v6122, %v6126
  %v6131 = vmax.f32 %v6123, %v6127
  %v6132 = vadd.f32 %v6128, %v30
  %v6133 = vadd.f32 %v6129, %v30
  %v6134 = vadd.f32 %v6130, %v30
  %v6135 = vadd.f32 %v6131, %v30
  %v6136 = vmax.f32 %v6132, 0.0
  %v6137 = vmax.f32 %v6133, 0.0
  %v6138 = vmax.f32 %v6134, 0.0
  %v6139 = vmax.f32 %v6135, 0.0
  %6140 = vst [vmem:[#allocation3 + $0x20] sm:$0xff] %v6136
  %6141 = vst [vmem:[#allocation3 + $0x28] sm:$0xff] %v6137
  %6142 = vst [vmem:[#allocation3 + $0x30] sm:$0xff] %v6138
  %6143 = vst [vmem:[#allocation3 + $0x38] sm:$0xff] %v6139
  %v6144 = vld [vmem:[#allocation3] sm:$0xff]
  %v6145 = vld [vmem:[#allocation3 + $0x8] sm:$0xff]
  %v6146 = vld [vmem:[#allocation3 + $0x10] sm:$0xff]
  %v6147 = vld [vmem:[#allocation3 + $0x18] sm:$0xff]
  %v6148 = vld [vmem:[#allocation3 + $0x20] sm:$0xff]
  %v6149 = vld [vmem:[#allocation3 + $0x28] sm:$0x3f]
  %v6150 = vld [vmem:[#allocation3 + $0x1] sm:$0xff]
  %v6151 = vld [vmem:[#allocation3 + $0x9] sm:$0xff]
  %v6152 = vld [vmem:[#allocation3 + $0x11] sm:$0xff]
  %v6153 = vld [vmem:[#allocation3 + $0x19] sm:$0xff]
  %v6154 = vld [vmem:[#allocation3 + $0x21] sm:$0xff]
  %v6155 = vld [vmem:[#allocation3 + $0x29] sm:$0x3f]
  %v6156 = vld [vmem:[#allocation3 + $0x2] sm:$0xff]
  %v6157 = vld [vmem:[#allocation3 + $0xa] sm:$0xff]
  %v6158 = vld [vmem:[#allocation3 + $0x12] sm:$0xff]
  %v6159 = vld [vmem:[#allocation3 + $0x1a] sm:$0xff]
  %v6160 = vld [vmem:[#allocation3 + $0x22] sm:$0xff]
  %v6161 = vld [vmem:[#allocation3 + $0x2a] sm:$0x3f]
  %v6162 = vld [vmem:[%s3] sm:$0xff]
  %v6163 = vld [vmem:[%s3 + $0x8] sm:$0xff]
  %v6164 = vld [vmem:[%s3 + $0x10] sm:$0xff]
  %v6165 = vld [vmem:[%s3 + $0x18] sm:$0xff]
  %v6166 = vld [vmem:[%s3 + $0x20] sm:$0xff]
  %v6167 = vld [vmem:[%s3 + $0x28] sm:$0xff]
  %v6168 = vld [vmem:[%s3 + $0x30] sm:$0xff]
  %v6169 = vld [vmem:[%s3 + $0x38] sm:$0xff]
  %v6170 = vld [vmem:[%s3 + $0x40] sm:$0xff]
  %v6171 = vld [vmem:[%s3 + $0x48] sm:$0xff]
  %v6172 = vld [vmem:[%s3 + $0x50] sm:$0xff]
  %v6173 = vld [vmem:[%s3 + $0x58] sm:$0xff]
  %v6174 = vld [vmem:[%s3 + $0x60] sm:$0xff]
  %v6175 = vld [vmem:[%s3 + $0x68] sm:$0xff]
  %v6176 = vld [vmem:[%s3 + $0x70] sm:$0xff]
  %v6177 = vld [vmem:[%s3 + $0x78] sm:$0xff]
  %v6178 = vld [vmem:[%s3 + $0x80] sm:$0xff]
  %v6179 = vld [vmem:[%s3 + $0x88] sm:$0xff]
  %v6180 = vld [vmem:[%s3 + $0x90] sm:$0xff]
  %v6181 = vld [vmem:[%s3 + $0x98] sm:$0xff]
  %v6182 = vld [vmem:[%s3 + $0xa0] sm:$0xff]
  %v6183 = vld [vmem:[%s3 + $0xa8] sm:$0xff]
  %v6184 = vld [vmem:[%s3 + $0xb0] sm:$0xff]
  %v6185 = vld [vmem:[%s3 + $0xb8] sm:$0xff]
  %v6186 = vld [vmem:[%s3 + $0xc0] sm:$0xff]
  %v6187 = vld [vmem:[%s3 + $0xc8] sm:$0xff]
  %v6188 = vld [vmem:[%s3 + $0xd0] sm:$0xff]
  %v6189 = vld [vmem:[%s3 + $0xd8] sm:$0xff]
  %v6190 = vld [vmem:[%s3 + $0xe0] sm:$0xff]
  %v6191 = vld [vmem:[%s3 + $0xe8] sm:$0xff]
  %v6192 = vld [vmem:[%s3 + $0xf0] sm:$0xff]
  %v6193 = vld [vmem:[%s3 + $0xf8] sm:$0xff]
  %v6194 = vld [vmem:[%s3 + $0x100] sm:$0xff]
  %v6195 = vld [vmem:[%s3 + $0x108] sm:$0xff]
  %v6196 = vld [vmem:[%s3 + $0x110] sm:$0xff]
  %v6197 = vld [vmem:[%s3 + $0x118] sm:$0xff]
  %v6198 = vld [vmem:[%s3 + $0x120] sm:$0xff]
  %v6199 = vld [vmem:[%s3 + $0x128] sm:$0xff]
  %v6200 = vld [vmem:[%s3 + $0x130] sm:$0xff]
  %v6201 = vld [vmem:[%s3 + $0x138] sm:$0xff]
  %v6202 = vld [vmem:[%s3 + $0x140] sm:$0xff]
  %v6203 = vld [vmem:[%s3 + $0x148] sm:$0xff]
  %v6204 = vld [vmem:[%s3 + $0x150] sm:$0xff]
  %v6205 = vld [vmem:[%s3 + $0x158] sm:$0xff]
  %v6206 = vld [vmem:[%s3 + $0x160] sm:$0xff]
  %v6207 = vld [vmem:[%s3 + $0x168] sm:$0xff]
  %v6208 = vld [vmem:[%s3 + $0x170] sm:$0xff]
  %v6209 = vld [vmem:[%s3 + $0x178] sm:$0xff]
  %v6210 = vld [vmem:[#allocation3 + $0x28] sm:$0xff]
  %v6211 = vld [vmem:[#allocation3 + $0x30] sm:$0x3f]
  %v6212 = vld [vmem:[#allocation3 + $0x29] sm:$0xff]
  %v6213 = vld [vmem:[#allocation3 + $0x31] sm:$0x3f]
  %v6214 = vld [vmem:[#allocation3 + $0x2a] sm:$0xff]
  %v6215 = vld [vmem:[#allocation3 + $0x32] sm:$0x3f]
  %v6216 = vld [vmem:[%s668] sm:$0xff]
  %v6217 = vld [vmem:[%s668 + $0x8] sm:$0xff]
  %v6218 = vld [vmem:[%s668 + $0x10] sm:$0xff]
  %v6219 = vld [vmem:[%s668 + $0x18] sm:$0xff]
  %v6220 = vld [vmem:[%s668 + $0x20] sm:$0xff]
  %v6221 = vld [vmem:[%s668 + $0x28] sm:$0xff]
  %v6222 = vld [vmem:[%s668 + $0x30] sm:$0xff]
  %v6223 = vld [vmem:[%s668 + $0x38] sm:$0xff]
  %v6224 = vld [vmem:[%s668 + $0x40] sm:$0xff]
  %v6225 = vld [vmem:[%s668 + $0x48] sm:$0xff]
  %v6226 = vld [vmem:[%s668 + $0x50] sm:$0xff]
  %v6227 = vld [vmem:[%s668 + $0x58] sm:$0xff]
  %v6228 = vld [vmem:[%s668 + $0x60] sm:$0xff]
  %v6229 = vld [vmem:[%s668 + $0x68] sm:$0xff]
  %v6230 = vld [vmem:[%s668 + $0x70] sm:$0xff]
  %v6231 = vld [vmem:[%s668 + $0x78] sm:$0xff]
  %v6232 = vld [vmem:[%s668 + $0x80] sm:$0xff]
  %v6233 = vld [vmem:[%s668 + $0x88] sm:$0xff]
  %v6234 = vld [vmem:[%s668 + $0x90] sm:$0xff]
  %v6235 = vld [vmem:[%s668 + $0x98] sm:$0xff]
  %v6236 = vld [vmem:[%s668 + $0xa0] sm:$0xff]
  %v6237 = vld [vmem:[%s668 + $0xa8] sm:$0xff]
  %v6238 = vld [vmem:[%s668 + $0xb0] sm:$0xff]
  %v6239 = vld [vmem:[%s668 + $0xb8] sm:$0xff]
  %v6240 = vld [vmem:[%s668 + $0xc0] sm:$0xff]
  %v6241 = vld [vmem:[%s668 + $0xc8] sm:$0xff]
  %v6242 = vld [vmem:[%s668 + $0xd0] sm:$0xff]
  %v6243 = vld [vmem:[%s668 + $0xd8] sm:$0xff]
  %v6244 = vld [vmem:[%s668 + $0xe0] sm:$0xff]
  %v6245 = vld [vmem:[%s668 + $0xe8] sm:$0xff]
  %v6246 = vld [vmem:[%s668 + $0xf0] sm:$0xff]
  %v6247 = vld [vmem:[%s668 + $0xf8] sm:$0xff]
  %v6248 = vld [vmem:[%s668 + $0x100] sm:$0xff]
  %v6249 = vld [vmem:[%s668 + $0x108] sm:$0xff]
  %v6250 = vld [vmem:[%s668 + $0x110] sm:$0xff]
  %v6251 = vld [vmem:[%s668 + $0x118] sm:$0xff]
  %v6252 = vld [vmem:[%s668 + $0x120] sm:$0xff]
  %v6253 = vld [vmem:[%s668 + $0x128] sm:$0xff]
  %v6254 = vld [vmem:[%s668 + $0x130] sm:$0xff]
  %v6255 = vld [vmem:[%s668 + $0x138] sm:$0xff]
  %v6256 = vld [vmem:[%s668 + $0x140] sm:$0xff]
  %v6257 = vld [vmem:[%s668 + $0x148] sm:$0xff]
  %v6258 = vld [vmem:[%s668 + $0x150] sm:$0xff]
  %v6259 = vld [vmem:[%s668 + $0x158] sm:$0xff]
  %v6260 = vld [vmem:[%s668 + $0x160] sm:$0xff]
  %v6261 = vld [vmem:[%s668 + $0x168] sm:$0xff]
  %v6262 = vld [vmem:[%s668 + $0x170] sm:$0xff]
  %v6263 = vld [vmem:[%s668 + $0x178] sm:$0xff]
  %6264 = vmatpush.msra.mxu0 %v6231
  %6265 = vmatpush.msra.mxu0 %v6230
  %6266 = vmatpush.msra.mxu0 %v6229
  %6267 = vmatpush.msra.mxu0 %v6228
  %6268 = vmatpush.msra.mxu0 %v6227
  %6269 = vmatpush.msra.mxu0 %v6226
  %6270 = vmatpush.msra.mxu0 %v6225
  %6271 = vmatpush.msra.mxu0 %v6224
  %6272 = vmatpush.msra.mxu0 %v6223
  %6273 = vmatpush.msra.mxu0 %v6222
  %6274 = vmatpush.msra.mxu0 %v6221
  %6275 = vmatpush.msra.mxu0 %v6220
  %6276 = vmatpush.msra.mxu0 %v6219
  %6277 = vmatpush.msra.mxu0 %v6218
  %6278 = vmatpush.msra.mxu0 %v6217
  %6279 = vmatpush.msra.mxu0 %v6216
  %6280 = vmatmul.f32.gmra.mxu0 %v6145
  %v6281 = vpop.f32.mrf.mxu0
  %v6282 = vadd.f32 0.0, %v6281
  %6283 = vmatmul.f32.gmra.mxu0 %v6146
  %v6284 = vpop.f32.mrf.mxu0
  %v6285 = vadd.f32 0.0, %v6284
  %6286 = vmatmul.f32.gmra.mxu0 %v6147
  %v6287 = vpop.f32.mrf.mxu0
  %v6288 = vadd.f32 0.0, %v6287
  %6289 = vmatmul.f32.gmra.mxu0 %v6148
  %v6290 = vpop.f32.mrf.mxu0
  %v6291 = vadd.f32 0.0, %v6290
  %6292 = vmatmul.f32.gmra.mxu0 %v6210
  %v6293 = vpop.f32.mrf.mxu0
  %v6294 = vadd.f32 0.0, %v6293
  %6295 = vmatmul.f32.gmra.mxu0 %v6211
  %v6296 = vpop.f32.mrf.mxu0
  %v6297 = vadd.f32 0.0, %v6296
  %6298 = vdwg.mxu0
  %6299 = vmatpush.msra.mxu0 %v6247
  %6300 = vmatpush.msra.mxu0 %v6246
  %6301 = vmatpush.msra.mxu0 %v6245
  %6302 = vmatpush.msra.mxu0 %v6244
  %6303 = vmatpush.msra.mxu0 %v6243
  %6304 = vmatpush.msra.mxu0 %v6242
  %6305 = vmatpush.msra.mxu0 %v6241
  %6306 = vmatpush.msra.mxu0 %v6240
  %6307 = vmatpush.msra.mxu0 %v6239
  %6308 = vmatpush.msra.mxu0 %v6238
  %6309 = vmatpush.msra.mxu0 %v6237
  %6310 = vmatpush.msra.mxu0 %v6236
  %6311 = vmatpush.msra.mxu0 %v6235
  %6312 = vmatpush.msra.mxu0 %v6234
  %6313 = vmatpush.msra.mxu0 %v6233
  %6314 = vmatpush.msra.mxu0 %v6232
  %6315 = vmatmul.f32.gmra.mxu0 %v6151
  %v6316 = vpop.f32.mrf.mxu0
  %v6317 = vadd.f32 %v6282, %v6316
  %6318 = vmatmul.f32.gmra.mxu0 %v6152
  %v6319 = vpop.f32.mrf.mxu0
  %v6320 = vadd.f32 %v6285, %v6319
  %6321 = vmatmul.f32.gmra.mxu0 %v6153
  %v6322 = vpop.f32.mrf.mxu0
  %v6323 = vadd.f32 %v6288, %v6322
  %6324 = vmatmul.f32.gmra.mxu0 %v6154
  %v6325 = vpop.f32.mrf.mxu0
  %v6326 = vadd.f32 %v6291, %v6325
  %6327 = vmatmul.f32.gmra.mxu0 %v6212
  %v6328 = vpop.f32.mrf.mxu0
  %v6329 = vadd.f32 %v6294, %v6328
  %6330 = vmatmul.f32.gmra.mxu0 %v6213
  %v6331 = vpop.f32.mrf.mxu0
  %v6332 = vadd.f32 %v6297, %v6331
  %6333 = vdwg.mxu0
  %6334 = vmatpush.msra.mxu0 %v6263
  %6335 = vmatpush.msra.mxu0 %v6262
  %6336 = vmatpush.msra.mxu0 %v6261
  %6337 = vmatpush.msra.mxu0 %v6260
  %6338 = vmatpush.msra.mxu0 %v6259
  %6339 = vmatpush.msra.mxu0 %v6258
  %6340 = vmatpush.msra.mxu0 %v6257
  %6341 = vmatpush.msra.mxu0 %v6256
  %6342 = vmatpush.msra.mxu0 %v6255
  %6343 = vmatpush.msra.mxu0 %v6254
  %6344 = vmatpush.msra.mxu0 %v6253
  %6345 = vmatpush.msra.mxu0 %v6252
  %6346 = vmatpush.msra.mxu0 %v6251
  %6347 = vmatpush.msra.mxu0 %v6250
  %6348 = vmatpush.msra.mxu0 %v6249
  %6349 = vmatpush.msra.mxu0 %v6248
  %6350 = vmatmul.f32.gmra.mxu0 %v6157
  %v6351 = vpop.f32.mrf.mxu0
  %v6352 = vadd.f32 %v6317, %v6351
  %6353 = vmatmul.f32.gmra.mxu0 %v6158
  %v6354 = vpop.f32.mrf.mxu0
  %v6355 = vadd.f32 %v6320, %v6354
  %6356 = vmatmul.f32.gmra.mxu0 %v6159
  %v6357 = vpop.f32.mrf.mxu0
  %v6358 = vadd.f32 %v6323, %v6357
  %6359 = vmatmul.f32.gmra.mxu0 %v6160
  %v6360 = vpop.f32.mrf.mxu0
  %v6361 = vadd.f32 %v6326, %v6360
  %6362 = vmatmul.f32.gmra.mxu0 %v6214
  %v6363 = vpop.f32.mrf.mxu0
  %v6364 = vadd.f32 %v6329, %v6363
  %6365 = vmatmul.f32.gmra.mxu0 %v6215
  %v6366 = vpop.f32.mrf.mxu0
  %v6367 = vadd.f32 %v6332, %v6366
  %6368 = vdwg.mxu0
  %6369 = vmatpush.msra.mxu0 %v6177
  %6370 = vmatpush.msra.mxu0 %v6176
  %6371 = vmatpush.msra.mxu0 %v6175
  %6372 = vmatpush.msra.mxu0 %v6174
  %6373 = vmatpush.msra.mxu0 %v6173
  %6374 = vmatpush.msra.mxu0 %v6172
  %6375 = vmatpush.msra.mxu0 %v6171
  %6376 = vmatpush.msra.mxu0 %v6170
  %6377 = vmatpush.msra.mxu0 %v6169
  %6378 = vmatpush.msra.mxu0 %v6168
  %6379 = vmatpush.msra.mxu0 %v6167
  %6380 = vmatpush.msra.mxu0 %v6166
  %6381 = vmatpush.msra.mxu0 %v6165
  %6382 = vmatpush.msra.mxu0 %v6164
  %6383 = vmatpush.msra.mxu0 %v6163
  %6384 = vmatpush.msra.mxu0 %v6162
  %6385 = vmatmul.f32.gmra.mxu0 %v6144
  %v6386 = vpop.f32.mrf.mxu0
  %v6387 = vadd.f32 %v6352, %v6386
  %6388 = vmatmul.f32.gmra.mxu0 %v6145
  %v6389 = vpop.f32.mrf.mxu0
  %v6390 = vadd.f32 %v6355, %v6389
  %6391 = vmatmul.f32.gmra.mxu0 %v6146
  %v6392 = vpop.f32.mrf.mxu0
  %v6393 = vadd.f32 %v6358, %v6392
  %6394 = vmatmul.f32.gmra.mxu0 %v6147
  %v6395 = vpop.f32.mrf.mxu0
  %v6396 = vadd.f32 %v6361, %v6395
  %6397 = vmatmul.f32.gmra.mxu0 %v6148
  %v6398 = vpop.f32.mrf.mxu0
  %v6399 = vadd.f32 %v6364, %v6398
  %6400 = vmatmul.f32.gmra.mxu0 %v6149
  %v6401 = vpop.f32.mrf.mxu0
  %v6402 = vadd.f32 %v6367, %v6401
  %6403 = vdwg.mxu0
  %6404 = vmatpush.msra.mxu0 %v6193
  %6405 = vmatpush.msra.mxu0 %v6192
  %6406 = vmatpush.msra.mxu0 %v6191
  %6407 = vmatpush.msra.mxu0 %v6190
  %6408 = vmatpush.msra.mxu0 %v6189
  %6409 = vmatpush.msra.mxu0 %v6188
  %6410 = vmatpush.msra.mxu0 %v6187
  %6411 = vmatpush.msra.mxu0 %v6186
  %6412 = vmatpush.msra.mxu0 %v6185
  %6413 = vmatpush.msra.mxu0 %v6184
  %6414 = vmatpush.msra.mxu0 %v6183
  %6415 = vmatpush.msra.mxu0 %v6182
  %6416 = vmatpush.msra.mxu0 %v6181
  %6417 = vmatpush.msra.mxu0 %v6180
  %6418 = vmatpush.msra.mxu0 %v6179
  %6419 = vmatpush.msra.mxu0 %v6178
  %6420 = vmatmul.f32.gmra.mxu0 %v6150
  %v6421 = vpop.f32.mrf.mxu0
  %v6422 = vadd.f32 %v6387, %v6421
  %6423 = vmatmul.f32.gmra.mxu0 %v6151
  %v6424 = vpop.f32.mrf.mxu0
  %v6425 = vadd.f32 %v6390, %v6424
  %6426 = vmatmul.f32.gmra.mxu0 %v6152
  %v6427 = vpop.f32.mrf.mxu0
  %v6428 = vadd.f32 %v6393, %v6427
  %6429 = vmatmul.f32.gmra.mxu0 %v6153
  %v6430 = vpop.f32.mrf.mxu0
  %v6431 = vadd.f32 %v6396, %v6430
  %6432 = vmatmul.f32.gmra.mxu0 %v6154
  %v6433 = vpop.f32.mrf.mxu0
  %v6434 = vadd.f32 %v6399, %v6433
  %6435 = vmatmul.f32.gmra.mxu0 %v6155
  %v6436 = vpop.f32.mrf.mxu0
  %v6437 = vadd.f32 %v6402, %v6436
  %6438 = vdwg.mxu0
  %6439 = vmatpush.msra.mxu0 %v6209
  %6440 = vmatpush.msra.mxu0 %v6208
  %6441 = vmatpush.msra.mxu0 %v6207
  %6442 = vmatpush.msra.mxu0 %v6206
  %6443 = vmatpush.msra.mxu0 %v6205
  %6444 = vmatpush.msra.mxu0 %v6204
  %6445 = vmatpush.msra.mxu0 %v6203
  %6446 = vmatpush.msra.mxu0 %v6202
  %6447 = vmatpush.msra.mxu0 %v6201
  %6448 = vmatpush.msra.mxu0 %v6200
  %6449 = vmatpush.msra.mxu0 %v6199
  %6450 = vmatpush.msra.mxu0 %v6198
  %6451 = vmatpush.msra.mxu0 %v6197
  %6452 = vmatpush.msra.mxu0 %v6196
  %6453 = vmatpush.msra.mxu0 %v6195
  %6454 = vmatpush.msra.mxu0 %v6194
  %6455 = vmatmul.f32.gmra.mxu0 %v6156
  %v6456 = vpop.f32.mrf.mxu0
  %v6457 = vadd.f32 %v6422, %v6456
  %6458 = vmatmul.f32.gmra.mxu0 %v6157
  %v6459 = vpop.f32.mrf.mxu0
  %v6460 = vadd.f32 %v6425, %v6459
  %6461 = vmatmul.f32.gmra.mxu0 %v6158
  %v6462 = vpop.f32.mrf.mxu0
  %v6463 = vadd.f32 %v6428, %v6462
  %6464 = vmatmul.f32.gmra.mxu0 %v6159
  %v6465 = vpop.f32.mrf.mxu0
  %v6466 = vadd.f32 %v6431, %v6465
  %6467 = vmatmul.f32.gmra.mxu0 %v6160
  %v6468 = vpop.f32.mrf.mxu0
  %v6469 = vadd.f32 %v6434, %v6468
  %6470 = vmatmul.f32.gmra.mxu0 %v6161
  %v6471 = vpop.f32.mrf.mxu0
  %v6472 = vadd.f32 %v6437, %v6471
  %6473 = vdwg.mxu0
  %v6474 = vld [vmem:[#allocation3 + $0x10] sm:$0xff]
  %v6475 = vld [vmem:[#allocation3 + $0x18] sm:$0xff]
  %v6476 = vld [vmem:[#allocation3 + $0x20] sm:$0xff]
  %v6477 = vld [vmem:[#allocation3 + $0x28] sm:$0xff]
  %v6478 = vld [vmem:[#allocation3 + $0x30] sm:$0xff]
  %v6479 = vld [vmem:[#allocation3 + $0x38] sm:$0x3f]
  %v6480 = vld [vmem:[#allocation3 + $0x11] sm:$0xff]
  %v6481 = vld [vmem:[#allocation3 + $0x19] sm:$0xff]
  %v6482 = vld [vmem:[#allocation3 + $0x21] sm:$0xff]
  %v6483 = vld [vmem:[#allocation3 + $0x29] sm:$0xff]
  %v6484 = vld [vmem:[#allocation3 + $0x31] sm:$0xff]
  %v6485 = vld [vmem:[#allocation3 + $0x39] sm:$0x3f]
  %v6486 = vld [vmem:[#allocation3 + $0x12] sm:$0xff]
  %v6487 = vld [vmem:[#allocation3 + $0x1a] sm:$0xff]
  %v6488 = vld [vmem:[#allocation3 + $0x22] sm:$0xff]
  %v6489 = vld [vmem:[#allocation3 + $0x2a] sm:$0xff]
  %v6490 = vld [vmem:[#allocation3 + $0x32] sm:$0xff]
  %v6491 = vld [vmem:[#allocation3 + $0x3a] sm:$0x3f]
  %v6492 = vld [vmem:[%s945] sm:$0xff]
  %v6493 = vld [vmem:[%s945 + $0x8] sm:$0xff]
  %v6494 = vld [vmem:[%s945 + $0x10] sm:$0xff]
  %v6495 = vld [vmem:[%s945 + $0x18] sm:$0xff]
  %v6496 = vld [vmem:[%s945 + $0x20] sm:$0xff]
  %v6497 = vld [vmem:[%s945 + $0x28] sm:$0xff]
  %v6498 = vld [vmem:[%s945 + $0x30] sm:$0xff]
  %v6499 = vld [vmem:[%s945 + $0x38] sm:$0xff]
  %v6500 = vld [vmem:[%s945 + $0x40] sm:$0xff]
  %v6501 = vld [vmem:[%s945 + $0x48] sm:$0xff]
  %v6502 = vld [vmem:[%s945 + $0x50] sm:$0xff]
  %v6503 = vld [vmem:[%s945 + $0x58] sm:$0xff]
  %v6504 = vld [vmem:[%s945 + $0x60] sm:$0xff]
  %v6505 = vld [vmem:[%s945 + $0x68] sm:$0xff]
  %v6506 = vld [vmem:[%s945 + $0x70] sm:$0xff]
  %v6507 = vld [vmem:[%s945 + $0x78] sm:$0xff]
  %v6508 = vld [vmem:[%s945 + $0x80] sm:$0xff]
  %v6509 = vld [vmem:[%s945 + $0x88] sm:$0xff]
  %v6510 = vld [vmem:[%s945 + $0x90] sm:$0xff]
  %v6511 = vld [vmem:[%s945 + $0x98] sm:$0xff]
  %v6512 = vld [vmem:[%s945 + $0xa0] sm:$0xff]
  %v6513 = vld [vmem:[%s945 + $0xa8] sm:$0xff]
  %v6514 = vld [vmem:[%s945 + $0xb0] sm:$0xff]
  %v6515 = vld [vmem:[%s945 + $0xb8] sm:$0xff]
  %v6516 = vld [vmem:[%s945 + $0xc0] sm:$0xff]
  %v6517 = vld [vmem:[%s945 + $0xc8] sm:$0xff]
  %v6518 = vld [vmem:[%s945 + $0xd0] sm:$0xff]
  %v6519 = vld [vmem:[%s945 + $0xd8] sm:$0xff]
  %v6520 = vld [vmem:[%s945 + $0xe0] sm:$0xff]
  %v6521 = vld [vmem:[%s945 + $0xe8] sm:$0xff]
  %v6522 = vld [vmem:[%s945 + $0xf0] sm:$0xff]
  %v6523 = vld [vmem:[%s945 + $0xf8] sm:$0xff]
  %v6524 = vld [vmem:[%s945 + $0x100] sm:$0xff]
  %v6525 = vld [vmem:[%s945 + $0x108] sm:$0xff]
  %v6526 = vld [vmem:[%s945 + $0x110] sm:$0xff]
  %v6527 = vld [vmem:[%s945 + $0x118] sm:$0xff]
  %v6528 = vld [vmem:[%s945 + $0x120] sm:$0xff]
  %v6529 = vld [vmem:[%s945 + $0x128] sm:$0xff]
  %v6530 = vld [vmem:[%s945 + $0x130] sm:$0xff]
  %v6531 = vld [vmem:[%s945 + $0x138] sm:$0xff]
  %v6532 = vld [vmem:[%s945 + $0x140] sm:$0xff]
  %v6533 = vld [vmem:[%s945 + $0x148] sm:$0xff]
  %v6534 = vld [vmem:[%s945 + $0x150] sm:$0xff]
  %v6535 = vld [vmem:[%s945 + $0x158] sm:$0xff]
  %v6536 = vld [vmem:[%s945 + $0x160] sm:$0xff]
  %v6537 = vld [vmem:[%s945 + $0x168] sm:$0xff]
  %v6538 = vld [vmem:[%s945 + $0x170] sm:$0xff]
  %v6539 = vld [vmem:[%s945 + $0x178] sm:$0xff]
  %6540 = vmatpush.msra.mxu0 %v6507
  %6541 = vmatpush.msra.mxu0 %v6506
  %6542 = vmatpush.msra.mxu0 %v6505
  %6543 = vmatpush.msra.mxu0 %v6504
  %6544 = vmatpush.msra.mxu0 %v6503
  %6545 = vmatpush.msra.mxu0 %v6502
  %6546 = vmatpush.msra.mxu0 %v6501
  %6547 = vmatpush.msra.mxu0 %v6500
  %6548 = vmatpush.msra.mxu0 %v6499
  %6549 = vmatpush.msra.mxu0 %v6498
  %6550 = vmatpush.msra.mxu0 %v6497
  %6551 = vmatpush.msra.mxu0 %v6496
  %6552 = vmatpush.msra.mxu0 %v6495
  %6553 = vmatpush.msra.mxu0 %v6494
  %6554 = vmatpush.msra.mxu0 %v6493
  %6555 = vmatpush.msra.mxu0 %v6492
  %6556 = vmatmul.f32.gmra.mxu0 %v6474
  %v6557 = vpop.f32.mrf.mxu0
  %v6558 = vadd.f32 0.0, %v6557
  %6559 = vmatmul.f32.gmra.mxu0 %v6475
  %v6560 = vpop.f32.mrf.mxu0
  %v6561 = vadd.f32 0.0, %v6560
  %6562 = vmatmul.f32.gmra.mxu0 %v6476
  %v6563 = vpop.f32.mrf.mxu0
  %v6564 = vadd.f32 0.0, %v6563
  %6565 = vmatmul.f32.gmra.mxu0 %v6477
  %v6566 = vpop.f32.mrf.mxu0
  %v6567 = vadd.f32 0.0, %v6566
  %6568 = vmatmul.f32.gmra.mxu0 %v6478
  %v6569 = vpop.f32.mrf.mxu0
  %v6570 = vadd.f32 0.0, %v6569
  %6571 = vmatmul.f32.gmra.mxu0 %v6479
  %v6572 = vpop.f32.mrf.mxu0
  %v6573 = vadd.f32 0.0, %v6572
  %6574 = vdwg.mxu0
  %6575 = vmatpush.msra.mxu0 %v6523
  %6576 = vmatpush.msra.mxu0 %v6522
  %6577 = vmatpush.msra.mxu0 %v6521
  %6578 = vmatpush.msra.mxu0 %v6520
  %6579 = vmatpush.msra.mxu0 %v6519
  %6580 = vmatpush.msra.mxu0 %v6518
  %6581 = vmatpush.msra.mxu0 %v6517
  %6582 = vmatpush.msra.mxu0 %v6516
  %6583 = vmatpush.msra.mxu0 %v6515
  %6584 = vmatpush.msra.mxu0 %v6514
  %6585 = vmatpush.msra.mxu0 %v6513
  %6586 = vmatpush.msra.mxu0 %v6512
  %6587 = vmatpush.msra.mxu0 %v6511
  %6588 = vmatpush.msra.mxu0 %v6510
  %6589 = vmatpush.msra.mxu0 %v6509
  %6590 = vmatpush.msra.mxu0 %v6508
  %6591 = vmatmul.f32.gmra.mxu0 %v6480
  %v6592 = vpop.f32.mrf.mxu0
  %v6593 = vadd.f32 %v6558, %v6592
  %6594 = vmatmul.f32.gmra.mxu0 %v6481
  %v6595 = vpop.f32.mrf.mxu0
  %v6596 = vadd.f32 %v6561, %v6595
  %6597 = vmatmul.f32.gmra.mxu0 %v6482
  %v6598 = vpop.f32.mrf.mxu0
  %v6599 = vadd.f32 %v6564, %v6598
  %6600 = vmatmul.f32.gmra.mxu0 %v6483
  %v6601 = vpop.f32.mrf.mxu0
  %v6602 = vadd.f32 %v6567, %v6601
  %6603 = vmatmul.f32.gmra.mxu0 %v6484
  %v6604 = vpop.f32.mrf.mxu0
  %v6605 = vadd.f32 %v6570, %v6604
  %6606 = vmatmul.f32.gmra.mxu0 %v6485
  %v6607 = vpop.f32.mrf.mxu0
  %v6608 = vadd.f32 %v6573, %v6607
  %6609 = vdwg.mxu0
  %6610 = vmatpush.msra.mxu0 %v6539
  %6611 = vmatpush.msra.mxu0 %v6538
  %6612 = vmatpush.msra.mxu0 %v6537
  %6613 = vmatpush.msra.mxu0 %v6536
  %6614 = vmatpush.msra.mxu0 %v6535
  %6615 = vmatpush.msra.mxu0 %v6534
  %6616 = vmatpush.msra.mxu0 %v6533
  %6617 = vmatpush.msra.mxu0 %v6532
  %6618 = vmatpush.msra.mxu0 %v6531
  %6619 = vmatpush.msra.mxu0 %v6530
  %6620 = vmatpush.msra.mxu0 %v6529
  %6621 = vmatpush.msra.mxu0 %v6528
  %6622 = vmatpush.msra.mxu0 %v6527
  %6623 = vmatpush.msra.mxu0 %v6526
  %6624 = vmatpush.msra.mxu0 %v6525
  %6625 = vmatpush.msra.mxu0 %v6524
  %6626 = vmatmul.f32.gmra.mxu0 %v6486
  %v6627 = vpop.f32.mrf.mxu0
  %v6628 = vadd.f32 %v6593, %v6627
  %6629 = vmatmul.f32.gmra.mxu0 %v6487
  %v6630 = vpop.f32.mrf.mxu0
  %v6631 = vadd.f32 %v6596, %v6630
  %6632 = vmatmul.f32.gmra.mxu0 %v6488
  %v6633 = vpop.f32.mrf.mxu0
  %v6634 = vadd.f32 %v6599, %v6633
  %6635 = vmatmul.f32.gmra.mxu0 %v6489
  %v6636 = vpop.f32.mrf.mxu0
  %v6637 = vadd.f32 %v6602, %v6636
  %6638 = vmatmul.f32.gmra.mxu0 %v6490
  %v6639 = vpop.f32.mrf.mxu0
  %v6640 = vadd.f32 %v6605, %v6639
  %6641 = vmatmul.f32.gmra.mxu0 %v6491
  %v6642 = vpop.f32.mrf.mxu0
  %v6643 = vadd.f32 %v6608, %v6642
  %6644 = vdwg.mxu0
  %v6645 = vadd.f32 %v6457, %v6628
  %v6646 = vadd.f32 %v6460, %v6631
  %v6647 = vadd.f32 %v6463, %v6634
  %v6648 = vadd.f32 %v6466, %v6637
  %v6649 = vadd.f32 %v6469, %v6640
  %v6650 = vadd.f32 %v6472, %v6643
  %6651 = vst [vmem:[#allocation2] sm:$0xff] %v6645
  %6652 = vst [vmem:[#allocation2 + $0x8] sm:$0xff] %v6646
  %6653 = vst [vmem:[#allocation2 + $0x10] sm:$0xff] %v6647
  %6654 = vst [vmem:[#allocation2 + $0x18] sm:$0xff] %v6648
  %6655 = vst [vmem:[#allocation2 + $0x20] sm:$0xff] %v6649
  %6656 = vst [vmem:[#allocation2 + $0x28] sm:$0x3f] %v6650
  %v6657 = vld [vmem:[#allocation2] ss:$2 sm:$0x7]
  %v6658 = vld [vmem:[%s297] ss:$2 sm:$0x7]
  %v6659 = vld [vmem:[%s1113] ss:$2 sm:$0x7]
  %v6660 = vld [vmem:[%s1115] ss:$2 sm:$0x7]
  %v6661 = vmax.f32 %v6657, %v6658
  %v6662 = vmax.f32 %v6659, %v6660
  %v6663 = vmax.f32 %v6661, %v6662
  %v6664 = vld [vmem:[%s1120] ss:$2 sm:$0x7]
  %v6665 = vld [vmem:[%s299] ss:$2 sm:$0x7]
  %v6666 = vld [vmem:[%s1123] ss:$2 sm:$0x7]
  %v6667 = vld [vmem:[%s1125] ss:$2 sm:$0x7]
  %v6668 = vmax.f32 %v6664, %v6665
  %v6669 = vmax.f32 %v6666, %v6667
  %v6670 = vmax.f32 %v6668, %v6669
  %v6671 = vld [vmem:[%s1130] ss:$2 sm:$0x7]
  %v6672 = vld [vmem:[%s301] ss:$2 sm:$0x7]
  %v6673 = vld [vmem:[%s1133] ss:$2 sm:$0x7]
  %v6674 = vld [vmem:[%s1135] ss:$2 sm:$0x7]
  %v6675 = vmax.f32 %v6671, %v6672
  %v6676 = vmax.f32 %v6673, %v6674
  %v6677 = vmax.f32 %v6675, %v6676
  %v6679 = vrot.slane %v6670, 5
  %v6682 = vrot.slane %v6677, 2
  %v6684 = vsel %vm1146, %v6663, %v6679
  %v6685 = vsel %vm1148, %v6684, %v6682
  %v6686 = vadd.f32 %v6685, %v34
  %v6687 = vadd.f32 %v6682, %v34
  %v6688 = vmax.f32 %v6686, 0.0
  %v6689 = vmax.f32 %v6687, 0.0
  %v6690 = vmul.f32 %v6688, %v36
  %v6691 = vmul.f32 %v6689, %v37
  %v6692 = vsel %vm1156, %v6691, 0.0
  %v6693 = vadd.f32 %v6690, %v6692
  %v6694 = vrot.slane %v6693, 4
  %v6695 = vadd.f32 %v6693, %v6694
  %v6696 = vrot.slane %v6695, 2
  %v6697 = vadd.f32 %v6695, %v6696
  %v6698 = vrot.slane %v6697, 1
  %v6699 = vadd.f32 %v6697, %v6698
  %6700 = vst [vmem:[#allocation4 + $0x5] sm:$0x1] %v6699
  %v6701 = vld [vmem:[%s0 + $0xc00] sm:$0xff]
  %v6702 = vld [vmem:[%s0 + $0xc08] sm:$0xff]
  %v6703 = vld [vmem:[%s0 + $0xc10] sm:$0xff]
  %v6704 = vld [vmem:[%s0 + $0xc18] sm:$0xff]
  %v6705 = vld [vmem:[%s0 + $0xc20] sm:$0xff]
  %v6706 = vld [vmem:[%s0 + $0xc28] sm:$0xff]
  %v6707 = vld [vmem:[%s0 + $0xc30] sm:$0xff]
  %v6708 = vld [vmem:[%s0 + $0xc38] sm:$0xff]
  %v6709 = vld [vmem:[%s0 + $0xc40] sm:$0xff]
  %v6710 = vld [vmem:[%s0 + $0xc48] sm:$0xff]
  %v6711 = vld [vmem:[%s0 + $0xc50] sm:$0xff]
  %v6712 = vld [vmem:[%s0 + $0xc58] sm:$0xff]
  %v6713 = vld [vmem:[%s0 + $0xc60] sm:$0xff]
  %v6714 = vld [vmem:[%s0 + $0xc68] sm:$0xff]
  %v6715 = vld [vmem:[%s0 + $0xc70] sm:$0xff]
  %v6716 = vld [vmem:[%s0 + $0xc78] sm:$0xff]
  %v6717 = vld [vmem:[%s0 + $0xc80] sm:$0xff]
  %v6718 = vld [vmem:[%s0 + $0xc88] sm:$0xff]
  %v6719 = vld [vmem:[%s0 + $0xc90] sm:$0xff]
  %v6720 = vld [vmem:[%s0 + $0xc98] sm:$0xff]
  %v6721 = vld [vmem:[%s0 + $0xca0] sm:$0xff]
  %v6722 = vld [vmem:[%s0 + $0xca8] sm:$0xff]
  %v6723 = vld [vmem:[%s0 + $0xcb0] sm:$0xff]
  %v6724 = vld [vmem:[%s0 + $0xcb8] sm:$0xff]
  %v6725 = vld [vmem:[%s0 + $0xcc0] sm:$0xff]
  %v6726 = vld [vmem:[%s0 + $0xcc8] sm:$0xff]
  %v6727 = vld [vmem:[%s0 + $0xcd0] sm:$0xff]
  %v6728 = vld [vmem:[%s0 + $0xcd8] sm:$0xff]
  %v6729 = vld [vmem:[%s0 + $0xce0] sm:$0xff]
  %v6730 = vld [vmem:[%s0 + $0xce8] sm:$0xff]
  %v6731 = vld [vmem:[%s0 + $0xcf0] sm:$0xff]
  %v6732 = vld [vmem:[%s0 + $0xcf8] sm:$0xff]
  %v6733 = vld [vmem:[%s1] sm:$0xff]
  %v6734 = vld [vmem:[%s1 + $0x8] sm:$0xff]
  %v6735 = vld [vmem:[%s1 + $0x10] sm:$0xff]
  %v6736 = vld [vmem:[%s1 + $0x18] sm:$0xff]
  %v6737 = vld [vmem:[%s1 + $0x20] sm:$0xff]
  %v6738 = vld [vmem:[%s1 + $0x28] sm:$0xff]
  %v6739 = vld [vmem:[%s1 + $0x30] sm:$0xff]
  %v6740 = vld [vmem:[%s1 + $0x38] sm:$0xff]
  %v6741 = vld [vmem:[%s1 + $0x40] sm:$0xff]
  %v6742 = vld [vmem:[%s1 + $0x48] sm:$0xff]
  %v6743 = vld [vmem:[%s1 + $0x50] sm:$0xff]
  %v6744 = vld [vmem:[%s1 + $0x58] sm:$0xff]
  %v6745 = vld [vmem:[%s1 + $0x60] sm:$0xff]
  %v6746 = vld [vmem:[%s1 + $0x68] sm:$0xff]
  %v6747 = vld [vmem:[%s1 + $0x70] sm:$0xff]
  %v6748 = vld [vmem:[%s1 + $0x78] sm:$0xff]
  %v6749 = vld [vmem:[%s1 + $0x80] sm:$0xff]
  %v6750 = vld [vmem:[%s1 + $0x88] sm:$0xff]
  %v6751 = vld [vmem:[%s1 + $0x90] sm:$0xff]
  %v6752 = vld [vmem:[%s1 + $0x98] sm:$0xff]
  %v6753 = vld [vmem:[%s1 + $0xa0] sm:$0xff]
  %v6754 = vld [vmem:[%s1 + $0xa8] sm:$0xff]
  %v6755 = vld [vmem:[%s1 + $0xb0] sm:$0xff]
  %v6756 = vld [vmem:[%s1 + $0xb8] sm:$0xff]
  %v6757 = vld [vmem:[%s1 + $0xc0] sm:$0xff]
  %v6759 = vsel %vm95, %v6702, 0
  %v6762 = vsel %vm95, %v6704, 0
  %v6765 = vsel %vm95, %v6706, 0
  %v6768 = vsel %vm95, %v6708, 0
  %v6771 = vsel %vm95, %v6710, 0
  %v6774 = vsel %vm95, %v6712, 0
  %v6777 = vsel %vm95, %v6714, 0
  %v6780 = vsel %vm95, %v6716, 0
  %v6783 = vsel %vm95, %v6718, 0
  %v6786 = vsel %vm95, %v6720, 0
  %v6789 = vsel %vm95, %v6722, 0
  %v6792 = vsel %vm95, %v6724, 0
  %v6795 = vsel %vm95, %v6726, 0
  %v6798 = vsel %vm95, %v6728, 0
  %v6801 = vsel %vm95, %v6730, 0
  %v6804 = vsel %vm95, %v6732, 0
  %6806 = vmatpush.msra.mxu0 %v6748
  %6807 = vmatpush.msra.mxu0 %v6747
  %6808 = vmatpush.msra.mxu0 %v6746
  %6809 = vmatpush.msra.mxu0 %v6745
  %6810 = vmatpush.msra.mxu0 %v6744
  %6811 = vmatpush.msra.mxu0 %v6743
  %6812 = vmatpush.msra.mxu0 %v6742
  %6813 = vmatpush.msra.mxu0 %v6741
  %6814 = vmatpush.msra.mxu0 %v6740
  %6815 = vmatpush.msra.mxu0 %v6739
  %6816 = vmatpush.msra.mxu0 %v6738
  %6817 = vmatpush.msra.mxu0 %v6737
  %6818 = vmatpush.msra.mxu0 %v6736
  %6819 = vmatpush.msra.mxu0 %v6735
  %6820 = vmatpush.msra.mxu0 %v6734
  %6821 = vmatpush.msra.mxu0 %v6733
  %6822 = vmatmul.f32.gmra.mxu0 %v6701
  %v6823 = vpop.f32.mrf.mxu0
  %v6824 = vadd.f32 0.0, %v6823
  %6825 = vmatmul.f32.gmra.mxu0 %v6703
  %v6826 = vpop.f32.mrf.mxu0
  %v6827 = vadd.f32 0.0, %v6826
  %6828 = vmatmul.f32.gmra.mxu0 %v6705
  %v6829 = vpop.f32.mrf.mxu0
  %v6830 = vadd.f32 0.0, %v6829
  %6831 = vmatmul.f32.gmra.mxu0 %v6707
  %v6832 = vpop.f32.mrf.mxu0
  %v6833 = vadd.f32 0.0, %v6832
  %6834 = vmatmul.f32.gmra.mxu0 %v6709
  %v6835 = vpop.f32.mrf.mxu0
  %v6836 = vadd.f32 0.0, %v6835
  %6837 = vmatmul.f32.gmra.mxu0 %v6711
  %v6838 = vpop.f32.mrf.mxu0
  %v6839 = vadd.f32 0.0, %v6838
  %6840 = vmatmul.f32.gmra.mxu0 %v6713
  %v6841 = vpop.f32.mrf.mxu0
  %v6842 = vadd.f32 0.0, %v6841
  %6843 = vmatmul.f32.gmra.mxu0 %v6715
  %v6844 = vpop.f32.mrf.mxu0
  %v6845 = vadd.f32 0.0, %v6844
  %6846 = vmatmul.f32.gmra.mxu0 %v6717
  %v6847 = vpop.f32.mrf.mxu0
  %v6848 = vadd.f32 0.0, %v6847
  %6849 = vmatmul.f32.gmra.mxu0 %v6719
  %v6850 = vpop.f32.mrf.mxu0
  %v6851 = vadd.f32 0.0, %v6850
  %6852 = vmatmul.f32.gmra.mxu0 %v6721
  %v6853 = vpop.f32.mrf.mxu0
  %v6854 = vadd.f32 0.0, %v6853
  %6855 = vmatmul.f32.gmra.mxu0 %v6723
  %v6856 = vpop.f32.mrf.mxu0
  %v6857 = vadd.f32 0.0, %v6856
  %6858 = vmatmul.f32.gmra.mxu0 %v6725
  %v6859 = vpop.f32.mrf.mxu0
  %v6860 = vadd.f32 0.0, %v6859
  %6861 = vmatmul.f32.gmra.mxu0 %v6727
  %v6862 = vpop.f32.mrf.mxu0
  %v6863 = vadd.f32 0.0, %v6862
  %6864 = vmatmul.f32.gmra.mxu0 %v6729
  %v6865 = vpop.f32.mrf.mxu0
  %v6866 = vadd.f32 0.0, %v6865
  %6867 = vmatmul.f32.gmra.mxu0 %v6731
  %v6868 = vpop.f32.mrf.mxu0
  %v6869 = vadd.f32 0.0, %v6868
  %6870 = vdwg.mxu0
  %6871 = vmatpush.msra.mxu0 0.0
  %6872 = vmatpush.msra.mxu0 0.0
  %6873 = vmatpush.msra.mxu0 0.0
  %6874 = vmatpush.msra.mxu0 0.0
  %6875 = vmatpush.msra.mxu0 0.0
  %6876 = vmatpush.msra.mxu0 0.0
  %6877 = vmatpush.msra.mxu0 0.0
  %6878 = vmatpush.msra.mxu0 %v6757
  %6879 = vmatpush.msra.mxu0 %v6756
  %6880 = vmatpush.msra.mxu0 %v6755
  %6881 = vmatpush.msra.mxu0 %v6754
  %6882 = vmatpush.msra.mxu0 %v6753
  %6883 = vmatpush.msra.mxu0 %v6752
  %6884 = vmatpush.msra.mxu0 %v6751
  %6885 = vmatpush.msra.mxu0 %v6750
  %6886 = vmatpush.msra.mxu0 %v6749
  %6887 = vmatmul.f32.gmra.mxu0 %v6759
  %v6888 = vpop.f32.mrf.mxu0
  %v6889 = vadd.f32 %v6824, %v6888
  %6890 = vmatmul.f32.gmra.mxu0 %v6762
  %v6891 = vpop.f32.mrf.mxu0
  %v6892 = vadd.f32 %v6827, %v6891
  %6893 = vmatmul.f32.gmra.mxu0 %v6765
  %v6894 = vpop.f32.mrf.mxu0
  %v6895 = vadd.f32 %v6830, %v6894
  %6896 = vmatmul.f32.gmra.mxu0 %v6768
  %v6897 = vpop.f32.mrf.mxu0
  %v6898 = vadd.f32 %v6833, %v6897
  %6899 = vmatmul.f32.gmra.mxu0 %v6771
  %v6900 = vpop.f32.mrf.mxu0
  %v6901 = vadd.f32 %v6836, %v6900
  %6902 = vmatmul.f32.gmra.mxu0 %v6774
  %v6903 = vpop.f32.mrf.mxu0
  %v6904 = vadd.f32 %v6839, %v6903
  %6905 = vmatmul.f32.gmra.mxu0 %v6777
  %v6906 = vpop.f32.mrf.mxu0
  %v6907 = vadd.f32 %v6842, %v6906
  %6908 = vmatmul.f32.gmra.mxu0 %v6780
  %v6909 = vpop.f32.mrf.mxu0
  %v6910 = vadd.f32 %v6845, %v6909
  %6911 = vmatmul.f32.gmra.mxu0 %v6783
  %v6912 = vpop.f32.mrf.mxu0
  %v6913 = vadd.f32 %v6848, %v6912
  %6914 = vmatmul.f32.gmra.mxu0 %v6786
  %v6915 = vpop.f32.mrf.mxu0
  %v6916 = vadd.f32 %v6851, %v6915
  %6917 = vmatmul.f32.gmra.mxu0 %v6789
  %v6918 = vpop.f32.mrf.mxu0
  %v6919 = vadd.f32 %v6854, %v6918
  %6920 = vmatmul.f32.gmra.mxu0 %v6792
  %v6921 = vpop.f32.mrf.mxu0
  %v6922 = vadd.f32 %v6857, %v6921
  %6923 = vmatmul.f32.gmra.mxu0 %v6795
  %v6924 = vpop.f32.mrf.mxu0
  %v6925 = vadd.f32 %v6860, %v6924
  %6926 = vmatmul.f32.gmra.mxu0 %v6798
  %v6927 = vpop.f32.mrf.mxu0
  %v6928 = vadd.f32 %v6863, %v6927
  %6929 = vmatmul.f32.gmra.mxu0 %v6801
  %v6930 = vpop.f32.mrf.mxu0
  %v6931 = vadd.f32 %v6866, %v6930
  %6932 = vmatmul.f32.gmra.mxu0 %v6804
  %v6933 = vpop.f32.mrf.mxu0
  %v6934 = vadd.f32 %v6869, %v6933
  %6935 = vdwg.mxu0
  %v6936 = vmax.f32 %v6889, %v6895
  %v6937 = vmax.f32 %v6892, %v6898
  %v6938 = vmax.f32 %v6901, %v6907
  %v6939 = vmax.f32 %v6904, %v6910
  %v6940 = vmax.f32 %v6913, %v6919
  %v6941 = vmax.f32 %v6916, %v6922
  %v6942 = vmax.f32 %v6925, %v6931
  %v6943 = vmax.f32 %v6928, %v6934
  %6944 = vst [vmem:[#allocation2] sm:$0xff] %v6936
  %6945 = vst [vmem:[#allocation2 + $0x8] sm:$0xff] %v6937
  %6946 = vst [vmem:[#allocation2 + $0x10] sm:$0xff] %v6938
  %6947 = vst [vmem:[#allocation2 + $0x18] sm:$0xff] %v6939
  %6948 = vst [vmem:[#allocation2 + $0x20] sm:$0xff] %v6940
  %6949 = vst [vmem:[#allocation2 + $0x28] sm:$0xff] %v6941
  %6950 = vst [vmem:[#allocation2 + $0x30] sm:$0xff] %v6942
  %6951 = vst [vmem:[#allocation2 + $0x38] sm:$0xff] %v6943
  %v6952 = vld [vmem:[#allocation2] ss:$2 sm:$0xff]
  %v6953 = vld [vmem:[%s291] ss:$2 sm:$0xff]
  %v6954 = vld [vmem:[%s293] ss:$2 sm:$0xff]
  %v6955 = vld [vmem:[%s295] ss:$2 sm:$0xff]
  %v6956 = vld [vmem:[%s297] ss:$2 sm:$0xff]
  %v6957 = vld [vmem:[%s299] ss:$2 sm:$0xff]
  %v6958 = vld [vmem:[%s301] ss:$2 sm:$0xff]
  %v6959 = vld [vmem:[%s303] ss:$2 sm:$0xff]
  %v6960 = vmax.f32 %v6952, %v6956
  %v6961 = vmax.f32 %v6953, %v6957
  %v6962 = vmax.f32 %v6954, %v6958
  %v6963 = vmax.f32 %v6955, %v6959
  %v6964 = vadd.f32 %v6960, %v30
  %v6965 = vadd.f32 %v6961, %v30
  %v6966 = vadd.f32 %v6962, %v30
  %v6967 = vadd.f32 %v6963, %v30
  %v6968 = vmax.f32 %v6964, 0.0
  %v6969 = vmax.f32 %v6965, 0.0
  %v6970 = vmax.f32 %v6966, 0.0
  %v6971 = vmax.f32 %v6967, 0.0
  %6972 = vst [vmem:[#allocation3] sm:$0xff] %v6968
  %6973 = vst [vmem:[#allocation3 + $0x8] sm:$0xff] %v6969
  %6974 = vst [vmem:[#allocation3 + $0x10] sm:$0xff] %v6970
  %6975 = vst [vmem:[#allocation3 + $0x18] sm:$0xff] %v6971
  %v6976 = vld [vmem:[%s0 + $0xd00] sm:$0xff]
  %v6977 = vld [vmem:[%s0 + $0xd08] sm:$0xff]
  %v6978 = vld [vmem:[%s0 + $0xd10] sm:$0xff]
  %v6979 = vld [vmem:[%s0 + $0xd18] sm:$0xff]
  %v6980 = vld [vmem:[%s0 + $0xd20] sm:$0xff]
  %v6981 = vld [vmem:[%s0 + $0xd28] sm:$0xff]
  %v6982 = vld [vmem:[%s0 + $0xd30] sm:$0xff]
  %v6983 = vld [vmem:[%s0 + $0xd38] sm:$0xff]
  %v6984 = vld [vmem:[%s0 + $0xd40] sm:$0xff]
  %v6985 = vld [vmem:[%s0 + $0xd48] sm:$0xff]
  %v6986 = vld [vmem:[%s0 + $0xd50] sm:$0xff]
  %v6987 = vld [vmem:[%s0 + $0xd58] sm:$0xff]
  %v6988 = vld [vmem:[%s0 + $0xd60] sm:$0xff]
  %v6989 = vld [vmem:[%s0 + $0xd68] sm:$0xff]
  %v6990 = vld [vmem:[%s0 + $0xd70] sm:$0xff]
  %v6991 = vld [vmem:[%s0 + $0xd78] sm:$0xff]
  %v6992 = vld [vmem:[%s0 + $0xd80] sm:$0xff]
  %v6993 = vld [vmem:[%s0 + $0xd88] sm:$0xff]
  %v6994 = vld [vmem:[%s0 + $0xd90] sm:$0xff]
  %v6995 = vld [vmem:[%s0 + $0xd98] sm:$0xff]
  %v6996 = vld [vmem:[%s0 + $0xda0] sm:$0xff]
  %v6997 = vld [vmem:[%s0 + $0xda8] sm:$0xff]
  %v6998 = vld [vmem:[%s0 + $0xdb0] sm:$0xff]
  %v6999 = vld [vmem:[%s0 + $0xdb8] sm:$0xff]
  %v7000 = vld [vmem:[%s0 + $0xdc0] sm:$0xff]
  %v7001 = vld [vmem:[%s0 + $0xdc8] sm:$0xff]
  %v7002 = vld [vmem:[%s0 + $0xdd0] sm:$0xff]
  %v7003 = vld [vmem:[%s0 + $0xdd8] sm:$0xff]
  %v7004 = vld [vmem:[%s0 + $0xde0] sm:$0xff]
  %v7005 = vld [vmem:[%s0 + $0xde8] sm:$0xff]
  %v7006 = vld [vmem:[%s0 + $0xdf0] sm:$0xff]
  %v7007 = vld [vmem:[%s0 + $0xdf8] sm:$0xff]
  %v7008 = vld [vmem:[%s1] sm:$0xff]
  %v7009 = vld [vmem:[%s1 + $0x8] sm:$0xff]
  %v7010 = vld [vmem:[%s1 + $0x10] sm:$0xff]
  %v7011 = vld [vmem:[%s1 + $0x18] sm:$0xff]
  %v7012 = vld [vmem:[%s1 + $0x20] sm:$0xff]
  %v7013 = vld [vmem:[%s1 + $0x28] sm:$0xff]
  %v7014 = vld [vmem:[%s1 + $0x30] sm:$0xff]
  %v7015 = vld [vmem:[%s1 + $0x38] sm:$0xff]
  %v7016 = vld [vmem:[%s1 + $0x40] sm:$0xff]
  %v7017 = vld [vmem:[%s1 + $0x48] sm:$0xff]
  %v7018 = vld [vmem:[%s1 + $0x50] sm:$0xff]
  %v7019 = vld [vmem:[%s1 + $0x58] sm:$0xff]
  %v7020 = vld [vmem:[%s1 + $0x60] sm:$0xff]
  %v7021 = vld [vmem:[%s1 + $0x68] sm:$0xff]
  %v7022 = vld [vmem:[%s1 + $0x70] sm:$0xff]
  %v7023 = vld [vmem:[%s1 + $0x78] sm:$0xff]
  %v7024 = vld [vmem:[%s1 + $0x80] sm:$0xff]
  %v7025 = vld [vmem:[%s1 + $0x88] sm:$0xff]
  %v7026 = vld [vmem:[%s1 + $0x90] sm:$0xff]
  %v7027 = vld [vmem:[%s1 + $0x98] sm:$0xff]
  %v7028 = vld [vmem:[%s1 + $0xa0] sm:$0xff]
  %v7029 = vld [vmem:[%s1 + $0xa8] sm:$0xff]
  %v7030 = vld [vmem:[%s1 + $0xb0] sm:$0xff]
  %v7031 = vld [vmem:[%s1 + $0xb8] sm:$0xff]
  %v7032 = vld [vmem:[%s1 + $0xc0] sm:$0xff]
  %v7034 = vsel %vm95, %v6977, 0
  %v7037 = vsel %vm95, %v6979, 0
  %v7040 = vsel %vm95, %v6981, 0
  %v7043 = vsel %vm95, %v6983, 0
  %v7046 = vsel %vm95, %v6985, 0
  %v7049 = vsel %vm95, %v6987, 0
  %v7052 = vsel %vm95, %v6989, 0
  %v7055 = vsel %vm95, %v6991, 0
  %v7058 = vsel %vm95, %v6993, 0
  %v7061 = vsel %vm95, %v6995, 0
  %v7064 = vsel %vm95, %v6997, 0
  %v7067 = vsel %vm95, %v6999, 0
  %v7070 = vsel %vm95, %v7001, 0
  %v7073 = vsel %vm95, %v7003, 0
  %v7076 = vsel %vm95, %v7005, 0
  %v7079 = vsel %vm95, %v7007, 0
  %7081 = vmatpush.msra.mxu0 %v7023
  %7082 = vmatpush.msra.mxu0 %v7022
  %7083 = vmatpush.msra.mxu0 %v7021
  %7084 = vmatpush.msra.mxu0 %v7020
  %7085 = vmatpush.msra.mxu0 %v7019
  %7086 = vmatpush.msra.mxu0 %v7018
  %7087 = vmatpush.msra.mxu0 %v7017
  %7088 = vmatpush.msra.mxu0 %v7016
  %7089 = vmatpush.msra.mxu0 %v7015
  %7090 = vmatpush.msra.mxu0 %v7014
  %7091 = vmatpush.msra.mxu0 %v7013
  %7092 = vmatpush.msra.mxu0 %v7012
  %7093 = vmatpush.msra.mxu0 %v7011
  %7094 = vmatpush.msra.mxu0 %v7010
  %7095 = vmatpush.msra.mxu0 %v7009
  %7096 = vmatpush.msra.mxu0 %v7008
  %7097 = vmatmul.f32.gmra.mxu0 %v6976
  %v7098 = vpop.f32.mrf.mxu0
  %v7099 = vadd.f32 0.0, %v7098
  %7100 = vmatmul.f32.gmra.mxu0 %v6978
  %v7101 = vpop.f32.mrf.mxu0
  %v7102 = vadd.f32 0.0, %v7101
  %7103 = vmatmul.f32.gmra.mxu0 %v6980
  %v7104 = vpop.f32.mrf.mxu0
  %v7105 = vadd.f32 0.0, %v7104
  %7106 = vmatmul.f32.gmra.mxu0 %v6982
  %v7107 = vpop.f32.mrf.mxu0
  %v7108 = vadd.f32 0.0, %v7107
  %7109 = vmatmul.f32.gmra.mxu0 %v6984
  %v7110 = vpop.f32.mrf.mxu0
  %v7111 = vadd.f32 0.0, %v7110
  %7112 = vmatmul.f32.gmra.mxu0 %v6986
  %v7113 = vpop.f32.mrf.mxu0
  %v7114 = vadd.f32 0.0, %v7113
  %7115 = vmatmul.f32.gmra.mxu0 %v6988
  %v7116 = vpop.f32.mrf.mxu0
  %v7117 = vadd.f32 0.0, %v7116
  %7118 = vmatmul.f32.gmra.mxu0 %v6990
  %v7119 = vpop.f32.mrf.mxu0
  %v7120 = vadd.f32 0.0, %v7119
  %7121 = vmatmul.f32.gmra.mxu0 %v6992
  %v7122 = vpop.f32.mrf.mxu0
  %v7123 = vadd.f32 0.0, %v7122
  %7124 = vmatmul.f32.gmra.mxu0 %v6994
  %v7125 = vpop.f32.mrf.mxu0
  %v7126 = vadd.f32 0.0, %v7125
  %7127 = vmatmul.f32.gmra.mxu0 %v6996
  %v7128 = vpop.f32.mrf.mxu0
  %v7129 = vadd.f32 0.0, %v7128
  %7130 = vmatmul.f32.gmra.mxu0 %v6998
  %v7131 = vpop.f32.mrf.mxu0
  %v7132 = vadd.f32 0.0, %v7131
  %7133 = vmatmul.f32.gmra.mxu0 %v7000
  %v7134 = vpop.f32.mrf.mxu0
  %v7135 = vadd.f32 0.0, %v7134
  %7136 = vmatmul.f32.gmra.mxu0 %v7002
  %v7137 = vpop.f32.mrf.mxu0
  %v7138 = vadd.f32 0.0, %v7137
  %7139 = vmatmul.f32.gmra.mxu0 %v7004
  %v7140 = vpop.f32.mrf.mxu0
  %v7141 = vadd.f32 0.0, %v7140
  %7142 = vmatmul.f32.gmra.mxu0 %v7006
  %v7143 = vpop.f32.mrf.mxu0
  %v7144 = vadd.f32 0.0, %v7143
  %7145 = vdwg.mxu0
  %7146 = vmatpush.msra.mxu0 0.0
  %7147 = vmatpush.msra.mxu0 0.0
  %7148 = vmatpush.msra.mxu0 0.0
  %7149 = vmatpush.msra.mxu0 0.0
  %7150 = vmatpush.msra.mxu0 0.0
  %7151 = vmatpush.msra.mxu0 0.0
  %7152 = vmatpush.msra.mxu0 0.0
  %7153 = vmatpush.msra.mxu0 %v7032
  %7154 = vmatpush.msra.mxu0 %v7031
  %7155 = vmatpush.msra.mxu0 %v7030
  %7156 = vmatpush.msra.mxu0 %v7029
  %7157 = vmatpush.msra.mxu0 %v7028
  %7158 = vmatpush.msra.mxu0 %v7027
  %7159 = vmatpush.msra.mxu0 %v7026
  %7160 = vmatpush.msra.mxu0 %v7025
  %7161 = vmatpush.msra.mxu0 %v7024
  %7162 = vmatmul.f32.gmra.mxu0 %v7034
  %v7163 = vpop.f32.mrf.mxu0
  %v7164 = vadd.f32 %v7099, %v7163
  %7165 = vmatmul.f32.gmra.mxu0 %v7037
  %v7166 = vpop.f32.mrf.mxu0
  %v7167 = vadd.f32 %v7102, %v7166
  %7168 = vmatmul.f32.gmra.mxu0 %v7040
  %v7169 = vpop.f32.mrf.mxu0
  %v7170 = vadd.f32 %v7105, %v7169
  %7171 = vmatmul.f32.gmra.mxu0 %v7043
  %v7172 = vpop.f32.mrf.mxu0
  %v7173 = vadd.f32 %v7108, %v7172
  %7174 = vmatmul.f32.gmra.mxu0 %v7046
  %v7175 = vpop.f32.mrf.mxu0
  %v7176 = vadd.f32 %v7111, %v7175
  %7177 = vmatmul.f32.gmra.mxu0 %v7049
  %v7178 = vpop.f32.mrf.mxu0
  %v7179 = vadd.f32 %v7114, %v7178
  %7180 = vmatmul.f32.gmra.mxu0 %v7052
  %v7181 = vpop.f32.mrf.mxu0
  %v7182 = vadd.f32 %v7117, %v7181
  %7183 = vmatmul.f32.gmra.mxu0 %v7055
  %v7184 = vpop.f32.mrf.mxu0
  %v7185 = vadd.f32 %v7120, %v7184
  %7186 = vmatmul.f32.gmra.mxu0 %v7058
  %v7187 = vpop.f32.mrf.mxu0
  %v7188 = vadd.f32 %v7123, %v7187
  %7189 = vmatmul.f32.gmra.mxu0 %v7061
  %v7190 = vpop.f32.mrf.mxu0
  %v7191 = vadd.f32 %v7126, %v7190
  %7192 = vmatmul.f32.gmra.mxu0 %v7064
  %v7193 = vpop.f32.mrf.mxu0
  %v7194 = vadd.f32 %v7129, %v7193
  %7195 = vmatmul.f32.gmra.mxu0 %v7067
  %v7196 = vpop.f32.mrf.mxu0
  %v7197 = vadd.f32 %v7132, %v7196
  %7198 = vmatmul.f32.gmra.mxu0 %v7070
  %v7199 = vpop.f32.mrf.mxu0
  %v7200 = vadd.f32 %v7135, %v7199
  %7201 = vmatmul.f32.gmra.mxu0 %v7073
  %v7202 = vpop.f32.mrf.mxu0
  %v7203 = vadd.f32 %v7138, %v7202
  %7204 = vmatmul.f32.gmra.mxu0 %v7076
  %v7205 = vpop.f32.mrf.mxu0
  %v7206 = vadd.f32 %v7141, %v7205
  %7207 = vmatmul.f32.gmra.mxu0 %v7079
  %v7208 = vpop.f32.mrf.mxu0
  %v7209 = vadd.f32 %v7144, %v7208
  %7210 = vdwg.mxu0
  %v7211 = vmax.f32 %v7164, %v7170
  %v7212 = vmax.f32 %v7167, %v7173
  %v7213 = vmax.f32 %v7176, %v7182
  %v7214 = vmax.f32 %v7179, %v7185
  %v7215 = vmax.f32 %v7188, %v7194
  %v7216 = vmax.f32 %v7191, %v7197
  %v7217 = vmax.f32 %v7200, %v7206
  %v7218 = vmax.f32 %v7203, %v7209
  %7219 = vst [vmem:[#allocation2] sm:$0xff] %v7211
  %7220 = vst [vmem:[#allocation2 + $0x8] sm:$0xff] %v7212
  %7221 = vst [vmem:[#allocation2 + $0x10] sm:$0xff] %v7213
  %7222 = vst [vmem:[#allocation2 + $0x18] sm:$0xff] %v7214
  %7223 = vst [vmem:[#allocation2 + $0x20] sm:$0xff] %v7215
  %7224 = vst [vmem:[#allocation2 + $0x28] sm:$0xff] %v7216
  %7225 = vst [vmem:[#allocation2 + $0x30] sm:$0xff] %v7217
  %7226 = vst [vmem:[#allocation2 + $0x38] sm:$0xff] %v7218
  %v7227 = vld [vmem:[#allocation2] ss:$2 sm:$0xff]
  %v7228 = vld [vmem:[%s291] ss:$2 sm:$0xff]
  %v7229 = vld [vmem:[%s293] ss:$2 sm:$0xff]
  %v7230 = vld [vmem:[%s295] ss:$2 sm:$0xff]
  %v7231 = vld [vmem:[%s297] ss:$2 sm:$0xff]
  %v7232 = vld [vmem:[%s299] ss:$2 sm:$0xff]
  %v7233 = vld [vmem:[%s301] ss:$2 sm:$0xff]
  %v7234 = vld [vmem:[%s303] ss:$2 sm:$0xff]
  %v7235 = vmax.f32 %v7227, %v7231
  %v7236 = vmax.f32 %v7228, %v7232
  %v7237 = vmax.f32 %v7229, %v7233
  %v7238 = vmax.f32 %v7230, %v7234
  %v7239 = vadd.f32 %v7235, %v30
  %v7240 = vadd.f32 %v7236, %v30
  %v7241 = vadd.f32 %v7237, %v30
  %v7242 = vadd.f32 %v7238, %v30
  %v7243 = vmax.f32 %v7239, 0.0
  %v7244 = vmax.f32 %v7240, 0.0
  %v7245 = vmax.f32 %v7241, 0.0
  %v7246 = vmax.f32 %v7242, 0.0
  %7247 = vst [vmem:[#allocation3 + $0x20] sm:$0xff] %v7243
  %7248 = vst [vmem:[#allocation3 + $0x28] sm:$0xff] %v7244
  %7249 = vst [vmem:[#allocation3 + $0x30] sm:$0xff] %v7245
  %7250 = vst [vmem:[#allocation3 + $0x38] sm:$0xff] %v7246
  %v7251 = vld [vmem:[#allocation3] sm:$0xff]
  %v7252 = vld [vmem:[#allocation3 + $0x8] sm:$0xff]
  %v7253 = vld [vmem:[#allocation3 + $0x10] sm:$0xff]
  %v7254 = vld [vmem:[#allocation3 + $0x18] sm:$0xff]
  %v7255 = vld [vmem:[#allocation3 + $0x20] sm:$0xff]
  %v7256 = vld [vmem:[#allocation3 + $0x28] sm:$0x3f]
  %v7257 = vld [vmem:[#allocation3 + $0x1] sm:$0xff]
  %v7258 = vld [vmem:[#allocation3 + $0x9] sm:$0xff]
  %v7259 = vld [vmem:[#allocation3 + $0x11] sm:$0xff]
  %v7260 = vld [vmem:[#allocation3 + $0x19] sm:$0xff]
  %v7261 = vld [vmem:[#allocation3 + $0x21] sm:$0xff]
  %v7262 = vld [vmem:[#allocation3 + $0x29] sm:$0x3f]
  %v7263 = vld [vmem:[#allocation3 + $0x2] sm:$0xff]
  %v7264 = vld [vmem:[#allocation3 + $0xa] sm:$0xff]
  %v7265 = vld [vmem:[#allocation3 + $0x12] sm:$0xff]
  %v7266 = vld [vmem:[#allocation3 + $0x1a] sm:$0xff]
  %v7267 = vld [vmem:[#allocation3 + $0x22] sm:$0xff]
  %v7268 = vld [vmem:[#allocation3 + $0x2a] sm:$0x3f]
  %v7269 = vld [vmem:[%s3] sm:$0xff]
  %v7270 = vld [vmem:[%s3 + $0x8] sm:$0xff]
  %v7271 = vld [vmem:[%s3 + $0x10] sm:$0xff]
  %v7272 = vld [vmem:[%s3 + $0x18] sm:$0xff]
  %v7273 = vld [vmem:[%s3 + $0x20] sm:$0xff]
  %v7274 = vld [vmem:[%s3 + $0x28] sm:$0xff]
  %v7275 = vld [vmem:[%s3 + $0x30] sm:$0xff]
  %v7276 = vld [vmem:[%s3 + $0x38] sm:$0xff]
  %v7277 = vld [vmem:[%s3 + $0x40] sm:$0xff]
  %v7278 = vld [vmem:[%s3 + $0x48] sm:$0xff]
  %v7279 = vld [vmem:[%s3 + $0x50] sm:$0xff]
  %v7280 = vld [vmem:[%s3 + $0x58] sm:$0xff]
  %v7281 = vld [vmem:[%s3 + $0x60] sm:$0xff]
  %v7282 = vld [vmem:[%s3 + $0x68] sm:$0xff]
  %v7283 = vld [vmem:[%s3 + $0x70] sm:$0xff]
  %v7284 = vld [vmem:[%s3 + $0x78] sm:$0xff]
  %v7285 = vld [vmem:[%s3 + $0x80] sm:$0xff]
  %v7286 = vld [vmem:[%s3 + $0x88] sm:$0xff]
  %v7287 = vld [vmem:[%s3 + $0x90] sm:$0xff]
  %v7288 = vld [vmem:[%s3 + $0x98] sm:$0xff]
  %v7289 = vld [vmem:[%s3 + $0xa0] sm:$0xff]
  %v7290 = vld [vmem:[%s3 + $0xa8] sm:$0xff]
  %v7291 = vld [vmem:[%s3 + $0xb0] sm:$0xff]
  %v7292 = vld [vmem:[%s3 + $0xb8] sm:$0xff]
  %v7293 = vld [vmem:[%s3 + $0xc0] sm:$0xff]
  %v7294 = vld [vmem:[%s3 + $0xc8] sm:$0xff]
  %v7295 = vld [vmem:[%s3 + $0xd0] sm:$0xff]
  %v7296 = vld [vmem:[%s3 + $0xd8] sm:$0xff]
  %v7297 = vld [vmem:[%s3 + $0xe0] sm:$0xff]
  %v7298 = vld [vmem:[%s3 + $0xe8] sm:$0xff]
  %v7299 = vld [vmem:[%s3 + $0xf0] sm:$0xff]
  %v7300 = vld [vmem:[%s3 + $0xf8] sm:$0xff]
  %v7301 = vld [vmem:[%s3 + $0x100] sm:$0xff]
  %v7302 = vld [vmem:[%s3 + $0x108] sm:$0xff]
  %v7303 = vld [vmem:[%s3 + $0x110] sm:$0xff]
  %v7304 = vld [vmem:[%s3 + $0x118] sm:$0xff]
  %v7305 = vld [vmem:[%s3 + $0x120] sm:$0xff]
  %v7306 = vld [vmem:[%s3 + $0x128] sm:$0xff]
  %v7307 = vld [vmem:[%s3 + $0x130] sm:$0xff]
  %v7308 = vld [vmem:[%s3 + $0x138] sm:$0xff]
  %v7309 = vld [vmem:[%s3 + $0x140] sm:$0xff]
  %v7310 = vld [vmem:[%s3 + $0x148] sm:$0xff]
  %v7311 = vld [vmem:[%s3 + $0x150] sm:$0xff]
  %v7312 = vld [vmem:[%s3 + $0x158] sm:$0xff]
  %v7313 = vld [vmem:[%s3 + $0x160] sm:$0xff]
  %v7314 = vld [vmem:[%s3 + $0x168] sm:$0xff]
  %v7315 = vld [vmem:[%s3 + $0x170] sm:$0xff]
  %v7316 = vld [vmem:[%s3 + $0x178] sm:$0xff]
  %v7317 = vld [vmem:[#allocation3 + $0x28] sm:$0xff]
  %v7318 = vld [vmem:[#allocation3 + $0x30] sm:$0x3f]
  %v7319 = vld [vmem:[#allocation3 + $0x29] sm:$0xff]
  %v7320 = vld [vmem:[#allocation3 + $0x31] sm:$0x3f]
  %v7321 = vld [vmem:[#allocation3 + $0x2a] sm:$0xff]
  %v7322 = vld [vmem:[#allocation3 + $0x32] sm:$0x3f]
  %v7323 = vld [vmem:[%s668] sm:$0xff]
  %v7324 = vld [vmem:[%s668 + $0x8] sm:$0xff]
  %v7325 = vld [vmem:[%s668 + $0x10] sm:$0xff]
  %v7326 = vld [vmem:[%s668 + $0x18] sm:$0xff]
  %v7327 = vld [vmem:[%s668 + $0x20] sm:$0xff]
  %v7328 = vld [vmem:[%s668 + $0x28] sm:$0xff]
  %v7329 = vld [vmem:[%s668 + $0x30] sm:$0xff]
  %v7330 = vld [vmem:[%s668 + $0x38] sm:$0xff]
  %v7331 = vld [vmem:[%s668 + $0x40] sm:$0xff]
  %v7332 = vld [vmem:[%s668 + $0x48] sm:$0xff]
  %v7333 = vld [vmem:[%s668 + $0x50] sm:$0xff]
  %v7334 = vld [vmem:[%s668 + $0x58] sm:$0xff]
  %v7335 = vld [vmem:[%s668 + $0x60] sm:$0xff]
  %v7336 = vld [vmem:[%s668 + $0x68] sm:$0xff]
  %v7337 = vld [vmem:[%s668 + $0x70] sm:$0xff]
  %v7338 = vld [vmem:[%s668 + $0x78] sm:$0xff]
  %v7339 = vld [vmem:[%s668 + $0x80] sm:$0xff]
  %v7340 = vld [vmem:[%s668 + $0x88] sm:$0xff]
  %v7341 = vld [vmem:[%s668 + $0x90] sm:$0xff]
  %v7342 = vld [vmem:[%s668 + $0x98] sm:$0xff]
  %v7343 = vld [vmem:[%s668 + $0xa0] sm:$0xff]
  %v7344 = vld [vmem:[%s668 + $0xa8] sm:$0xff]
  %v7345 = vld [vmem:[%s668 + $0xb0] sm:$0xff]
  %v7346 = vld [vmem:[%s668 + $0xb8] sm:$0xff]
  %v7347 = vld [vmem:[%s668 + $0xc0] sm:$0xff]
  %v7348 = vld [vmem:[%s668 + $0xc8] sm:$0xff]
  %v7349 = vld [vmem:[%s668 + $0xd0] sm:$0xff]
  %v7350 = vld [vmem:[%s668 + $0xd8] sm:$0xff]
  %v7351 = vld [vmem:[%s668 + $0xe0] sm:$0xff]
  %v7352 = vld [vmem:[%s668 + $0xe8] sm:$0xff]
  %v7353 = vld [vmem:[%s668 + $0xf0] sm:$0xff]
  %v7354 = vld [vmem:[%s668 + $0xf8] sm:$0xff]
  %v7355 = vld [vmem:[%s668 + $0x100] sm:$0xff]
  %v7356 = vld [vmem:[%s668 + $0x108] sm:$0xff]
  %v7357 = vld [vmem:[%s668 + $0x110] sm:$0xff]
  %v7358 = vld [vmem:[%s668 + $0x118] sm:$0xff]
  %v7359 = vld [vmem:[%s668 + $0x120] sm:$0xff]
  %v7360 = vld [vmem:[%s668 + $0x128] sm:$0xff]
  %v7361 = vld [vmem:[%s668 + $0x130] sm:$0xff]
  %v7362 = vld [vmem:[%s668 + $0x138] sm:$0xff]
  %v7363 = vld [vmem:[%s668 + $0x140] sm:$0xff]
  %v7364 = vld [vmem:[%s668 + $0x148] sm:$0xff]
  %v7365 = vld [vmem:[%s668 + $0x150] sm:$0xff]
  %v7366 = vld [vmem:[%s668 + $0x158] sm:$0xff]
  %v7367 = vld [vmem:[%s668 + $0x160] sm:$0xff]
  %v7368 = vld [vmem:[%s668 + $0x168] sm:$0xff]
  %v7369 = vld [vmem:[%s668 + $0x170] sm:$0xff]
  %v7370 = vld [vmem:[%s668 + $0x178] sm:$0xff]
  %7371 = vmatpush.msra.mxu0 %v7338
  %7372 = vmatpush.msra.mxu0 %v7337
  %7373 = vmatpush.msra.mxu0 %v7336
  %7374 = vmatpush.msra.mxu0 %v7335
  %7375 = vmatpush.msra.mxu0 %v7334
  %7376 = vmatpush.msra.mxu0 %v7333
  %7377 = vmatpush.msra.mxu0 %v7332
  %7378 = vmatpush.msra.mxu0 %v7331
  %7379 = vmatpush.msra.mxu0 %v7330
  %7380 = vmatpush.msra.mxu0 %v7329
  %7381 = vmatpush.msra.mxu0 %v7328
  %7382 = vmatpush.msra.mxu0 %v7327
  %7383 = vmatpush.msra.mxu0 %v7326
  %7384 = vmatpush.msra.mxu0 %v7325
  %7385 = vmatpush.msra.mxu0 %v7324
  %7386 = vmatpush.msra.mxu0 %v7323
  %7387 = vmatmul.f32.gmra.mxu0 %v7252
  %v7388 = vpop.f32.mrf.mxu0
  %v7389 = vadd.f32 0.0, %v7388
  %7390 = vmatmul.f32.gmra.mxu0 %v7253
  %v7391 = vpop.f32.mrf.mxu0
  %v7392 = vadd.f32 0.0, %v7391
  %7393 = vmatmul.f32.gmra.mxu0 %v7254
  %v7394 = vpop.f32.mrf.mxu0
  %v7395 = vadd.f32 0.0, %v7394
  %7396 = vmatmul.f32.gmra.mxu0 %v7255
  %v7397 = vpop.f32.mrf.mxu0
  %v7398 = vadd.f32 0.0, %v7397
  %7399 = vmatmul.f32.gmra.mxu0 %v7317
  %v7400 = vpop.f32.mrf.mxu0
  %v7401 = vadd.f32 0.0, %v7400
  %7402 = vmatmul.f32.gmra.mxu0 %v7318
  %v7403 = vpop.f32.mrf.mxu0
  %v7404 = vadd.f32 0.0, %v7403
  %7405 = vdwg.mxu0
  %7406 = vmatpush.msra.mxu0 %v7354
  %7407 = vmatpush.msra.mxu0 %v7353
  %7408 = vmatpush.msra.mxu0 %v7352
  %7409 = vmatpush.msra.mxu0 %v7351
  %7410 = vmatpush.msra.mxu0 %v7350
  %7411 = vmatpush.msra.mxu0 %v7349
  %7412 = vmatpush.msra.mxu0 %v7348
  %7413 = vmatpush.msra.mxu0 %v7347
  %7414 = vmatpush.msra.mxu0 %v7346
  %7415 = vmatpush.msra.mxu0 %v7345
  %7416 = vmatpush.msra.mxu0 %v7344
  %7417 = vmatpush.msra.mxu0 %v7343
  %7418 = vmatpush.msra.mxu0 %v7342
  %7419 = vmatpush.msra.mxu0 %v7341
  %7420 = vmatpush.msra.mxu0 %v7340
  %7421 = vmatpush.msra.mxu0 %v7339
  %7422 = vmatmul.f32.gmra.mxu0 %v7258
  %v7423 = vpop.f32.mrf.mxu0
  %v7424 = vadd.f32 %v7389, %v7423
  %7425 = vmatmul.f32.gmra.mxu0 %v7259
  %v7426 = vpop.f32.mrf.mxu0
  %v7427 = vadd.f32 %v7392, %v7426
  %7428 = vmatmul.f32.gmra.mxu0 %v7260
  %v7429 = vpop.f32.mrf.mxu0
  %v7430 = vadd.f32 %v7395, %v7429
  %7431 = vmatmul.f32.gmra.mxu0 %v7261
  %v7432 = vpop.f32.mrf.mxu0
  %v7433 = vadd.f32 %v7398, %v7432
  %7434 = vmatmul.f32.gmra.mxu0 %v7319
  %v7435 = vpop.f32.mrf.mxu0
  %v7436 = vadd.f32 %v7401, %v7435
  %7437 = vmatmul.f32.gmra.mxu0 %v7320
  %v7438 = vpop.f32.mrf.mxu0
  %v7439 = vadd.f32 %v7404, %v7438
  %7440 = vdwg.mxu0
  %7441 = vmatpush.msra.mxu0 %v7370
  %7442 = vmatpush.msra.mxu0 %v7369
  %7443 = vmatpush.msra.mxu0 %v7368
  %7444 = vmatpush.msra.mxu0 %v7367
  %7445 = vmatpush.msra.mxu0 %v7366
  %7446 = vmatpush.msra.mxu0 %v7365
  %7447 = vmatpush.msra.mxu0 %v7364
  %7448 = vmatpush.msra.mxu0 %v7363
  %7449 = vmatpush.msra.mxu0 %v7362
  %7450 = vmatpush.msra.mxu0 %v7361
  %7451 = vmatpush.msra.mxu0 %v7360
  %7452 = vmatpush.msra.mxu0 %v7359
  %7453 = vmatpush.msra.mxu0 %v7358
  %7454 = vmatpush.msra.mxu0 %v7357
  %7455 = vmatpush.msra.mxu0 %v7356
  %7456 = vmatpush.msra.mxu0 %v7355
  %7457 = vmatmul.f32.gmra.mxu0 %v7264
  %v7458 = vpop.f32.mrf.mxu0
  %v7459 = vadd.f32 %v7424, %v7458
  %7460 = vmatmul.f32.gmra.mxu0 %v7265
  %v7461 = vpop.f32.mrf.mxu0
  %v7462 = vadd.f32 %v7427, %v7461
  %7463 = vmatmul.f32.gmra.mxu0 %v7266
  %v7464 = vpop.f32.mrf.mxu0
  %v7465 = vadd.f32 %v7430, %v7464
  %7466 = vmatmul.f32.gmra.mxu0 %v7267
  %v7467 = vpop.f32.mrf.mxu0
  %v7468 = vadd.f32 %v7433, %v7467
  %7469 = vmatmul.f32.gmra.mxu0 %v7321
  %v7470 = vpop.f32.mrf.mxu0
  %v7471 = vadd.f32 %v7436, %v7470
  %7472 = vmatmul.f32.gmra.mxu0 %v7322
  %v7473 = vpop.f32.mrf.mxu0
  %v7474 = vadd.f32 %v7439, %v7473
  %7475 = vdwg.mxu0
  %7476 = vmatpush.msra.mxu0 %v7284
  %7477 = vmatpush.msra.mxu0 %v7283
  %7478 = vmatpush.msra.mxu0 %v7282
  %7479 = vmatpush.msra.mxu0 %v7281
  %7480 = vmatpush.msra.mxu0 %v7280
  %7481 = vmatpush.msra.mxu0 %v7279
  %7482 = vmatpush.msra.mxu0 %v7278
  %7483 = vmatpush.msra.mxu0 %v7277
  %7484 = vmatpush.msra.mxu0 %v7276
  %7485 = vmatpush.msra.mxu0 %v7275
  %7486 = vmatpush.msra.mxu0 %v7274
  %7487 = vmatpush.msra.mxu0 %v7273
  %7488 = vmatpush.msra.mxu0 %v7272
  %7489 = vmatpush.msra.mxu0 %v7271
  %7490 = vmatpush.msra.mxu0 %v7270
  %7491 = vmatpush.msra.mxu0 %v7269
  %7492 = vmatmul.f32.gmra.mxu0 %v7251
  %v7493 = vpop.f32.mrf.mxu0
  %v7494 = vadd.f32 %v7459, %v7493
  %7495 = vmatmul.f32.gmra.mxu0 %v7252
  %v7496 = vpop.f32.mrf.mxu0
  %v7497 = vadd.f32 %v7462, %v7496
  %7498 = vmatmul.f32.gmra.mxu0 %v7253
  %v7499 = vpop.f32.mrf.mxu0
  %v7500 = vadd.f32 %v7465, %v7499
  %7501 = vmatmul.f32.gmra.mxu0 %v7254
  %v7502 = vpop.f32.mrf.mxu0
  %v7503 = vadd.f32 %v7468, %v7502
  %7504 = vmatmul.f32.gmra.mxu0 %v7255
  %v7505 = vpop.f32.mrf.mxu0
  %v7506 = vadd.f32 %v7471, %v7505
  %7507 = vmatmul.f32.gmra.mxu0 %v7256
  %v7508 = vpop.f32.mrf.mxu0
  %v7509 = vadd.f32 %v7474, %v7508
  %7510 = vdwg.mxu0
  %7511 = vmatpush.msra.mxu0 %v7300
  %7512 = vmatpush.msra.mxu0 %v7299
  %7513 = vmatpush.msra.mxu0 %v7298
  %7514 = vmatpush.msra.mxu0 %v7297
  %7515 = vmatpush.msra.mxu0 %v7296
  %7516 = vmatpush.msra.mxu0 %v7295
  %7517 = vmatpush.msra.mxu0 %v7294
  %7518 = vmatpush.msra.mxu0 %v7293
  %7519 = vmatpush.msra.mxu0 %v7292
  %7520 = vmatpush.msra.mxu0 %v7291
  %7521 = vmatpush.msra.mxu0 %v7290
  %7522 = vmatpush.msra.mxu0 %v7289
  %7523 = vmatpush.msra.mxu0 %v7288
  %7524 = vmatpush.msra.mxu0 %v7287
  %7525 = vmatpush.msra.mxu0 %v7286
  %7526 = vmatpush.msra.mxu0 %v7285
  %7527 = vmatmul.f32.gmra.mxu0 %v7257
  %v7528 = vpop.f32.mrf.mxu0
  %v7529 = vadd.f32 %v7494, %v7528
  %7530 = vmatmul.f32.gmra.mxu0 %v7258
  %v7531 = vpop.f32.mrf.mxu0
  %v7532 = vadd.f32 %v7497, %v7531
  %7533 = vmatmul.f32.gmra.mxu0 %v7259
  %v7534 = vpop.f32.mrf.mxu0
  %v7535 = vadd.f32 %v7500, %v7534
  %7536 = vmatmul.f32.gmra.mxu0 %v7260
  %v7537 = vpop.f32.mrf.mxu0
  %v7538 = vadd.f32 %v7503, %v7537
  %7539 = vmatmul.f32.gmra.mxu0 %v7261
  %v7540 = vpop.f32.mrf.mxu0
  %v7541 = vadd.f32 %v7506, %v7540
  %7542 = vmatmul.f32.gmra.mxu0 %v7262
  %v7543 = vpop.f32.mrf.mxu0
  %v7544 = vadd.f32 %v7509, %v7543
  %7545 = vdwg.mxu0
  %7546 = vmatpush.msra.mxu0 %v7316
  %7547 = vmatpush.msra.mxu0 %v7315
  %7548 = vmatpush.msra.mxu0 %v7314
  %7549 = vmatpush.msra.mxu0 %v7313
  %7550 = vmatpush.msra.mxu0 %v7312
  %7551 = vmatpush.msra.mxu0 %v7311
  %7552 = vmatpush.msra.mxu0 %v7310
  %7553 = vmatpush.msra.mxu0 %v7309
  %7554 = vmatpush.msra.mxu0 %v7308
  %7555 = vmatpush.msra.mxu0 %v7307
  %7556 = vmatpush.msra.mxu0 %v7306
  %7557 = vmatpush.msra.mxu0 %v7305
  %7558 = vmatpush.msra.mxu0 %v7304
  %7559 = vmatpush.msra.mxu0 %v7303
  %7560 = vmatpush.msra.mxu0 %v7302
  %7561 = vmatpush.msra.mxu0 %v7301
  %7562 = vmatmul.f32.gmra.mxu0 %v7263
  %v7563 = vpop.f32.mrf.mxu0
  %v7564 = vadd.f32 %v7529, %v7563
  %7565 = vmatmul.f32.gmra.mxu0 %v7264
  %v7566 = vpop.f32.mrf.mxu0
  %v7567 = vadd.f32 %v7532, %v7566
  %7568 = vmatmul.f32.gmra.mxu0 %v7265
  %v7569 = vpop.f32.mrf.mxu0
  %v7570 = vadd.f32 %v7535, %v7569
  %7571 = vmatmul.f32.gmra.mxu0 %v7266
  %v7572 = vpop.f32.mrf.mxu0
  %v7573 = vadd.f32 %v7538, %v7572
  %7574 = vmatmul.f32.gmra.mxu0 %v7267
  %v7575 = vpop.f32.mrf.mxu0
  %v7576 = vadd.f32 %v7541, %v7575
  %7577 = vmatmul.f32.gmra.mxu0 %v7268
  %v7578 = vpop.f32.mrf.mxu0
  %v7579 = vadd.f32 %v7544, %v7578
  %7580 = vdwg.mxu0
  %v7581 = vld [vmem:[#allocation3 + $0x10] sm:$0xff]
  %v7582 = vld [vmem:[#allocation3 + $0x18] sm:$0xff]
  %v7583 = vld [vmem:[#allocation3 + $0x20] sm:$0xff]
  %v7584 = vld [vmem:[#allocation3 + $0x28] sm:$0xff]
  %v7585 = vld [vmem:[#allocation3 + $0x30] sm:$0xff]
  %v7586 = vld [vmem:[#allocation3 + $0x38] sm:$0x3f]
  %v7587 = vld [vmem:[#allocation3 + $0x11] sm:$0xff]
  %v7588 = vld [vmem:[#allocation3 + $0x19] sm:$0xff]
  %v7589 = vld [vmem:[#allocation3 + $0x21] sm:$0xff]
  %v7590 = vld [vmem:[#allocation3 + $0x29] sm:$0xff]
  %v7591 = vld [vmem:[#allocation3 + $0x31] sm:$0xff]
  %v7592 = vld [vmem:[#allocation3 + $0x39] sm:$0x3f]
  %v7593 = vld [vmem:[#allocation3 + $0x12] sm:$0xff]
  %v7594 = vld [vmem:[#allocation3 + $0x1a] sm:$0xff]
  %v7595 = vld [vmem:[#allocation3 + $0x22] sm:$0xff]
  %v7596 = vld [vmem:[#allocation3 + $0x2a] sm:$0xff]
  %v7597 = vld [vmem:[#allocation3 + $0x32] sm:$0xff]
  %v7598 = vld [vmem:[#allocation3 + $0x3a] sm:$0x3f]
  %v7599 = vld [vmem:[%s945] sm:$0xff]
  %v7600 = vld [vmem:[%s945 + $0x8] sm:$0xff]
  %v7601 = vld [vmem:[%s945 + $0x10] sm:$0xff]
  %v7602 = vld [vmem:[%s945 + $0x18] sm:$0xff]
  %v7603 = vld [vmem:[%s945 + $0x20] sm:$0xff]
  %v7604 = vld [vmem:[%s945 + $0x28] sm:$0xff]
  %v7605 = vld [vmem:[%s945 + $0x30] sm:$0xff]
  %v7606 = vld [vmem:[%s945 + $0x38] sm:$0xff]
  %v7607 = vld [vmem:[%s945 + $0x40] sm:$0xff]
  %v7608 = vld [vmem:[%s945 + $0x48] sm:$0xff]
  %v7609 = vld [vmem:[%s945 + $0x50] sm:$0xff]
  %v7610 = vld [vmem:[%s945 + $0x58] sm:$0xff]
  %v7611 = vld [vmem:[%s945 + $0x60] sm:$0xff]
  %v7612 = vld [vmem:[%s945 + $0x68] sm:$0xff]
  %v7613 = vld [vmem:[%s945 + $0x70] sm:$0xff]
  %v7614 = vld [vmem:[%s945 + $0x78] sm:$0xff]
  %v7615 = vld [vmem:[%s945 + $0x80] sm:$0xff]
  %v7616 = vld [vmem:[%s945 + $0x88] sm:$0xff]
  %v7617 = vld [vmem:[%s945 + $0x90] sm:$0xff]
  %v7618 = vld [vmem:[%s945 + $0x98] sm:$0xff]
  %v7619 = vld [vmem:[%s945 + $0xa0] sm:$0xff]
  %v7620 = vld [vmem:[%s945 + $0xa8] sm:$0xff]
  %v7621 = vld [vmem:[%s945 + $0xb0] sm:$0xff]
  %v7622 = vld [vmem:[%s945 + $0xb8] sm:$0xff]
  %v7623 = vld [vmem:[%s945 + $0xc0] sm:$0xff]
  %v7624 = vld [vmem:[%s945 + $0xc8] sm:$0xff]
  %v7625 = vld [vmem:[%s945 + $0xd0] sm:$0xff]
  %v7626 = vld [vmem:[%s945 + $0xd8] sm:$0xff]
  %v7627 = vld [vmem:[%s945 + $0xe0] sm:$0xff]
  %v7628 = vld [vmem:[%s945 + $0xe8] sm:$0xff]
  %v7629 = vld [vmem:[%s945 + $0xf0] sm:$0xff]
  %v7630 = vld [vmem:[%s945 + $0xf8] sm:$0xff]
  %v7631 = vld [vmem:[%s945 + $0x100] sm:$0xff]
  %v7632 = vld [vmem:[%s945 + $0x108] sm:$0xff]
  %v7633 = vld [vmem:[%s945 + $0x110] sm:$0xff]
  %v7634 = vld [vmem:[%s945 + $0x118] sm:$0xff]
  %v7635 = vld [vmem:[%s945 + $0x120] sm:$0xff]
  %v7636 = vld [vmem:[%s945 + $0x128] sm:$0xff]
  %v7637 = vld [vmem:[%s945 + $0x130] sm:$0xff]
  %v7638 = vld [vmem:[%s945 + $0x138] sm:$0xff]
  %v7639 = vld [vmem:[%s945 + $0x140] sm:$0xff]
  %v7640 = vld [vmem:[%s945 + $0x148] sm:$0xff]
  %v7641 = vld [vmem:[%s945 + $0x150] sm:$0xff]
  %v7642 = vld [vmem:[%s945 + $0x158] sm:$0xff]
  %v7643 = vld [vmem:[%s945 + $0x160] sm:$0xff]
  %v7644 = vld [vmem:[%s945 + $0x168] sm:$0xff]
  %v7645 = vld [vmem:[%s945 + $0x170] sm:$0xff]
  %v7646 = vld [vmem:[%s945 + $0x178] sm:$0xff]
  %7647 = vmatpush.msra.mxu0 %v7614
  %7648 = vmatpush.msra.mxu0 %v7613
  %7649 = vmatpush.msra.mxu0 %v7612
  %7650 = vmatpush.msra.mxu0 %v7611
  %7651 = vmatpush.msra.mxu0 %v7610
  %7652 = vmatpush.msra.mxu0 %v7609
  %7653 = vmatpush.msra.mxu0 %v7608
  %7654 = vmatpush.msra.mxu0 %v7607
  %7655 = vmatpush.msra.mxu0 %v7606
  %7656 = vmatpush.msra.mxu0 %v7605
  %7657 = vmatpush.msra.mxu0 %v7604
  %7658 = vmatpush.msra.mxu0 %v7603
  %7659 = vmatpush.msra.mxu0 %v7602
  %7660 = vmatpush.msra.mxu0 %v7601
  %7661 = vmatpush.msra.mxu0 %v7600
  %7662 = vmatpush.msra.mxu0 %v7599
  %7663 = vmatmul.f32.gmra.mxu0 %v7581
  %v7664 = vpop.f32.mrf.mxu0
  %v7665 = vadd.f32 0.0, %v7664
  %7666 = vmatmul.f32.gmra.mxu0 %v7582
  %v7667 = vpop.f32.mrf.mxu0
  %v7668 = vadd.f32 0.0, %v7667
  %7669 = vmatmul.f32.gmra.mxu0 %v7583
  %v7670 = vpop.f32.mrf.mxu0
  %v7671 = vadd.f32 0.0, %v7670
  %7672 = vmatmul.f32.gmra.mxu0 %v7584
  %v7673 = vpop.f32.mrf.mxu0
  %v7674 = vadd.f32 0.0, %v7673
  %7675 = vmatmul.f32.gmra.mxu0 %v7585
  %v7676 = vpop.f32.mrf.mxu0
  %v7677 = vadd.f32 0.0, %v7676
  %7678 = vmatmul.f32.gmra.mxu0 %v7586
  %v7679 = vpop.f32.mrf.mxu0
  %v7680 = vadd.f32 0.0, %v7679
  %7681 = vdwg.mxu0
  %7682 = vmatpush.msra.mxu0 %v7630
  %7683 = vmatpush.msra.mxu0 %v7629
  %7684 = vmatpush.msra.mxu0 %v7628
  %7685 = vmatpush.msra.mxu0 %v7627
  %7686 = vmatpush.msra.mxu0 %v7626
  %7687 = vmatpush.msra.mxu0 %v7625
  %7688 = vmatpush.msra.mxu0 %v7624
  %7689 = vmatpush.msra.mxu0 %v7623
  %7690 = vmatpush.msra.mxu0 %v7622
  %7691 = vmatpush.msra.mxu0 %v7621
  %7692 = vmatpush.msra.mxu0 %v7620
  %7693 = vmatpush.msra.mxu0 %v7619
  %7694 = vmatpush.msra.mxu0 %v7618
  %7695 = vmatpush.msra.mxu0 %v7617
  %7696 = vmatpush.msra.mxu0 %v7616
  %7697 = vmatpush.msra.mxu0 %v7615
  %7698 = vmatmul.f32.gmra.mxu0 %v7587
  %v7699 = vpop.f32.mrf.mxu0
  %v7700 = vadd.f32 %v7665, %v7699
  %7701 = vmatmul.f32.gmra.mxu0 %v7588
  %v7702 = vpop.f32.mrf.mxu0
  %v7703 = vadd.f32 %v7668, %v7702
  %7704 = vmatmul.f32.gmra.mxu0 %v7589
  %v7705 = vpop.f32.mrf.mxu0
  %v7706 = vadd.f32 %v7671, %v7705
  %7707 = vmatmul.f32.gmra.mxu0 %v7590
  %v7708 = vpop.f32.mrf.mxu0
  %v7709 = vadd.f32 %v7674, %v7708
  %7710 = vmatmul.f32.gmra.mxu0 %v7591
  %v7711 = vpop.f32.mrf.mxu0
  %v7712 = vadd.f32 %v7677, %v7711
  %7713 = vmatmul.f32.gmra.mxu0 %v7592
  %v7714 = vpop.f32.mrf.mxu0
  %v7715 = vadd.f32 %v7680, %v7714
  %7716 = vdwg.mxu0
  %7717 = vmatpush.msra.mxu0 %v7646
  %7718 = vmatpush.msra.mxu0 %v7645
  %7719 = vmatpush.msra.mxu0 %v7644
  %7720 = vmatpush.msra.mxu0 %v7643
  %7721 = vmatpush.msra.mxu0 %v7642
  %7722 = vmatpush.msra.mxu0 %v7641
  %7723 = vmatpush.msra.mxu0 %v7640
  %7724 = vmatpush.msra.mxu0 %v7639
  %7725 = vmatpush.msra.mxu0 %v7638
  %7726 = vmatpush.msra.mxu0 %v7637
  %7727 = vmatpush.msra.mxu0 %v7636
  %7728 = vmatpush.msra.mxu0 %v7635
  %7729 = vmatpush.msra.mxu0 %v7634
  %7730 = vmatpush.msra.mxu0 %v7633
  %7731 = vmatpush.msra.mxu0 %v7632
  %7732 = vmatpush.msra.mxu0 %v7631
  %7733 = vmatmul.f32.gmra.mxu0 %v7593
  %v7734 = vpop.f32.mrf.mxu0
  %v7735 = vadd.f32 %v7700, %v7734
  %7736 = vmatmul.f32.gmra.mxu0 %v7594
  %v7737 = vpop.f32.mrf.mxu0
  %v7738 = vadd.f32 %v7703, %v7737
  %7739 = vmatmul.f32.gmra.mxu0 %v7595
  %v7740 = vpop.f32.mrf.mxu0
  %v7741 = vadd.f32 %v7706, %v7740
  %7742 = vmatmul.f32.gmra.mxu0 %v7596
  %v7743 = vpop.f32.mrf.mxu0
  %v7744 = vadd.f32 %v7709, %v7743
  %7745 = vmatmul.f32.gmra.mxu0 %v7597
  %v7746 = vpop.f32.mrf.mxu0
  %v7747 = vadd.f32 %v7712, %v7746
  %7748 = vmatmul.f32.gmra.mxu0 %v7598
  %v7749 = vpop.f32.mrf.mxu0
  %v7750 = vadd.f32 %v7715, %v7749
  %7751 = vdwg.mxu0
  %v7752 = vadd.f32 %v7564, %v7735
  %v7753 = vadd.f32 %v7567, %v7738
  %v7754 = vadd.f32 %v7570, %v7741
  %v7755 = vadd.f32 %v7573, %v7744
  %v7756 = vadd.f32 %v7576, %v7747
  %v7757 = vadd.f32 %v7579, %v7750
  %7758 = vst [vmem:[#allocation2] sm:$0xff] %v7752
  %7759 = vst [vmem:[#allocation2 + $0x8] sm:$0xff] %v7753
  %7760 = vst [vmem:[#allocation2 + $0x10] sm:$0xff] %v7754
  %7761 = vst [vmem:[#allocation2 + $0x18] sm:$0xff] %v7755
  %7762 = vst [vmem:[#allocation2 + $0x20] sm:$0xff] %v7756
  %7763 = vst [vmem:[#allocation2 + $0x28] sm:$0x3f] %v7757
  %v7764 = vld [vmem:[#allocation2] ss:$2 sm:$0x7]
  %v7765 = vld [vmem:[%s297] ss:$2 sm:$0x7]
  %v7766 = vld [vmem:[%s1113] ss:$2 sm:$0x7]
  %v7767 = vld [vmem:[%s1115] ss:$2 sm:$0x7]
  %v7768 = vmax.f32 %v7764, %v7765
  %v7769 = vmax.f32 %v7766, %v7767
  %v7770 = vmax.f32 %v7768, %v7769
  %v7771 = vld [vmem:[%s1120] ss:$2 sm:$0x7]
  %v7772 = vld [vmem:[%s299] ss:$2 sm:$0x7]
  %v7773 = vld [vmem:[%s1123] ss:$2 sm:$0x7]
  %v7774 = vld [vmem:[%s1125] ss:$2 sm:$0x7]
  %v7775 = vmax.f32 %v7771, %v7772
  %v7776 = vmax.f32 %v7773, %v7774
  %v7777 = vmax.f32 %v7775, %v7776
  %v7778 = vld [vmem:[%s1130] ss:$2 sm:$0x7]
  %v7779 = vld [vmem:[%s301] ss:$2 sm:$0x7]
  %v7780 = vld [vmem:[%s1133] ss:$2 sm:$0x7]
  %v7781 = vld [vmem:[%s1135] ss:$2 sm:$0x7]
  %v7782 = vmax.f32 %v7778, %v7779
  %v7783 = vmax.f32 %v7780, %v7781
  %v7784 = vmax.f32 %v7782, %v7783
  %v7786 = vrot.slane %v7777, 5
  %v7789 = vrot.slane %v7784, 2
  %v7791 = vsel %vm1146, %v7770, %v7786
  %v7792 = vsel %vm1148, %v7791, %v7789
  %v7793 = vadd.f32 %v7792, %v34
  %v7794 = vadd.f32 %v7789, %v34
  %v7795 = vmax.f32 %v7793, 0.0
  %v7796 = vmax.f32 %v7794, 0.0
  %v7797 = vmul.f32 %v7795, %v36
  %v7798 = vmul.f32 %v7796, %v37
  %v7799 = vsel %vm1156, %v7798, 0.0
  %v7800 = vadd.f32 %v7797, %v7799
  %v7801 = vrot.slane %v7800, 4
  %v7802 = vadd.f32 %v7800, %v7801
  %v7803 = vrot.slane %v7802, 2
  %v7804 = vadd.f32 %v7802, %v7803
  %v7805 = vrot.slane %v7804, 1
  %v7806 = vadd.f32 %v7804, %v7805
  %7807 = vst [vmem:[#allocation4 + $0x6] sm:$0x1] %v7806
  %v7808 = vld [vmem:[%s0 + $0xe00] sm:$0xff]
  %v7809 = vld [vmem:[%s0 + $0xe08] sm:$0xff]
  %v7810 = vld [vmem:[%s0 + $0xe10] sm:$0xff]
  %v7811 = vld [vmem:[%s0 + $0xe18] sm:$0xff]
  %v7812 = vld [vmem:[%s0 + $0xe20] sm:$0xff]
  %v7813 = vld [vmem:[%s0 + $0xe28] sm:$0xff]
  %v7814 = vld [vmem:[%s0 + $0xe30] sm:$0xff]
  %v7815 = vld [vmem:[%s0 + $0xe38] sm:$0xff]
  %v7816 = vld [vmem:[%s0 + $0xe40] sm:$0xff]
  %v7817 = vld [vmem:[%s0 + $0xe48] sm:$0xff]
  %v7818 = vld [vmem:[%s0 + $0xe50] sm:$0xff]
  %v7819 = vld [vmem:[%s0 + $0xe58] sm:$0xff]
  %v7820 = vld [vmem:[%s0 + $0xe60] sm:$0xff]
  %v7821 = vld [vmem:[%s0 + $0xe68] sm:$0xff]
  %v7822 = vld [vmem:[%s0 + $0xe70] sm:$0xff]
  %v7823 = vld [vmem:[%s0 + $0xe78] sm:$0xff]
  %v7824 = vld [vmem:[%s0 + $0xe80] sm:$0xff]
  %v7825 = vld [vmem:[%s0 + $0xe88] sm:$0xff]
  %v7826 = vld [vmem:[%s0 + $0xe90] sm:$0xff]
  %v7827 = vld [vmem:[%s0 + $0xe98] sm:$0xff]
  %v7828 = vld [vmem:[%s0 + $0xea0] sm:$0xff]
  %v7829 = vld [vmem:[%s0 + $0xea8] sm:$0xff]
  %v7830 = vld [vmem:[%s0 + $0xeb0] sm:$0xff]
  %v7831 = vld [vmem:[%s0 + $0xeb8] sm:$0xff]
  %v7832 = vld [vmem:[%s0 + $0xec0] sm:$0xff]
  %v7833 = vld [vmem:[%s0 + $0xec8] sm:$0xff]
  %v7834 = vld [vmem:[%s0 + $0xed0] sm:$0xff]
  %v7835 = vld [vmem:[%s0 + $0xed8] sm:$0xff]
  %v7836 = vld [vmem:[%s0 + $0xee0] sm:$0xff]
  %v7837 = vld [vmem:[%s0 + $0xee8] sm:$0xff]
  %v7838 = vld [vmem:[%s0 + $0xef0] sm:$0xff]
  %v7839 = vld [vmem:[%s0 + $0xef8] sm:$0xff]
  %v7840 = vld [vmem:[%s1] sm:$0xff]
  %v7841 = vld [vmem:[%s1 + $0x8] sm:$0xff]
  %v7842 = vld [vmem:[%s1 + $0x10] sm:$0xff]
  %v7843 = vld [vmem:[%s1 + $0x18] sm:$0xff]
  %v7844 = vld [vmem:[%s1 + $0x20] sm:$0xff]
  %v7845 = vld [vmem:[%s1 + $0x28] sm:$0xff]
  %v7846 = vld [vmem:[%s1 + $0x30] sm:$0xff]
  %v7847 = vld [vmem:[%s1 + $0x38] sm:$0xff]
  %v7848 = vld [vmem:[%s1 + $0x40] sm:$0xff]
  %v7849 = vld [vmem:[%s1 + $0x48] sm:$0xff]
  %v7850 = vld [vmem:[%s1 + $0x50] sm:$0xff]
  %v7851 = vld [vmem:[%s1 + $0x58] sm:$0xff]
  %v7852 = vld [vmem:[%s1 + $0x60] sm:$0xff]
  %v7853 = vld [vmem:[%s1 + $0x68] sm:$0xff]
  %v7854 = vld [vmem:[%s1 + $0x70] sm:$0xff]
  %v7855 = vld [vmem:[%s1 + $0x78] sm:$0xff]
  %v7856 = vld [vmem:[%s1 + $0x80] sm:$0xff]
  %v7857 = vld [vmem:[%s1 + $0x88] sm:$0xff]
  %v7858 = vld [vmem:[%s1 + $0x90] sm:$0xff]
  %v7859 = vld [vmem:[%s1 + $0x98] sm:$0xff]
  %v7860 = vld [vmem:[%s1 + $0xa0] sm:$0xff]
  %v7861 = vld [vmem:[%s1 + $0xa8] sm:$0xff]
  %v7862 = vld [vmem:[%s1 + $0xb0] sm:$0xff]
  %v7863 = vld [vmem:[%s1 + $0xb8] sm:$0xff]
  %v7864 = vld [vmem:[%s1 + $0xc0] sm:$0xff]
  %v7866 = vsel %vm95, %v7809, 0
  %v7869 = vsel %vm95, %v7811, 0
  %v7872 = vsel %vm95, %v7813, 0
  %v7875 = vsel %vm95, %v7815, 0
  %v7878 = vsel %vm95, %v7817, 0
  %v7881 = vsel %vm95, %v7819, 0
  %v7884 = vsel %vm95, %v7821, 0
  %v7887 = vsel %vm95, %v7823, 0
  %v7890 = vsel %vm95, %v7825, 0
  %v7893 = vsel %vm95, %v7827, 0
  %v7896 = vsel %vm95, %v7829, 0
  %v7899 = vsel %vm95, %v7831, 0
  %v7902 = vsel %vm95, %v7833, 0
  %v7905 = vsel %vm95, %v7835, 0
  %v7908 = vsel %vm95, %v7837, 0
  %v7911 = vsel %vm95, %v7839, 0
  %7913 = vmatpush.msra.mxu0 %v7855
  %7914 = vmatpush.msra.mxu0 %v7854
  %7915 = vmatpush.msra.mxu0 %v7853
  %7916 = vmatpush.msra.mxu0 %v7852
  %7917 = vmatpush.msra.mxu0 %v7851
  %7918 = vmatpush.msra.mxu0 %v7850
  %7919 = vmatpush.msra.mxu0 %v7849
  %7920 = vmatpush.msra.mxu0 %v7848
  %7921 = vmatpush.msra.mxu0 %v7847
  %7922 = vmatpush.msra.mxu0 %v7846
  %7923 = vmatpush.msra.mxu0 %v7845
  %7924 = vmatpush.msra.mxu0 %v7844
  %7925 = vmatpush.msra.mxu0 %v7843
  %7926 = vmatpush.msra.mxu0 %v7842
  %7927 = vmatpush.msra.mxu0 %v7841
  %7928 = vmatpush.msra.mxu0 %v7840
  %7929 = vmatmul.f32.gmra.mxu0 %v7808
  %v7930 = vpop.f32.mrf.mxu0
  %v7931 = vadd.f32 0.0, %v7930
  %7932 = vmatmul.f32.gmra.mxu0 %v7810
  %v7933 = vpop.f32.mrf.mxu0
  %v7934 = vadd.f32 0.0, %v7933
  %7935 = vmatmul.f32.gmra.mxu0 %v7812
  %v7936 = vpop.f32.mrf.mxu0
  %v7937 = vadd.f32 0.0, %v7936
  %7938 = vmatmul.f32.gmra.mxu0 %v7814
  %v7939 = vpop.f32.mrf.mxu0
  %v7940 = vadd.f32 0.0, %v7939
  %7941 = vmatmul.f32.gmra.mxu0 %v7816
  %v7942 = vpop.f32.mrf.mxu0
  %v7943 = vadd.f32 0.0, %v7942
  %7944 = vmatmul.f32.gmra.mxu0 %v7818
  %v7945 = vpop.f32.mrf.mxu0
  %v7946 = vadd.f32 0.0, %v7945
  %7947 = vmatmul.f32.gmra.mxu0 %v7820
  %v7948 = vpop.f32.mrf.mxu0
  %v7949 = vadd.f32 0.0, %v7948
  %7950 = vmatmul.f32.gmra.mxu0 %v7822
  %v7951 = vpop.f32.mrf.mxu0
  %v7952 = vadd.f32 0.0, %v7951
  %7953 = vmatmul.f32.gmra.mxu0 %v7824
  %v7954 = vpop.f32.mrf.mxu0
  %v7955 = vadd.f32 0.0, %v7954
  %7956 = vmatmul.f32.gmra.mxu0 %v7826
  %v7957 = vpop.f32.mrf.mxu0
  %v7958 = vadd.f32 0.0, %v7957
  %7959 = vmatmul.f32.gmra.mxu0 %v7828
  %v7960 = vpop.f32.mrf.mxu0
  %v7961 = vadd.f32 0.0, %v7960
  %7962 = vmatmul.f32.gmra.mxu0 %v7830
  %v7963 = vpop.f32.mrf.mxu0
  %v7964 = vadd.f32 0.0, %v7963
  %7965 = vmatmul.f32.gmra.mxu0 %v7832
  %v7966 = vpop.f32.mrf.mxu0
  %v7967 = vadd.f32 0.0, %v7966
  %7968 = vmatmul.f32.gmra.mxu0 %v7834
  %v7969 = vpop.f32.mrf.mxu0
  %v7970 = vadd.f32 0.0, %v7969
  %7971 = vmatmul.f32.gmra.mxu0 %v7836
  %v7972 = vpop.f32.mrf.mxu0
  %v7973 = vadd.f32 0.0, %v7972
  %7974 = vmatmul.f32.gmra.mxu0 %v7838
  %v7975 = vpop.f32.mrf.mxu0
  %v7976 = vadd.f32 0.0, %v7975
  %7977 = vdwg.mxu0
  %7978 = vmatpush.msra.mxu0 0.0
  %7979 = vmatpush.msra.mxu0 0.0
  %7980 = vmatpush.msra.mxu0 0.0
  %7981 = vmatpush.msra.mxu0 0.0
  %7982 = vmatpush.msra.mxu0 0.0
  %7983 = vmatpush.msra.mxu0 0.0
  %7984 = vmatpush.msra.mxu0 0.0
  %7985 = vmatpush.msra.mxu0 %v7864
  %7986 = vmatpush.msra.mxu0 %v7863
  %7987 = vmatpush.msra.mxu0 %v7862
  %7988 = vmatpush.msra.mxu0 %v7861
  %7989 = vmatpush.msra.mxu0 %v7860
  %7990 = vmatpush.msra.mxu0 %v7859
  %7991 = vmatpush.msra.mxu0 %v7858
  %7992 = vmatpush.msra.mxu0 %v7857
  %7993 = vmatpush.msra.mxu0 %v7856
  %7994 = vmatmul.f32.gmra.mxu0 %v7866
  %v7995 = vpop.f32.mrf.mxu0
  %v7996 = vadd.f32 %v7931, %v7995
  %7997 = vmatmul.f32.gmra.mxu0 %v7869
  %v7998 = vpop.f32.mrf.mxu0
  %v7999 = vadd.f32 %v7934, %v7998
  %8000 = vmatmul.f32.gmra.mxu0 %v7872
  %v8001 = vpop.f32.mrf.mxu0
  %v8002 = vadd.f32 %v7937, %v8001
  %8003 = vmatmul.f32.gmra.mxu0 %v7875
  %v8004 = vpop.f32.mrf.mxu0
  %v8005 = vadd.f32 %v7940, %v8004
  %8006 = vmatmul.f32.gmra.mxu0 %v7878
  %v8007 = vpop.f32.mrf.mxu0
  %v8008 = vadd.f32 %v7943, %v8007
  %8009 = vmatmul.f32.gmra.mxu0 %v7881
  %v8010 = vpop.f32.mrf.mxu0
  %v8011 = vadd.f32 %v7946, %v8010
  %8012 = vmatmul.f32.gmra.mxu0 %v7884
  %v8013 = vpop.f32.mrf.mxu0
  %v8014 = vadd.f32 %v7949, %v8013
  %8015 = vmatmul.f32.gmra.mxu0 %v7887
  %v8016 = vpop.f32.mrf.mxu0
  %v8017 = vadd.f32 %v7952, %v8016
  %8018 = vmatmul.f32.gmra.mxu0 %v7890
  %v8019 = vpop.f32.mrf.mxu0
  %v8020 = vadd.f32 %v7955, %v8019
  %8021 = vmatmul.f32.gmra.mxu0 %v7893
  %v8022 = vpop.f32.mrf.mxu0
  %v8023 = vadd.f32 %v7958, %v8022
  %8024 = vmatmul.f32.gmra.mxu0 %v7896
  %v8025 = vpop.f32.mrf.mxu0
  %v8026 = vadd.f32 %v7961, %v8025
  %8027 = vmatmul.f32.gmra.mxu0 %v7899
  %v8028 = vpop.f32.mrf.mxu0
  %v8029 = vadd.f32 %v7964, %v8028
  %8030 = vmatmul.f32.gmra.mxu0 %v7902
  %v8031 = vpop.f32.mrf.mxu0
  %v8032 = vadd.f32 %v7967, %v8031
  %8033 = vmatmul.f32.gmra.mxu0 %v7905
  %v8034 = vpop.f32.mrf.mxu0
  %v8035 = vadd.f32 %v7970, %v8034
  %8036 = vmatmul.f32.gmra.mxu0 %v7908
  %v8037 = vpop.f32.mrf.mxu0
  %v8038 = vadd.f32 %v7973, %v8037
  %8039 = vmatmul.f32.gmra.mxu0 %v7911
  %v8040 = vpop.f32.mrf.mxu0
  %v8041 = vadd.f32 %v7976, %v8040
  %8042 = vdwg.mxu0
  %v8043 = vmax.f32 %v7996, %v8002
  %v8044 = vmax.f32 %v7999, %v8005
  %v8045 = vmax.f32 %v8008, %v8014
  %v8046 = vmax.f32 %v8011, %v8017
  %v8047 = vmax.f32 %v8020, %v8026
  %v8048 = vmax.f32 %v8023, %v8029
  %v8049 = vmax.f32 %v8032, %v8038
  %v8050 = vmax.f32 %v8035, %v8041
  %8051 = vst [vmem:[#allocation2] sm:$0xff] %v8043
  %8052 = vst [vmem:[#allocation2 + $0x8] sm:$0xff] %v8044
  %8053 = vst [vmem:[#allocation2 + $0x10] sm:$0xff] %v8045
  %8054 = vst [vmem:[#allocation2 + $0x18] sm:$0xff] %v8046
  %8055 = vst [vmem:[#allocation2 + $0x20] sm:$0xff] %v8047
  %8056 = vst [vmem:[#allocation2 + $0x28] sm:$0xff] %v8048
  %8057 = vst [vmem:[#allocation2 + $0x30] sm:$0xff] %v8049
  %8058 = vst [vmem:[#allocation2 + $0x38] sm:$0xff] %v8050
  %v8059 = vld [vmem:[#allocation2] ss:$2 sm:$0xff]
  %v8060 = vld [vmem:[%s291] ss:$2 sm:$0xff]
  %v8061 = vld [vmem:[%s293] ss:$2 sm:$0xff]
  %v8062 = vld [vmem:[%s295] ss:$2 sm:$0xff]
  %v8063 = vld [vmem:[%s297] ss:$2 sm:$0xff]
  %v8064 = vld [vmem:[%s299] ss:$2 sm:$0xff]
  %v8065 = vld [vmem:[%s301] ss:$2 sm:$0xff]
  %v8066 = vld [vmem:[%s303] ss:$2 sm:$0xff]
  %v8067 = vmax.f32 %v8059, %v8063
  %v8068 = vmax.f32 %v8060, %v8064
  %v8069 = vmax.f32 %v8061, %v8065
  %v8070 = vmax.f32 %v8062, %v8066
  %v8071 = vadd.f32 %v8067, %v30
  %v8072 = vadd.f32 %v8068, %v30
  %v8073 = vadd.f32 %v8069, %v30
  %v8074 = vadd.f32 %v8070, %v30
  %v8075 = vmax.f32 %v8071, 0.0
  %v8076 = vmax.f32 %v8072, 0.0
  %v8077 = vmax.f32 %v8073, 0.0
  %v8078 = vmax.f32 %v8074, 0.0
  %8079 = vst [vmem:[#allocation3] sm:$0xff] %v8075
  %8080 = vst [vmem:[#allocation3 + $0x8] sm:$0xff] %v8076
  %8081 = vst [vmem:[#allocation3 + $0x10] sm:$0xff] %v8077
  %8082 = vst [vmem:[#allocation3 + $0x18] sm:$0xff] %v8078
  %v8083 = vld [vmem:[%s0 + $0xf00] sm:$0xff]
  %v8084 = vld [vmem:[%s0 + $0xf08] sm:$0xff]
  %v8085 = vld [vmem:[%s0 + $0xf10] sm:$0xff]
  %v8086 = vld [vmem:[%s0 + $0xf18] sm:$0xff]
  %v8087 = vld [vmem:[%s0 + $0xf20] sm:$0xff]
  %v8088 = vld [vmem:[%s0 + $0xf28] sm:$0xff]
  %v8089 = vld [vmem:[%s0 + $0xf30] sm:$0xff]
  %v8090 = vld [vmem:[%s0 + $0xf38] sm:$0xff]
  %v8091 = vld [vmem:[%s0 + $0xf40] sm:$0xff]
  %v8092 = vld [vmem:[%s0 + $0xf48] sm:$0xff]
  %v8093 = vld [vmem:[%s0 + $0xf50] sm:$0xff]
  %v8094 = vld [vmem:[%s0 + $0xf58] sm:$0xff]
  %v8095 = vld [vmem:[%s0 + $0xf60] sm:$0xff]
  %v8096 = vld [vmem:[%s0 + $0xf68] sm:$0xff]
  %v8097 = vld [vmem:[%s0 + $0xf70] sm:$0xff]
  %v8098 = vld [vmem:[%s0 + $0xf78] sm:$0xff]
  %v8099 = vld [vmem:[%s0 + $0xf80] sm:$0xff]
  %v8100 = vld [vmem:[%s0 + $0xf88] sm:$0xff]
  %v8101 = vld [vmem:[%s0 + $0xf90] sm:$0xff]
  %v8102 = vld [vmem:[%s0 + $0xf98] sm:$0xff]
  %v8103 = vld [vmem:[%s0 + $0xfa0] sm:$0xff]
  %v8104 = vld [vmem:[%s0 + $0xfa8] sm:$0xff]
  %v8105 = vld [vmem:[%s0 + $0xfb0] sm:$0xff]
  %v8106 = vld [vmem:[%s0 + $0xfb8] sm:$0xff]
  %v8107 = vld [vmem:[%s0 + $0xfc0] sm:$0xff]
  %v8108 = vld [vmem:[%s0 + $0xfc8] sm:$0xff]
  %v8109 = vld [vmem:[%s0 + $0xfd0] sm:$0xff]
  %v8110 = vld [vmem:[%s0 + $0xfd8] sm:$0xff]
  %v8111 = vld [vmem:[%s0 + $0xfe0] sm:$0xff]
  %v8112 = vld [vmem:[%s0 + $0xfe8] sm:$0xff]
  %v8113 = vld [vmem:[%s0 + $0xff0] sm:$0xff]
  %v8114 = vld [vmem:[%s0 + $0xff8] sm:$0xff]
  %v8115 = vld [vmem:[%s1] sm:$0xff]
  %v8116 = vld [vmem:[%s1 + $0x8] sm:$0xff]
  %v8117 = vld [vmem:[%s1 + $0x10] sm:$0xff]
  %v8118 = vld [vmem:[%s1 + $0x18] sm:$0xff]
  %v8119 = vld [vmem:[%s1 + $0x20] sm:$0xff]
  %v8120 = vld [vmem:[%s1 + $0x28] sm:$0xff]
  %v8121 = vld [vmem:[%s1 + $0x30] sm:$0xff]
  %v8122 = vld [vmem:[%s1 + $0x38] sm:$0xff]
  %v8123 = vld [vmem:[%s1 + $0x40] sm:$0xff]
  %v8124 = vld [vmem:[%s1 + $0x48] sm:$0xff]
  %v8125 = vld [vmem:[%s1 + $0x50] sm:$0xff]
  %v8126 = vld [vmem:[%s1 + $0x58] sm:$0xff]
  %v8127 = vld [vmem:[%s1 + $0x60] sm:$0xff]
  %v8128 = vld [vmem:[%s1 + $0x68] sm:$0xff]
  %v8129 = vld [vmem:[%s1 + $0x70] sm:$0xff]
  %v8130 = vld [vmem:[%s1 + $0x78] sm:$0xff]
  %v8131 = vld [vmem:[%s1 + $0x80] sm:$0xff]
  %v8132 = vld [vmem:[%s1 + $0x88] sm:$0xff]
  %v8133 = vld [vmem:[%s1 + $0x90] sm:$0xff]
  %v8134 = vld [vmem:[%s1 + $0x98] sm:$0xff]
  %v8135 = vld [vmem:[%s1 + $0xa0] sm:$0xff]
  %v8136 = vld [vmem:[%s1 + $0xa8] sm:$0xff]
  %v8137 = vld [vmem:[%s1 + $0xb0] sm:$0xff]
  %v8138 = vld [vmem:[%s1 + $0xb8] sm:$0xff]
  %v8139 = vld [vmem:[%s1 + $0xc0] sm:$0xff]
  %v8141 = vsel %vm95, %v8084, 0
  %v8144 = vsel %vm95, %v8086, 0
  %v8147 = vsel %vm95, %v8088, 0
  %v8150 = vsel %vm95, %v8090, 0
  %v8153 = vsel %vm95, %v8092, 0
  %v8156 = vsel %vm95, %v8094, 0
  %v8159 = vsel %vm95, %v8096, 0
  %v8162 = vsel %vm95, %v8098, 0
  %v8165 = vsel %vm95, %v8100, 0
  %v8168 = vsel %vm95, %v8102, 0
  %v8171 = vsel %vm95, %v8104, 0
  %v8174 = vsel %vm95, %v8106, 0
  %v8177 = vsel %vm95, %v8108, 0
  %v8180 = vsel %vm95, %v8110, 0
  %v8183 = vsel %vm95, %v8112, 0
  %v8186 = vsel %vm95, %v8114, 0
  %8188 = vmatpush.msra.mxu0 %v8130
  %8189 = vmatpush.msra.mxu0 %v8129
  %8190 = vmatpush.msra.mxu0 %v8128
  %8191 = vmatpush.msra.mxu0 %v8127
  %8192 = vmatpush.msra.mxu0 %v8126
  %8193 = vmatpush.msra.mxu0 %v8125
  %8194 = vmatpush.msra.mxu0 %v8124
  %8195 = vmatpush.msra.mxu0 %v8123
  %8196 = vmatpush.msra.mxu0 %v8122
  %8197 = vmatpush.msra.mxu0 %v8121
  %8198 = vmatpush.msra.mxu0 %v8120
  %8199 = vmatpush.msra.mxu0 %v8119
  %8200 = vmatpush.msra.mxu0 %v8118
  %8201 = vmatpush.msra.mxu0 %v8117
  %8202 = vmatpush.msra.mxu0 %v8116
  %8203 = vmatpush.msra.mxu0 %v8115
  %8204 = vmatmul.f32.gmra.mxu0 %v8083
  %v8205 = vpop.f32.mrf.mxu0
  %v8206 = vadd.f32 0.0, %v8205
  %8207 = vmatmul.f32.gmra.mxu0 %v8085
  %v8208 = vpop.f32.mrf.mxu0
  %v8209 = vadd.f32 0.0, %v8208
  %8210 = vmatmul.f32.gmra.mxu0 %v8087
  %v8211 = vpop.f32.mrf.mxu0
  %v8212 = vadd.f32 0.0, %v8211
  %8213 = vmatmul.f32.gmra.mxu0 %v8089
  %v8214 = vpop.f32.mrf.mxu0
  %v8215 = vadd.f32 0.0, %v8214
  %8216 = vmatmul.f32.gmra.mxu0 %v8091
  %v8217 = vpop.f32.mrf.mxu0
  %v8218 = vadd.f32 0.0, %v8217
  %8219 = vmatmul.f32.gmra.mxu0 %v8093
  %v8220 = vpop.f32.mrf.mxu0
  %v8221 = vadd.f32 0.0, %v8220
  %8222 = vmatmul.f32.gmra.mxu0 %v8095
  %v8223 = vpop.f32.mrf.mxu0
  %v8224 = vadd.f32 0.0, %v8223
  %8225 = vmatmul.f32.gmra.mxu0 %v8097
  %v8226 = vpop.f32.mrf.mxu0
  %v8227 = vadd.f32 0.0, %v8226
  %8228 = vmatmul.f32.gmra.mxu0 %v8099
  %v8229 = vpop.f32.mrf.mxu0
  %v8230 = vadd.f32 0.0, %v8229
  %8231 = vmatmul.f32.gmra.mxu0 %v8101
  %v8232 = vpop.f32.mrf.mxu0
  %v8233 = vadd.f32 0.0, %v8232
  %8234 = vmatmul.f32.gmra.mxu0 %v8103
  %v8235 = vpop.f32.mrf.mxu0
  %v8236 = vadd.f32 0.0, %v8235
  %8237 = vmatmul.f32.gmra.mxu0 %v8105
  %v8238 = vpop.f32.mrf.mxu0
  %v8239 = vadd.f32 0.0, %v8238
  %8240 = vmatmul.f32.gmra.mxu0 %v8107
  %v8241 = vpop.f32.mrf.mxu0
  %v8242 = vadd.f32 0.0, %v8241
  %8243 = vmatmul.f32.gmra.mxu0 %v8109
  %v8244 = vpop.f32.mrf.mxu0
  %v8245 = vadd.f32 0.0, %v8244
  %8246 = vmatmul.f32.gmra.mxu0 %v8111
  %v8247 = vpop.f32.mrf.mxu0
  %v8248 = vadd.f32 0.0, %v8247
  %8249 = vmatmul.f32.gmra.mxu0 %v8113
  %v8250 = vpop.f32.mrf.mxu0
  %v8251 = vadd.f32 0.0, %v8250
  %8252 = vdwg.mxu0
  %8253 = vmatpush.msra.mxu0 0.0
  %8254 = vmatpush.msra.mxu0 0.0
  %8255 = vmatpush.msra.mxu0 0.0
  %8256 = vmatpush.msra.mxu0 0.0
  %8257 = vmatpush.msra.mxu0 0.0
  %8258 = vmatpush.msra.mxu0 0.0
  %8259 = vmatpush.msra.mxu0 0.0
  %8260 = vmatpush.msra.mxu0 %v8139
  %8261 = vmatpush.msra.mxu0 %v8138
  %8262 = vmatpush.msra.mxu0 %v8137
  %8263 = vmatpush.msra.mxu0 %v8136
  %8264 = vmatpush.msra.mxu0 %v8135
  %8265 = vmatpush.msra.mxu0 %v8134
  %8266 = vmatpush.msra.mxu0 %v8133
  %8267 = vmatpush.msra.mxu0 %v8132
  %8268 = vmatpush.msra.mxu0 %v8131
  %8269 = vmatmul.f32.gmra.mxu0 %v8141
  %v8270 = vpop.f32.mrf.mxu0
  %v8271 = vadd.f32 %v8206, %v8270
  %8272 = vmatmul.f32.gmra.mxu0 %v8144
  %v8273 = vpop.f32.mrf.mxu0
  %v8274 = vadd.f32 %v8209, %v8273
  %8275 = vmatmul.f32.gmra.mxu0 %v8147
  %v8276 = vpop.f32.mrf.mxu0
  %v8277 = vadd.f32 %v8212, %v8276
  %8278 = vmatmul.f32.gmra.mxu0 %v8150
  %v8279 = vpop.f32.mrf.mxu0
  %v8280 = vadd.f32 %v8215, %v8279
  %8281 = vmatmul.f32.gmra.mxu0 %v8153
  %v8282 = vpop.f32.mrf.mxu0
  %v8283 = vadd.f32 %v8218, %v8282
  %8284 = vmatmul.f32.gmra.mxu0 %v8156
  %v8285 = vpop.f32.mrf.mxu0
  %v8286 = vadd.f32 %v8221, %v8285
  %8287 = vmatmul.f32.gmra.mxu0 %v8159
  %v8288 = vpop.f32.mrf.mxu0
  %v8289 = vadd.f32 %v8224, %v8288
  %8290 = vmatmul.f32.gmra.mxu0 %v8162
  %v8291 = vpop.f32.mrf.mxu0
  %v8292 = vadd.f32 %v8227, %v8291
  %8293 = vmatmul.f32.gmra.mxu0 %v8165
  %v8294 = vpop.f32.mrf.mxu0
  %v8295 = vadd.f32 %v8230, %v8294
  %8296 = vmatmul.f32.gmra.mxu0 %v8168
  %v8297 = vpop.f32.mrf.mxu0
  %v8298 = vadd.f32 %v8233, %v8297
  %8299 = vmatmul.f32.gmra.mxu0 %v8171
  %v8300 = vpop.f32.mrf.mxu0
  %v8301 = vadd.f32 %v8236, %v8300
  %8302 = vmatmul.f32.gmra.mxu0 %v8174
  %v8303 = vpop.f32.mrf.mxu0
  %v8304 = vadd.f32 %v8239, %v8303
  %8305 = vmatmul.f32.gmra.mxu0 %v8177
  %v8306 = vpop.f32.mrf.mxu0
  %v8307 = vadd.f32 %v8242, %v8306
  %8308 = vmatmul.f32.gmra.mxu0 %v8180
  %v8309 = vpop.f32.mrf.mxu0
  %v8310 = vadd.f32 %v8245, %v8309
  %8311 = vmatmul.f32.gmra.mxu0 %v8183
  %v8312 = vpop.f32.mrf.mxu0
  %v8313 = vadd.f32 %v8248, %v8312
  %8314 = vmatmul.f32.gmra.mxu0 %v8186
  %v8315 = vpop.f32.mrf.mxu0
  %v8316 = vadd.f32 %v8251, %v8315
  %8317 = vdwg.mxu0
  %v8318 = vmax.f32 %v8271, %v8277
  %v8319 = vmax.f32 %v8274, %v8280
  %v8320 = vmax.f32 %v8283, %v8289
  %v8321 = vmax.f32 %v8286, %v8292
  %v8322 = vmax.f32 %v8295, %v8301
  %v8323 = vmax.f32 %v8298, %v8304
  %v8324 = vmax.f32 %v8307, %v8313
  %v8325 = vmax.f32 %v8310, %v8316
  %8326 = vst [vmem:[#allocation2] sm:$0xff] %v8318
  %8327 = vst [vmem:[#allocation2 + $0x8] sm:$0xff] %v8319
  %8328 = vst [vmem:[#allocation2 + $0x10] sm:$0xff] %v8320
  %8329 = vst [vmem:[#allocation2 + $0x18] sm:$0xff] %v8321
  %8330 = vst [vmem:[#allocation2 + $0x20] sm:$0xff] %v8322
  %8331 = vst [vmem:[#allocation2 + $0x28] sm:$0xff] %v8323
  %8332 = vst [vmem:[#allocation2 + $0x30] sm:$0xff] %v8324
  %8333 = vst [vmem:[#allocation2 + $0x38] sm:$0xff] %v8325
  %v8334 = vld [vmem:[#allocation2] ss:$2 sm:$0xff]
  %v8335 = vld [vmem:[%s291] ss:$2 sm:$0xff]
  %v8336 = vld [vmem:[%s293] ss:$2 sm:$0xff]
  %v8337 = vld [vmem:[%s295] ss:$2 sm:$0xff]
  %v8338 = vld [vmem:[%s297] ss:$2 sm:$0xff]
  %v8339 = vld [vmem:[%s299] ss:$2 sm:$0xff]
  %v8340 = vld [vmem:[%s301] ss:$2 sm:$0xff]
  %v8341 = vld [vmem:[%s303] ss:$2 sm:$0xff]
  %v8342 = vmax.f32 %v8334, %v8338
  %v8343 = vmax.f32 %v8335, %v8339
  %v8344 = vmax.f32 %v8336, %v8340
  %v8345 = vmax.f32 %v8337, %v8341
  %v8346 = vadd.f32 %v8342, %v30
  %v8347 = vadd.f32 %v8343, %v30
  %v8348 = vadd.f32 %v8344, %v30
  %v8349 = vadd.f32 %v8345, %v30
  %v8350 = vmax.f32 %v8346, 0.0
  %v8351 = vmax.f32 %v8347, 0.0
  %v8352 = vmax.f32 %v8348, 0.0
  %v8353 = vmax.f32 %v8349, 0.0
  %8354 = vst [vmem:[#allocation3 + $0x20] sm:$0xff] %v8350
  %8355 = vst [vmem:[#allocation3 + $0x28] sm:$0xff] %v8351
  %8356 = vst [vmem:[#allocation3 + $0x30] sm:$0xff] %v8352
  %8357 = vst [vmem:[#allocation3 + $0x38] sm:$0xff] %v8353
  %v8358 = vld [vmem:[#allocation3] sm:$0xff]
  %v8359 = vld [vmem:[#allocation3 + $0x8] sm:$0xff]
  %v8360 = vld [vmem:[#allocation3 + $0x10] sm:$0xff]
  %v8361 = vld [vmem:[#allocation3 + $0x18] sm:$0xff]
  %v8362 = vld [vmem:[#allocation3 + $0x20] sm:$0xff]
  %v8363 = vld [vmem:[#allocation3 + $0x28] sm:$0x3f]
  %v8364 = vld [vmem:[#allocation3 + $0x1] sm:$0xff]
  %v8365 = vld [vmem:[#allocation3 + $0x9] sm:$0xff]
  %v8366 = vld [vmem:[#allocation3 + $0x11] sm:$0xff]
  %v8367 = vld [vmem:[#allocation3 + $0x19] sm:$0xff]
  %v8368 = vld [vmem:[#allocation3 + $0x21] sm:$0xff]
  %v8369 = vld [vmem:[#allocation3 + $0x29] sm:$0x3f]
  %v8370 = vld [vmem:[#allocation3 + $0x2] sm:$0xff]
  %v8371 = vld [vmem:[#allocation3 + $0xa] sm:$0xff]
  %v8372 = vld [vmem:[#allocation3 + $0x12] sm:$0xff]
  %v8373 = vld [vmem:[#allocation3 + $0x1a] sm:$0xff]
  %v8374 = vld [vmem:[#allocation3 + $0x22] sm:$0xff]
  %v8375 = vld [vmem:[#allocation3 + $0x2a] sm:$0x3f]
  %v8376 = vld [vmem:[%s3] sm:$0xff]
  %v8377 = vld [vmem:[%s3 + $0x8] sm:$0xff]
  %v8378 = vld [vmem:[%s3 + $0x10] sm:$0xff]
  %v8379 = vld [vmem:[%s3 + $0x18] sm:$0xff]
  %v8380 = vld [vmem:[%s3 + $0x20] sm:$0xff]
  %v8381 = vld [vmem:[%s3 + $0x28] sm:$0xff]
  %v8382 = vld [vmem:[%s3 + $0x30] sm:$0xff]
  %v8383 = vld [vmem:[%s3 + $0x38] sm:$0xff]
  %v8384 = vld [vmem:[%s3 + $0x40] sm:$0xff]
  %v8385 = vld [vmem:[%s3 + $0x48] sm:$0xff]
  %v8386 = vld [vmem:[%s3 + $0x50] sm:$0xff]
  %v8387 = vld [vmem:[%s3 + $0x58] sm:$0xff]
  %v8388 = vld [vmem:[%s3 + $0x60] sm:$0xff]
  %v8389 = vld [vmem:[%s3 + $0x68] sm:$0xff]
  %v8390 = vld [vmem:[%s3 + $0x70] sm:$0xff]
  %v8391 = vld [vmem:[%s3 + $0x78] sm:$0xff]
  %v8392 = vld [vmem:[%s3 + $0x80] sm:$0xff]
  %v8393 = vld [vmem:[%s3 + $0x88] sm:$0xff]
  %v8394 = vld [vmem:[%s3 + $0x90] sm:$0xff]
  %v8395 = vld [vmem:[%s3 + $0x98] sm:$0xff]
  %v8396 = vld [vmem:[%s3 + $0xa0] sm:$0xff]
  %v8397 = vld [vmem:[%s3 + $0xa8] sm:$0xff]
  %v8398 = vld [vmem:[%s3 + $0xb0] sm:$0xff]
  %v8399 = vld [vmem:[%s3 + $0xb8] sm:$0xff]
  %v8400 = vld [vmem:[%s3 + $0xc0] sm:$0xff]
  %v8401 = vld [vmem:[%s3 + $0xc8] sm:$0xff]
  %v8402 = vld [vmem:[%s3 + $0xd0] sm:$0xff]
  %v8403 = vld [vmem:[%s3 + $0xd8] sm:$0xff]
  %v8404 = vld [vmem:[%s3 + $0xe0] sm:$0xff]
  %v8405 = vld [vmem:[%s3 + $0xe8] sm:$0xff]
  %v8406 = vld [vmem:[%s3 + $0xf0] sm:$0xff]
  %v8407 = vld [vmem:[%s3 + $0xf8] sm:$0xff]
  %v8408 = vld [vmem:[%s3 + $0x100] sm:$0xff]
  %v8409 = vld [vmem:[%s3 + $0x108] sm:$0xff]
  %v8410 = vld [vmem:[%s3 + $0x110] sm:$0xff]
  %v8411 = vld [vmem:[%s3 + $0x118] sm:$0xff]
  %v8412 = vld [vmem:[%s3 + $0x120] sm:$0xff]
  %v8413 = vld [vmem:[%s3 + $0x128] sm:$0xff]
  %v8414 = vld [vmem:[%s3 + $0x130] sm:$0xff]
  %v8415 = vld [vmem:[%s3 + $0x138] sm:$0xff]
  %v8416 = vld [vmem:[%s3 + $0x140] sm:$0xff]
  %v8417 = vld [vmem:[%s3 + $0x148] sm:$0xff]
  %v8418 = vld [vmem:[%s3 + $0x150] sm:$0xff]
  %v8419 = vld [vmem:[%s3 + $0x158] sm:$0xff]
  %v8420 = vld [vmem:[%s3 + $0x160] sm:$0xff]
  %v8421 = vld [vmem:[%s3 + $0x168] sm:$0xff]
  %v8422 = vld [vmem:[%s3 + $0x170] sm:$0xff]
  %v8423 = vld [vmem:[%s3 + $0x178] sm:$0xff]
  %v8424 = vld [vmem:[#allocation3 + $0x28] sm:$0xff]
  %v8425 = vld [vmem:[#allocation3 + $0x30] sm:$0x3f]
  %v8426 = vld [vmem:[#allocation3 + $0x29] sm:$0xff]
  %v8427 = vld [vmem:[#allocation3 + $0x31] sm:$0x3f]
  %v8428 = vld [vmem:[#allocation3 + $0x2a] sm:$0xff]
  %v8429 = vld [vmem:[#allocation3 + $0x32] sm:$0x3f]
  %v8430 = vld [vmem:[%s668] sm:$0xff]
  %v8431 = vld [vmem:[%s668 + $0x8] sm:$0xff]
  %v8432 = vld [vmem:[%s668 + $0x10] sm:$0xff]
  %v8433 = vld [vmem:[%s668 + $0x18] sm:$0xff]
  %v8434 = vld [vmem:[%s668 + $0x20] sm:$0xff]
  %v8435 = vld [vmem:[%s668 + $0x28] sm:$0xff]
  %v8436 = vld [vmem:[%s668 + $0x30] sm:$0xff]
  %v8437 = vld [vmem:[%s668 + $0x38] sm:$0xff]
  %v8438 = vld [vmem:[%s668 + $0x40] sm:$0xff]
  %v8439 = vld [vmem:[%s668 + $0x48] sm:$0xff]
  %v8440 = vld [vmem:[%s668 + $0x50] sm:$0xff]
  %v8441 = vld [vmem:[%s668 + $0x58] sm:$0xff]
  %v8442 = vld [vmem:[%s668 + $0x60] sm:$0xff]
  %v8443 = vld [vmem:[%s668 + $0x68] sm:$0xff]
  %v8444 = vld [vmem:[%s668 + $0x70] sm:$0xff]
  %v8445 = vld [vmem:[%s668 + $0x78] sm:$0xff]
  %v8446 = vld [vmem:[%s668 + $0x80] sm:$0xff]
  %v8447 = vld [vmem:[%s668 + $0x88] sm:$0xff]
  %v8448 = vld [vmem:[%s668 + $0x90] sm:$0xff]
  %v8449 = vld [vmem:[%s668 + $0x98] sm:$0xff]
  %v8450 = vld [vmem:[%s668 + $0xa0] sm:$0xff]
  %v8451 = vld [vmem:[%s668 + $0xa8] sm:$0xff]
  %v8452 = vld [vmem:[%s668 + $0xb0] sm:$0xff]
  %v8453 = vld [vmem:[%s668 + $0xb8] sm:$0xff]
  %v8454 = vld [vmem:[%s668 + $0xc0] sm:$0xff]
  %v8455 = vld [vmem:[%s668 + $0xc8] sm:$0xff]
  %v8456 = vld [vmem:[%s668 + $0xd0] sm:$0xff]
  %v8457 = vld [vmem:[%s668 + $0xd8] sm:$0xff]
  %v8458 = vld [vmem:[%s668 + $0xe0] sm:$0xff]
  %v8459 = vld [vmem:[%s668 + $0xe8] sm:$0xff]
  %v8460 = vld [vmem:[%s668 + $0xf0] sm:$0xff]
  %v8461 = vld [vmem:[%s668 + $0xf8] sm:$0xff]
  %v8462 = vld [vmem:[%s668 + $0x100] sm:$0xff]
  %v8463 = vld [vmem:[%s668 + $0x108] sm:$0xff]
  %v8464 = vld [vmem:[%s668 + $0x110] sm:$0xff]
  %v8465 = vld [vmem:[%s668 + $0x118] sm:$0xff]
  %v8466 = vld [vmem:[%s668 + $0x120] sm:$0xff]
  %v8467 = vld [vmem:[%s668 + $0x128] sm:$0xff]
  %v8468 = vld [vmem:[%s668 + $0x130] sm:$0xff]
  %v8469 = vld [vmem:[%s668 + $0x138] sm:$0xff]
  %v8470 = vld [vmem:[%s668 + $0x140] sm:$0xff]
  %v8471 = vld [vmem:[%s668 + $0x148] sm:$0xff]
  %v8472 = vld [vmem:[%s668 + $0x150] sm:$0xff]
  %v8473 = vld [vmem:[%s668 + $0x158] sm:$0xff]
  %v8474 = vld [vmem:[%s668 + $0x160] sm:$0xff]
  %v8475 = vld [vmem:[%s668 + $0x168] sm:$0xff]
  %v8476 = vld [vmem:[%s668 + $0x170] sm:$0xff]
  %v8477 = vld [vmem:[%s668 + $0x178] sm:$0xff]
  %8478 = vmatpush.msra.mxu0 %v8445
  %8479 = vmatpush.msra.mxu0 %v8444
  %8480 = vmatpush.msra.mxu0 %v8443
  %8481 = vmatpush.msra.mxu0 %v8442
  %8482 = vmatpush.msra.mxu0 %v8441
  %8483 = vmatpush.msra.mxu0 %v8440
  %8484 = vmatpush.msra.mxu0 %v8439
  %8485 = vmatpush.msra.mxu0 %v8438
  %8486 = vmatpush.msra.mxu0 %v8437
  %8487 = vmatpush.msra.mxu0 %v8436
  %8488 = vmatpush.msra.mxu0 %v8435
  %8489 = vmatpush.msra.mxu0 %v8434
  %8490 = vmatpush.msra.mxu0 %v8433
  %8491 = vmatpush.msra.mxu0 %v8432
  %8492 = vmatpush.msra.mxu0 %v8431
  %8493 = vmatpush.msra.mxu0 %v8430
  %8494 = vmatmul.f32.gmra.mxu0 %v8359
  %v8495 = vpop.f32.mrf.mxu0
  %v8496 = vadd.f32 0.0, %v8495
  %8497 = vmatmul.f32.gmra.mxu0 %v8360
  %v8498 = vpop.f32.mrf.mxu0
  %v8499 = vadd.f32 0.0, %v8498
  %8500 = vmatmul.f32.gmra.mxu0 %v8361
  %v8501 = vpop.f32.mrf.mxu0
  %v8502 = vadd.f32 0.0, %v8501
  %8503 = vmatmul.f32.gmra.mxu0 %v8362
  %v8504 = vpop.f32.mrf.mxu0
  %v8505 = vadd.f32 0.0, %v8504
  %8506 = vmatmul.f32.gmra.mxu0 %v8424
  %v8507 = vpop.f32.mrf.mxu0
  %v8508 = vadd.f32 0.0, %v8507
  %8509 = vmatmul.f32.gmra.mxu0 %v8425
  %v8510 = vpop.f32.mrf.mxu0
  %v8511 = vadd.f32 0.0, %v8510
  %8512 = vdwg.mxu0
  %8513 = vmatpush.msra.mxu0 %v8461
  %8514 = vmatpush.msra.mxu0 %v8460
  %8515 = vmatpush.msra.mxu0 %v8459
  %8516 = vmatpush.msra.mxu0 %v8458
  %8517 = vmatpush.msra.mxu0 %v8457
  %8518 = vmatpush.msra.mxu0 %v8456
  %8519 = vmatpush.msra.mxu0 %v8455
  %8520 = vmatpush.msra.mxu0 %v8454
  %8521 = vmatpush.msra.mxu0 %v8453
  %8522 = vmatpush.msra.mxu0 %v8452
  %8523 = vmatpush.msra.mxu0 %v8451
  %8524 = vmatpush.msra.mxu0 %v8450
  %8525 = vmatpush.msra.mxu0 %v8449
  %8526 = vmatpush.msra.mxu0 %v8448
  %8527 = vmatpush.msra.mxu0 %v8447
  %8528 = vmatpush.msra.mxu0 %v8446
  %8529 = vmatmul.f32.gmra.mxu0 %v8365
  %v8530 = vpop.f32.mrf.mxu0
  %v8531 = vadd.f32 %v8496, %v8530
  %8532 = vmatmul.f32.gmra.mxu0 %v8366
  %v8533 = vpop.f32.mrf.mxu0
  %v8534 = vadd.f32 %v8499, %v8533
  %8535 = vmatmul.f32.gmra.mxu0 %v8367
  %v8536 = vpop.f32.mrf.mxu0
  %v8537 = vadd.f32 %v8502, %v8536
  %8538 = vmatmul.f32.gmra.mxu0 %v8368
  %v8539 = vpop.f32.mrf.mxu0
  %v8540 = vadd.f32 %v8505, %v8539
  %8541 = vmatmul.f32.gmra.mxu0 %v8426
  %v8542 = vpop.f32.mrf.mxu0
  %v8543 = vadd.f32 %v8508, %v8542
  %8544 = vmatmul.f32.gmra.mxu0 %v8427
  %v8545 = vpop.f32.mrf.mxu0
  %v8546 = vadd.f32 %v8511, %v8545
  %8547 = vdwg.mxu0
  %8548 = vmatpush.msra.mxu0 %v8477
  %8549 = vmatpush.msra.mxu0 %v8476
  %8550 = vmatpush.msra.mxu0 %v8475
  %8551 = vmatpush.msra.mxu0 %v8474
  %8552 = vmatpush.msra.mxu0 %v8473
  %8553 = vmatpush.msra.mxu0 %v8472
  %8554 = vmatpush.msra.mxu0 %v8471
  %8555 = vmatpush.msra.mxu0 %v8470
  %8556 = vmatpush.msra.mxu0 %v8469
  %8557 = vmatpush.msra.mxu0 %v8468
  %8558 = vmatpush.msra.mxu0 %v8467
  %8559 = vmatpush.msra.mxu0 %v8466
  %8560 = vmatpush.msra.mxu0 %v8465
  %8561 = vmatpush.msra.mxu0 %v8464
  %8562 = vmatpush.msra.mxu0 %v8463
  %8563 = vmatpush.msra.mxu0 %v8462
  %8564 = vmatmul.f32.gmra.mxu0 %v8371
  %v8565 = vpop.f32.mrf.mxu0
  %v8566 = vadd.f32 %v8531, %v8565
  %8567 = vmatmul.f32.gmra.mxu0 %v8372
  %v8568 = vpop.f32.mrf.mxu0
  %v8569 = vadd.f32 %v8534, %v8568
  %8570 = vmatmul.f32.gmra.mxu0 %v8373
  %v8571 = vpop.f32.mrf.mxu0
  %v8572 = vadd.f32 %v8537, %v8571
  %8573 = vmatmul.f32.gmra.mxu0 %v8374
  %v8574 = vpop.f32.mrf.mxu0
  %v8575 = vadd.f32 %v8540, %v8574
  %8576 = vmatmul.f32.gmra.mxu0 %v8428
  %v8577 = vpop.f32.mrf.mxu0
  %v8578 = vadd.f32 %v8543, %v8577
  %8579 = vmatmul.f32.gmra.mxu0 %v8429
  %v8580 = vpop.f32.mrf.mxu0
  %v8581 = vadd.f32 %v8546, %v8580
  %8582 = vdwg.mxu0
  %8583 = vmatpush.msra.mxu0 %v8391
  %8584 = vmatpush.msra.mxu0 %v8390
  %8585 = vmatpush.msra.mxu0 %v8389
  %8586 = vmatpush.msra.mxu0 %v8388
  %8587 = vmatpush.msra.mxu0 %v8387
  %8588 = vmatpush.msra.mxu0 %v8386
  %8589 = vmatpush.msra.mxu0 %v8385
  %8590 = vmatpush.msra.mxu0 %v8384
  %8591 = vmatpush.msra.mxu0 %v8383
  %8592 = vmatpush.msra.mxu0 %v8382
  %8593 = vmatpush.msra.mxu0 %v8381
  %8594 = vmatpush.msra.mxu0 %v8380
  %8595 = vmatpush.msra.mxu0 %v8379
  %8596 = vmatpush.msra.mxu0 %v8378
  %8597 = vmatpush.msra.mxu0 %v8377
  %8598 = vmatpush.msra.mxu0 %v8376
  %8599 = vmatmul.f32.gmra.mxu0 %v8358
  %v8600 = vpop.f32.mrf.mxu0
  %v8601 = vadd.f32 %v8566, %v8600
  %8602 = vmatmul.f32.gmra.mxu0 %v8359
  %v8603 = vpop.f32.mrf.mxu0
  %v8604 = vadd.f32 %v8569, %v8603
  %8605 = vmatmul.f32.gmra.mxu0 %v8360
  %v8606 = vpop.f32.mrf.mxu0
  %v8607 = vadd.f32 %v8572, %v8606
  %8608 = vmatmul.f32.gmra.mxu0 %v8361
  %v8609 = vpop.f32.mrf.mxu0
  %v8610 = vadd.f32 %v8575, %v8609
  %8611 = vmatmul.f32.gmra.mxu0 %v8362
  %v8612 = vpop.f32.mrf.mxu0
  %v8613 = vadd.f32 %v8578, %v8612
  %8614 = vmatmul.f32.gmra.mxu0 %v8363
  %v8615 = vpop.f32.mrf.mxu0
  %v8616 = vadd.f32 %v8581, %v8615
  %8617 = vdwg.mxu0
  %8618 = vmatpush.msra.mxu0 %v8407
  %8619 = vmatpush.msra.mxu0 %v8406
  %8620 = vmatpush.msra.mxu0 %v8405
  %8621 = vmatpush.msra.mxu0 %v8404
  %8622 = vmatpush.msra.mxu0 %v8403
  %8623 = vmatpush.msra.mxu0 %v8402
  %8624 = vmatpush.msra.mxu0 %v8401
  %8625 = vmatpush.msra.mxu0 %v8400
  %8626 = vmatpush.msra.mxu0 %v8399
  %8627 = vmatpush.msra.mxu0 %v8398
  %8628 = vmatpush.msra.mxu0 %v8397
  %8629 = vmatpush.msra.mxu0 %v8396
  %8630 = vmatpush.msra.mxu0 %v8395
  %8631 = vmatpush.msra.mxu0 %v8394
  %8632 = vmatpush.msra.mxu0 %v8393
  %8633 = vmatpush.msra.mxu0 %v8392
  %8634 = vmatmul.f32.gmra.mxu0 %v8364
  %v8635 = vpop.f32.mrf.mxu0
  %v8636 = vadd.f32 %v8601, %v8635
  %8637 = vmatmul.f32.gmra.mxu0 %v8365
  %v8638 = vpop.f32.mrf.mxu0
  %v8639 = vadd.f32 %v8604, %v8638
  %8640 = vmatmul.f32.gmra.mxu0 %v8366
  %v8641 = vpop.f32.mrf.mxu0
  %v8642 = vadd.f32 %v8607, %v8641
  %8643 = vmatmul.f32.gmra.mxu0 %v8367
  %v8644 = vpop.f32.mrf.mxu0
  %v8645 = vadd.f32 %v8610, %v8644
  %8646 = vmatmul.f32.gmra.mxu0 %v8368
  %v8647 = vpop.f32.mrf.mxu0
  %v8648 = vadd.f32 %v8613, %v8647
  %8649 = vmatmul.f32.gmra.mxu0 %v8369
  %v8650 = vpop.f32.mrf.mxu0
  %v8651 = vadd.f32 %v8616, %v8650
  %8652 = vdwg.mxu0
  %8653 = vmatpush.msra.mxu0 %v8423
  %8654 = vmatpush.msra.mxu0 %v8422
  %8655 = vmatpush.msra.mxu0 %v8421
  %8656 = vmatpush.msra.mxu0 %v8420
  %8657 = vmatpush.msra.mxu0 %v8419
  %8658 = vmatpush.msra.mxu0 %v8418
  %8659 = vmatpush.msra.mxu0 %v8417
  %8660 = vmatpush.msra.mxu0 %v8416
  %8661 = vmatpush.msra.mxu0 %v8415
  %8662 = vmatpush.msra.mxu0 %v8414
  %8663 = vmatpush.msra.mxu0 %v8413
  %8664 = vmatpush.msra.mxu0 %v8412
  %8665 = vmatpush.msra.mxu0 %v8411
  %8666 = vmatpush.msra.mxu0 %v8410
  %8667 = vmatpush.msra.mxu0 %v8409
  %8668 = vmatpush.msra.mxu0 %v8408
  %8669 = vmatmul.f32.gmra.mxu0 %v8370
  %v8670 = vpop.f32.mrf.mxu0
  %v8671 = vadd.f32 %v8636, %v8670
  %8672 = vmatmul.f32.gmra.mxu0 %v8371
  %v8673 = vpop.f32.mrf.mxu0
  %v8674 = vadd.f32 %v8639, %v8673
  %8675 = vmatmul.f32.gmra.mxu0 %v8372
  %v8676 = vpop.f32.mrf.mxu0
  %v8677 = vadd.f32 %v8642, %v8676
  %8678 = vmatmul.f32.gmra.mxu0 %v8373
  %v8679 = vpop.f32.mrf.mxu0
  %v8680 = vadd.f32 %v8645, %v8679
  %8681 = vmatmul.f32.gmra.mxu0 %v8374
  %v8682 = vpop.f32.mrf.mxu0
  %v8683 = vadd.f32 %v8648, %v8682
  %8684 = vmatmul.f32.gmra.mxu0 %v8375
  %v8685 = vpop.f32.mrf.mxu0
  %v8686 = vadd.f32 %v8651, %v8685
  %8687 = vdwg.mxu0
  %v8688 = vld [vmem:[#allocation3 + $0x10] sm:$0xff]
  %v8689 = vld [vmem:[#allocation3 + $0x18] sm:$0xff]
  %v8690 = vld [vmem:[#allocation3 + $0x20] sm:$0xff]
  %v8691 = vld [vmem:[#allocation3 + $0x28] sm:$0xff]
  %v8692 = vld [vmem:[#allocation3 + $0x30] sm:$0xff]
  %v8693 = vld [vmem:[#allocation3 + $0x38] sm:$0x3f]
  %v8694 = vld [vmem:[#allocation3 + $0x11] sm:$0xff]
  %v8695 = vld [vmem:[#allocation3 + $0x19] sm:$0xff]
  %v8696 = vld [vmem:[#allocation3 + $0x21] sm:$0xff]
  %v8697 = vld [vmem:[#allocation3 + $0x29] sm:$0xff]
  %v8698 = vld [vmem:[#allocation3 + $0x31] sm:$0xff]
  %v8699 = vld [vmem:[#allocation3 + $0x39] sm:$0x3f]
  %v8700 = vld [vmem:[#allocation3 + $0x12] sm:$0xff]
  %v8701 = vld [vmem:[#allocation3 + $0x1a] sm:$0xff]
  %v8702 = vld [vmem:[#allocation3 + $0x22] sm:$0xff]
  %v8703 = vld [vmem:[#allocation3 + $0x2a] sm:$0xff]
  %v8704 = vld [vmem:[#allocation3 + $0x32] sm:$0xff]
  %v8705 = vld [vmem:[#allocation3 + $0x3a] sm:$0x3f]
  %v8706 = vld [vmem:[%s945] sm:$0xff]
  %v8707 = vld [vmem:[%s945 + $0x8] sm:$0xff]
  %v8708 = vld [vmem:[%s945 + $0x10] sm:$0xff]
  %v8709 = vld [vmem:[%s945 + $0x18] sm:$0xff]
  %v8710 = vld [vmem:[%s945 + $0x20] sm:$0xff]
  %v8711 = vld [vmem:[%s945 + $0x28] sm:$0xff]
  %v8712 = vld [vmem:[%s945 + $0x30] sm:$0xff]
  %v8713 = vld [vmem:[%s945 + $0x38] sm:$0xff]
  %v8714 = vld [vmem:[%s945 + $0x40] sm:$0xff]
  %v8715 = vld [vmem:[%s945 + $0x48] sm:$0xff]
  %v8716 = vld [vmem:[%s945 + $0x50] sm:$0xff]
  %v8717 = vld [vmem:[%s945 + $0x58] sm:$0xff]
  %v8718 = vld [vmem:[%s945 + $0x60] sm:$0xff]
  %v8719 = vld [vmem:[%s945 + $0x68] sm:$0xff]
  %v8720 = vld [vmem:[%s945 + $0x70] sm:$0xff]
  %v8721 = vld [vmem:[%s945 + $0x78] sm:$0xff]
  %v8722 = vld [vmem:[%s945 + $0x80] sm:$0xff]
  %v8723 = vld [vmem:[%s945 + $0x88] sm:$0xff]
  %v8724 = vld [vmem:[%s945 + $0x90] sm:$0xff]
  %v8725 = vld [vmem:[%s945 + $0x98] sm:$0xff]
  %v8726 = vld [vmem:[%s945 + $0xa0] sm:$0xff]
  %v8727 = vld [vmem:[%s945 + $0xa8] sm:$0xff]
  %v8728 = vld [vmem:[%s945 + $0xb0] sm:$0xff]
  %v8729 = vld [vmem:[%s945 + $0xb8] sm:$0xff]
  %v8730 = vld [vmem:[%s945 + $0xc0] sm:$0xff]
  %v8731 = vld [vmem:[%s945 + $0xc8] sm:$0xff]
  %v8732 = vld [vmem:[%s945 + $0xd0] sm:$0xff]
  %v8733 = vld [vmem:[%s945 + $0xd8] sm:$0xff]
  %v8734 = vld [vmem:[%s945 + $0xe0] sm:$0xff]
  %v8735 = vld [vmem:[%s945 + $0xe8] sm:$0xff]
  %v8736 = vld [vmem:[%s945 + $0xf0] sm:$0xff]
  %v8737 = vld [vmem:[%s945 + $0xf8] sm:$0xff]
  %v8738 = vld [vmem:[%s945 + $0x100] sm:$0xff]
  %v8739 = vld [vmem:[%s945 + $0x108] sm:$0xff]
  %v8740 = vld [vmem:[%s945 + $0x110] sm:$0xff]
  %v8741 = vld [vmem:[%s945 + $0x118] sm:$0xff]
  %v8742 = vld [vmem:[%s945 + $0x120] sm:$0xff]
  %v8743 = vld [vmem:[%s945 + $0x128] sm:$0xff]
  %v8744 = vld [vmem:[%s945 + $0x130] sm:$0xff]
  %v8745 = vld [vmem:[%s945 + $0x138] sm:$0xff]
  %v8746 = vld [vmem:[%s945 + $0x140] sm:$0xff]
  %v8747 = vld [vmem:[%s945 + $0x148] sm:$0xff]
  %v8748 = vld [vmem:[%s945 + $0x150] sm:$0xff]
  %v8749 = vld [vmem:[%s945 + $0x158] sm:$0xff]
  %v8750 = vld [vmem:[%s945 + $0x160] sm:$0xff]
  %v8751 = vld [vmem:[%s945 + $0x168] sm:$0xff]
  %v8752 = vld [vmem:[%s945 + $0x170] sm:$0xff]
  %v8753 = vld [vmem:[%s945 + $0x178] sm:$0xff]
  %8754 = vmatpush.msra.mxu0 %v8721
  %8755 = vmatpush.msra.mxu0 %v8720
  %8756 = vmatpush.msra.mxu0 %v8719
  %8757 = vmatpush.msra.mxu0 %v8718
  %8758 = vmatpush.msra.mxu0 %v8717
  %8759 = vmatpush.msra.mxu0 %v8716
  %8760 = vmatpush.msra.mxu0 %v8715
  %8761 = vmatpush.msra.mxu0 %v8714
  %8762 = vmatpush.msra.mxu0 %v8713
  %8763 = vmatpush.msra.mxu0 %v8712
  %8764 = vmatpush.msra.mxu0 %v8711
  %8765 = vmatpush.msra.mxu0 %v8710
  %8766 = vmatpush.msra.mxu0 %v8709
  %8767 = vmatpush.msra.mxu0 %v8708
  %8768 = vmatpush.msra.mxu0 %v8707
  %8769 = vmatpush.msra.mxu0 %v8706
  %8770 = vmatmul.f32.gmra.mxu0 %v8688
  %v8771 = vpop.f32.mrf.mxu0
  %v8772 = vadd.f32 0.0, %v8771
  %8773 = vmatmul.f32.gmra.mxu0 %v8689
  %v8774 = vpop.f32.mrf.mxu0
  %v8775 = vadd.f32 0.0, %v8774
  %8776 = vmatmul.f32.gmra.mxu0 %v8690
  %v8777 = vpop.f32.mrf.mxu0
  %v8778 = vadd.f32 0.0, %v8777
  %8779 = vmatmul.f32.gmra.mxu0 %v8691
  %v8780 = vpop.f32.mrf.mxu0
  %v8781 = vadd.f32 0.0, %v8780
  %8782 = vmatmul.f32.gmra.mxu0 %v8692
  %v8783 = vpop.f32.mrf.mxu0
  %v8784 = vadd.f32 0.0, %v8783
  %8785 = vmatmul.f32.gmra.mxu0 %v8693
  %v8786 = vpop.f32.mrf.mxu0
  %v8787 = vadd.f32 0.0, %v8786
  %8788 = vdwg.mxu0
  %8789 = vmatpush.msra.mxu0 %v8737
  %8790 = vmatpush.msra.mxu0 %v8736
  %8791 = vmatpush.msra.mxu0 %v8735
  %8792 = vmatpush.msra.mxu0 %v8734
  %8793 = vmatpush.msra.mxu0 %v8733
  %8794 = vmatpush.msra.mxu0 %v8732
  %8795 = vmatpush.msra.mxu0 %v8731
  %8796 = vmatpush.msra.mxu0 %v8730
  %8797 = vmatpush.msra.mxu0 %v8729
  %8798 = vmatpush.msra.mxu0 %v8728
  %8799 = vmatpush.msra.mxu0 %v8727
  %8800 = vmatpush.msra.mxu0 %v8726
  %8801 = vmatpush.msra.mxu0 %v8725
  %8802 = vmatpush.msra.mxu0 %v8724
  %8803 = vmatpush.msra.mxu0 %v8723
  %8804 = vmatpush.msra.mxu0 %v8722
  %8805 = vmatmul.f32.gmra.mxu0 %v8694
  %v8806 = vpop.f32.mrf.mxu0
  %v8807 = vadd.f32 %v8772, %v8806
  %8808 = vmatmul.f32.gmra.mxu0 %v8695
  %v8809 = vpop.f32.mrf.mxu0
  %v8810 = vadd.f32 %v8775, %v8809
  %8811 = vmatmul.f32.gmra.mxu0 %v8696
  %v8812 = vpop.f32.mrf.mxu0
  %v8813 = vadd.f32 %v8778, %v8812
  %8814 = vmatmul.f32.gmra.mxu0 %v8697
  %v8815 = vpop.f32.mrf.mxu0
  %v8816 = vadd.f32 %v8781, %v8815
  %8817 = vmatmul.f32.gmra.mxu0 %v8698
  %v8818 = vpop.f32.mrf.mxu0
  %v8819 = vadd.f32 %v8784, %v8818
  %8820 = vmatmul.f32.gmra.mxu0 %v8699
  %v8821 = vpop.f32.mrf.mxu0
  %v8822 = vadd.f32 %v8787, %v8821
  %8823 = vdwg.mxu0
  %8824 = vmatpush.msra.mxu0 %v8753
  %8825 = vmatpush.msra.mxu0 %v8752
  %8826 = vmatpush.msra.mxu0 %v8751
  %8827 = vmatpush.msra.mxu0 %v8750
  %8828 = vmatpush.msra.mxu0 %v8749
  %8829 = vmatpush.msra.mxu0 %v8748
  %8830 = vmatpush.msra.mxu0 %v8747
  %8831 = vmatpush.msra.mxu0 %v8746
  %8832 = vmatpush.msra.mxu0 %v8745
  %8833 = vmatpush.msra.mxu0 %v8744
  %8834 = vmatpush.msra.mxu0 %v8743
  %8835 = vmatpush.msra.mxu0 %v8742
  %8836 = vmatpush.msra.mxu0 %v8741
  %8837 = vmatpush.msra.mxu0 %v8740
  %8838 = vmatpush.msra.mxu0 %v8739
  %8839 = vmatpush.msra.mxu0 %v8738
  %8840 = vmatmul.f32.gmra.mxu0 %v8700
  %v8841 = vpop.f32.mrf.mxu0
  %v8842 = vadd.f32 %v8807, %v8841
  %8843 = vmatmul.f32.gmra.mxu0 %v8701
  %v8844 = vpop.f32.mrf.mxu0
  %v8845 = vadd.f32 %v8810, %v8844
  %8846 = vmatmul.f32.gmra.mxu0 %v8702
  %v8847 = vpop.f32.mrf.mxu0
  %v8848 = vadd.f32 %v8813, %v8847
  %8849 = vmatmul.f32.gmra.mxu0 %v8703
  %v8850 = vpop.f32.mrf.mxu0
  %v8851 = vadd.f32 %v8816, %v8850
  %8852 = vmatmul.f32.gmra.mxu0 %v8704
  %v8853 = vpop.f32.mrf.mxu0
  %v8854 = vadd.f32 %v8819, %v8853
  %8855 = vmatmul.f32.gmra.mxu0 %v8705
  %v8856 = vpop.f32.mrf.mxu0
  %v8857 = vadd.f32 %v8822, %v8856
  %8858 = vdwg.mxu0
  %v8859 = vadd.f32 %v8671, %v8842
  %v8860 = vadd.f32 %v8674, %v8845
  %v8861 = vadd.f32 %v8677, %v8848
  %v8862 = vadd.f32 %v8680, %v8851
  %v8863 = vadd.f32 %v8683, %v8854
  %v8864 = vadd.f32 %v8686, %v8857
  %8865 = vst [vmem:[#allocation2] sm:$0xff] %v8859
  %8866 = vst [vmem:[#allocation2 + $0x8] sm:$0xff] %v8860
  %8867 = vst [vmem:[#allocation2 + $0x10] sm:$0xff] %v8861
  %8868 = vst [vmem:[#allocation2 + $0x18] sm:$0xff] %v8862
  %8869 = vst [vmem:[#allocation2 + $0x20] sm:$0xff] %v8863
  %8870 = vst [vmem:[#allocation2 + $0x28] sm:$0x3f] %v8864
  %v8871 = vld [vmem:[#allocation2] ss:$2 sm:$0x7]
  %v8872 = vld [vmem:[%s297] ss:$2 sm:$0x7]
  %v8873 = vld [vmem:[%s1113] ss:$2 sm:$0x7]
  %v8874 = vld [vmem:[%s1115] ss:$2 sm:$0x7]
  %v8875 = vmax.f32 %v8871, %v8872
  %v8876 = vmax.f32 %v8873, %v8874
  %v8877 = vmax.f32 %v8875, %v8876
  %v8878 = vld [vmem:[%s1120] ss:$2 sm:$0x7]
  %v8879 = vld [vmem:[%s299] ss:$2 sm:$0x7]
  %v8880 = vld [vmem:[%s1123] ss:$2 sm:$0x7]
  %v8881 = vld [vmem:[%s1125] ss:$2 sm:$0x7]
  %v8882 = vmax.f32 %v8878, %v8879
  %v8883 = vmax.f32 %v8880, %v8881
  %v8884 = vmax.f32 %v8882, %v8883
  %v8885 = vld [vmem:[%s1130] ss:$2 sm:$0x7]
  %v8886 = vld [vmem:[%s301] ss:$2 sm:$0x7]
  %v8887 = vld [vmem:[%s1133] ss:$2 sm:$0x7]
  %v8888 = vld [vmem:[%s1135] ss:$2 sm:$0x7]
  %v8889 = vmax.f32 %v8885, %v8886
  %v8890 = vmax.f32 %v8887, %v8888
  %v8891 = vmax.f32 %v8889, %v8890
  %v8893 = vrot.slane %v8884, 5
  %v8896 = vrot.slane %v8891, 2
  %v8898 = vsel %vm1146, %v8877, %v8893
  %v8899 = vsel %vm1148, %v8898, %v8896
  %v8900 = vadd.f32 %v8899, %v34
  %v8901 = vadd.f32 %v8896, %v34
  %v8902 = vmax.f32 %v8900, 0.0
  %v8903 = vmax.f32 %v8901, 0.0
  %v8904 = vmul.f32 %v8902, %v36
  %v8905 = vmul.f32 %v8903, %v37
  %v8906 = vsel %vm1156, %v8905, 0.0
  %v8907 = vadd.f32 %v8904, %v8906
  %v8908 = vrot.slane %v8907, 4
  %v8909 = vadd.f32 %v8907, %v8908
  %v8910 = vrot.slane %v8909, 2
  %v8911 = vadd.f32 %v8909, %v8910
  %v8912 = vrot.slane %v8911, 1
  %v8913 = vadd.f32 %v8911, %v8912
  %8914 = vst [vmem:[#allocation4 + $0x7] sm:$0x1] %v8913
  %v8915 = vld [vmem:[#allocation4] sm:$0xff]
  %8916 = vadd.xlane.f32.xlu0 %v8915
  %v8917 = vpop.xlane.xlu0 %8916
  %v8918 = vld [vmem:[#allocation5] sm:$0x1]
  %v8920 = vperm.slane %v8918, 0
  %v8922 = vadd.f32 %v8917, %v8920
  %vm8923 = vcmask 7168
  %8924 = vst.msk [vmem:[%s7] sm:$0xff] %vm8923, %v8922
  // Predicated region
  $region30: #{identicle_forward.1} parent=0 // pred_check
    _
  $region31: #{identicle_forward.1} parent=0 // pred_check_branch
    %8926 = sbr.rel (0) target = $region33
  $region32: #{identicle_forward.1} parent=0 // pred_region
    _
  $region33: #{identicle_forward.1} parent=0 // pred_fallthru
    _
  // Predicated region
  $region34: #{identicle_forward.1} parent=0 // pred_check
    _
  $region35: #{identicle_forward.1} parent=0 // pred_check_branch
    %8928 = sbr.rel (0) target = $region37
  $region36: #{identicle_forward.1} parent=0 // pred_region
    _
  $region37: #{identicle_forward.1} parent=0 // pred_fallthru
    _

</llo_original>
